<compile_context>
chip_gen: v7x
topology: tpu7x:2x2x1
jax: 0.10.0
libtpu: 0.0.40
codegen_flags: <defaults>
</compile_context>

<pallas_src>
import functools

import jax
import jax.numpy as jnp
from jax.experimental import pallas as pl
from jax.experimental.pallas import tpu as pltpu


_TILE_M = 512                       # pixels per tile (lane axis), 128-aligned
_VMEM_LIMIT_BYTES = 32 * 1024 * 1024


# ----------------------------------------------------------------------------
# Pallas kernel: fused (W @ patches) + bias (+ residual) (+ ReLU)
#   operands bf16 on the MXU, f32 accumulate / epilogue.
# ----------------------------------------------------------------------------
def _conv_mm_kernel(p_ref, w_ref, b_ref, *rest, relu, has_res):
    if has_res:
        res_ref, o_ref = rest
    else:
        (o_ref,) = rest
    # (Cout, K) @ (K, tm) -> (Cout, tm), f32 accumulation on the MXU.
    y = jnp.dot(w_ref[...], p_ref[...], preferred_element_type=jnp.float32)
    y = y + b_ref[...]                         # (Cout, 1) broadcasts over lanes
    if has_res:
        y = y + res_ref[...].astype(jnp.float32)
    if relu:
        y = jnp.maximum(y, 0.0)
    o_ref[...] = y.astype(o_ref.dtype)


def _conv_matmul(patches, w_mat, bias, residual, *, relu, out_dtype):
    """patches: (B, K, M) bf16; w_mat: (Cout, K) bf16; bias: (Cout, 1) f32;
    residual: (B, Cout, M) bf16 or None.  Returns (B, Cout, M) out_dtype."""
    B, K, M = patches.shape
    Cout = w_mat.shape[0]

    # Pad the pixel axis to a lane multiple so every block is 128-aligned.
    Mp = max(128, ((M + 127) // 128) * 128)
    if Mp != M:
        patches = jnp.pad(patches, ((0, 0), (0, 0), (0, Mp - M)))
        if residual is not None:
            residual = jnp.pad(residual, ((0, 0), (0, 0), (0, Mp - M)))

    tm = min(_TILE_M, Mp)
    grid = (B, pl.cdiv(Mp, tm))                # ragged last tile is masked
    has_res = residual is not None

    kern = functools.partial(_conv_mm_kernel, relu=relu, has_res=has_res)
    in_specs = [
        pl.BlockSpec((None, K, tm), lambda b, i: (b, 0, i)),   # patches tile
        pl.BlockSpec((Cout, K), lambda b, i: (0, 0)),          # weights (const)
        pl.BlockSpec((Cout, 1), lambda b, i: (0, 0)),          # bias (const)
    ]
    args = [patches, w_mat, bias]
    if has_res:
        in_specs.append(pl.BlockSpec((None, Cout, tm), lambda b, i: (b, 0, i)))
        args.append(residual)

    out_bytes = B * Cout * Mp * jnp.dtype(out_dtype).itemsize
    bytes_acc = (patches.size * patches.dtype.itemsize
                 + w_mat.size * w_mat.dtype.itemsize
                 + bias.size * 4 + out_bytes
                 + (residual.size * residual.dtype.itemsize if has_res else 0))
    cost = pl.CostEstimate(flops=2 * B * Mp * K * Cout,
                           transcendentals=0,
                           bytes_accessed=int(bytes_acc))

    out = pl.pallas_call(
        kern,
        out_shape=jax.ShapeDtypeStruct((B, Cout, Mp), out_dtype),
        grid=grid,
        in_specs=in_specs,
        out_specs=pl.BlockSpec((None, Cout, tm), lambda b, i: (b, 0, i)),
        compiler_params=pltpu.CompilerParams(
            dimension_semantics=("parallel", "parallel"),
            vmem_limit_bytes=_VMEM_LIMIT_BYTES),
        cost_estimate=cost,
    )(*args)
    return out[:, :, :M] if Mp != M else out


# ----------------------------------------------------------------------------
# Patch / weight construction (JAX glue, bf16, stride folded in)
# ----------------------------------------------------------------------------
_TAPS_3x3 = tuple((kh - 1, kw - 1) for kh in range(3) for kw in range(3))


def _tapped_patches(x, taps, stride):
    """x: (B, C, H, W) -> patches (B, T*C, Ho*Wo) bf16 for the given tap offsets.
    Patches are built only for the kept (strided) output pixels."""
    B, C, H, W = x.shape
    s = stride
    Ho = (H - 1) // s + 1
    Wo = (W - 1) // s + 1
    xp = jnp.pad(x, ((0, 0), (0, 0), (1, 1), (1, 1)))
    chunks = []
    for dr, dc in taps:
        r0, c0 = 1 + dr, 1 + dc
        chunks.append(
            xp[:, :, r0:r0 + s * (Ho - 1) + 1:s, c0:c0 + s * (Wo - 1) + 1:s])
    p = jnp.concatenate(chunks, axis=1).astype(jnp.bfloat16)
    return p.reshape(B, len(taps) * C, Ho * Wo), Ho, Wo


def conv3x3(x, wb, *, relu, stride=1, residual=None, out_dtype=jnp.bfloat16):
    """x: (B, Cin, H, W); w: (3,3,Cin,Cout); b: (Cout,).  pad=1, stride 1 or 2."""
    w, b = wb
    B, Cin, H, W = x.shape
    Cout = w.shape[-1]
    patches, Ho, Wo = _tapped_patches(x, _TAPS_3x3, stride)
    w_mat = jnp.transpose(w.reshape(9, Cin, Cout), (2, 0, 1)).reshape(
        Cout, 9 * Cin).astype(jnp.bfloat16)
    bias = b.reshape(Cout, 1).astype(jnp.float32)
    res = None if residual is None else residual.reshape(B, Cout, Ho * Wo)
    y = _conv_matmul(patches, w_mat, bias, res, relu=relu, out_dtype=out_dtype)
    return y.reshape(B, Cout, Ho, Wo)


def resblock(x, p):
    """relu( conv2( relu(conv1(x)) ) + x ); residual add fused into the kernel."""
    (w1, b1), (w2, b2) = p
    h = conv3x3(x, (w1, b1), relu=True)
    return conv3x3(h, (w2, b2), relu=True, residual=x)


# --- decoder: nearest x2 upsample + 3x3 conv via sub-pixel decomposition -----
# kh -> low-res row offset for output phase a (same map for columns / kw, b).
_PHASE_OFF = {0: {0: -1, 1: 0, 2: 0}, 1: {0: 0, 1: 0, 2: 1}}


def _subpixel_weights(w):
    """w: (3,3,Cin,Cout) -> (4*Cout, 9*Cin) merged weights such that a single
    low-res matmul produces all four output phases of 'repeat x2 then conv'."""
    Cin, Cout = w.shape[2], w.shape[3]
    zero = jnp.zeros((Cin, Cout), w.dtype)
    rows = []
    for a in (0, 1):
        for bph in (0, 1):
            acc = [[zero for _ in range(3)] for _ in range(3)]
            for kh in range(3):
                drx = _PHASE_OFF[a][kh] + 1
                for kw in range(3):
                    dcx = _PHASE_OFF[bph][kw] + 1
                    acc[drx][dcx] = acc[drx][dcx] + w[kh, kw]
            wt = jnp.stack([acc[i][j] for i in range(3) for j in range(3)],
                           axis=0)                      # (9, Cin, Cout)
            rows.append(jnp.transpose(wt, (2, 0, 1)).reshape(Cout, 9 * Cin))
    return jnp.concatenate(rows, axis=0)                # (4*Cout, 9*Cin)


def upsample2x_conv3x3(x, wb, *, relu):
    """Equivalent to: nearest x2 upsample, then 3x3 conv (pad 1), then ReLU —
    computed at low resolution (no 4x activation materialized in HBM)."""
    w, b = wb
    B, Cin, H, W = x.shape
    Cout = w.shape[-1]
    patches, Ho, Wo = _tapped_patches(x, _TAPS_3x3, 1)      # 9 low-res taps
    w_mat = _subpixel_weights(w).astype(jnp.bfloat16)       # (4*Cout, 9*Cin)
    bias = jnp.tile(b, 4).reshape(4 * Cout, 1).astype(jnp.float32)
    y = _conv_matmul(patches, w_mat, bias, None, relu=relu,
                     out_dtype=jnp.bfloat16)                # (B, 4*Cout, Ho*Wo)
    y = y.reshape(B, 2, 2, Cout, Ho, Wo)
    y = jnp.transpose(y, (0, 3, 4, 1, 5, 2)).reshape(B, Cout, 2 * Ho, 2 * Wo)
    return y


# ----------------------------------------------------------------------------
# Parameters (deterministic synthetic init)
# ----------------------------------------------------------------------------
def _init_conv(key, cin, cout):
    kw, kb = jax.random.split(key)
    scale = (9.0 * cin) ** -0.5
    w = jax.random.normal(kw, (3, 3, cin, cout), jnp.float32) * scale
    b = jax.random.normal(kb, (cout,), jnp.float32) * 0.01
    return w, b


def init_params(key, in_c, out_c):
    enc_chs = [8, 16, 32, 32, 32]           # stem out, then 4 downsample stages
    dec_chs = [32, 32, 16, 8]               # 4 upsample stages
    params = {}
    idx = [0]

    def nxt():
        idx[0] += 1
        return jax.random.fold_in(key, idx[0])

    params["stem"] = _init_conv(nxt(), in_c, enc_chs[0])
    for i in range(4):
        params[f"down{i}"] = _init_conv(nxt(), enc_chs[i], enc_chs[i + 1])
        params[f"res{i}"] = (
            _init_conv(nxt(), enc_chs[i + 1], enc_chs[i + 1]),
            _init_conv(nxt(), enc_chs[i + 1], enc_chs[i + 1]),
        )
    c = enc_chs[-1]
    for i in range(4):
        params[f"up{i}"] = _init_conv(nxt(), c, dec_chs[i])
        c = dec_chs[i]
    params["head"] = _init_conv(nxt(), c, out_c)
    return params


# ----------------------------------------------------------------------------
# disp_net forward
# ----------------------------------------------------------------------------
def disp_net_forward(x_nchw, params):
    b, c, h_inp, w_inp = x_nchw.shape
    hb = wb = 16                            # down_scales = 2**4
    pad_h = (hb - h_inp % hb) % hb
    pad_w = (wb - w_inp % wb) % wb
    # F.pad(x, [0, pad_w, 0, pad_h], mode='reflect')
    xpad = jnp.pad(x_nchw, ((0, 0), (0, 0), (0, pad_h), (0, pad_w)),
                   mode="reflect")

    f = xpad.astype(jnp.bfloat16)           # activations kept in bf16

    # ---- encoder: stem + 4x (stride-2 conv + residual block) ----
    f = conv3x3(f, params["stem"], relu=True)
    for i in range(4):
        f = conv3x3(f, params[f"down{i}"], relu=True, stride=2)
        f = resblock(f, params[f"res{i}"])

    # ---- decoder: 4x (nearest x2 upsample + conv, fused) + head conv ----
    for i in range(4):
        f = upsample2x_conv3x3(f, params[f"up{i}"], relu=True)
    out = conv3x3(f, params["head"], relu=False, out_dtype=jnp.float32)

    return out[:, :, :h_inp, :w_inp] + xpad[:, 0:1, :h_inp, :w_inp]


# ----------------------------------------------------------------------------
if __name__ == "__main__":
    top_k = 2
    out_c = 1
    B, C, H, W = 2, top_k * 2, 30, 26       # non-multiple of 16 -> exercises pad/crop

    key = jax.random.PRNGKey(0)
    x = jax.random.normal(key, (B, C, H, W), jnp.float32)
    params = init_params(jax.random.PRNGKey(42), C, out_c)

    fwd = jax.jit(lambda xx: disp_net_forward(xx, params))
    out = fwd(x)
    jax.block_until_ready(out)

    assert out.shape == (B, out_c, H, W), out.shape
    assert jnp.all(jnp.isfinite(out))
    print("KERNEL_OK")
</pallas_src>

<mosaic_0001>
module attributes {stable_mosaic.version = 11 : i64} {
  func.func @_conv_mm_kernel(%arg0: i32, %arg1: i32, %arg2: memref<1x36x512xbf16, #tpu.memory_space<vmem>>, %arg3: memref<8x36xbf16, #tpu.memory_space<vmem>>, %arg4: memref<8x1xf32, #tpu.memory_space<vmem>>, %arg5: memref<1x8x512xbf16, #tpu.memory_space<vmem>>) attributes {dimension_semantics = [#tpu.dimension_semantics<parallel>, #tpu.dimension_semantics<parallel>], iteration_bounds = array<i64: 2, 2>, scalar_prefetch = 0 : i64, scratch_operands = 0 : i64, tpu.core_type = #tpu.core_type<tc>, window_params = [{transform_indices = @transform_0, window_bounds = array<i64: 1, 36, 512>}, {pipeline_mode = #tpu.pipeline_mode<synchronous>, transform_indices = @transform_1, window_bounds = array<i64: 8, 36>}, {pipeline_mode = #tpu.pipeline_mode<synchronous>, transform_indices = @transform_2, window_bounds = array<i64: 8, 1>}, {transform_indices = @transform_3, window_bounds = array<i64: 1, 8, 512>}]} {
    %c0 = arith.constant 0 : index
    %c0_0 = arith.constant 0 : index
    %0 = vector.load %arg3[%c0, %c0_0] : memref<8x36xbf16, #tpu.memory_space<vmem>>, vector<8x36xbf16>
    %c0_1 = arith.constant 0 : index
    %c0_2 = arith.constant 0 : index
    %c0_3 = arith.constant 0 : index
    %1 = vector.load %arg2[%c0_1, %c0_2, %c0_3] : memref<1x36x512xbf16, #tpu.memory_space<vmem>>, vector<1x36x512xbf16>
    %2 = vector.shape_cast %1 : vector<1x36x512xbf16> to vector<36x512xbf16>
    %cst = arith.constant dense<0.000000e+00> : vector<8x512xf32>
    %3 = tpu.matmul %0, %2, %cst {dimension_numbers = #tpu.dot_dimension_numbers<[1], [0], [0], [1], [0, 0, 1, 1], [], []>} : vector<8x36xbf16>, vector<36x512xbf16>, vector<8x512xf32> -> vector<8x512xf32>
    %c0_4 = arith.constant 0 : index
    %c0_5 = arith.constant 0 : index
    %4 = vector.load %arg4[%c0_4, %c0_5] : memref<8x1xf32, #tpu.memory_space<vmem>>, vector<8x1xf32>
    %5 = vector.broadcast %4 : vector<8x1xf32> to vector<8x512xf32>
    %6 = arith.addf %3, %5 : vector<8x512xf32>
    %cst_6 = arith.constant 0.000000e+00 : f32
    %7 = vector.broadcast %cst_6 : f32 to vector<8x512xf32>
    %8 = arith.maximumf %6, %7 : vector<8x512xf32>
    %9 = arith.truncf %8 : vector<8x512xf32> to vector<8x512xbf16>
    %c0_7 = arith.constant 0 : index
    %c0_8 = arith.constant 0 : index
    %c0_9 = arith.constant 0 : index
    %10 = vector.load %arg5[%c0_7, %c0_8, %c0_9] : memref<1x8x512xbf16, #tpu.memory_space<vmem>>, vector<1x8x512xbf16>
    %11 = vector.shape_cast %10 : vector<1x8x512xbf16> to vector<8x512xbf16>
    %12 = vector.shape_cast %9 : vector<8x512xbf16> to vector<1x8x512xbf16>
    tpu.vector_store %arg5[%c0_7, %c0_8, %c0_9], %12 {strides = array<i32>} : memref<1x8x512xbf16, #tpu.memory_space<vmem>>, vector<1x8x512xbf16>,
    return
  }
  func.func @transform_0(%arg0: i32, %arg1: i32) -> (i32, i32, i32) {
    %c0_i32 = arith.constant 0 : i32
    %c0_i32_0 = arith.constant 0 : i32
    return %arg0, %c0_i32, %arg1 : i32, i32, i32
  }
  func.func @transform_1(%arg0: i32, %arg1: i32) -> (i32, i32) {
    %c0_i32 = arith.constant 0 : i32
    %c0_i32_0 = arith.constant 0 : i32
    %c0_i32_1 = arith.constant 0 : i32
    return %c0_i32, %c0_i32_0 : i32, i32
  }
  func.func @transform_2(%arg0: i32, %arg1: i32) -> (i32, i32) {
    %c0_i32 = arith.constant 0 : i32
    %c0_i32_0 = arith.constant 0 : i32
    %c0_i32_1 = arith.constant 0 : i32
    return %c0_i32, %c0_i32_0 : i32, i32
  }
  func.func @transform_3(%arg0: i32, %arg1: i32) -> (i32, i32, i32) {
    %c0_i32 = arith.constant 0 : i32
    %c0_i32_0 = arith.constant 0 : i32
    return %arg0, %c0_i32, %arg1 : i32, i32, i32
  }
}

module attributes {stable_mosaic.version = 11 : i64} {
  func.func @_conv_mm_kernel(%arg0: i32, %arg1: i32, %arg2: memref<1x72x256xbf16, #tpu.memory_space<vmem>>, %arg3: memref<16x72xbf16, #tpu.memory_space<vmem>>, %arg4: memref<16x1xf32, #tpu.memory_space<vmem>>, %arg5: memref<1x16x256xbf16, #tpu.memory_space<vmem>>) attributes {dimension_semantics = [#tpu.dimension_semantics<parallel>, #tpu.dimension_semantics<parallel>], iteration_bounds = array<i64: 2, 1>, scalar_prefetch = 0 : i64, scratch_operands = 0 : i64, tpu.core_type = #tpu.core_type<tc>, window_params = [{transform_indices = @transform_0, window_bounds = array<i64: 1, 72, 256>}, {pipeline_mode = #tpu.pipeline_mode<synchronous>, transform_indices = @transform_1, window_bounds = array<i64: 16, 72>}, {pipeline_mode = #tpu.pipeline_mode<synchronous>, transform_indices = @transform_2, window_bounds = array<i64: 16, 1>}, {transform_indices = @transform_3, window_bounds = array<i64: 1, 16, 256>}]} {
    %c0 = arith.constant 0 : index
    %c0_0 = arith.constant 0 : index
    %0 = vector.load %arg3[%c0, %c0_0] : memref<16x72xbf16, #tpu.memory_space<vmem>>, vector<16x72xbf16>
    %c0_1 = arith.constant 0 : index
    %c0_2 = arith.constant 0 : index
    %c0_3 = arith.constant 0 : index
    %1 = vector.load %arg2[%c0_1, %c0_2, %c0_3] : memref<1x72x256xbf16, #tpu.memory_space<vmem>>, vector<1x72x256xbf16>
    %2 = vector.shape_cast %1 : vector<1x72x256xbf16> to vector<72x256xbf16>
    %cst = arith.constant dense<0.000000e+00> : vector<16x256xf32>
    %3 = tpu.matmul %0, %2, %cst {dimension_numbers = #tpu.dot_dimension_numbers<[1], [0], [0], [1], [0, 0, 1, 1], [], []>} : vector<16x72xbf16>, vector<72x256xbf16>, vector<16x256xf32> -> vector<16x256xf32>
    %c0_4 = arith.constant 0 : index
    %c0_5 = arith.constant 0 : index
    %4 = vector.load %arg4[%c0_4, %c0_5] : memref<16x1xf32, #tpu.memory_space<vmem>>, vector<16x1xf32>
    %5 = vector.broadcast %4 : vector<16x1xf32> to vector<16x256xf32>
    %6 = arith.addf %3, %5 : vector<16x256xf32>
    %cst_6 = arith.constant 0.000000e+00 : f32
    %7 = vector.broadcast %cst_6 : f32 to vector<16x256xf32>
    %8 = arith.maximumf %6, %7 : vector<16x256xf32>
    %9 = arith.truncf %8 : vector<16x256xf32> to vector<16x256xbf16>
    %c0_7 = arith.constant 0 : index
    %c0_8 = arith.constant 0 : index
    %c0_9 = arith.constant 0 : index
    %10 = vector.load %arg5[%c0_7, %c0_8, %c0_9] : memref<1x16x256xbf16, #tpu.memory_space<vmem>>, vector<1x16x256xbf16>
    %11 = vector.shape_cast %10 : vector<1x16x256xbf16> to vector<16x256xbf16>
    %12 = vector.shape_cast %9 : vector<16x256xbf16> to vector<1x16x256xbf16>
    tpu.vector_store %arg5[%c0_7, %c0_8, %c0_9], %12 {strides = array<i32>} : memref<1x16x256xbf16, #tpu.memory_space<vmem>>, vector<1x16x256xbf16>,
    return
  }
  func.func @transform_0(%arg0: i32, %arg1: i32) -> (i32, i32, i32) {
    %c0_i32 = arith.constant 0 : i32
    %c0_i32_0 = arith.constant 0 : i32
    return %arg0, %c0_i32, %arg1 : i32, i32, i32
  }
  func.func @transform_1(%arg0: i32, %arg1: i32) -> (i32, i32) {
    %c0_i32 = arith.constant 0 : i32
    %c0_i32_0 = arith.constant 0 : i32
    %c0_i32_1 = arith.constant 0 : i32
    return %c0_i32, %c0_i32_0 : i32, i32
  }
  func.func @transform_2(%arg0: i32, %arg1: i32) -> (i32, i32) {
    %c0_i32 = arith.constant 0 : i32
    %c0_i32_0 = arith.constant 0 : i32
    %c0_i32_1 = arith.constant 0 : i32
    return %c0_i32, %c0_i32_0 : i32, i32
  }
  func.func @transform_3(%arg0: i32, %arg1: i32) -> (i32, i32, i32) {
    %c0_i32 = arith.constant 0 : i32
    %c0_i32_0 = arith.constant 0 : i32
    return %arg0, %c0_i32, %arg1 : i32, i32, i32
  }
}

module attributes {stable_mosaic.version = 11 : i64} {
  func.func @_conv_mm_kernel(%arg0: i32, %arg1: i32, %arg2: memref<1x144x256xbf16, #tpu.memory_space<vmem>>, %arg3: memref<16x144xbf16, #tpu.memory_space<vmem>>, %arg4: memref<16x1xf32, #tpu.memory_space<vmem>>, %arg5: memref<1x16x256xbf16, #tpu.memory_space<vmem>>) attributes {dimension_semantics = [#tpu.dimension_semantics<parallel>, #tpu.dimension_semantics<parallel>], iteration_bounds = array<i64: 2, 1>, scalar_prefetch = 0 : i64, scratch_operands = 0 : i64, tpu.core_type = #tpu.core_type<tc>, window_params = [{transform_indices = @transform_0, window_bounds = array<i64: 1, 144, 256>}, {pipeline_mode = #tpu.pipeline_mode<synchronous>, transform_indices = @transform_1, window_bounds = array<i64: 16, 144>}, {pipeline_mode = #tpu.pipeline_mode<synchronous>, transform_indices = @transform_2, window_bounds = array<i64: 16, 1>}, {transform_indices = @transform_3, window_bounds = array<i64: 1, 16, 256>}]} {
    %c0 = arith.constant 0 : index
    %c0_0 = arith.constant 0 : index
    %0 = vector.load %arg3[%c0, %c0_0] : memref<16x144xbf16, #tpu.memory_space<vmem>>, vector<16x144xbf16>
    %c0_1 = arith.constant 0 : index
    %c0_2 = arith.constant 0 : index
    %c0_3 = arith.constant 0 : index
    %1 = vector.load %arg2[%c0_1, %c0_2, %c0_3] : memref<1x144x256xbf16, #tpu.memory_space<vmem>>, vector<1x144x256xbf16>
    %2 = vector.shape_cast %1 : vector<1x144x256xbf16> to vector<144x256xbf16>
    %cst = arith.constant dense<0.000000e+00> : vector<16x256xf32>
    %3 = tpu.matmul %0, %2, %cst {dimension_numbers = #tpu.dot_dimension_numbers<[1], [0], [0], [1], [0, 0, 1, 1], [], []>} : vector<16x144xbf16>, vector<144x256xbf16>, vector<16x256xf32> -> vector<16x256xf32>
    %c0_4 = arith.constant 0 : index
    %c0_5 = arith.constant 0 : index
    %4 = vector.load %arg4[%c0_4, %c0_5] : memref<16x1xf32, #tpu.memory_space<vmem>>, vector<16x1xf32>
    %5 = vector.broadcast %4 : vector<16x1xf32> to vector<16x256xf32>
    %6 = arith.addf %3, %5 : vector<16x256xf32>
    %cst_6 = arith.constant 0.000000e+00 : f32
    %7 = vector.broadcast %cst_6 : f32 to vector<16x256xf32>
    %8 = arith.maximumf %6, %7 : vector<16x256xf32>
    %9 = arith.truncf %8 : vector<16x256xf32> to vector<16x256xbf16>
    %c0_7 = arith.constant 0 : index
    %c0_8 = arith.constant 0 : index
    %c0_9 = arith.constant 0 : index
    %10 = vector.load %arg5[%c0_7, %c0_8, %c0_9] : memref<1x16x256xbf16, #tpu.memory_space<vmem>>, vector<1x16x256xbf16>
    %11 = vector.shape_cast %10 : vector<1x16x256xbf16> to vector<16x256xbf16>
    %12 = vector.shape_cast %9 : vector<16x256xbf16> to vector<1x16x256xbf16>
    tpu.vector_store %arg5[%c0_7, %c0_8, %c0_9], %12 {strides = array<i32>} : memref<1x16x256xbf16, #tpu.memory_space<vmem>>, vector<1x16x256xbf16>,
    return
  }
  func.func @transform_0(%arg0: i32, %arg1: i32) -> (i32, i32, i32) {
    %c0_i32 = arith.constant 0 : i32
    %c0_i32_0 = arith.constant 0 : i32
    return %arg0, %c0_i32, %arg1 : i32, i32, i32
  }
  func.func @transform_1(%arg0: i32, %arg1: i32) -> (i32, i32) {
    %c0_i32 = arith.constant 0 : i32
    %c0_i32_0 = arith.constant 0 : i32
    %c0_i32_1 = arith.constant 0 : i32
    return %c0_i32, %c0_i32_0 : i32, i32
  }
  func.func @transform_2(%arg0: i32, %arg1: i32) -> (i32, i32) {
    %c0_i32 = arith.constant 0 : i32
    %c0_i32_0 = arith.constant 0 : i32
    %c0_i32_1 = arith.constant 0 : i32
    return %c0_i32, %c0_i32_0 : i32, i32
  }
  func.func @transform_3(%arg0: i32, %arg1: i32) -> (i32, i32, i32) {
    %c0_i32 = arith.constant 0 : i32
    %c0_i32_0 = arith.constant 0 : i32
    return %arg0, %c0_i32, %arg1 : i32, i32, i32
  }
}

module attributes {stable_mosaic.version = 11 : i64} {
  func.func @_conv_mm_kernel(%arg0: i32, %arg1: i32, %arg2: memref<1x144x256xbf16, #tpu.memory_space<vmem>>, %arg3: memref<16x144xbf16, #tpu.memory_space<vmem>>, %arg4: memref<16x1xf32, #tpu.memory_space<vmem>>, %arg5: memref<1x16x256xbf16, #tpu.memory_space<vmem>>, %arg6: memref<1x16x256xbf16, #tpu.memory_space<vmem>>) attributes {dimension_semantics = [#tpu.dimension_semantics<parallel>, #tpu.dimension_semantics<parallel>], iteration_bounds = array<i64: 2, 1>, scalar_prefetch = 0 : i64, scratch_operands = 0 : i64, tpu.core_type = #tpu.core_type<tc>, window_params = [{transform_indices = @transform_0, window_bounds = array<i64: 1, 144, 256>}, {pipeline_mode = #tpu.pipeline_mode<synchronous>, transform_indices = @transform_1, window_bounds = array<i64: 16, 144>}, {pipeline_mode = #tpu.pipeline_mode<synchronous>, transform_indices = @transform_2, window_bounds = array<i64: 16, 1>}, {transform_indices = @transform_3, window_bounds = array<i64: 1, 16, 256>}, {transform_indices = @transform_4, window_bounds = array<i64: 1, 16, 256>}]} {
    %c0 = arith.constant 0 : index
    %c0_0 = arith.constant 0 : index
    %0 = vector.load %arg3[%c0, %c0_0] : memref<16x144xbf16, #tpu.memory_space<vmem>>, vector<16x144xbf16>
    %c0_1 = arith.constant 0 : index
    %c0_2 = arith.constant 0 : index
    %c0_3 = arith.constant 0 : index
    %1 = vector.load %arg2[%c0_1, %c0_2, %c0_3] : memref<1x144x256xbf16, #tpu.memory_space<vmem>>, vector<1x144x256xbf16>
    %2 = vector.shape_cast %1 : vector<1x144x256xbf16> to vector<144x256xbf16>
    %cst = arith.constant dense<0.000000e+00> : vector<16x256xf32>
    %3 = tpu.matmul %0, %2, %cst {dimension_numbers = #tpu.dot_dimension_numbers<[1], [0], [0], [1], [0, 0, 1, 1], [], []>} : vector<16x144xbf16>, vector<144x256xbf16>, vector<16x256xf32> -> vector<16x256xf32>
    %c0_4 = arith.constant 0 : index
    %c0_5 = arith.constant 0 : index
    %4 = vector.load %arg4[%c0_4, %c0_5] : memref<16x1xf32, #tpu.memory_space<vmem>>, vector<16x1xf32>
    %5 = vector.broadcast %4 : vector<16x1xf32> to vector<16x256xf32>
    %6 = arith.addf %3, %5 : vector<16x256xf32>
    %c0_6 = arith.constant 0 : index
    %c0_7 = arith.constant 0 : index
    %c0_8 = arith.constant 0 : index
    %7 = vector.load %arg5[%c0_6, %c0_7, %c0_8] : memref<1x16x256xbf16, #tpu.memory_space<vmem>>, vector<1x16x256xbf16>
    %8 = vector.shape_cast %7 : vector<1x16x256xbf16> to vector<16x256xbf16>
    %9 = arith.extf %8 : vector<16x256xbf16> to vector<16x256xf32>
    %10 = arith.addf %6, %9 : vector<16x256xf32>
    %cst_9 = arith.constant 0.000000e+00 : f32
    %11 = vector.broadcast %cst_9 : f32 to vector<16x256xf32>
    %12 = arith.maximumf %10, %11 : vector<16x256xf32>
    %13 = arith.truncf %12 : vector<16x256xf32> to vector<16x256xbf16>
    %c0_10 = arith.constant 0 : index
    %c0_11 = arith.constant 0 : index
    %c0_12 = arith.constant 0 : index
    %14 = vector.load %arg6[%c0_10, %c0_11, %c0_12] : memref<1x16x256xbf16, #tpu.memory_space<vmem>>, vector<1x16x256xbf16>
    %15 = vector.shape_cast %14 : vector<1x16x256xbf16> to vector<16x256xbf16>
    %16 = vector.shape_cast %13 : vector<16x256xbf16> to vector<1x16x256xbf16>
    tpu.vector_store %arg6[%c0_10, %c0_11, %c0_12], %16 {strides = array<i32>} : memref<1x16x256xbf16, #tpu.memory_space<vmem>>, vector<1x16x256xbf16>,
    return
  }
  func.func @transform_0(%arg0: i32, %arg1: i32) -> (i32, i32, i32) {
    %c0_i32 = arith.constant 0 : i32
    %c0_i32_0 = arith.constant 0 : i32
    return %arg0, %c0_i32, %arg1 : i32, i32, i32
  }
  func.func @transform_1(%arg0: i32, %arg1: i32) -> (i32, i32) {
    %c0_i32 = arith.constant 0 : i32
    %c0_i32_0 = arith.constant 0 : i32
    %c0_i32_1 = arith.constant 0 : i32
    return %c0_i32, %c0_i32_0 : i32, i32
  }
  func.func @transform_2(%arg0: i32, %arg1: i32) -> (i32, i32) {
    %c0_i32 = arith.constant 0 : i32
    %c0_i32_0 = arith.constant 0 : i32
    %c0_i32_1 = arith.constant 0 : i32
    return %c0_i32, %c0_i32_0 : i32, i32
  }
  func.func @transform_3(%arg0: i32, %arg1: i32) -> (i32, i32, i32) {
    %c0_i32 = arith.constant 0 : i32
    %c0_i32_0 = arith.constant 0 : i32
    return %arg0, %c0_i32, %arg1 : i32, i32, i32
  }
  func.func @transform_4(%arg0: i32, %arg1: i32) -> (i32, i32, i32) {
    %c0_i32 = arith.constant 0 : i32
    %c0_i32_0 = arith.constant 0 : i32
    return %arg0, %c0_i32, %arg1 : i32, i32, i32
  }
}

module attributes {stable_mosaic.version = 11 : i64} {
  func.func @_conv_mm_kernel(%arg0: i32, %arg1: i32, %arg2: memref<1x144x128xbf16, #tpu.memory_space<vmem>>, %arg3: memref<32x144xbf16, #tpu.memory_space<vmem>>, %arg4: memref<32x1xf32, #tpu.memory_space<vmem>>, %arg5: memref<1x32x128xbf16, #tpu.memory_space<vmem>>) attributes {dimension_semantics = [#tpu.dimension_semantics<parallel>, #tpu.dimension_semantics<parallel>], iteration_bounds = array<i64: 2, 1>, scalar_prefetch = 0 : i64, scratch_operands = 0 : i64, tpu.core_type = #tpu.core_type<tc>, window_params = [{transform_indices = @transform_0, window_bounds = array<i64: 1, 144, 128>}, {pipeline_mode = #tpu.pipeline_mode<synchronous>, transform_indices = @transform_1, window_bounds = array<i64: 32, 144>}, {pipeline_mode = #tpu.pipeline_mode<synchronous>, transform_indices = @transform_2, window_bounds = array<i64: 32, 1>}, {transform_indices = @transform_3, window_bounds = array<i64: 1, 32, 128>}]} {
    %c0 = arith.constant 0 : index
    %c0_0 = arith.constant 0 : index
    %0 = vector.load %arg3[%c0, %c0_0] : memref<32x144xbf16, #tpu.memory_space<vmem>>, vector<32x144xbf16>
    %c0_1 = arith.constant 0 : index
    %c0_2 = arith.constant 0 : index
    %c0_3 = arith.constant 0 : index
    %1 = vector.load %arg2[%c0_1, %c0_2, %c0_3] : memref<1x144x128xbf16, #tpu.memory_space<vmem>>, vector<1x144x128xbf16>
    %2 = vector.shape_cast %1 : vector<1x144x128xbf16> to vector<144x128xbf16>
    %cst = arith.constant dense<0.000000e+00> : vector<32x128xf32>
    %3 = tpu.matmul %0, %2, %cst {dimension_numbers = #tpu.dot_dimension_numbers<[1], [0], [0], [1], [0, 0, 1, 1], [], []>} : vector<32x144xbf16>, vector<144x128xbf16>, vector<32x128xf32> -> vector<32x128xf32>
    %c0_4 = arith.constant 0 : index
    %c0_5 = arith.constant 0 : index
    %4 = vector.load %arg4[%c0_4, %c0_5] : memref<32x1xf32, #tpu.memory_space<vmem>>, vector<32x1xf32>
    %5 = vector.broadcast %4 : vector<32x1xf32> to vector<32x128xf32>
    %6 = arith.addf %3, %5 : vector<32x128xf32>
    %cst_6 = arith.constant 0.000000e+00 : f32
    %7 = vector.broadcast %cst_6 : f32 to vector<32x128xf32>
    %8 = arith.maximumf %6, %7 : vector<32x128xf32>
    %9 = arith.truncf %8 : vector<32x128xf32> to vector<32x128xbf16>
    %c0_7 = arith.constant 0 : index
    %c0_8 = arith.constant 0 : index
    %c0_9 = arith.constant 0 : index
    %10 = vector.load %arg5[%c0_7, %c0_8, %c0_9] : memref<1x32x128xbf16, #tpu.memory_space<vmem>>, vector<1x32x128xbf16>
    %11 = vector.shape_cast %10 : vector<1x32x128xbf16> to vector<32x128xbf16>
    %12 = vector.shape_cast %9 : vector<32x128xbf16> to vector<1x32x128xbf16>
    tpu.vector_store %arg5[%c0_7, %c0_8, %c0_9], %12 {strides = array<i32>} : memref<1x32x128xbf16, #tpu.memory_space<vmem>>, vector<1x32x128xbf16>,
    return
  }
  func.func @transform_0(%arg0: i32, %arg1: i32) -> (i32, i32, i32) {
    %c0_i32 = arith.constant 0 : i32
    %c0_i32_0 = arith.constant 0 : i32
    return %arg0, %c0_i32, %arg1 : i32, i32, i32
  }
  func.func @transform_1(%arg0: i32, %arg1: i32) -> (i32, i32) {
    %c0_i32 = arith.constant 0 : i32
    %c0_i32_0 = arith.constant 0 : i32
    %c0_i32_1 = arith.constant 0 : i32
    return %c0_i32, %c0_i32_0 : i32, i32
  }
  func.func @transform_2(%arg0: i32, %arg1: i32) -> (i32, i32) {
    %c0_i32 = arith.constant 0 : i32
    %c0_i32_0 = arith.constant 0 : i32
    %c0_i32_1 = arith.constant 0 : i32
    return %c0_i32, %c0_i32_0 : i32, i32
  }
  func.func @transform_3(%arg0: i32, %arg1: i32) -> (i32, i32, i32) {
    %c0_i32 = arith.constant 0 : i32
    %c0_i32_0 = arith.constant 0 : i32
    return %arg0, %c0_i32, %arg1 : i32, i32, i32
  }
}

module attributes {stable_mosaic.version = 11 : i64} {
  func.func @_conv_mm_kernel(%arg0: i32, %arg1: i32, %arg2: memref<1x288x128xbf16, #tpu.memory_space<vmem>>, %arg3: memref<32x288xbf16, #tpu.memory_space<vmem>>, %arg4: memref<32x1xf32, #tpu.memory_space<vmem>>, %arg5: memref<1x32x128xbf16, #tpu.memory_space<vmem>>) attributes {dimension_semantics = [#tpu.dimension_semantics<parallel>, #tpu.dimension_semantics<parallel>], iteration_bounds = array<i64: 2, 1>, scalar_prefetch = 0 : i64, scratch_operands = 0 : i64, tpu.core_type = #tpu.core_type<tc>, window_params = [{transform_indices = @transform_0, window_bounds = array<i64: 1, 288, 128>}, {pipeline_mode = #tpu.pipeline_mode<synchronous>, transform_indices = @transform_1, window_bounds = array<i64: 32, 288>}, {pipeline_mode = #tpu.pipeline_mode<synchronous>, transform_indices = @transform_2, window_bounds = array<i64: 32, 1>}, {transform_indices = @transform_3, window_bounds = array<i64: 1, 32, 128>}]} {
    %c0 = arith.constant 0 : index
    %c0_0 = arith.constant 0 : index
    %0 = vector.load %arg3[%c0, %c0_0] : memref<32x288xbf16, #tpu.memory_space<vmem>>, vector<32x288xbf16>
    %c0_1 = arith.constant 0 : index
    %c0_2 = arith.constant 0 : index
    %c0_3 = arith.constant 0 : index
    %1 = vector.load %arg2[%c0_1, %c0_2, %c0_3] : memref<1x288x128xbf16, #tpu.memory_space<vmem>>, vector<1x288x128xbf16>
    %2 = vector.shape_cast %1 : vector<1x288x128xbf16> to vector<288x128xbf16>
    %cst = arith.constant dense<0.000000e+00> : vector<32x128xf32>
    %3 = tpu.matmul %0, %2, %cst {dimension_numbers = #tpu.dot_dimension_numbers<[1], [0], [0], [1], [0, 0, 1, 1], [], []>} : vector<32x288xbf16>, vector<288x128xbf16>, vector<32x128xf32> -> vector<32x128xf32>
    %c0_4 = arith.constant 0 : index
    %c0_5 = arith.constant 0 : index
    %4 = vector.load %arg4[%c0_4, %c0_5] : memref<32x1xf32, #tpu.memory_space<vmem>>, vector<32x1xf32>
    %5 = vector.broadcast %4 : vector<32x1xf32> to vector<32x128xf32>
    %6 = arith.addf %3, %5 : vector<32x128xf32>
    %cst_6 = arith.constant 0.000000e+00 : f32
    %7 = vector.broadcast %cst_6 : f32 to vector<32x128xf32>
    %8 = arith.maximumf %6, %7 : vector<32x128xf32>
    %9 = arith.truncf %8 : vector<32x128xf32> to vector<32x128xbf16>
    %c0_7 = arith.constant 0 : index
    %c0_8 = arith.constant 0 : index
    %c0_9 = arith.constant 0 : index
    %10 = vector.load %arg5[%c0_7, %c0_8, %c0_9] : memref<1x32x128xbf16, #tpu.memory_space<vmem>>, vector<1x32x128xbf16>
    %11 = vector.shape_cast %10 : vector<1x32x128xbf16> to vector<32x128xbf16>
    %12 = vector.shape_cast %9 : vector<32x128xbf16> to vector<1x32x128xbf16>
    tpu.vector_store %arg5[%c0_7, %c0_8, %c0_9], %12 {strides = array<i32>} : memref<1x32x128xbf16, #tpu.memory_space<vmem>>, vector<1x32x128xbf16>,
    return
  }
  func.func @transform_0(%arg0: i32, %arg1: i32) -> (i32, i32, i32) {
    %c0_i32 = arith.constant 0 : i32
    %c0_i32_0 = arith.constant 0 : i32
    return %arg0, %c0_i32, %arg1 : i32, i32, i32
  }
  func.func @transform_1(%arg0: i32, %arg1: i32) -> (i32, i32) {
    %c0_i32 = arith.constant 0 : i32
    %c0_i32_0 = arith.constant 0 : i32
    %c0_i32_1 = arith.constant 0 : i32
    return %c0_i32, %c0_i32_0 : i32, i32
  }
  func.func @transform_2(%arg0: i32, %arg1: i32) -> (i32, i32) {
    %c0_i32 = arith.constant 0 : i32
    %c0_i32_0 = arith.constant 0 : i32
    %c0_i32_1 = arith.constant 0 : i32
    return %c0_i32, %c0_i32_0 : i32, i32
  }
  func.func @transform_3(%arg0: i32, %arg1: i32) -> (i32, i32, i32) {
    %c0_i32 = arith.constant 0 : i32
    %c0_i32_0 = arith.constant 0 : i32
    return %arg0, %c0_i32, %arg1 : i32, i32, i32
  }
}

module attributes {stable_mosaic.version = 11 : i64} {
  func.func @_conv_mm_kernel(%arg0: i32, %arg1: i32, %arg2: memref<1x288x128xbf16, #tpu.memory_space<vmem>>, %arg3: memref<32x288xbf16, #tpu.memory_space<vmem>>, %arg4: memref<32x1xf32, #tpu.memory_space<vmem>>, %arg5: memref<1x32x128xbf16, #tpu.memory_space<vmem>>, %arg6: memref<1x32x128xbf16, #tpu.memory_space<vmem>>) attributes {dimension_semantics = [#tpu.dimension_semantics<parallel>, #tpu.dimension_semantics<parallel>], iteration_bounds = array<i64: 2, 1>, scalar_prefetch = 0 : i64, scratch_operands = 0 : i64, tpu.core_type = #tpu.core_type<tc>, window_params = [{transform_indices = @transform_0, window_bounds = array<i64: 1, 288, 128>}, {pipeline_mode = #tpu.pipeline_mode<synchronous>, transform_indices = @transform_1, window_bounds = array<i64: 32, 288>}, {pipeline_mode = #tpu.pipeline_mode<synchronous>, transform_indices = @transform_2, window_bounds = array<i64: 32, 1>}, {transform_indices = @transform_3, window_bounds = array<i64: 1, 32, 128>}, {transform_indices = @transform_4, window_bounds = array<i64: 1, 32, 128>}]} {
    %c0 = arith.constant 0 : index
    %c0_0 = arith.constant 0 : index
    %0 = vector.load %arg3[%c0, %c0_0] : memref<32x288xbf16, #tpu.memory_space<vmem>>, vector<32x288xbf16>
    %c0_1 = arith.constant 0 : index
    %c0_2 = arith.constant 0 : index
    %c0_3 = arith.constant 0 : index
    %1 = vector.load %arg2[%c0_1, %c0_2, %c0_3] : memref<1x288x128xbf16, #tpu.memory_space<vmem>>, vector<1x288x128xbf16>
    %2 = vector.shape_cast %1 : vector<1x288x128xbf16> to vector<288x128xbf16>
    %cst = arith.constant dense<0.000000e+00> : vector<32x128xf32>
    %3 = tpu.matmul %0, %2, %cst {dimension_numbers = #tpu.dot_dimension_numbers<[1], [0], [0], [1], [0, 0, 1, 1], [], []>} : vector<32x288xbf16>, vector<288x128xbf16>, vector<32x128xf32> -> vector<32x128xf32>
    %c0_4 = arith.constant 0 : index
    %c0_5 = arith.constant 0 : index
    %4 = vector.load %arg4[%c0_4, %c0_5] : memref<32x1xf32, #tpu.memory_space<vmem>>, vector<32x1xf32>
    %5 = vector.broadcast %4 : vector<32x1xf32> to vector<32x128xf32>
    %6 = arith.addf %3, %5 : vector<32x128xf32>
    %c0_6 = arith.constant 0 : index
    %c0_7 = arith.constant 0 : index
    %c0_8 = arith.constant 0 : index
    %7 = vector.load %arg5[%c0_6, %c0_7, %c0_8] : memref<1x32x128xbf16, #tpu.memory_space<vmem>>, vector<1x32x128xbf16>
    %8 = vector.shape_cast %7 : vector<1x32x128xbf16> to vector<32x128xbf16>
    %9 = arith.extf %8 : vector<32x128xbf16> to vector<32x128xf32>
    %10 = arith.addf %6, %9 : vector<32x128xf32>
    %cst_9 = arith.constant 0.000000e+00 : f32
    %11 = vector.broadcast %cst_9 : f32 to vector<32x128xf32>
    %12 = arith.maximumf %10, %11 : vector<32x128xf32>
    %13 = arith.truncf %12 : vector<32x128xf32> to vector<32x128xbf16>
    %c0_10 = arith.constant 0 : index
    %c0_11 = arith.constant 0 : index
    %c0_12 = arith.constant 0 : index
    %14 = vector.load %arg6[%c0_10, %c0_11, %c0_12] : memref<1x32x128xbf16, #tpu.memory_space<vmem>>, vector<1x32x128xbf16>
    %15 = vector.shape_cast %14 : vector<1x32x128xbf16> to vector<32x128xbf16>
    %16 = vector.shape_cast %13 : vector<32x128xbf16> to vector<1x32x128xbf16>
    tpu.vector_store %arg6[%c0_10, %c0_11, %c0_12], %16 {strides = array<i32>} : memref<1x32x128xbf16, #tpu.memory_space<vmem>>, vector<1x32x128xbf16>,
    return
  }
  func.func @transform_0(%arg0: i32, %arg1: i32) -> (i32, i32, i32) {
    %c0_i32 = arith.constant 0 : i32
    %c0_i32_0 = arith.constant 0 : i32
    return %arg0, %c0_i32, %arg1 : i32, i32, i32
  }
  func.func @transform_1(%arg0: i32, %arg1: i32) -> (i32, i32) {
    %c0_i32 = arith.constant 0 : i32
    %c0_i32_0 = arith.constant 0 : i32
    %c0_i32_1 = arith.constant 0 : i32
    return %c0_i32, %c0_i32_0 : i32, i32
  }
  func.func @transform_2(%arg0: i32, %arg1: i32) -> (i32, i32) {
    %c0_i32 = arith.constant 0 : i32
    %c0_i32_0 = arith.constant 0 : i32
    %c0_i32_1 = arith.constant 0 : i32
    return %c0_i32, %c0_i32_0 : i32, i32
  }
  func.func @transform_3(%arg0: i32, %arg1: i32) -> (i32, i32, i32) {
    %c0_i32 = arith.constant 0 : i32
    %c0_i32_0 = arith.constant 0 : i32
    return %arg0, %c0_i32, %arg1 : i32, i32, i32
  }
  func.func @transform_4(%arg0: i32, %arg1: i32) -> (i32, i32, i32) {
    %c0_i32 = arith.constant 0 : i32
    %c0_i32_0 = arith.constant 0 : i32
    return %arg0, %c0_i32, %arg1 : i32, i32, i32
  }
}

module attributes {stable_mosaic.version = 11 : i64} {
  func.func @_conv_mm_kernel(%arg0: i32, %arg1: i32, %arg2: memref<1x288x128xbf16, #tpu.memory_space<vmem>>, %arg3: memref<128x288xbf16, #tpu.memory_space<vmem>>, %arg4: memref<128x1xf32, #tpu.memory_space<vmem>>, %arg5: memref<1x128x128xbf16, #tpu.memory_space<vmem>>) attributes {dimension_semantics = [#tpu.dimension_semantics<parallel>, #tpu.dimension_semantics<parallel>], iteration_bounds = array<i64: 2, 1>, scalar_prefetch = 0 : i64, scratch_operands = 0 : i64, tpu.core_type = #tpu.core_type<tc>, window_params = [{transform_indices = @transform_0, window_bounds = array<i64: 1, 288, 128>}, {pipeline_mode = #tpu.pipeline_mode<synchronous>, transform_indices = @transform_1, window_bounds = array<i64: 128, 288>}, {pipeline_mode = #tpu.pipeline_mode<synchronous>, transform_indices = @transform_2, window_bounds = array<i64: 128, 1>}, {transform_indices = @transform_3, window_bounds = array<i64: 1, 128, 128>}]} {
    %c0 = arith.constant 0 : index
    %c0_0 = arith.constant 0 : index
    %0 = vector.load %arg3[%c0, %c0_0] : memref<128x288xbf16, #tpu.memory_space<vmem>>, vector<128x288xbf16>
    %c0_1 = arith.constant 0 : index
    %c0_2 = arith.constant 0 : index
    %c0_3 = arith.constant 0 : index
    %1 = vector.load %arg2[%c0_1, %c0_2, %c0_3] : memref<1x288x128xbf16, #tpu.memory_space<vmem>>, vector<1x288x128xbf16>
    %2 = vector.shape_cast %1 : vector<1x288x128xbf16> to vector<288x128xbf16>
    %cst = arith.constant dense<0.000000e+00> : vector<128x128xf32>
    %3 = tpu.matmul %0, %2, %cst {dimension_numbers = #tpu.dot_dimension_numbers<[1], [0], [0], [1], [0, 0, 1, 1], [], []>} : vector<128x288xbf16>, vector<288x128xbf16>, vector<128x128xf32> -> vector<128x128xf32>
    %c0_4 = arith.constant 0 : index
    %c0_5 = arith.constant 0 : index
    %4 = vector.load %arg4[%c0_4, %c0_5] : memref<128x1xf32, #tpu.memory_space<vmem>>, vector<128x1xf32>
    %5 = vector.broadcast %4 : vector<128x1xf32> to vector<128x128xf32>
    %6 = arith.addf %3, %5 : vector<128x128xf32>
    %cst_6 = arith.constant 0.000000e+00 : f32
    %7 = vector.broadcast %cst_6 : f32 to vector<128x128xf32>
    %8 = arith.maximumf %6, %7 : vector<128x128xf32>
    %9 = arith.truncf %8 : vector<128x128xf32> to vector<128x128xbf16>
    %c0_7 = arith.constant 0 : index
    %c0_8 = arith.constant 0 : index
    %c0_9 = arith.constant 0 : index
    %10 = vector.load %arg5[%c0_7, %c0_8, %c0_9] : memref<1x128x128xbf16, #tpu.memory_space<vmem>>, vector<1x128x128xbf16>
    %11 = vector.shape_cast %10 : vector<1x128x128xbf16> to vector<128x128xbf16>
    %12 = vector.shape_cast %9 : vector<128x128xbf16> to vector<1x128x128xbf16>
    tpu.vector_store %arg5[%c0_7, %c0_8, %c0_9], %12 {strides = array<i32>} : memref<1x128x128xbf16, #tpu.memory_space<vmem>>, vector<1x128x128xbf16>,
    return
  }
  func.func @transform_0(%arg0: i32, %arg1: i32) -> (i32, i32, i32) {
    %c0_i32 = arith.constant 0 : i32
    %c0_i32_0 = arith.constant 0 : i32
    return %arg0, %c0_i32, %arg1 : i32, i32, i32
  }
  func.func @transform_1(%arg0: i32, %arg1: i32) -> (i32, i32) {
    %c0_i32 = arith.constant 0 : i32
    %c0_i32_0 = arith.constant 0 : i32
    %c0_i32_1 = arith.constant 0 : i32
    return %c0_i32, %c0_i32_0 : i32, i32
  }
  func.func @transform_2(%arg0: i32, %arg1: i32) -> (i32, i32) {
    %c0_i32 = arith.constant 0 : i32
    %c0_i32_0 = arith.constant 0 : i32
    %c0_i32_1 = arith.constant 0 : i32
    return %c0_i32, %c0_i32_0 : i32, i32
  }
  func.func @transform_3(%arg0: i32, %arg1: i32) -> (i32, i32, i32) {
    %c0_i32 = arith.constant 0 : i32
    %c0_i32_0 = arith.constant 0 : i32
    return %arg0, %c0_i32, %arg1 : i32, i32, i32
  }
}

module attributes {stable_mosaic.version = 11 : i64} {
  func.func @_conv_mm_kernel(%arg0: i32, %arg1: i32, %arg2: memref<1x288x128xbf16, #tpu.memory_space<vmem>>, %arg3: memref<64x288xbf16, #tpu.memory_space<vmem>>, %arg4: memref<64x1xf32, #tpu.memory_space<vmem>>, %arg5: memref<1x64x128xbf16, #tpu.memory_space<vmem>>) attributes {dimension_semantics = [#tpu.dimension_semantics<parallel>, #tpu.dimension_semantics<parallel>], iteration_bounds = array<i64: 2, 1>, scalar_prefetch = 0 : i64, scratch_operands = 0 : i64, tpu.core_type = #tpu.core_type<tc>, window_params = [{transform_indices = @transform_0, window_bounds = array<i64: 1, 288, 128>}, {pipeline_mode = #tpu.pipeline_mode<synchronous>, transform_indices = @transform_1, window_bounds = array<i64: 64, 288>}, {pipeline_mode = #tpu.pipeline_mode<synchronous>, transform_indices = @transform_2, window_bounds = array<i64: 64, 1>}, {transform_indices = @transform_3, window_bounds = array<i64: 1, 64, 128>}]} {
    %c0 = arith.constant 0 : index
    %c0_0 = arith.constant 0 : index
    %0 = vector.load %arg3[%c0, %c0_0] : memref<64x288xbf16, #tpu.memory_space<vmem>>, vector<64x288xbf16>
    %c0_1 = arith.constant 0 : index
    %c0_2 = arith.constant 0 : index
    %c0_3 = arith.constant 0 : index
    %1 = vector.load %arg2[%c0_1, %c0_2, %c0_3] : memref<1x288x128xbf16, #tpu.memory_space<vmem>>, vector<1x288x128xbf16>
    %2 = vector.shape_cast %1 : vector<1x288x128xbf16> to vector<288x128xbf16>
    %cst = arith.constant dense<0.000000e+00> : vector<64x128xf32>
    %3 = tpu.matmul %0, %2, %cst {dimension_numbers = #tpu.dot_dimension_numbers<[1], [0], [0], [1], [0, 0, 1, 1], [], []>} : vector<64x288xbf16>, vector<288x128xbf16>, vector<64x128xf32> -> vector<64x128xf32>
    %c0_4 = arith.constant 0 : index
    %c0_5 = arith.constant 0 : index
    %4 = vector.load %arg4[%c0_4, %c0_5] : memref<64x1xf32, #tpu.memory_space<vmem>>, vector<64x1xf32>
    %5 = vector.broadcast %4 : vector<64x1xf32> to vector<64x128xf32>
    %6 = arith.addf %3, %5 : vector<64x128xf32>
    %cst_6 = arith.constant 0.000000e+00 : f32
    %7 = vector.broadcast %cst_6 : f32 to vector<64x128xf32>
    %8 = arith.maximumf %6, %7 : vector<64x128xf32>
    %9 = arith.truncf %8 : vector<64x128xf32> to vector<64x128xbf16>
    %c0_7 = arith.constant 0 : index
    %c0_8 = arith.constant 0 : index
    %c0_9 = arith.constant 0 : index
    %10 = vector.load %arg5[%c0_7, %c0_8, %c0_9] : memref<1x64x128xbf16, #tpu.memory_space<vmem>>, vector<1x64x128xbf16>
    %11 = vector.shape_cast %10 : vector<1x64x128xbf16> to vector<64x128xbf16>
    %12 = vector.shape_cast %9 : vector<64x128xbf16> to vector<1x64x128xbf16>
    tpu.vector_store %arg5[%c0_7, %c0_8, %c0_9], %12 {strides = array<i32>} : memref<1x64x128xbf16, #tpu.memory_space<vmem>>, vector<1x64x128xbf16>,
    return
  }
  func.func @transform_0(%arg0: i32, %arg1: i32) -> (i32, i32, i32) {
    %c0_i32 = arith.constant 0 : i32
    %c0_i32_0 = arith.constant 0 : i32
    return %arg0, %c0_i32, %arg1 : i32, i32, i32
  }
  func.func @transform_1(%arg0: i32, %arg1: i32) -> (i32, i32) {
    %c0_i32 = arith.constant 0 : i32
    %c0_i32_0 = arith.constant 0 : i32
    %c0_i32_1 = arith.constant 0 : i32
    return %c0_i32, %c0_i32_0 : i32, i32
  }
  func.func @transform_2(%arg0: i32, %arg1: i32) -> (i32, i32) {
    %c0_i32 = arith.constant 0 : i32
    %c0_i32_0 = arith.constant 0 : i32
    %c0_i32_1 = arith.constant 0 : i32
    return %c0_i32, %c0_i32_0 : i32, i32
  }
  func.func @transform_3(%arg0: i32, %arg1: i32) -> (i32, i32, i32) {
    %c0_i32 = arith.constant 0 : i32
    %c0_i32_0 = arith.constant 0 : i32
    return %arg0, %c0_i32, %arg1 : i32, i32, i32
  }
}

module attributes {stable_mosaic.version = 11 : i64} {
  func.func @_conv_mm_kernel(%arg0: i32, %arg1: i32, %arg2: memref<1x144x256xbf16, #tpu.memory_space<vmem>>, %arg3: memref<32x144xbf16, #tpu.memory_space<vmem>>, %arg4: memref<32x1xf32, #tpu.memory_space<vmem>>, %arg5: memref<1x32x256xbf16, #tpu.memory_space<vmem>>) attributes {dimension_semantics = [#tpu.dimension_semantics<parallel>, #tpu.dimension_semantics<parallel>], iteration_bounds = array<i64: 2, 1>, scalar_prefetch = 0 : i64, scratch_operands = 0 : i64, tpu.core_type = #tpu.core_type<tc>, window_params = [{transform_indices = @transform_0, window_bounds = array<i64: 1, 144, 256>}, {pipeline_mode = #tpu.pipeline_mode<synchronous>, transform_indices = @transform_1, window_bounds = array<i64: 32, 144>}, {pipeline_mode = #tpu.pipeline_mode<synchronous>, transform_indices = @transform_2, window_bounds = array<i64: 32, 1>}, {transform_indices = @transform_3, window_bounds = array<i64: 1, 32, 256>}]} {
    %c0 = arith.constant 0 : index
    %c0_0 = arith.constant 0 : index
    %0 = vector.load %arg3[%c0, %c0_0] : memref<32x144xbf16, #tpu.memory_space<vmem>>, vector<32x144xbf16>
    %c0_1 = arith.constant 0 : index
    %c0_2 = arith.constant 0 : index
    %c0_3 = arith.constant 0 : index
    %1 = vector.load %arg2[%c0_1, %c0_2, %c0_3] : memref<1x144x256xbf16, #tpu.memory_space<vmem>>, vector<1x144x256xbf16>
    %2 = vector.shape_cast %1 : vector<1x144x256xbf16> to vector<144x256xbf16>
    %cst = arith.constant dense<0.000000e+00> : vector<32x256xf32>
    %3 = tpu.matmul %0, %2, %cst {dimension_numbers = #tpu.dot_dimension_numbers<[1], [0], [0], [1], [0, 0, 1, 1], [], []>} : vector<32x144xbf16>, vector<144x256xbf16>, vector<32x256xf32> -> vector<32x256xf32>
    %c0_4 = arith.constant 0 : index
    %c0_5 = arith.constant 0 : index
    %4 = vector.load %arg4[%c0_4, %c0_5] : memref<32x1xf32, #tpu.memory_space<vmem>>, vector<32x1xf32>
    %5 = vector.broadcast %4 : vector<32x1xf32> to vector<32x256xf32>
    %6 = arith.addf %3, %5 : vector<32x256xf32>
    %cst_6 = arith.constant 0.000000e+00 : f32
    %7 = vector.broadcast %cst_6 : f32 to vector<32x256xf32>
    %8 = arith.maximumf %6, %7 : vector<32x256xf32>
    %9 = arith.truncf %8 : vector<32x256xf32> to vector<32x256xbf16>
    %c0_7 = arith.constant 0 : index
    %c0_8 = arith.constant 0 : index
    %c0_9 = arith.constant 0 : index
    %10 = vector.load %arg5[%c0_7, %c0_8, %c0_9] : memref<1x32x256xbf16, #tpu.memory_space<vmem>>, vector<1x32x256xbf16>
    %11 = vector.shape_cast %10 : vector<1x32x256xbf16> to vector<32x256xbf16>
    %12 = vector.shape_cast %9 : vector<32x256xbf16> to vector<1x32x256xbf16>
    tpu.vector_store %arg5[%c0_7, %c0_8, %c0_9], %12 {strides = array<i32>} : memref<1x32x256xbf16, #tpu.memory_space<vmem>>, vector<1x32x256xbf16>,
    return
  }
  func.func @transform_0(%arg0: i32, %arg1: i32) -> (i32, i32, i32) {
    %c0_i32 = arith.constant 0 : i32
    %c0_i32_0 = arith.constant 0 : i32
    return %arg0, %c0_i32, %arg1 : i32, i32, i32
  }
  func.func @transform_1(%arg0: i32, %arg1: i32) -> (i32, i32) {
    %c0_i32 = arith.constant 0 : i32
    %c0_i32_0 = arith.constant 0 : i32
    %c0_i32_1 = arith.constant 0 : i32
    return %c0_i32, %c0_i32_0 : i32, i32
  }
  func.func @transform_2(%arg0: i32, %arg1: i32) -> (i32, i32) {
    %c0_i32 = arith.constant 0 : i32
    %c0_i32_0 = arith.constant 0 : i32
    %c0_i32_1 = arith.constant 0 : i32
    return %c0_i32, %c0_i32_0 : i32, i32
  }
  func.func @transform_3(%arg0: i32, %arg1: i32) -> (i32, i32, i32) {
    %c0_i32 = arith.constant 0 : i32
    %c0_i32_0 = arith.constant 0 : i32
    return %arg0, %c0_i32, %arg1 : i32, i32, i32
  }
}

module attributes {stable_mosaic.version = 11 : i64} {
  func.func @_conv_mm_kernel(%arg0: i32, %arg1: i32, %arg2: memref<1x72x512xbf16, #tpu.memory_space<vmem>>, %arg3: memref<1x72xbf16, #tpu.memory_space<vmem>>, %arg4: memref<1x1xf32, #tpu.memory_space<vmem>>, %arg5: memref<1x1x512xf32, #tpu.memory_space<vmem>>) attributes {dimension_semantics = [#tpu.dimension_semantics<parallel>, #tpu.dimension_semantics<parallel>], iteration_bounds = array<i64: 2, 2>, scalar_prefetch = 0 : i64, scratch_operands = 0 : i64, tpu.core_type = #tpu.core_type<tc>, window_params = [{transform_indices = @transform_0, window_bounds = array<i64: 1, 72, 512>}, {pipeline_mode = #tpu.pipeline_mode<synchronous>, transform_indices = @transform_1, window_bounds = array<i64: 1, 72>}, {pipeline_mode = #tpu.pipeline_mode<synchronous>, transform_indices = @transform_2, window_bounds = array<i64: 1, 1>}, {transform_indices = @transform_3, window_bounds = array<i64: 1, 1, 512>}]} {
    %c0 = arith.constant 0 : index
    %c0_0 = arith.constant 0 : index
    %0 = vector.load %arg3[%c0, %c0_0] : memref<1x72xbf16, #tpu.memory_space<vmem>>, vector<1x72xbf16>
    %c0_1 = arith.constant 0 : index
    %c0_2 = arith.constant 0 : index
    %c0_3 = arith.constant 0 : index
    %1 = vector.load %arg2[%c0_1, %c0_2, %c0_3] : memref<1x72x512xbf16, #tpu.memory_space<vmem>>, vector<1x72x512xbf16>
    %2 = vector.shape_cast %1 : vector<1x72x512xbf16> to vector<72x512xbf16>
    %cst = arith.constant dense<0.000000e+00> : vector<1x512xf32>
    %3 = tpu.matmul %0, %2, %cst {dimension_numbers = #tpu.dot_dimension_numbers<[1], [0], [0], [1], [0, 0, 1, 1], [], []>} : vector<1x72xbf16>, vector<72x512xbf16>, vector<1x512xf32> -> vector<1x512xf32>
    %c0_4 = arith.constant 0 : index
    %c0_5 = arith.constant 0 : index
    %4 = vector.load %arg4[%c0_4, %c0_5] : memref<1x1xf32, #tpu.memory_space<vmem>>, vector<1x1xf32>
    %5 = vector.broadcast %4 : vector<1x1xf32> to vector<1x512xf32>
    %6 = arith.addf %3, %5 : vector<1x512xf32>
    %c0_6 = arith.constant 0 : index
    %c0_7 = arith.constant 0 : index
    %c0_8 = arith.constant 0 : index
    %7 = vector.load %arg5[%c0_6, %c0_7, %c0_8] : memref<1x1x512xf32, #tpu.memory_space<vmem>>, vector<1x1x512xf32>
    %8 = vector.shape_cast %7 : vector<1x1x512xf32> to vector<1x512xf32>
    %9 = vector.shape_cast %6 : vector<1x512xf32> to vector<1x1x512xf32>
    tpu.vector_store %arg5[%c0_6, %c0_7, %c0_8], %9 {strides = array<i32>} : memref<1x1x512xf32, #tpu.memory_space<vmem>>, vector<1x1x512xf32>,
    return
  }
  func.func @transform_0(%arg0: i32, %arg1: i32) -> (i32, i32, i32) {
    %c0_i32 = arith.constant 0 : i32
    %c0_i32_0 = arith.constant 0 : i32
    return %arg0, %c0_i32, %arg1 : i32, i32, i32
  }
  func.func @transform_1(%arg0: i32, %arg1: i32) -> (i32, i32) {
    %c0_i32 = arith.constant 0 : i32
    %c0_i32_0 = arith.constant 0 : i32
    %c0_i32_1 = arith.constant 0 : i32
    return %c0_i32, %c0_i32_0 : i32, i32
  }
  func.func @transform_2(%arg0: i32, %arg1: i32) -> (i32, i32) {
    %c0_i32 = arith.constant 0 : i32
    %c0_i32_0 = arith.constant 0 : i32
    %c0_i32_1 = arith.constant 0 : i32
    return %c0_i32, %c0_i32_0 : i32, i32
  }
  func.func @transform_3(%arg0: i32, %arg1: i32) -> (i32, i32, i32) {
    %c0_i32 = arith.constant 0 : i32
    %c0_i32_0 = arith.constant 0 : i32
    return %arg0, %c0_i32, %arg1 : i32, i32, i32
  }
}

</mosaic_0001>

<llo_original>
// kernel: tile.30
$region0: #{tile.30}
  #allocation0 [shape = 's32[1]{0}', space=sflag, size = 0x4, scoped, tag = 'scoped memory for tile.30']
  %s0 = inlined_call_operand.vmem [shape: f32[8], index: 0, kind: input, shape index: {}]
  %s1 = inlined_call_operand.vmem [shape: f32[4,8], index: 1, kind: output, shape index: {}]
  // Predicated region
  $region2: #{tile.30} parent=0 // pred_check
    _
  $region3: #{tile.30} parent=0 // pred_check_branch
    %3 = sbr.rel (0) target = $region5
  $region4: #{tile.30} parent=0 // pred_region
    _
  $region5: #{tile.30} parent=0 // pred_fallthru
    _
  %v4 = vld [vmem:[%s0] ss:$0 sm:$0xff]
  %5 = vst [vmem:[%s1] sm:$0xf] %v4

// kernel: tile.3
$region0: #{tile.3}
  %s0 = inlined_call_operand.vmem [shape: f32[4,8], index: 0, kind: input, shape index: {}]
  %s1 = inlined_call_operand.vmem [shape: f32[32,1], index: 1, kind: output, shape index: {}]
  $region1: #{tile.3} parent=0
    #allocation0 [shape = 'u8[4096]{0}', space=vmem, size = 0x1000, scoped, tag = 'scoped mem for input reshape']
    %s3 = sshllo.u32 0, 4
    %v4 = vld [vmem:[%s0] sm:%s3]
    %5 = vst [vmem:[#allocation0] sm:%s3] %v4
    %v6 = vld [vmem:[#allocation0] sm:$0xf]
    %vm7 = vcmask 7168
    %8 = vst.msk [vmem:[%s1] ss:$8 sm:$0xf] %vm7, %v6
    %v9 = vld [vmem:[#allocation0] sm:$0xf]
    %10 = vrot.lane.b32.xlu0 %v9, 127
    %v11 = vpop.permute.xlu0 %10
    %vm12 = vcmask 7168
    %s13 = scalar_lea.vmem %s1, 1
    %14 = vst.msk [vmem:[%s13] ss:$8 sm:$0xf] %vm12, %v11
    %v15 = vld [vmem:[#allocation0] sm:$0xf]
    %16 = vrot.lane.b32.xlu0 %v15, 126
    %v17 = vpop.permute.xlu0 %16
    %vm18 = vcmask 7168
    %s19 = scalar_lea.vmem %s1, 2
    %20 = vst.msk [vmem:[%s19] ss:$8 sm:$0xf] %vm18, %v17
    %v21 = vld [vmem:[#allocation0] sm:$0xf]
    %22 = vrot.lane.b32.xlu0 %v21, 125
    %v23 = vpop.permute.xlu0 %22
    %vm24 = vcmask 7168
    %s25 = scalar_lea.vmem %s1, 3
    %26 = vst.msk [vmem:[%s25] ss:$8 sm:$0xf] %vm24, %v23
    %v27 = vld [vmem:[#allocation0] sm:$0xf]
    %28 = vrot.lane.b32.xlu0 %v27, 124
    %v29 = vpop.permute.xlu0 %28
    %vm30 = vcmask 7168
    %s31 = scalar_lea.vmem %s1, 4
    %32 = vst.msk [vmem:[%s31] ss:$8 sm:$0xf] %vm30, %v29
    %v33 = vld [vmem:[#allocation0] sm:$0xf]
    %34 = vrot.lane.b32.xlu0 %v33, 123
    %v35 = vpop.permute.xlu0 %34
    %vm36 = vcmask 7168
    %s37 = scalar_lea.vmem %s1, 5
    %38 = vst.msk [vmem:[%s37] ss:$8 sm:$0xf] %vm36, %v35
    %v39 = vld [vmem:[#allocation0] sm:$0xf]
    %40 = vrot.lane.b32.xlu0 %v39, 122
    %v41 = vpop.permute.xlu0 %40
    %vm42 = vcmask 7168
    %s43 = scalar_lea.vmem %s1, 6
    %44 = vst.msk [vmem:[%s43] ss:$8 sm:$0xf] %vm42, %v41
    %v45 = vld [vmem:[#allocation0] sm:$0xf]
    %46 = vrot.lane.b32.xlu0 %v45, 121
    %v47 = vpop.permute.xlu0 %46
    %vm48 = vcmask 7168
    %s49 = scalar_lea.vmem %s1, 7
    %50 = vst.msk [vmem:[%s49] ss:$8 sm:$0xf] %vm48, %v47

// kernel: tile.26
$region0: #{tile.26}
  #allocation0 [shape = 's32[1]{0}', space=sflag, size = 0x4, scoped, tag = 'scoped memory for tile.26']
  %s0 = inlined_call_operand.vmem [shape: f32[16], index: 0, kind: input, shape index: {}]
  %s1 = inlined_call_operand.vmem [shape: f32[4,16], index: 1, kind: output, shape index: {}]
  // Predicated region
  $region2: #{tile.26} parent=0 // pred_check
    _
  $region3: #{tile.26} parent=0 // pred_check_branch
    %3 = sbr.rel (0) target = $region5
  $region4: #{tile.26} parent=0 // pred_region
    _
  $region5: #{tile.26} parent=0 // pred_fallthru
    _
  %v4 = vld [vmem:[%s0] ss:$0 sm:$0xff]
  %5 = vst [vmem:[%s1] sm:$0xf] %v4

// kernel: tile.2
$region0: #{tile.2}
  %s0 = inlined_call_operand.vmem [shape: f32[4,16], index: 0, kind: input, shape index: {}]
  %s1 = inlined_call_operand.vmem [shape: f32[64,1], index: 1, kind: output, shape index: {}]
  $region1: #{tile.2} parent=0
    #allocation0 [shape = 'u8[4096]{0}', space=vmem, size = 0x1000, scoped, tag = 'scoped mem for input reshape']
    %s3 = sshllo.u32 0, 4
    %v4 = vld [vmem:[%s0] sm:%s3]
    %5 = vst [vmem:[#allocation0] sm:%s3] %v4
    %v6 = vld [vmem:[#allocation0] sm:$0xf]
    %vm7 = vcmask 7168
    %8 = vst.msk [vmem:[%s1] ss:$16 sm:$0x3] %vm7, %v6
    %9 = vst.msk [vmem:[%s1] ss:$16 sm:$0xc] %vm7, %v6
    %v10 = vld [vmem:[#allocation0] sm:$0xf]
    %11 = vrot.lane.b32.xlu0 %v10, 127
    %v12 = vpop.permute.xlu0 %11
    %vm13 = vcmask 7168
    %s14 = scalar_lea.vmem %s1, 1
    %15 = vst.msk [vmem:[%s14] ss:$16 sm:$0x3] %vm13, %v12
    %s16 = scalar_lea.vmem %s1, 1
    %17 = vst.msk [vmem:[%s16] ss:$16 sm:$0xc] %vm13, %v12
    %v18 = vld [vmem:[#allocation0] sm:$0xf]
    %19 = vrot.lane.b32.xlu0 %v18, 126
    %v20 = vpop.permute.xlu0 %19
    %vm21 = vcmask 7168
    %s22 = scalar_lea.vmem %s1, 2
    %23 = vst.msk [vmem:[%s22] ss:$16 sm:$0x3] %vm21, %v20
    %s24 = scalar_lea.vmem %s1, 2
    %25 = vst.msk [vmem:[%s24] ss:$16 sm:$0xc] %vm21, %v20
    %v26 = vld [vmem:[#allocation0] sm:$0xf]
    %27 = vrot.lane.b32.xlu0 %v26, 125
    %v28 = vpop.permute.xlu0 %27
    %vm29 = vcmask 7168
    %s30 = scalar_lea.vmem %s1, 3
    %31 = vst.msk [vmem:[%s30] ss:$16 sm:$0x3] %vm29, %v28
    %s32 = scalar_lea.vmem %s1, 3
    %33 = vst.msk [vmem:[%s32] ss:$16 sm:$0xc] %vm29, %v28
    %v34 = vld [vmem:[#allocation0] sm:$0xf]
    %35 = vrot.lane.b32.xlu0 %v34, 124
    %v36 = vpop.permute.xlu0 %35
    %vm37 = vcmask 7168
    %s38 = scalar_lea.vmem %s1, 4
    %39 = vst.msk [vmem:[%s38] ss:$16 sm:$0x3] %vm37, %v36
    %s40 = scalar_lea.vmem %s1, 4
    %41 = vst.msk [vmem:[%s40] ss:$16 sm:$0xc] %vm37, %v36
    %v42 = vld [vmem:[#allocation0] sm:$0xf]
    %43 = vrot.lane.b32.xlu0 %v42, 123
    %v44 = vpop.permute.xlu0 %43
    %vm45 = vcmask 7168
    %s46 = scalar_lea.vmem %s1, 5
    %47 = vst.msk [vmem:[%s46] ss:$16 sm:$0x3] %vm45, %v44
    %s48 = scalar_lea.vmem %s1, 5
    %49 = vst.msk [vmem:[%s48] ss:$16 sm:$0xc] %vm45, %v44
    %v50 = vld [vmem:[#allocation0] sm:$0xf]
    %51 = vrot.lane.b32.xlu0 %v50, 122
    %v52 = vpop.permute.xlu0 %51
    %vm53 = vcmask 7168
    %s54 = scalar_lea.vmem %s1, 6
    %55 = vst.msk [vmem:[%s54] ss:$16 sm:$0x3] %vm53, %v52
    %s56 = scalar_lea.vmem %s1, 6
    %57 = vst.msk [vmem:[%s56] ss:$16 sm:$0xc] %vm53, %v52
    %v58 = vld [vmem:[#allocation0] sm:$0xf]
    %59 = vrot.lane.b32.xlu0 %v58, 121
    %v60 = vpop.permute.xlu0 %59
    %vm61 = vcmask 7168
    %s62 = scalar_lea.vmem %s1, 7
    %63 = vst.msk [vmem:[%s62] ss:$16 sm:$0x3] %vm61, %v60
    %s64 = scalar_lea.vmem %s1, 7
    %65 = vst.msk [vmem:[%s64] ss:$16 sm:$0xc] %vm61, %v60
    %v66 = vld [vmem:[#allocation0] sm:$0xf]
    %67 = vrot.lane.b32.xlu0 %v66, 120
    %v68 = vpop.permute.xlu0 %67
    %vm69 = vcmask 7168
    %s70 = scalar_lea.vmem %s1, 8
    %71 = vst.msk [vmem:[%s70] ss:$16 sm:$0x3] %vm69, %v68
    %s72 = scalar_lea.vmem %s1, 8
    %73 = vst.msk [vmem:[%s72] ss:$16 sm:$0xc] %vm69, %v68
    %v74 = vld [vmem:[#allocation0] sm:$0xf]
    %75 = vrot.lane.b32.xlu0 %v74, 119
    %v76 = vpop.permute.xlu0 %75
    %vm77 = vcmask 7168
    %s78 = scalar_lea.vmem %s1, 9
    %79 = vst.msk [vmem:[%s78] ss:$16 sm:$0x3] %vm77, %v76
    %s80 = scalar_lea.vmem %s1, 9
    %81 = vst.msk [vmem:[%s80] ss:$16 sm:$0xc] %vm77, %v76
    %v82 = vld [vmem:[#allocation0] sm:$0xf]
    %83 = vrot.lane.b32.xlu0 %v82, 118
    %v84 = vpop.permute.xlu0 %83
    %vm85 = vcmask 7168
    %s86 = scalar_lea.vmem %s1, 10
    %87 = vst.msk [vmem:[%s86] ss:$16 sm:$0x3] %vm85, %v84
    %s88 = scalar_lea.vmem %s1, 10
    %89 = vst.msk [vmem:[%s88] ss:$16 sm:$0xc] %vm85, %v84
    %v90 = vld [vmem:[#allocation0] sm:$0xf]
    %91 = vrot.lane.b32.xlu0 %v90, 117
    %v92 = vpop.permute.xlu0 %91
    %vm93 = vcmask 7168
    %s94 = scalar_lea.vmem %s1, 11
    %95 = vst.msk [vmem:[%s94] ss:$16 sm:$0x3] %vm93, %v92
    %s96 = scalar_lea.vmem %s1, 11
    %97 = vst.msk [vmem:[%s96] ss:$16 sm:$0xc] %vm93, %v92
    %v98 = vld [vmem:[#allocation0] sm:$0xf]
    %99 = vrot.lane.b32.xlu0 %v98, 116
    %v100 = vpop.permute.xlu0 %99
    %vm101 = vcmask 7168
    %s102 = scalar_lea.vmem %s1, 12
    %103 = vst.msk [vmem:[%s102] ss:$16 sm:$0x3] %vm101, %v100
    %s104 = scalar_lea.vmem %s1, 12
    %105 = vst.msk [vmem:[%s104] ss:$16 sm:$0xc] %vm101, %v100
    %v106 = vld [vmem:[#allocation0] sm:$0xf]
    %107 = vrot.lane.b32.xlu0 %v106, 115
    %v108 = vpop.permute.xlu0 %107
    %vm109 = vcmask 7168
    %s110 = scalar_lea.vmem %s1, 13
    %111 = vst.msk [vmem:[%s110] ss:$16 sm:$0x3] %vm109, %v108
    %s112 = scalar_lea.vmem %s1, 13
    %113 = vst.msk [vmem:[%s112] ss:$16 sm:$0xc] %vm109, %v108
    %v114 = vld [vmem:[#allocation0] sm:$0xf]
    %115 = vrot.lane.b32.xlu0 %v114, 114
    %v116 = vpop.permute.xlu0 %115
    %vm117 = vcmask 7168
    %s118 = scalar_lea.vmem %s1, 14
    %119 = vst.msk [vmem:[%s118] ss:$16 sm:$0x3] %vm117, %v116
    %s120 = scalar_lea.vmem %s1, 14
    %121 = vst.msk [vmem:[%s120] ss:$16 sm:$0xc] %vm117, %v116
    %v122 = vld [vmem:[#allocation0] sm:$0xf]
    %123 = vrot.lane.b32.xlu0 %v122, 113
    %v124 = vpop.permute.xlu0 %123
    %vm125 = vcmask 7168
    %s126 = scalar_lea.vmem %s1, 15
    %127 = vst.msk [vmem:[%s126] ss:$16 sm:$0x3] %vm125, %v124
    %s128 = scalar_lea.vmem %s1, 15
    %129 = vst.msk [vmem:[%s128] ss:$16 sm:$0xc] %vm125, %v124

// kernel: tile.22
$region0: #{tile.22}
  #allocation0 [shape = 's32[1]{0}', space=sflag, size = 0x4, scoped, tag = 'scoped memory for tile.22']
  %s0 = inlined_call_operand.vmem [shape: f32[32], index: 0, kind: input, shape index: {}]
  %s1 = inlined_call_operand.vmem [shape: f32[4,32], index: 1, kind: output, shape index: {}]
  // Predicated region
  $region2: #{tile.22} parent=0 // pred_check
    _
  $region3: #{tile.22} parent=0 // pred_check_branch
    %3 = sbr.rel (0) target = $region5
  $region4: #{tile.22} parent=0 // pred_region
    _
  $region5: #{tile.22} parent=0 // pred_fallthru
    _
  %v4 = vld [vmem:[%s0] ss:$0 sm:$0xff]
  %5 = vst [vmem:[%s1] sm:$0xf] %v4

// kernel: tile.1
$region0: #{tile.1}
  %s0 = inlined_call_operand.vmem [shape: f32[4,32], index: 0, kind: input, shape index: {}]
  %s1 = inlined_call_operand.vmem [shape: f32[128,1], index: 1, kind: output, shape index: {}]
  $region1: #{tile.1} parent=0
    #allocation0 [shape = 'u8[4096]{0}', space=vmem, size = 0x1000, scoped, tag = 'scoped mem for input reshape']
    %s3 = sshllo.u32 0, 4
    %v4 = vld [vmem:[%s0] sm:%s3]
    %5 = vst [vmem:[#allocation0] sm:%s3] %v4
    %v6 = vld [vmem:[#allocation0] sm:$0xf]
    %vm7 = vcmask 7168
    %8 = vst.msk [vmem:[%s1] sm:$0x1] %vm7, %v6
    %s9 = scalar_lea.vmem %s1, 31
    %10 = vst.msk [vmem:[%s9] sm:$0x2] %vm7, %v6
    %s11 = scalar_lea.vmem %s1, 62
    %12 = vst.msk [vmem:[%s11] sm:$0x4] %vm7, %v6
    %s13 = scalar_lea.vmem %s1, 93
    %14 = vst.msk [vmem:[%s13] sm:$0x8] %vm7, %v6
    %v15 = vld [vmem:[#allocation0] sm:$0xf]
    %16 = vrot.lane.b32.xlu0 %v15, 127
    %v17 = vpop.permute.xlu0 %16
    %vm18 = vcmask 7168
    %s19 = scalar_lea.vmem %s1, 1
    %20 = vst.msk [vmem:[%s19] sm:$0x1] %vm18, %v17
    %s21 = scalar_lea.vmem %s1, 32
    %22 = vst.msk [vmem:[%s21] sm:$0x2] %vm18, %v17
    %s23 = scalar_lea.vmem %s1, 63
    %24 = vst.msk [vmem:[%s23] sm:$0x4] %vm18, %v17
    %s25 = scalar_lea.vmem %s1, 94
    %26 = vst.msk [vmem:[%s25] sm:$0x8] %vm18, %v17
    %v27 = vld [vmem:[#allocation0] sm:$0xf]
    %28 = vrot.lane.b32.xlu0 %v27, 126
    %v29 = vpop.permute.xlu0 %28
    %vm30 = vcmask 7168
    %s31 = scalar_lea.vmem %s1, 2
    %32 = vst.msk [vmem:[%s31] sm:$0x1] %vm30, %v29
    %s33 = scalar_lea.vmem %s1, 33
    %34 = vst.msk [vmem:[%s33] sm:$0x2] %vm30, %v29
    %s35 = scalar_lea.vmem %s1, 64
    %36 = vst.msk [vmem:[%s35] sm:$0x4] %vm30, %v29
    %s37 = scalar_lea.vmem %s1, 95
    %38 = vst.msk [vmem:[%s37] sm:$0x8] %vm30, %v29
    %v39 = vld [vmem:[#allocation0] sm:$0xf]
    %40 = vrot.lane.b32.xlu0 %v39, 125
    %v41 = vpop.permute.xlu0 %40
    %vm42 = vcmask 7168
    %s43 = scalar_lea.vmem %s1, 3
    %44 = vst.msk [vmem:[%s43] sm:$0x1] %vm42, %v41
    %s45 = scalar_lea.vmem %s1, 34
    %46 = vst.msk [vmem:[%s45] sm:$0x2] %vm42, %v41
    %s47 = scalar_lea.vmem %s1, 65
    %48 = vst.msk [vmem:[%s47] sm:$0x4] %vm42, %v41
    %s49 = scalar_lea.vmem %s1, 96
    %50 = vst.msk [vmem:[%s49] sm:$0x8] %vm42, %v41
    %v51 = vld [vmem:[#allocation0] sm:$0xf]
    %52 = vrot.lane.b32.xlu0 %v51, 124
    %v53 = vpop.permute.xlu0 %52
    %vm54 = vcmask 7168
    %s55 = scalar_lea.vmem %s1, 4
    %56 = vst.msk [vmem:[%s55] sm:$0x1] %vm54, %v53
    %s57 = scalar_lea.vmem %s1, 35
    %58 = vst.msk [vmem:[%s57] sm:$0x2] %vm54, %v53
    %s59 = scalar_lea.vmem %s1, 66
    %60 = vst.msk [vmem:[%s59] sm:$0x4] %vm54, %v53
    %s61 = scalar_lea.vmem %s1, 97
    %62 = vst.msk [vmem:[%s61] sm:$0x8] %vm54, %v53
    %v63 = vld [vmem:[#allocation0] sm:$0xf]
    %64 = vrot.lane.b32.xlu0 %v63, 123
    %v65 = vpop.permute.xlu0 %64
    %vm66 = vcmask 7168
    %s67 = scalar_lea.vmem %s1, 5
    %68 = vst.msk [vmem:[%s67] sm:$0x1] %vm66, %v65
    %s69 = scalar_lea.vmem %s1, 36
    %70 = vst.msk [vmem:[%s69] sm:$0x2] %vm66, %v65
    %s71 = scalar_lea.vmem %s1, 67
    %72 = vst.msk [vmem:[%s71] sm:$0x4] %vm66, %v65
    %s73 = scalar_lea.vmem %s1, 98
    %74 = vst.msk [vmem:[%s73] sm:$0x8] %vm66, %v65
    %v75 = vld [vmem:[#allocation0] sm:$0xf]
    %76 = vrot.lane.b32.xlu0 %v75, 122
    %v77 = vpop.permute.xlu0 %76
    %vm78 = vcmask 7168
    %s79 = scalar_lea.vmem %s1, 6
    %80 = vst.msk [vmem:[%s79] sm:$0x1] %vm78, %v77
    %s81 = scalar_lea.vmem %s1, 37
    %82 = vst.msk [vmem:[%s81] sm:$0x2] %vm78, %v77
    %s83 = scalar_lea.vmem %s1, 68
    %84 = vst.msk [vmem:[%s83] sm:$0x4] %vm78, %v77
    %s85 = scalar_lea.vmem %s1, 99
    %86 = vst.msk [vmem:[%s85] sm:$0x8] %vm78, %v77
    %v87 = vld [vmem:[#allocation0] sm:$0xf]
    %88 = vrot.lane.b32.xlu0 %v87, 121
    %v89 = vpop.permute.xlu0 %88
    %vm90 = vcmask 7168
    %s91 = scalar_lea.vmem %s1, 7
    %92 = vst.msk [vmem:[%s91] sm:$0x1] %vm90, %v89
    %s93 = scalar_lea.vmem %s1, 38
    %94 = vst.msk [vmem:[%s93] sm:$0x2] %vm90, %v89
    %s95 = scalar_lea.vmem %s1, 69
    %96 = vst.msk [vmem:[%s95] sm:$0x4] %vm90, %v89
    %s97 = scalar_lea.vmem %s1, 100
    %98 = vst.msk [vmem:[%s97] sm:$0x8] %vm90, %v89
    %v99 = vld [vmem:[#allocation0] sm:$0xf]
    %100 = vrot.lane.b32.xlu0 %v99, 120
    %v101 = vpop.permute.xlu0 %100
    %vm102 = vcmask 7168
    %s103 = scalar_lea.vmem %s1, 8
    %104 = vst.msk [vmem:[%s103] sm:$0x1] %vm102, %v101
    %s105 = scalar_lea.vmem %s1, 39
    %106 = vst.msk [vmem:[%s105] sm:$0x2] %vm102, %v101
    %s107 = scalar_lea.vmem %s1, 70
    %108 = vst.msk [vmem:[%s107] sm:$0x4] %vm102, %v101
    %s109 = scalar_lea.vmem %s1, 101
    %110 = vst.msk [vmem:[%s109] sm:$0x8] %vm102, %v101
    %v111 = vld [vmem:[#allocation0] sm:$0xf]
    %112 = vrot.lane.b32.xlu0 %v111, 119
    %v113 = vpop.permute.xlu0 %112
    %vm114 = vcmask 7168
    %s115 = scalar_lea.vmem %s1, 9
    %116 = vst.msk [vmem:[%s115] sm:$0x1] %vm114, %v113
    %s117 = scalar_lea.vmem %s1, 40
    %118 = vst.msk [vmem:[%s117] sm:$0x2] %vm114, %v113
    %s119 = scalar_lea.vmem %s1, 71
    %120 = vst.msk [vmem:[%s119] sm:$0x4] %vm114, %v113
    %s121 = scalar_lea.vmem %s1, 102
    %122 = vst.msk [vmem:[%s121] sm:$0x8] %vm114, %v113
    %v123 = vld [vmem:[#allocation0] sm:$0xf]
    %124 = vrot.lane.b32.xlu0 %v123, 118
    %v125 = vpop.permute.xlu0 %124
    %vm126 = vcmask 7168
    %s127 = scalar_lea.vmem %s1, 10
    %128 = vst.msk [vmem:[%s127] sm:$0x1] %vm126, %v125
    %s129 = scalar_lea.vmem %s1, 41
    %130 = vst.msk [vmem:[%s129] sm:$0x2] %vm126, %v125
    %s131 = scalar_lea.vmem %s1, 72
    %132 = vst.msk [vmem:[%s131] sm:$0x4] %vm126, %v125
    %s133 = scalar_lea.vmem %s1, 103
    %134 = vst.msk [vmem:[%s133] sm:$0x8] %vm126, %v125
    %v135 = vld [vmem:[#allocation0] sm:$0xf]
    %136 = vrot.lane.b32.xlu0 %v135, 117
    %v137 = vpop.permute.xlu0 %136
    %vm138 = vcmask 7168
    %s139 = scalar_lea.vmem %s1, 11
    %140 = vst.msk [vmem:[%s139] sm:$0x1] %vm138, %v137
    %s141 = scalar_lea.vmem %s1, 42
    %142 = vst.msk [vmem:[%s141] sm:$0x2] %vm138, %v137
    %s143 = scalar_lea.vmem %s1, 73
    %144 = vst.msk [vmem:[%s143] sm:$0x4] %vm138, %v137
    %s145 = scalar_lea.vmem %s1, 104
    %146 = vst.msk [vmem:[%s145] sm:$0x8] %vm138, %v137
    %v147 = vld [vmem:[#allocation0] sm:$0xf]
    %148 = vrot.lane.b32.xlu0 %v147, 116
    %v149 = vpop.permute.xlu0 %148
    %vm150 = vcmask 7168
    %s151 = scalar_lea.vmem %s1, 12
    %152 = vst.msk [vmem:[%s151] sm:$0x1] %vm150, %v149
    %s153 = scalar_lea.vmem %s1, 43
    %154 = vst.msk [vmem:[%s153] sm:$0x2] %vm150, %v149
    %s155 = scalar_lea.vmem %s1, 74
    %156 = vst.msk [vmem:[%s155] sm:$0x4] %vm150, %v149
    %s157 = scalar_lea.vmem %s1, 105
    %158 = vst.msk [vmem:[%s157] sm:$0x8] %vm150, %v149
    %v159 = vld [vmem:[#allocation0] sm:$0xf]
    %160 = vrot.lane.b32.xlu0 %v159, 115
    %v161 = vpop.permute.xlu0 %160
    %vm162 = vcmask 7168
    %s163 = scalar_lea.vmem %s1, 13
    %164 = vst.msk [vmem:[%s163] sm:$0x1] %vm162, %v161
    %s165 = scalar_lea.vmem %s1, 44
    %166 = vst.msk [vmem:[%s165] sm:$0x2] %vm162, %v161
    %s167 = scalar_lea.vmem %s1, 75
    %168 = vst.msk [vmem:[%s167] sm:$0x4] %vm162, %v161
    %s169 = scalar_lea.vmem %s1, 106
    %170 = vst.msk [vmem:[%s169] sm:$0x8] %vm162, %v161
    %v171 = vld [vmem:[#allocation0] sm:$0xf]
    %172 = vrot.lane.b32.xlu0 %v171, 114
    %v173 = vpop.permute.xlu0 %172
    %vm174 = vcmask 7168
    %s175 = scalar_lea.vmem %s1, 14
    %176 = vst.msk [vmem:[%s175] sm:$0x1] %vm174, %v173
    %s177 = scalar_lea.vmem %s1, 45
    %178 = vst.msk [vmem:[%s177] sm:$0x2] %vm174, %v173
    %s179 = scalar_lea.vmem %s1, 76
    %180 = vst.msk [vmem:[%s179] sm:$0x4] %vm174, %v173
    %s181 = scalar_lea.vmem %s1, 107
    %182 = vst.msk [vmem:[%s181] sm:$0x8] %vm174, %v173
    %v183 = vld [vmem:[#allocation0] sm:$0xf]
    %184 = vrot.lane.b32.xlu0 %v183, 113
    %v185 = vpop.permute.xlu0 %184
    %vm186 = vcmask 7168
    %s187 = scalar_lea.vmem %s1, 15
    %188 = vst.msk [vmem:[%s187] sm:$0x1] %vm186, %v185
    %s189 = scalar_lea.vmem %s1, 46
    %190 = vst.msk [vmem:[%s189] sm:$0x2] %vm186, %v185
    %s191 = scalar_lea.vmem %s1, 77
    %192 = vst.msk [vmem:[%s191] sm:$0x4] %vm186, %v185
    %s193 = scalar_lea.vmem %s1, 108
    %194 = vst.msk [vmem:[%s193] sm:$0x8] %vm186, %v185
    %v195 = vld [vmem:[#allocation0] sm:$0xf]
    %196 = vrot.lane.b32.xlu0 %v195, 112
    %v197 = vpop.permute.xlu0 %196
    %vm198 = vcmask 7168
    %s199 = scalar_lea.vmem %s1, 16
    %200 = vst.msk [vmem:[%s199] sm:$0x1] %vm198, %v197
    %s201 = scalar_lea.vmem %s1, 47
    %202 = vst.msk [vmem:[%s201] sm:$0x2] %vm198, %v197
    %s203 = scalar_lea.vmem %s1, 78
    %204 = vst.msk [vmem:[%s203] sm:$0x4] %vm198, %v197
    %s205 = scalar_lea.vmem %s1, 109
    %206 = vst.msk [vmem:[%s205] sm:$0x8] %vm198, %v197
    %v207 = vld [vmem:[#allocation0] sm:$0xf]
    %208 = vrot.lane.b32.xlu0 %v207, 111
    %v209 = vpop.permute.xlu0 %208
    %vm210 = vcmask 7168
    %s211 = scalar_lea.vmem %s1, 17
    %212 = vst.msk [vmem:[%s211] sm:$0x1] %vm210, %v209
    %s213 = scalar_lea.vmem %s1, 48
    %214 = vst.msk [vmem:[%s213] sm:$0x2] %vm210, %v209
    %s215 = scalar_lea.vmem %s1, 79
    %216 = vst.msk [vmem:[%s215] sm:$0x4] %vm210, %v209
    %s217 = scalar_lea.vmem %s1, 110
    %218 = vst.msk [vmem:[%s217] sm:$0x8] %vm210, %v209
    %v219 = vld [vmem:[#allocation0] sm:$0xf]
    %220 = vrot.lane.b32.xlu0 %v219, 110
    %v221 = vpop.permute.xlu0 %220
    %vm222 = vcmask 7168
    %s223 = scalar_lea.vmem %s1, 18
    %224 = vst.msk [vmem:[%s223] sm:$0x1] %vm222, %v221
    %s225 = scalar_lea.vmem %s1, 49
    %226 = vst.msk [vmem:[%s225] sm:$0x2] %vm222, %v221
    %s227 = scalar_lea.vmem %s1, 80
    %228 = vst.msk [vmem:[%s227] sm:$0x4] %vm222, %v221
    %s229 = scalar_lea.vmem %s1, 111
    %230 = vst.msk [vmem:[%s229] sm:$0x8] %vm222, %v221
    %v231 = vld [vmem:[#allocation0] sm:$0xf]
    %232 = vrot.lane.b32.xlu0 %v231, 109
    %v233 = vpop.permute.xlu0 %232
    %vm234 = vcmask 7168
    %s235 = scalar_lea.vmem %s1, 19
    %236 = vst.msk [vmem:[%s235] sm:$0x1] %vm234, %v233
    %s237 = scalar_lea.vmem %s1, 50
    %238 = vst.msk [vmem:[%s237] sm:$0x2] %vm234, %v233
    %s239 = scalar_lea.vmem %s1, 81
    %240 = vst.msk [vmem:[%s239] sm:$0x4] %vm234, %v233
    %s241 = scalar_lea.vmem %s1, 112
    %242 = vst.msk [vmem:[%s241] sm:$0x8] %vm234, %v233
    %v243 = vld [vmem:[#allocation0] sm:$0xf]
    %244 = vrot.lane.b32.xlu0 %v243, 108
    %v245 = vpop.permute.xlu0 %244
    %vm246 = vcmask 7168
    %s247 = scalar_lea.vmem %s1, 20
    %248 = vst.msk [vmem:[%s247] sm:$0x1] %vm246, %v245
    %s249 = scalar_lea.vmem %s1, 51
    %250 = vst.msk [vmem:[%s249] sm:$0x2] %vm246, %v245
    %s251 = scalar_lea.vmem %s1, 82
    %252 = vst.msk [vmem:[%s251] sm:$0x4] %vm246, %v245
    %s253 = scalar_lea.vmem %s1, 113
    %254 = vst.msk [vmem:[%s253] sm:$0x8] %vm246, %v245
    %v255 = vld [vmem:[#allocation0] sm:$0xf]
    %256 = vrot.lane.b32.xlu0 %v255, 107
    %v257 = vpop.permute.xlu0 %256
    %vm258 = vcmask 7168
    %s259 = scalar_lea.vmem %s1, 21
    %260 = vst.msk [vmem:[%s259] sm:$0x1] %vm258, %v257
    %s261 = scalar_lea.vmem %s1, 52
    %262 = vst.msk [vmem:[%s261] sm:$0x2] %vm258, %v257
    %s263 = scalar_lea.vmem %s1, 83
    %264 = vst.msk [vmem:[%s263] sm:$0x4] %vm258, %v257
    %s265 = scalar_lea.vmem %s1, 114
    %266 = vst.msk [vmem:[%s265] sm:$0x8] %vm258, %v257
    %v267 = vld [vmem:[#allocation0] sm:$0xf]
    %268 = vrot.lane.b32.xlu0 %v267, 106
    %v269 = vpop.permute.xlu0 %268
    %vm270 = vcmask 7168
    %s271 = scalar_lea.vmem %s1, 22
    %272 = vst.msk [vmem:[%s271] sm:$0x1] %vm270, %v269
    %s273 = scalar_lea.vmem %s1, 53
    %274 = vst.msk [vmem:[%s273] sm:$0x2] %vm270, %v269
    %s275 = scalar_lea.vmem %s1, 84
    %276 = vst.msk [vmem:[%s275] sm:$0x4] %vm270, %v269
    %s277 = scalar_lea.vmem %s1, 115
    %278 = vst.msk [vmem:[%s277] sm:$0x8] %vm270, %v269
    %v279 = vld [vmem:[#allocation0] sm:$0xf]
    %280 = vrot.lane.b32.xlu0 %v279, 105
    %v281 = vpop.permute.xlu0 %280
    %vm282 = vcmask 7168
    %s283 = scalar_lea.vmem %s1, 23
    %284 = vst.msk [vmem:[%s283] sm:$0x1] %vm282, %v281
    %s285 = scalar_lea.vmem %s1, 54
    %286 = vst.msk [vmem:[%s285] sm:$0x2] %vm282, %v281
    %s287 = scalar_lea.vmem %s1, 85
    %288 = vst.msk [vmem:[%s287] sm:$0x4] %vm282, %v281
    %s289 = scalar_lea.vmem %s1, 116
    %290 = vst.msk [vmem:[%s289] sm:$0x8] %vm282, %v281
    %v291 = vld [vmem:[#allocation0] sm:$0xf]
    %292 = vrot.lane.b32.xlu0 %v291, 104
    %v293 = vpop.permute.xlu0 %292
    %vm294 = vcmask 7168
    %s295 = scalar_lea.vmem %s1, 24
    %296 = vst.msk [vmem:[%s295] sm:$0x1] %vm294, %v293
    %s297 = scalar_lea.vmem %s1, 55
    %298 = vst.msk [vmem:[%s297] sm:$0x2] %vm294, %v293
    %s299 = scalar_lea.vmem %s1, 86
    %300 = vst.msk [vmem:[%s299] sm:$0x4] %vm294, %v293
    %s301 = scalar_lea.vmem %s1, 117
    %302 = vst.msk [vmem:[%s301] sm:$0x8] %vm294, %v293
    %v303 = vld [vmem:[#allocation0] sm:$0xf]
    %304 = vrot.lane.b32.xlu0 %v303, 103
    %v305 = vpop.permute.xlu0 %304
    %vm306 = vcmask 7168
    %s307 = scalar_lea.vmem %s1, 25
    %308 = vst.msk [vmem:[%s307] sm:$0x1] %vm306, %v305
    %s309 = scalar_lea.vmem %s1, 56
    %310 = vst.msk [vmem:[%s309] sm:$0x2] %vm306, %v305
    %s311 = scalar_lea.vmem %s1, 87
    %312 = vst.msk [vmem:[%s311] sm:$0x4] %vm306, %v305
    %s313 = scalar_lea.vmem %s1, 118
    %314 = vst.msk [vmem:[%s313] sm:$0x8] %vm306, %v305
    %v315 = vld [vmem:[#allocation0] sm:$0xf]
    %316 = vrot.lane.b32.xlu0 %v315, 102
    %v317 = vpop.permute.xlu0 %316
    %vm318 = vcmask 7168
    %s319 = scalar_lea.vmem %s1, 26
    %320 = vst.msk [vmem:[%s319] sm:$0x1] %vm318, %v317
    %s321 = scalar_lea.vmem %s1, 57
    %322 = vst.msk [vmem:[%s321] sm:$0x2] %vm318, %v317
    %s323 = scalar_lea.vmem %s1, 88
    %324 = vst.msk [vmem:[%s323] sm:$0x4] %vm318, %v317
    %s325 = scalar_lea.vmem %s1, 119
    %326 = vst.msk [vmem:[%s325] sm:$0x8] %vm318, %v317
    %v327 = vld [vmem:[#allocation0] sm:$0xf]
    %328 = vrot.lane.b32.xlu0 %v327, 101
    %v329 = vpop.permute.xlu0 %328
    %vm330 = vcmask 7168
    %s331 = scalar_lea.vmem %s1, 27
    %332 = vst.msk [vmem:[%s331] sm:$0x1] %vm330, %v329
    %s333 = scalar_lea.vmem %s1, 58
    %334 = vst.msk [vmem:[%s333] sm:$0x2] %vm330, %v329
    %s335 = scalar_lea.vmem %s1, 89
    %336 = vst.msk [vmem:[%s335] sm:$0x4] %vm330, %v329
    %s337 = scalar_lea.vmem %s1, 120
    %338 = vst.msk [vmem:[%s337] sm:$0x8] %vm330, %v329
    %v339 = vld [vmem:[#allocation0] sm:$0xf]
    %340 = vrot.lane.b32.xlu0 %v339, 100
    %v341 = vpop.permute.xlu0 %340
    %vm342 = vcmask 7168
    %s343 = scalar_lea.vmem %s1, 28
    %344 = vst.msk [vmem:[%s343] sm:$0x1] %vm342, %v341
    %s345 = scalar_lea.vmem %s1, 59
    %346 = vst.msk [vmem:[%s345] sm:$0x2] %vm342, %v341
    %s347 = scalar_lea.vmem %s1, 90
    %348 = vst.msk [vmem:[%s347] sm:$0x4] %vm342, %v341
    %s349 = scalar_lea.vmem %s1, 121
    %350 = vst.msk [vmem:[%s349] sm:$0x8] %vm342, %v341
    %v351 = vld [vmem:[#allocation0] sm:$0xf]
    %352 = vrot.lane.b32.xlu0 %v351, 99
    %v353 = vpop.permute.xlu0 %352
    %vm354 = vcmask 7168
    %s355 = scalar_lea.vmem %s1, 29
    %356 = vst.msk [vmem:[%s355] sm:$0x1] %vm354, %v353
    %s357 = scalar_lea.vmem %s1, 60
    %358 = vst.msk [vmem:[%s357] sm:$0x2] %vm354, %v353
    %s359 = scalar_lea.vmem %s1, 91
    %360 = vst.msk [vmem:[%s359] sm:$0x4] %vm354, %v353
    %s361 = scalar_lea.vmem %s1, 122
    %362 = vst.msk [vmem:[%s361] sm:$0x8] %vm354, %v353
    %v363 = vld [vmem:[#allocation0] sm:$0xf]
    %364 = vrot.lane.b32.xlu0 %v363, 98
    %v365 = vpop.permute.xlu0 %364
    %vm366 = vcmask 7168
    %s367 = scalar_lea.vmem %s1, 30
    %368 = vst.msk [vmem:[%s367] sm:$0x1] %vm366, %v365
    %s369 = scalar_lea.vmem %s1, 61
    %370 = vst.msk [vmem:[%s369] sm:$0x2] %vm366, %v365
    %s371 = scalar_lea.vmem %s1, 92
    %372 = vst.msk [vmem:[%s371] sm:$0x4] %vm366, %v365
    %s373 = scalar_lea.vmem %s1, 123
    %374 = vst.msk [vmem:[%s373] sm:$0x8] %vm366, %v365
    %v375 = vld [vmem:[#allocation0] sm:$0xf]
    %376 = vrot.lane.b32.xlu0 %v375, 97
    %v377 = vpop.permute.xlu0 %376
    %vm378 = vcmask 7168
    %s379 = scalar_lea.vmem %s1, 31
    %380 = vst.msk [vmem:[%s379] sm:$0x1] %vm378, %v377
    %s381 = scalar_lea.vmem %s1, 62
    %382 = vst.msk [vmem:[%s381] sm:$0x2] %vm378, %v377
    %s383 = scalar_lea.vmem %s1, 93
    %384 = vst.msk [vmem:[%s383] sm:$0x4] %vm378, %v377
    %s385 = scalar_lea.vmem %s1, 124
    %386 = vst.msk [vmem:[%s385] sm:$0x8] %vm378, %v377

// kernel: _lambda_.18
$region0: #{_lambda_.18}
  #allocation0 [shape = 'u32[]', space=smem, size = 0x4, offset = 0x4, fixed_abs, tag = 'smem constant byte address 0x4 - core index']
  #allocation1 [shape = 'u32[144,128]{1,0:T(1,128)}', space=vmem, size = 0x12000, scoped, tag = 'internal scratch']
  %s0 = inlined_call_operand.vmem [shape: bf16[2,36,1024], index: 0, kind: input, shape index: {}]
  %s1 = inlined_call_operand.vmem [shape: bf16[8,36], index: 1, kind: input, shape index: {}]
  %s2 = inlined_call_operand.vmem [shape: f32[8,1], index: 2, kind: input, shape index: {}]
  %s3 = inlined_call_operand.vmem [shape: bf16[2,8,1024], index: 3, kind: output, shape index: {}]
  %s4 = sld [smem:[#allocation0]]
  $region68: #{_lambda_.18} parent=0
    _
  %s6 = ssub.s32 1, %s4
  %s7 = scalar_select 0, %s6, %s4
  $region1: #{_lambda_.18} parent=0
    #allocation2 [shape = 'u8[81920]{0}', space=vmem, size = 0x14000, scoped, tag = 'input window, operand 0']
    loop: start=0, step=1, limit=6
    $region2: #{_lambda_.18} parent=1 // loop_pre_header
      _
    $region3: #{_lambda_.18} parent=1 // loop_header
      %s9 = sphi 0, %s13
      %p10 = scmp.ge.s32.totalorder %s9, 6
      %s16 = sphi 0, %s28
      %s17 = sphi 0, %s24
      %s18 = sphi 0, %s16
      %s19 = sphi 0, %s17
      %s20 = sphi 0, %s18
      %s21 = sphi 0, %s19
      %s33 = sphi 0, %s35
      %s36 = sphi 0, %s33
      %s37 = sphi 0, %s36
      %s53 = sphi 0, %s37
      %s57 = sphi 0, %s57
      %s59 = sphi 0, %s57
      %s60 = sphi 0, %s59
      %s74 = sphi 0, %s60
      %s78 = sphi 0, %s78
      %s80 = sphi 0, %s78
      %s81 = sphi 0, %s80
      %s95 = sphi 0, %s81
      %s103 = sphi 0, %s105
      %s106 = sphi 0, %s103
      %s107 = sphi 0, %s106
      %s123 = sphi 0, %s107
    $region4: #{_lambda_.18} parent=1 // loop_header_branch
      %12 = sbr.rel (%p10) target = $region8
    $region5: #{_lambda_.18} parent=1 // loop_body
      %s14 = ssub.s32 %s9, 1
      %s15 = ssub.s32 %s9, 2
      %s22 = sadd.s32 1, %s17
      %p23 = scmp.ge.s32.totalorder %s22, 2
      %s24 = scalar_select %p23, 0, %s22
      %s25 = sadd.s32 1, %s16
      %s26 = scalar_select %p23, %s25, %s16
      %p27 = scmp.ge.s32.totalorder %s26, 2
      %s28 = scalar_select %p27, 0, %s26
      %s29 = ssub.s32 %s16, %s28
      %s30 = ssub.s32 %s17, %s24
      %s31 = sor.u32 %s29, %s30
      %p32 = scmp.eq.s32.totalorder %s31, 0
      %s34 = sadd.s32 %s33, 1
      %s35 = scalar_select %p32, %s33, %s34
      %p38 = pneg %p32
      %p39 = scmp.eq.s32.totalorder %s9, 3
      %p40 = por %p38, %p39
      %p41 = scmp.ne.s32.totalorder %s33, %s36
      %p42 = scmp.eq.s32.totalorder %s9, 0
      %p43 = por %p41, %p42
      %p44 = scmp.ne.s32.totalorder %s33, %s36
      %p45 = scmp.eq.s32.totalorder %s14, 3
      %p46 = por %p44, %p45
      %p47 = scmp.ne.s32.totalorder %s36, %s37
      %p48 = scmp.eq.s32.totalorder %s14, 0
      %p49 = por %p47, %p48
      %p50 = scmp.ne.s32.totalorder %s36, %s37
      %p51 = scmp.eq.s32.totalorder %s15, 3
      %p52 = por %p50, %p51
      %p54 = scmp.ne.s32.totalorder %s37, %s53
      %p55 = scmp.eq.s32.totalorder %s15, 0
      %p56 = por %p54, %p55
      %s58 = sadd.s32 %s57, 1
      %p61 = scmp.eq.s32.totalorder %s9, 3
      %p62 = scmp.ne.s32.totalorder %s57, %s59
      %p63 = scmp.eq.s32.totalorder %s9, 0
      %p64 = por %p62, %p63
      %p65 = scmp.ne.s32.totalorder %s57, %s59
      %p66 = scmp.eq.s32.totalorder %s14, 3
      %p67 = por %p65, %p66
      %p68 = scmp.ne.s32.totalorder %s59, %s60
      %p69 = scmp.eq.s32.totalorder %s14, 0
      %p70 = por %p68, %p69
      %p71 = scmp.ne.s32.totalorder %s59, %s60
      %p72 = scmp.eq.s32.totalorder %s15, 3
      %p73 = por %p71, %p72
      %p75 = scmp.ne.s32.totalorder %s60, %s74
      %p76 = scmp.eq.s32.totalorder %s15, 0
      %p77 = por %p75, %p76
      %s79 = sadd.s32 %s78, 1
      %p82 = scmp.eq.s32.totalorder %s9, 3
      %p83 = scmp.ne.s32.totalorder %s78, %s80
      %p84 = scmp.eq.s32.totalorder %s9, 0
      %p85 = por %p83, %p84
      %p86 = scmp.ne.s32.totalorder %s78, %s80
      %p87 = scmp.eq.s32.totalorder %s14, 3
      %p88 = por %p86, %p87
      %p89 = scmp.ne.s32.totalorder %s80, %s81
      %p90 = scmp.eq.s32.totalorder %s14, 0
      %p91 = por %p89, %p90
      %p92 = scmp.ne.s32.totalorder %s80, %s81
      %p93 = scmp.eq.s32.totalorder %s15, 3
      %p94 = por %p92, %p93
      %p96 = scmp.ne.s32.totalorder %s81, %s95
      %p97 = scmp.eq.s32.totalorder %s15, 0
      %p98 = por %p96, %p97
      %s99 = ssub.s32 %s16, %s28
      %s100 = ssub.s32 %s17, %s24
      %s101 = sor.u32 %s99, %s100
      %p102 = scmp.eq.s32.totalorder %s101, 0
      %s104 = sadd.s32 %s103, 1
      %s105 = scalar_select %p102, %s103, %s104
      %p108 = pneg %p102
      %p109 = scmp.eq.s32.totalorder %s9, 3
      %p110 = por %p108, %p109
      %p111 = scmp.ne.s32.totalorder %s103, %s106
      %p112 = scmp.eq.s32.totalorder %s9, 0
      %p113 = por %p111, %p112
      %p114 = scmp.ne.s32.totalorder %s103, %s106
      %p115 = scmp.eq.s32.totalorder %s14, 3
      %p116 = por %p114, %p115
      %p117 = scmp.ne.s32.totalorder %s106, %s107
      %p118 = scmp.eq.s32.totalorder %s14, 0
      %p119 = por %p117, %p118
      %p120 = scmp.ne.s32.totalorder %s106, %s107
      %p121 = scmp.eq.s32.totalorder %s15, 3
      %p122 = por %p120, %p121
      %p124 = scmp.ne.s32.totalorder %s107, %s123
      %p125 = scmp.eq.s32.totalorder %s15, 0
      %p126 = por %p124, %p125
      %p127 = scmp.le.s32.totalorder 1, %s9
      %p128 = scmp.lt.s32.totalorder %s9, 5
      %p129 = pnand %p127, %p128
      %p130 = pneg %p129
      // Predicated region
      $region9: #{_lambda_.18} parent=5 // pred_check
        _
      $region10: #{_lambda_.18} parent=5 // pred_check_branch
        %132 = sbr.rel (%p129) target = $region12
      $region11: #{_lambda_.18} parent=5 // pred_region
        %s133 = ssub.s32 %s9, 1
        // Predicated region
        $region13: #{_lambda_.18} parent=11 // pred_check
          %p134 = pneg %p70
        $region14: #{_lambda_.18} parent=11 // pred_check_branch
          %136 = sbr.rel (%p134) target = $region16
        $region15: #{_lambda_.18} parent=11 // pred_region
          _
        $region16: #{_lambda_.18} parent=11 // pred_fallthru
          _
        // Predicated region
        $region17: #{_lambda_.18} parent=11 // pred_check
          %p137 = pneg %p91
        $region18: #{_lambda_.18} parent=11 // pred_check_branch
          %139 = sbr.rel (%p137) target = $region20
        $region19: #{_lambda_.18} parent=11 // pred_region
          _
        $region20: #{_lambda_.18} parent=11 // pred_fallthru
          _
      $region12: #{_lambda_.18} parent=5 // pred_fallthru
        _
      %p140 = scmp.lt.s32.totalorder %s9, 4
      // Predicated region
      $region21: #{_lambda_.18} parent=5 // pred_check
        %p141 = pneg %p140
      $region22: #{_lambda_.18} parent=5 // pred_check_branch
        %143 = sbr.rel (%p141) target = $region24
      $region23: #{_lambda_.18} parent=5 // pred_region
        // Predicated region
        $region25: #{_lambda_.18} parent=23 // pred_check
          %p144 = pneg %p43
        $region26: #{_lambda_.18} parent=23 // pred_check_branch
          %146 = sbr.rel (%p144) target = $region28
        $region27: #{_lambda_.18} parent=23 // pred_region
          %s147 = sand.u32 %s33, 1
          %s148 = sand.u32 %s33, 1
          %s149 = smul.addr %s148, 80
          %s150 = scalar_lea.vmem [#allocation2], %s149
          %s151 = smul.u32 4, %s17
          %s152 = smul.addr %s16, 40
          %s153 = sadd.s32 %s151, %s152
          %s154 = smul.addr %s153, 4
          %s155 = scalar_lea.vmem %s0, %s154
          // Predicated region
          $region29: #{_lambda_.18} parent=27 // pred_check
            _
          $region30: #{_lambda_.18} parent=27 // pred_check_branch
            %157 = sbr.rel (0) target = $region32
          $region31: #{_lambda_.18} parent=27 // pred_region
            // Predicated region
            $region33: #{_lambda_.18} parent=31 // pred_check
              _
            $region34: #{_lambda_.18} parent=31 // pred_check_branch
              %159 = sbr.rel (0) target = $region36
            $region35: #{_lambda_.18} parent=31 // pred_region
              loop: start=0, step=1, limit=1
              $region37: #{_lambda_.18} parent=35 // loop_pre_header
                _
              $region38: #{_lambda_.18} parent=35 // loop_header
                %s161 = sphi 0, %s165
                %p162 = scmp.ge.s32.totalorder %s161, 1
                %s166 = sphi %s155, %s155
                %s167 = sphi %s150, %s150
              $region39: #{_lambda_.18} parent=35 // loop_header_branch
                %164 = sbr.rel (%p162) target = $region43
              $region40: #{_lambda_.18} parent=35 // loop_body
                %v168 = vld [vmem:[%s166] sm:$0xff]
                %169 = vst [vmem:[%s167] sm:$0xff] %v168
                %v170 = vld [vmem:[%s166 + $0x8] sm:$0xff]
                %171 = vst [vmem:[%s167 + $0x8] sm:$0xff] %v170
                %v172 = vld [vmem:[%s166 + $0x20] sm:$0xff]
                %173 = vst [vmem:[%s167 + $0x10] sm:$0xff] %v172
                %v174 = vld [vmem:[%s166 + $0x28] sm:$0xff]
                %175 = vst [vmem:[%s167 + $0x18] sm:$0xff] %v174
                %v176 = vld [vmem:[%s166 + $0x40] sm:$0xff]
                %177 = vst [vmem:[%s167 + $0x20] sm:$0xff] %v176
                %v178 = vld [vmem:[%s166 + $0x48] sm:$0xff]
                %179 = vst [vmem:[%s167 + $0x28] sm:$0xff] %v178
                %v180 = vld [vmem:[%s166 + $0x60] sm:$0xff]
                %181 = vst [vmem:[%s167 + $0x30] sm:$0xff] %v180
                %v182 = vld [vmem:[%s166 + $0x68] sm:$0xff]
                %183 = vst [vmem:[%s167 + $0x38] sm:$0xff] %v182
                %v184 = vld [vmem:[%s166 + $0x80] sm:$0xff]
                %185 = vst [vmem:[%s167 + $0x40] sm:$0xff] %v184
                %v186 = vld [vmem:[%s166 + $0x88] sm:$0xff]
                %187 = vst [vmem:[%s167 + $0x48] sm:$0xff] %v186
              $region41: #{_lambda_.18} parent=35 // loop_footer
                %s165 = sadd.s32 1, %s161
              $region42: #{_lambda_.18} parent=35 // loop_footer_branch
                %160 = sbr.rel target = $region38
              $region43: #{_lambda_.18} parent=35 // loop_exit
                _
            $region36: #{_lambda_.18} parent=31 // pred_fallthru
              _
            // Predicated region
            $region44: #{_lambda_.18} parent=31 // pred_check
              _
            $region45: #{_lambda_.18} parent=31 // pred_check_branch
              %189 = sbr.rel target = $region47
            $region46: #{_lambda_.18} parent=31 // pred_region
              _
            $region47: #{_lambda_.18} parent=31 // pred_fallthru
              _
          $region32: #{_lambda_.18} parent=27 // pred_fallthru
            _
          %190 = vnop
        $region28: #{_lambda_.18} parent=23 // pred_fallthru
          _
      $region24: #{_lambda_.18} parent=5 // pred_fallthru
        _
      %p191 = scmp.le.s32.totalorder 1, %s9
      %p192 = scmp.lt.s32.totalorder %s9, 5
      %p193 = pnand %p191, %p192
      %p194 = pneg %p193
      // Predicated region
      $region48: #{_lambda_.18} parent=5 // pred_check
        _
      $region49: #{_lambda_.18} parent=5 // pred_check_branch
        %196 = sbr.rel (%p193) target = $region51
      $region50: #{_lambda_.18} parent=5 // pred_region
        %s197 = ssub.s32 %s9, 1
        %s198 = sand.u32 %s36, 1
        %s199 = sand.u32 %s36, 1
        %s200 = smul.addr %s199, 80
        %s201 = scalar_lea.vmem [#allocation2], %s200
        // Predicated region
        $region52: #{_lambda_.18} parent=50 // pred_check
          %p202 = pneg %p49
        $region53: #{_lambda_.18} parent=50 // pred_check_branch
          %204 = sbr.rel (%p202) target = $region55
        $region54: #{_lambda_.18} parent=50 // pred_region
          _
        $region55: #{_lambda_.18} parent=50 // pred_fallthru
          _
        %s205 = sand.u32 %s36, 1
        %s206 = sand.u32 %s36, 1
        %s207 = smul.addr %s206, 80
        %s208 = scalar_lea.vmem [#allocation2], %s207
        %p209 = pneg %p49
        %p210 = pneg %p46
        %p211 = pneg %p70
        %p212 = pneg %p67
        %p213 = pneg %p91
        %p214 = pneg %p88
        %p215 = pneg %p119
        %p216 = pneg %p116
        %s217 = smul.u32 4, %s19
        %p218 = scmp.lt.s32.totalorder %s18, 1
        %s219 = scalar_select %p218, %s18, 1
        %p220 = scmp.lt.s32.totalorder %s217, 7
        %s221 = scalar_select %p220, %s217, 7
        %s222 = smul.addr %s219, 8
        %s223 = sadd.s32 %s221, %s222
        %s224 = smul.addr %s223, 4
        %s225 = scalar_lea.vmem %s3, %s224
        %s226 = smul.u32 4, %s19
        %s227 = smul.u32 4, %s19
        %p228 = scmp.lt.s32.totalorder %s18, 1
        %s229 = scalar_select %p228, %s18, 1
        %p230 = scmp.lt.s32.totalorder %s227, 7
        %s231 = scalar_select %p230, %s227, 7
        %s232 = smul.addr %s229, 8
        %s233 = sadd.s32 %s231, %s232
        %s234 = smul.addr %s233, 4
        %s235 = scalar_lea.vmem %s3, %s234
        %s236 = smul.u32 4, %s19
        %v238 = vld [vmem:[%s1] sm:$0xf]
        %v239 = vld [vmem:[%s201] sm:$0xff]
        %v240 = vld [vmem:[%s201 + $0x8] sm:$0xff]
        %v241 = vld [vmem:[%s201 + $0x10] sm:$0xff]
        %v242 = vld [vmem:[%s201 + $0x18] sm:$0xff]
        %v243 = vld [vmem:[%s201 + $0x20] sm:$0xff]
        %v244 = vld [vmem:[%s201 + $0x28] sm:$0xff]
        %v245 = vld [vmem:[%s201 + $0x30] sm:$0xff]
        %v246 = vld [vmem:[%s201 + $0x38] sm:$0xff]
        %v247 = vld [vmem:[%s201 + $0x40] sm:$0x33]
        %v248 = vld [vmem:[%s201 + $0x48] sm:$0x33]
        %v249 = vld [vmem:[%s2] sm:$0xff]
        %251 = vset.pattern.permute.xlu0 0
        %252 = vperm.xlu0 %251, %v249
        %v253 = vpop.permute.xlu0 %252
        %v265 = vunpack.c.l.b16 %v239
        %v266 = vunpack.c.h.b16 %v239
        %v267 = vunpack.c.l.b16 %v240
        %v268 = vunpack.c.h.b16 %v240
        %v269 = vunpack.c.l.b16 %v241
        %v270 = vunpack.c.h.b16 %v241
        %v271 = vunpack.c.l.b16 %v242
        %v272 = vunpack.c.h.b16 %v242
        %v273 = vunpack.c.l.b16 %v243
        %v274 = vunpack.c.h.b16 %v243
        %v275 = vunpack.c.l.b16 %v244
        %v276 = vunpack.c.h.b16 %v244
        %v277 = vunpack.c.l.b16 %v245
        %v278 = vunpack.c.h.b16 %v245
        %v279 = vunpack.c.l.b16 %v246
        %v280 = vunpack.c.h.b16 %v246
        %v281 = vunpack.c.l.b16 %v247
        %v282 = vunpack.c.h.b16 %v247
        %v283 = vunpack.c.l.b16 %v248
        %v284 = vunpack.c.h.b16 %v248
        %v285 = vpack.c.b16 %v269, %v265
        %v286 = vpack.c.b16 %v270, %v266
        %v287 = vpack.c.b16 %v271, %v267
        %v288 = vpack.c.b16 %v272, %v268
        %v289 = vpack.c.b16 %v277, %v273
        %v290 = vpack.c.b16 %v278, %v274
        %v291 = vpack.c.b16 %v279, %v275
        %v292 = vpack.c.b16 %v280, %v276
        %v293 = vpack.c.b16 %v281, %v281
        %v294 = vpack.c.b16 %v282, %v282
        %v295 = vpack.c.b16 %v283, %v283
        %v296 = vpack.c.b16 %v284, %v284
        %vm305 = vcmask 293888
        %v307 = vsel %vm305, %v238, 0
        %vm309 = vcmask 1041408
        %v311 = vsel %vm309, %v293, 0
        %v314 = vsel %vm309, %v294, 0
        %v317 = vsel %vm309, %v295, 0
        %v320 = vsel %vm309, %v296, 0
        %322 = vmatprep.subr.bf16.mxu0 %v286
        %323 = vmatpush1.bf16.msra.mxu0 %v285
        %324 = vmatprep.subr.bf16.mxu0 %v290
        %325 = vmatpush1.bf16.msra.mxu0 %v289
        %326 = vmatprep.subr.bf16.mxu0 %v314
        %327 = vmatpush1.bf16.msra.mxu0 %v311
        %328 = vmatprep.subr.bf16.mxu0 0
        %329 = vmatpush1.bf16.msra.mxu0 0
        %330 = vmatprep.subr.bf16.mxu0 0
        %331 = vmatpush1.bf16.msra.mxu0 0
        %332 = vmatprep.subr.bf16.mxu0 0
        %333 = vmatpush1.bf16.msra.mxu0 0
        %334 = vmatprep.subr.bf16.mxu0 0
        %335 = vmatpush1.bf16.msra.mxu0 0
        %336 = vmatprep.subr.bf16.mxu0 0
        %337 = vmatpush1.bf16.msra.mxu0 0
        %338 = vmatprep.subr.bf16.mxu0 0
        %339 = vmatpush1.bf16.msra.mxu0 0
        %340 = vmatprep.subr.bf16.mxu0 0
        %341 = vmatpush1.bf16.msra.mxu0 0
        %342 = vmatprep.subr.bf16.mxu0 0
        %343 = vmatpush1.bf16.msra.mxu0 0
        %344 = vmatprep.subr.bf16.mxu0 0
        %345 = vmatpush1.bf16.msra.mxu0 0
        %346 = vmatprep.subr.bf16.mxu0 0
        %347 = vmatpush1.bf16.msra.mxu0 0
        %348 = vmatprep.subr.bf16.mxu0 0
        %349 = vmatpush1.bf16.msra.mxu0 0
        %350 = vmatprep.subr.bf16.mxu0 0
        %351 = vmatpush1.bf16.msra.mxu0 0
        %352 = vmatprep.subr.bf16.mxu0 0
        %353 = vmatpush1.bf16.msra.mxu0 0
        %354 = vmatprep.mubr.bf16.mxu0 0
        %355 = vmatmul.mubr.bf16.gmra.mrb[0].mxu0 %v307
        %v356 = vpop.f32.mrb[0].mxu0
        %v357 = vadd.f32 %v253, %v356
        %v358 = vpop.f32.mrb[0].mxu0
        %v359 = vadd.f32 %v253, %v358
        %v360 = vpop.f32.mrb[0].mxu0
        %v361 = vpop.f32.mrb[0].mxu0
        %362 = vdwg.mxu0
        %363 = vmatprep.subr.bf16.mxu0 %v288
        %364 = vmatpush1.bf16.msra.mxu0 %v287
        %365 = vmatprep.subr.bf16.mxu0 %v292
        %366 = vmatpush1.bf16.msra.mxu0 %v291
        %367 = vmatprep.subr.bf16.mxu0 %v320
        %368 = vmatpush1.bf16.msra.mxu0 %v317
        %369 = vmatprep.subr.bf16.mxu0 0
        %370 = vmatpush1.bf16.msra.mxu0 0
        %371 = vmatprep.subr.bf16.mxu0 0
        %372 = vmatpush1.bf16.msra.mxu0 0
        %373 = vmatprep.subr.bf16.mxu0 0
        %374 = vmatpush1.bf16.msra.mxu0 0
        %375 = vmatprep.subr.bf16.mxu0 0
        %376 = vmatpush1.bf16.msra.mxu0 0
        %377 = vmatprep.subr.bf16.mxu0 0
        %378 = vmatpush1.bf16.msra.mxu0 0
        %379 = vmatprep.subr.bf16.mxu0 0
        %380 = vmatpush1.bf16.msra.mxu0 0
        %381 = vmatprep.subr.bf16.mxu0 0
        %382 = vmatpush1.bf16.msra.mxu0 0
        %383 = vmatprep.subr.bf16.mxu0 0
        %384 = vmatpush1.bf16.msra.mxu0 0
        %385 = vmatprep.subr.bf16.mxu0 0
        %386 = vmatpush1.bf16.msra.mxu0 0
        %387 = vmatprep.subr.bf16.mxu0 0
        %388 = vmatpush1.bf16.msra.mxu0 0
        %389 = vmatprep.subr.bf16.mxu0 0
        %390 = vmatpush1.bf16.msra.mxu0 0
        %391 = vmatprep.subr.bf16.mxu0 0
        %392 = vmatpush1.bf16.msra.mxu0 0
        %393 = vmatprep.subr.bf16.mxu0 0
        %394 = vmatpush1.bf16.msra.mxu0 0
        %395 = vmatprep.mubr.bf16.mxu0 0
        %396 = vmatmul.mubr.bf16.gmra.mrb[0].mxu0 %v307
        %v397 = vpop.f32.mrb[0].mxu0
        %v398 = vadd.f32 %v253, %v397
        %v399 = vpop.f32.mrb[0].mxu0
        %v400 = vadd.f32 %v253, %v399
        %v401 = vpop.f32.mrb[0].mxu0
        %v402 = vpop.f32.mrb[0].mxu0
        %403 = vdwg.mxu0
        %v404 = vmax.f32 %v357, 0.0
        %v405 = vmax.f32 %v359, 0.0
        %v406 = vmax.f32 %v398, 0.0
        %v407 = vmax.f32 %v400, 0.0
        %v408 = vpack.c.bf16 %v404, %v404
        %v409 = vpack.c.bf16 %v405, %v405
        %v410 = vpack.c.bf16 %v406, %v406
        %v411 = vpack.c.bf16 %v407, %v407
        %v416 = vunpack.c.l.b16 %v408
        %v417 = vunpack.c.l.b16 %v409
        %v418 = vunpack.c.l.b16 %v410
        %v419 = vunpack.c.l.b16 %v411
        %v420 = vpack.c.b16 %v417, %v416
        %v421 = vpack.c.b16 %v419, %v418
        %424 = vst [vmem:[%s235] sm:$0xff] %v420
        %425 = vst [vmem:[%s235 + $0x8] sm:$0xff] %v421
        %s426 = smul.u32 4, %s19
        %p427 = scmp.lt.s32.totalorder %s18, 1
        %s428 = scalar_select %p427, %s18, 1
        %p429 = scmp.lt.s32.totalorder %s426, 7
        %s430 = scalar_select %p429, %s426, 7
        %s431 = smul.addr %s428, 8
        %s432 = sadd.s32 %s430, %s431
        %s433 = smul.addr %s432, 4
        %s434 = scalar_lea.vmem %s3, %s433
        // Predicated region
        $region56: #{_lambda_.18} parent=50 // pred_check
          %p435 = pneg %p116
        $region57: #{_lambda_.18} parent=50 // pred_check_branch
          %437 = sbr.rel (%p435) target = $region59
        $region58: #{_lambda_.18} parent=50 // pred_region
          %s438 = smul.u32 4, %s19
        $region59: #{_lambda_.18} parent=50 // pred_fallthru
          _
      $region51: #{_lambda_.18} parent=5 // pred_fallthru
        _
      %p439 = scmp.le.s32.totalorder 2, %s9
      // Predicated region
      $region60: #{_lambda_.18} parent=5 // pred_check
        %p440 = pneg %p439
      $region61: #{_lambda_.18} parent=5 // pred_check_branch
        %442 = sbr.rel (%p440) target = $region63
      $region62: #{_lambda_.18} parent=5 // pred_region
        %s443 = ssub.s32 %s9, 2
        // Predicated region
        $region64: #{_lambda_.18} parent=62 // pred_check
          %p444 = pneg %p122
        $region65: #{_lambda_.18} parent=62 // pred_check_branch
          %446 = sbr.rel (%p444) target = $region67
        $region66: #{_lambda_.18} parent=62 // pred_region
          %s447 = smul.u32 4, %s21
          %p448 = scmp.lt.s32.totalorder %s20, 1
          %s449 = scalar_select %p448, %s20, 1
          %p450 = scmp.lt.s32.totalorder %s447, 7
          %s451 = scalar_select %p450, %s447, 7
          %s452 = smul.addr %s449, 8
          %s453 = sadd.s32 %s451, %s452
          %s454 = smul.addr %s453, 4
          %s455 = scalar_lea.vmem %s3, %s454
        $region67: #{_lambda_.18} parent=62 // pred_fallthru
          _
      $region63: #{_lambda_.18} parent=5 // pred_fallthru
        _
    $region6: #{_lambda_.18} parent=1 // loop_footer
      %s13 = sadd.s32 1, %s9
    $region7: #{_lambda_.18} parent=1 // loop_footer_branch
      %8 = sbr.rel target = $region3
    $region8: #{_lambda_.18} parent=1 // loop_exit
      _

// kernel: _lambda_.19
$region0: #{_lambda_.19}
  #allocation0 [shape = 'u32[]', space=smem, size = 0x4, offset = 0x4, fixed_abs, tag = 'smem constant byte address 0x4 - core index']
  #allocation1 [shape = 'u32[144,128]{1,0:T(1,128)}', space=vmem, size = 0x12000, scoped, tag = 'internal scratch']
  %s0 = inlined_call_operand.vmem [shape: bf16[2,72,256], index: 0, kind: input, shape index: {}]
  %s1 = inlined_call_operand.vmem [shape: bf16[16,72], index: 1, kind: input, shape index: {}]
  %s2 = inlined_call_operand.vmem [shape: f32[16,1], index: 2, kind: input, shape index: {}]
  %s3 = inlined_call_operand.vmem [shape: bf16[2,16,256], index: 3, kind: output, shape index: {}]
  %s4 = sld [smem:[#allocation0]]
  $region45: #{_lambda_.19} parent=0
    _
  %s6 = ssub.s32 1, %s4
  %s7 = scalar_select 0, %s6, %s4
  loop: start=0, step=1, limit=4
  $region2: #{_lambda_.19} parent=0 // loop_pre_header
    _
  $region3: #{_lambda_.19} parent=0 // loop_header
    %s9 = sphi 0, %s13
    %p10 = scmp.ge.s32.totalorder %s9, 4
    %s16 = sphi 0, %s28
    %s17 = sphi 0, %s24
    %s18 = sphi 0, %s16
    %s19 = sphi 0, %s17
    %s20 = sphi 0, %s18
    %s21 = sphi 0, %s19
    %s33 = sphi 0, %s35
    %s36 = sphi 0, %s33
    %s37 = sphi 0, %s36
    %s53 = sphi 0, %s37
    %s57 = sphi 0, %s57
    %s59 = sphi 0, %s57
    %s60 = sphi 0, %s59
    %s74 = sphi 0, %s60
    %s78 = sphi 0, %s78
    %s80 = sphi 0, %s78
    %s81 = sphi 0, %s80
    %s95 = sphi 0, %s81
    %s103 = sphi 0, %s105
    %s106 = sphi 0, %s103
    %s107 = sphi 0, %s106
    %s123 = sphi 0, %s107
  $region4: #{_lambda_.19} parent=0 // loop_header_branch
    %12 = sbr.rel (%p10) target = $region8
  $region5: #{_lambda_.19} parent=0 // loop_body
    %s14 = ssub.s32 %s9, 1
    %s15 = ssub.s32 %s9, 2
    %s22 = sadd.s32 1, %s17
    %p23 = scmp.ge.s32.totalorder %s22, 1
    %s24 = scalar_select %p23, 0, %s22
    %s25 = sadd.s32 1, %s16
    %s26 = scalar_select %p23, %s25, %s16
    %p27 = scmp.ge.s32.totalorder %s26, 2
    %s28 = scalar_select %p27, 0, %s26
    %s29 = ssub.s32 %s16, %s28
    %s30 = ssub.s32 %s17, %s24
    %s31 = sor.u32 %s29, %s30
    %p32 = scmp.eq.s32.totalorder %s31, 0
    %s34 = sadd.s32 %s33, 1
    %s35 = scalar_select %p32, %s33, %s34
    %p38 = pneg %p32
    %p39 = scmp.eq.s32.totalorder %s9, 1
    %p40 = por %p38, %p39
    %p41 = scmp.ne.s32.totalorder %s33, %s36
    %p42 = scmp.eq.s32.totalorder %s9, 0
    %p43 = por %p41, %p42
    %p44 = scmp.ne.s32.totalorder %s33, %s36
    %p45 = scmp.eq.s32.totalorder %s14, 1
    %p46 = por %p44, %p45
    %p47 = scmp.ne.s32.totalorder %s36, %s37
    %p48 = scmp.eq.s32.totalorder %s14, 0
    %p49 = por %p47, %p48
    %p50 = scmp.ne.s32.totalorder %s36, %s37
    %p51 = scmp.eq.s32.totalorder %s15, 1
    %p52 = por %p50, %p51
    %p54 = scmp.ne.s32.totalorder %s37, %s53
    %p55 = scmp.eq.s32.totalorder %s15, 0
    %p56 = por %p54, %p55
    %s58 = sadd.s32 %s57, 1
    %p61 = scmp.eq.s32.totalorder %s9, 1
    %p62 = scmp.ne.s32.totalorder %s57, %s59
    %p63 = scmp.eq.s32.totalorder %s9, 0
    %p64 = por %p62, %p63
    %p65 = scmp.ne.s32.totalorder %s57, %s59
    %p66 = scmp.eq.s32.totalorder %s14, 1
    %p67 = por %p65, %p66
    %p68 = scmp.ne.s32.totalorder %s59, %s60
    %p69 = scmp.eq.s32.totalorder %s14, 0
    %p70 = por %p68, %p69
    %p71 = scmp.ne.s32.totalorder %s59, %s60
    %p72 = scmp.eq.s32.totalorder %s15, 1
    %p73 = por %p71, %p72
    %p75 = scmp.ne.s32.totalorder %s60, %s74
    %p76 = scmp.eq.s32.totalorder %s15, 0
    %p77 = por %p75, %p76
    %s79 = sadd.s32 %s78, 1
    %p82 = scmp.eq.s32.totalorder %s9, 1
    %p83 = scmp.ne.s32.totalorder %s78, %s80
    %p84 = scmp.eq.s32.totalorder %s9, 0
    %p85 = por %p83, %p84
    %p86 = scmp.ne.s32.totalorder %s78, %s80
    %p87 = scmp.eq.s32.totalorder %s14, 1
    %p88 = por %p86, %p87
    %p89 = scmp.ne.s32.totalorder %s80, %s81
    %p90 = scmp.eq.s32.totalorder %s14, 0
    %p91 = por %p89, %p90
    %p92 = scmp.ne.s32.totalorder %s80, %s81
    %p93 = scmp.eq.s32.totalorder %s15, 1
    %p94 = por %p92, %p93
    %p96 = scmp.ne.s32.totalorder %s81, %s95
    %p97 = scmp.eq.s32.totalorder %s15, 0
    %p98 = por %p96, %p97
    %s99 = ssub.s32 %s16, %s28
    %s100 = ssub.s32 %s17, %s24
    %s101 = sor.u32 %s99, %s100
    %p102 = scmp.eq.s32.totalorder %s101, 0
    %s104 = sadd.s32 %s103, 1
    %s105 = scalar_select %p102, %s103, %s104
    %p108 = pneg %p102
    %p109 = scmp.eq.s32.totalorder %s9, 1
    %p110 = por %p108, %p109
    %p111 = scmp.ne.s32.totalorder %s103, %s106
    %p112 = scmp.eq.s32.totalorder %s9, 0
    %p113 = por %p111, %p112
    %p114 = scmp.ne.s32.totalorder %s103, %s106
    %p115 = scmp.eq.s32.totalorder %s14, 1
    %p116 = por %p114, %p115
    %p117 = scmp.ne.s32.totalorder %s106, %s107
    %p118 = scmp.eq.s32.totalorder %s14, 0
    %p119 = por %p117, %p118
    %p120 = scmp.ne.s32.totalorder %s106, %s107
    %p121 = scmp.eq.s32.totalorder %s15, 1
    %p122 = por %p120, %p121
    %p124 = scmp.ne.s32.totalorder %s107, %s123
    %p125 = scmp.eq.s32.totalorder %s15, 0
    %p126 = por %p124, %p125
    %p127 = scmp.le.s32.totalorder 1, %s9
    %p128 = scmp.lt.s32.totalorder %s9, 3
    %p129 = pnand %p127, %p128
    %p130 = pneg %p129
    // Predicated region
    $region9: #{_lambda_.19} parent=5 // pred_check
      _
    $region10: #{_lambda_.19} parent=5 // pred_check_branch
      %132 = sbr.rel (%p129) target = $region12
    $region11: #{_lambda_.19} parent=5 // pred_region
      %s133 = ssub.s32 %s9, 1
      // Predicated region
      $region13: #{_lambda_.19} parent=11 // pred_check
        %p134 = pneg %p70
      $region14: #{_lambda_.19} parent=11 // pred_check_branch
        %136 = sbr.rel (%p134) target = $region16
      $region15: #{_lambda_.19} parent=11 // pred_region
        _
      $region16: #{_lambda_.19} parent=11 // pred_fallthru
        _
      // Predicated region
      $region17: #{_lambda_.19} parent=11 // pred_check
        %p137 = pneg %p91
      $region18: #{_lambda_.19} parent=11 // pred_check_branch
        %139 = sbr.rel (%p137) target = $region20
      $region19: #{_lambda_.19} parent=11 // pred_region
        _
      $region20: #{_lambda_.19} parent=11 // pred_fallthru
        _
    $region12: #{_lambda_.19} parent=5 // pred_fallthru
      _
    %p140 = scmp.lt.s32.totalorder %s9, 2
    // Predicated region
    $region21: #{_lambda_.19} parent=5 // pred_check
      %p141 = pneg %p140
    $region22: #{_lambda_.19} parent=5 // pred_check_branch
      %143 = sbr.rel (%p141) target = $region24
    $region23: #{_lambda_.19} parent=5 // pred_region
      // Predicated region
      $region25: #{_lambda_.19} parent=23 // pred_check
        %p144 = pneg %p43
      $region26: #{_lambda_.19} parent=23 // pred_check_branch
        %146 = sbr.rel (%p144) target = $region28
      $region27: #{_lambda_.19} parent=23 // pred_region
        %s147 = smul.u32 2, %s17
        %p148 = scmp.lt.s32.totalorder %s16, 1
        %s149 = scalar_select %p148, %s16, 1
        %p150 = scmp.lt.s32.totalorder %s147, 1
        %s151 = scalar_select %p150, %s147, 1
        %s152 = smul.addr %s149, 18
        %s153 = sadd.s32 %s151, %s152
        %s154 = smul.addr %s153, 4
        %s155 = scalar_lea.vmem %s0, %s154
        %s156 = smul.u32 2, %s17
      $region28: #{_lambda_.19} parent=23 // pred_fallthru
        _
    $region24: #{_lambda_.19} parent=5 // pred_fallthru
      _
    %p157 = scmp.le.s32.totalorder 1, %s9
    %p158 = scmp.lt.s32.totalorder %s9, 3
    %p159 = pnand %p157, %p158
    %p160 = pneg %p159
    // Predicated region
    $region29: #{_lambda_.19} parent=5 // pred_check
      _
    $region30: #{_lambda_.19} parent=5 // pred_check_branch
      %162 = sbr.rel (%p159) target = $region32
    $region31: #{_lambda_.19} parent=5 // pred_region
      %s163 = ssub.s32 %s9, 1
      %s164 = smul.u32 2, %s19
      %p165 = scmp.lt.s32.totalorder %s18, 1
      %s166 = scalar_select %p165, %s18, 1
      %p167 = scmp.lt.s32.totalorder %s164, 1
      %s168 = scalar_select %p167, %s164, 1
      %s169 = smul.addr %s166, 18
      %s170 = sadd.s32 %s168, %s169
      %s171 = smul.addr %s170, 4
      %s172 = scalar_lea.vmem %s0, %s171
      %p173 = pneg %p49
      %p174 = pneg %p46
      %p175 = pneg %p70
      %p176 = pneg %p67
      %p177 = pneg %p91
      %p178 = pneg %p88
      %p179 = pneg %p119
      %p180 = pneg %p116
      %s181 = smul.u32 2, %s19
      %p182 = scmp.lt.s32.totalorder %s18, 1
      %s183 = scalar_select %p182, %s18, 1
      %p184 = scmp.lt.s32.totalorder %s181, 1
      %s185 = scalar_select %p184, %s181, 1
      %s186 = smul.addr %s183, 4
      %s187 = sadd.s32 %s185, %s186
      %s188 = smul.addr %s187, 4
      %s189 = scalar_lea.vmem %s3, %s188
      %s190 = smul.u32 2, %s19
      %p191 = scmp.lt.s32.totalorder %s18, 1
      %s192 = scalar_select %p191, %s18, 1
      %p193 = scmp.lt.s32.totalorder %s190, 1
      %s194 = scalar_select %p193, %s190, 1
      %s195 = smul.addr %s192, 18
      %s196 = sadd.s32 %s194, %s195
      %s197 = smul.addr %s196, 4
      %s198 = scalar_lea.vmem %s0, %s197
      %s199 = smul.u32 2, %s19
      %s200 = smul.u32 2, %s19
      %p201 = scmp.lt.s32.totalorder %s18, 1
      %s202 = scalar_select %p201, %s18, 1
      %p203 = scmp.lt.s32.totalorder %s200, 1
      %s204 = scalar_select %p203, %s200, 1
      %s205 = smul.addr %s202, 4
      %s206 = sadd.s32 %s204, %s205
      %s207 = smul.addr %s206, 4
      %s208 = scalar_lea.vmem %s3, %s207
      %s209 = smul.u32 2, %s19
      %v211 = vld [vmem:[%s1] sm:$0xf]
      %v212 = vld [vmem:[%s1 + $0x4] sm:$0xf]
      %v213 = vld [vmem:[%s198] sm:$0xff]
      %v214 = vld [vmem:[%s198 + $0x8] sm:$0xff]
      %v215 = vld [vmem:[%s198 + $0x10] sm:$0xff]
      %v216 = vld [vmem:[%s198 + $0x18] sm:$0xff]
      %v217 = vld [vmem:[%s198 + $0x20] sm:$0xff]
      %v218 = vld [vmem:[%s198 + $0x28] sm:$0xff]
      %v219 = vld [vmem:[%s198 + $0x30] sm:$0xff]
      %v220 = vld [vmem:[%s198 + $0x38] sm:$0xff]
      %v221 = vld [vmem:[%s198 + $0x40] sm:$0xff]
      %v222 = vld [vmem:[%s2] sm:$0xff]
      %v223 = vld [vmem:[%s2 + $0x8] sm:$0xff]
      %225 = vset.pattern.permute.xlu0 0
      %226 = vperm.xlu0 %225, %v222
      %v227 = vpop.permute.xlu0 %226
      %230 = vset.pattern.permute.xlu0 0
      %231 = vperm.xlu0 %230, %v223
      %v232 = vpop.permute.xlu0 %231
      %v236 = vunpack.c.l.b16 %v211
      %v237 = vunpack.c.l.b16 %v212
      %v238 = vpack.c.b16 %v237, %v236
      %v248 = vunpack.c.l.b16 %v213
      %v249 = vunpack.c.h.b16 %v213
      %v250 = vunpack.c.l.b16 %v214
      %v251 = vunpack.c.h.b16 %v214
      %v252 = vunpack.c.l.b16 %v215
      %v253 = vunpack.c.h.b16 %v215
      %v254 = vunpack.c.l.b16 %v216
      %v255 = vunpack.c.h.b16 %v216
      %v256 = vunpack.c.l.b16 %v217
      %v257 = vunpack.c.h.b16 %v217
      %v258 = vunpack.c.l.b16 %v218
      %v259 = vunpack.c.h.b16 %v218
      %v260 = vunpack.c.l.b16 %v219
      %v261 = vunpack.c.h.b16 %v219
      %v262 = vunpack.c.l.b16 %v220
      %v263 = vunpack.c.h.b16 %v220
      %v264 = vunpack.c.l.b16 %v221
      %v265 = vunpack.c.h.b16 %v221
      %v266 = vpack.c.b16 %v250, %v248
      %v267 = vpack.c.b16 %v251, %v249
      %v268 = vpack.c.b16 %v254, %v252
      %v269 = vpack.c.b16 %v255, %v253
      %v270 = vpack.c.b16 %v258, %v256
      %v271 = vpack.c.b16 %v259, %v257
      %v272 = vpack.c.b16 %v262, %v260
      %v273 = vpack.c.b16 %v263, %v261
      %v274 = vpack.c.b16 %v264, %v264
      %v275 = vpack.c.b16 %v265, %v265
      %vm284 = vcmask 588800
      %v286 = vsel %vm284, %v238, 0
      %vm288 = vcmask 1043456
      %v290 = vsel %vm288, %v274, 0
      %v293 = vsel %vm288, %v275, 0
      %295 = vmatprep.subr.bf16.mxu0 %v267
      %296 = vmatpush1.bf16.msra.mxu0 %v266
      %297 = vmatprep.subr.bf16.mxu0 %v269
      %298 = vmatpush1.bf16.msra.mxu0 %v268
      %299 = vmatprep.subr.bf16.mxu0 %v271
      %300 = vmatpush1.bf16.msra.mxu0 %v270
      %301 = vmatprep.subr.bf16.mxu0 %v273
      %302 = vmatpush1.bf16.msra.mxu0 %v272
      %303 = vmatprep.subr.bf16.mxu0 %v293
      %304 = vmatpush1.bf16.msra.mxu0 %v290
      %305 = vmatprep.subr.bf16.mxu0 0
      %306 = vmatpush1.bf16.msra.mxu0 0
      %307 = vmatprep.subr.bf16.mxu0 0
      %308 = vmatpush1.bf16.msra.mxu0 0
      %309 = vmatprep.subr.bf16.mxu0 0
      %310 = vmatpush1.bf16.msra.mxu0 0
      %311 = vmatprep.subr.bf16.mxu0 0
      %312 = vmatpush1.bf16.msra.mxu0 0
      %313 = vmatprep.subr.bf16.mxu0 0
      %314 = vmatpush1.bf16.msra.mxu0 0
      %315 = vmatprep.subr.bf16.mxu0 0
      %316 = vmatpush1.bf16.msra.mxu0 0
      %317 = vmatprep.subr.bf16.mxu0 0
      %318 = vmatpush1.bf16.msra.mxu0 0
      %319 = vmatprep.subr.bf16.mxu0 0
      %320 = vmatpush1.bf16.msra.mxu0 0
      %321 = vmatprep.subr.bf16.mxu0 0
      %322 = vmatpush1.bf16.msra.mxu0 0
      %323 = vmatprep.subr.bf16.mxu0 0
      %324 = vmatpush1.bf16.msra.mxu0 0
      %325 = vmatprep.subr.bf16.mxu0 0
      %326 = vmatpush1.bf16.msra.mxu0 0
      %327 = vmatprep.mubr.bf16.mxu0 0
      %328 = vmatmul.mubr.bf16.gmra.mrb[0].mxu0 %v286
      %v329 = vpop.f32.mrb[0].mxu0
      %v330 = vadd.f32 %v227, %v329
      %v331 = vpop.f32.mrb[0].mxu0
      %v332 = vadd.f32 %v227, %v331
      %v333 = vpop.f32.mrb[0].mxu0
      %v334 = vadd.f32 %v232, %v333
      %v335 = vpop.f32.mrb[0].mxu0
      %v336 = vadd.f32 %v232, %v335
      %337 = vdwg.mxu0
      %v338 = vmax.f32 %v330, 0.0
      %v339 = vmax.f32 %v332, 0.0
      %v340 = vmax.f32 %v334, 0.0
      %v341 = vmax.f32 %v336, 0.0
      %v342 = vpack.c.bf16 %v340, %v338
      %v343 = vpack.c.bf16 %v341, %v339
      %v346 = vunpack.c.l.b16 %v342
      %v347 = vunpack.c.l.b16 %v343
      %v348 = vunpack.c.h.b16 %v342
      %v349 = vunpack.c.h.b16 %v343
      %v350 = vpack.c.b16 %v347, %v346
      %v351 = vpack.c.b16 %v349, %v348
      %354 = vst [vmem:[%s208] sm:$0xff] %v350
      %355 = vst [vmem:[%s208 + $0x8] sm:$0xff] %v351
      %s356 = smul.u32 2, %s19
      %p357 = scmp.lt.s32.totalorder %s18, 1
      %s358 = scalar_select %p357, %s18, 1
      %p359 = scmp.lt.s32.totalorder %s356, 1
      %s360 = scalar_select %p359, %s356, 1
      %s361 = smul.addr %s358, 4
      %s362 = sadd.s32 %s360, %s361
      %s363 = smul.addr %s362, 4
      %s364 = scalar_lea.vmem %s3, %s363
      // Predicated region
      $region33: #{_lambda_.19} parent=31 // pred_check
        %p365 = pneg %p116
      $region34: #{_lambda_.19} parent=31 // pred_check_branch
        %367 = sbr.rel (%p365) target = $region36
      $region35: #{_lambda_.19} parent=31 // pred_region
        %s368 = smul.u32 2, %s19
      $region36: #{_lambda_.19} parent=31 // pred_fallthru
        _
    $region32: #{_lambda_.19} parent=5 // pred_fallthru
      _
    %p369 = scmp.le.s32.totalorder 2, %s9
    // Predicated region
    $region37: #{_lambda_.19} parent=5 // pred_check
      %p370 = pneg %p369
    $region38: #{_lambda_.19} parent=5 // pred_check_branch
      %372 = sbr.rel (%p370) target = $region40
    $region39: #{_lambda_.19} parent=5 // pred_region
      %s373 = ssub.s32 %s9, 2
      // Predicated region
      $region41: #{_lambda_.19} parent=39 // pred_check
        %p374 = pneg %p122
      $region42: #{_lambda_.19} parent=39 // pred_check_branch
        %376 = sbr.rel (%p374) target = $region44
      $region43: #{_lambda_.19} parent=39 // pred_region
        %s377 = smul.u32 2, %s21
        %p378 = scmp.lt.s32.totalorder %s20, 1
        %s379 = scalar_select %p378, %s20, 1
        %p380 = scmp.lt.s32.totalorder %s377, 1
        %s381 = scalar_select %p380, %s377, 1
        %s382 = smul.addr %s379, 4
        %s383 = sadd.s32 %s381, %s382
        %s384 = smul.addr %s383, 4
        %s385 = scalar_lea.vmem %s3, %s384
      $region44: #{_lambda_.19} parent=39 // pred_fallthru
        _
    $region40: #{_lambda_.19} parent=5 // pred_fallthru
      _
  $region6: #{_lambda_.19} parent=0 // loop_footer
    %s13 = sadd.s32 1, %s9
  $region7: #{_lambda_.19} parent=0 // loop_footer_branch
    %8 = sbr.rel target = $region3
  $region8: #{_lambda_.19} parent=0 // loop_exit
    _

// kernel: _lambda_.20
$region0: #{_lambda_.20}
  #allocation0 [shape = 'u32[]', space=smem, size = 0x4, offset = 0x4, fixed_abs, tag = 'smem constant byte address 0x4 - core index']
  #allocation1 [shape = 'u32[144,128]{1,0:T(1,128)}', space=vmem, size = 0x12000, scoped, tag = 'internal scratch']
  %s0 = inlined_call_operand.vmem [shape: bf16[2,144,256], index: 0, kind: input, shape index: {}]
  %s1 = inlined_call_operand.vmem [shape: bf16[16,144], index: 1, kind: input, shape index: {}]
  %s2 = inlined_call_operand.vmem [shape: f32[16,1], index: 2, kind: input, shape index: {}]
  %s3 = inlined_call_operand.vmem [shape: bf16[2,16,256], index: 3, kind: output, shape index: {}]
  %s4 = sld [smem:[#allocation0]]
  $region45: #{_lambda_.20} parent=0
    _
  %s6 = ssub.s32 1, %s4
  %s7 = scalar_select 0, %s6, %s4
  loop: start=0, step=1, limit=4
  $region2: #{_lambda_.20} parent=0 // loop_pre_header
    _
  $region3: #{_lambda_.20} parent=0 // loop_header
    %s9 = sphi 0, %s13
    %p10 = scmp.ge.s32.totalorder %s9, 4
    %s16 = sphi 0, %s28
    %s17 = sphi 0, %s24
    %s18 = sphi 0, %s16
    %s19 = sphi 0, %s17
    %s20 = sphi 0, %s18
    %s21 = sphi 0, %s19
    %s33 = sphi 0, %s35
    %s36 = sphi 0, %s33
    %s37 = sphi 0, %s36
    %s53 = sphi 0, %s37
    %s57 = sphi 0, %s57
    %s59 = sphi 0, %s57
    %s60 = sphi 0, %s59
    %s74 = sphi 0, %s60
    %s78 = sphi 0, %s78
    %s80 = sphi 0, %s78
    %s81 = sphi 0, %s80
    %s95 = sphi 0, %s81
    %s103 = sphi 0, %s105
    %s106 = sphi 0, %s103
    %s107 = sphi 0, %s106
    %s123 = sphi 0, %s107
  $region4: #{_lambda_.20} parent=0 // loop_header_branch
    %12 = sbr.rel (%p10) target = $region8
  $region5: #{_lambda_.20} parent=0 // loop_body
    %s14 = ssub.s32 %s9, 1
    %s15 = ssub.s32 %s9, 2
    %s22 = sadd.s32 1, %s17
    %p23 = scmp.ge.s32.totalorder %s22, 1
    %s24 = scalar_select %p23, 0, %s22
    %s25 = sadd.s32 1, %s16
    %s26 = scalar_select %p23, %s25, %s16
    %p27 = scmp.ge.s32.totalorder %s26, 2
    %s28 = scalar_select %p27, 0, %s26
    %s29 = ssub.s32 %s16, %s28
    %s30 = ssub.s32 %s17, %s24
    %s31 = sor.u32 %s29, %s30
    %p32 = scmp.eq.s32.totalorder %s31, 0
    %s34 = sadd.s32 %s33, 1
    %s35 = scalar_select %p32, %s33, %s34
    %p38 = pneg %p32
    %p39 = scmp.eq.s32.totalorder %s9, 1
    %p40 = por %p38, %p39
    %p41 = scmp.ne.s32.totalorder %s33, %s36
    %p42 = scmp.eq.s32.totalorder %s9, 0
    %p43 = por %p41, %p42
    %p44 = scmp.ne.s32.totalorder %s33, %s36
    %p45 = scmp.eq.s32.totalorder %s14, 1
    %p46 = por %p44, %p45
    %p47 = scmp.ne.s32.totalorder %s36, %s37
    %p48 = scmp.eq.s32.totalorder %s14, 0
    %p49 = por %p47, %p48
    %p50 = scmp.ne.s32.totalorder %s36, %s37
    %p51 = scmp.eq.s32.totalorder %s15, 1
    %p52 = por %p50, %p51
    %p54 = scmp.ne.s32.totalorder %s37, %s53
    %p55 = scmp.eq.s32.totalorder %s15, 0
    %p56 = por %p54, %p55
    %s58 = sadd.s32 %s57, 1
    %p61 = scmp.eq.s32.totalorder %s9, 1
    %p62 = scmp.ne.s32.totalorder %s57, %s59
    %p63 = scmp.eq.s32.totalorder %s9, 0
    %p64 = por %p62, %p63
    %p65 = scmp.ne.s32.totalorder %s57, %s59
    %p66 = scmp.eq.s32.totalorder %s14, 1
    %p67 = por %p65, %p66
    %p68 = scmp.ne.s32.totalorder %s59, %s60
    %p69 = scmp.eq.s32.totalorder %s14, 0
    %p70 = por %p68, %p69
    %p71 = scmp.ne.s32.totalorder %s59, %s60
    %p72 = scmp.eq.s32.totalorder %s15, 1
    %p73 = por %p71, %p72
    %p75 = scmp.ne.s32.totalorder %s60, %s74
    %p76 = scmp.eq.s32.totalorder %s15, 0
    %p77 = por %p75, %p76
    %s79 = sadd.s32 %s78, 1
    %p82 = scmp.eq.s32.totalorder %s9, 1
    %p83 = scmp.ne.s32.totalorder %s78, %s80
    %p84 = scmp.eq.s32.totalorder %s9, 0
    %p85 = por %p83, %p84
    %p86 = scmp.ne.s32.totalorder %s78, %s80
    %p87 = scmp.eq.s32.totalorder %s14, 1
    %p88 = por %p86, %p87
    %p89 = scmp.ne.s32.totalorder %s80, %s81
    %p90 = scmp.eq.s32.totalorder %s14, 0
    %p91 = por %p89, %p90
    %p92 = scmp.ne.s32.totalorder %s80, %s81
    %p93 = scmp.eq.s32.totalorder %s15, 1
    %p94 = por %p92, %p93
    %p96 = scmp.ne.s32.totalorder %s81, %s95
    %p97 = scmp.eq.s32.totalorder %s15, 0
    %p98 = por %p96, %p97
    %s99 = ssub.s32 %s16, %s28
    %s100 = ssub.s32 %s17, %s24
    %s101 = sor.u32 %s99, %s100
    %p102 = scmp.eq.s32.totalorder %s101, 0
    %s104 = sadd.s32 %s103, 1
    %s105 = scalar_select %p102, %s103, %s104
    %p108 = pneg %p102
    %p109 = scmp.eq.s32.totalorder %s9, 1
    %p110 = por %p108, %p109
    %p111 = scmp.ne.s32.totalorder %s103, %s106
    %p112 = scmp.eq.s32.totalorder %s9, 0
    %p113 = por %p111, %p112
    %p114 = scmp.ne.s32.totalorder %s103, %s106
    %p115 = scmp.eq.s32.totalorder %s14, 1
    %p116 = por %p114, %p115
    %p117 = scmp.ne.s32.totalorder %s106, %s107
    %p118 = scmp.eq.s32.totalorder %s14, 0
    %p119 = por %p117, %p118
    %p120 = scmp.ne.s32.totalorder %s106, %s107
    %p121 = scmp.eq.s32.totalorder %s15, 1
    %p122 = por %p120, %p121
    %p124 = scmp.ne.s32.totalorder %s107, %s123
    %p125 = scmp.eq.s32.totalorder %s15, 0
    %p126 = por %p124, %p125
    %p127 = scmp.le.s32.totalorder 1, %s9
    %p128 = scmp.lt.s32.totalorder %s9, 3
    %p129 = pnand %p127, %p128
    %p130 = pneg %p129
    // Predicated region
    $region9: #{_lambda_.20} parent=5 // pred_check
      _
    $region10: #{_lambda_.20} parent=5 // pred_check_branch
      %132 = sbr.rel (%p129) target = $region12
    $region11: #{_lambda_.20} parent=5 // pred_region
      %s133 = ssub.s32 %s9, 1
      // Predicated region
      $region13: #{_lambda_.20} parent=11 // pred_check
        %p134 = pneg %p70
      $region14: #{_lambda_.20} parent=11 // pred_check_branch
        %136 = sbr.rel (%p134) target = $region16
      $region15: #{_lambda_.20} parent=11 // pred_region
        _
      $region16: #{_lambda_.20} parent=11 // pred_fallthru
        _
      // Predicated region
      $region17: #{_lambda_.20} parent=11 // pred_check
        %p137 = pneg %p91
      $region18: #{_lambda_.20} parent=11 // pred_check_branch
        %139 = sbr.rel (%p137) target = $region20
      $region19: #{_lambda_.20} parent=11 // pred_region
        _
      $region20: #{_lambda_.20} parent=11 // pred_fallthru
        _
    $region12: #{_lambda_.20} parent=5 // pred_fallthru
      _
    %p140 = scmp.lt.s32.totalorder %s9, 2
    // Predicated region
    $region21: #{_lambda_.20} parent=5 // pred_check
      %p141 = pneg %p140
    $region22: #{_lambda_.20} parent=5 // pred_check_branch
      %143 = sbr.rel (%p141) target = $region24
    $region23: #{_lambda_.20} parent=5 // pred_region
      // Predicated region
      $region25: #{_lambda_.20} parent=23 // pred_check
        %p144 = pneg %p43
      $region26: #{_lambda_.20} parent=23 // pred_check_branch
        %146 = sbr.rel (%p144) target = $region28
      $region27: #{_lambda_.20} parent=23 // pred_region
        %s147 = smul.u32 2, %s17
        %p148 = scmp.lt.s32.totalorder %s16, 1
        %s149 = scalar_select %p148, %s16, 1
        %p150 = scmp.lt.s32.totalorder %s147, 1
        %s151 = scalar_select %p150, %s147, 1
        %s152 = smul.addr %s149, 36
        %s153 = sadd.s32 %s151, %s152
        %s154 = smul.addr %s153, 4
        %s155 = scalar_lea.vmem %s0, %s154
        %s156 = smul.u32 2, %s17
      $region28: #{_lambda_.20} parent=23 // pred_fallthru
        _
    $region24: #{_lambda_.20} parent=5 // pred_fallthru
      _
    %p157 = scmp.le.s32.totalorder 1, %s9
    %p158 = scmp.lt.s32.totalorder %s9, 3
    %p159 = pnand %p157, %p158
    %p160 = pneg %p159
    // Predicated region
    $region29: #{_lambda_.20} parent=5 // pred_check
      _
    $region30: #{_lambda_.20} parent=5 // pred_check_branch
      %162 = sbr.rel (%p159) target = $region32
    $region31: #{_lambda_.20} parent=5 // pred_region
      %s163 = ssub.s32 %s9, 1
      %s164 = smul.u32 2, %s19
      %p165 = scmp.lt.s32.totalorder %s18, 1
      %s166 = scalar_select %p165, %s18, 1
      %p167 = scmp.lt.s32.totalorder %s164, 1
      %s168 = scalar_select %p167, %s164, 1
      %s169 = smul.addr %s166, 36
      %s170 = sadd.s32 %s168, %s169
      %s171 = smul.addr %s170, 4
      %s172 = scalar_lea.vmem %s0, %s171
      %p173 = pneg %p49
      %p174 = pneg %p46
      %p175 = pneg %p70
      %p176 = pneg %p67
      %p177 = pneg %p91
      %p178 = pneg %p88
      %p179 = pneg %p119
      %p180 = pneg %p116
      %s181 = smul.u32 2, %s19
      %p182 = scmp.lt.s32.totalorder %s18, 1
      %s183 = scalar_select %p182, %s18, 1
      %p184 = scmp.lt.s32.totalorder %s181, 1
      %s185 = scalar_select %p184, %s181, 1
      %s186 = smul.addr %s183, 4
      %s187 = sadd.s32 %s185, %s186
      %s188 = smul.addr %s187, 4
      %s189 = scalar_lea.vmem %s3, %s188
      %s190 = smul.u32 2, %s19
      %p191 = scmp.lt.s32.totalorder %s18, 1
      %s192 = scalar_select %p191, %s18, 1
      %p193 = scmp.lt.s32.totalorder %s190, 1
      %s194 = scalar_select %p193, %s190, 1
      %s195 = smul.addr %s192, 36
      %s196 = sadd.s32 %s194, %s195
      %s197 = smul.addr %s196, 4
      %s198 = scalar_lea.vmem %s0, %s197
      %s199 = smul.u32 2, %s19
      %s200 = smul.u32 2, %s19
      %p201 = scmp.lt.s32.totalorder %s18, 1
      %s202 = scalar_select %p201, %s18, 1
      %p203 = scmp.lt.s32.totalorder %s200, 1
      %s204 = scalar_select %p203, %s200, 1
      %s205 = smul.addr %s202, 4
      %s206 = sadd.s32 %s204, %s205
      %s207 = smul.addr %s206, 4
      %s208 = scalar_lea.vmem %s3, %s207
      %s209 = smul.u32 2, %s19
      %v211 = vld [vmem:[%s1] sm:$0xff]
      %v212 = vld [vmem:[%s1 + $0x8] sm:$0xff]
      %v213 = vld [vmem:[%s198] sm:$0xff]
      %v214 = vld [vmem:[%s198 + $0x8] sm:$0xff]
      %v215 = vld [vmem:[%s198 + $0x10] sm:$0xff]
      %v216 = vld [vmem:[%s198 + $0x18] sm:$0xff]
      %v217 = vld [vmem:[%s198 + $0x20] sm:$0xff]
      %v218 = vld [vmem:[%s198 + $0x28] sm:$0xff]
      %v219 = vld [vmem:[%s198 + $0x30] sm:$0xff]
      %v220 = vld [vmem:[%s198 + $0x38] sm:$0xff]
      %v221 = vld [vmem:[%s198 + $0x40] sm:$0xff]
      %v222 = vld [vmem:[%s198 + $0x48] sm:$0xff]
      %v223 = vld [vmem:[%s198 + $0x50] sm:$0xff]
      %v224 = vld [vmem:[%s198 + $0x58] sm:$0xff]
      %v225 = vld [vmem:[%s198 + $0x60] sm:$0xff]
      %v226 = vld [vmem:[%s198 + $0x68] sm:$0xff]
      %v227 = vld [vmem:[%s198 + $0x70] sm:$0xff]
      %v228 = vld [vmem:[%s198 + $0x78] sm:$0xff]
      %v229 = vld [vmem:[%s198 + $0x80] sm:$0xff]
      %v230 = vld [vmem:[%s198 + $0x88] sm:$0xff]
      %v231 = vld [vmem:[%s2] sm:$0xff]
      %v232 = vld [vmem:[%s2 + $0x8] sm:$0xff]
      %234 = vset.pattern.permute.xlu0 0
      %235 = vperm.xlu0 %234, %v231
      %v236 = vpop.permute.xlu0 %235
      %239 = vset.pattern.permute.xlu0 0
      %240 = vperm.xlu0 %239, %v232
      %v241 = vpop.permute.xlu0 %240
      %v245 = vunpack.c.l.b16 %v211
      %v246 = vunpack.c.h.b16 %v211
      %v247 = vunpack.c.l.b16 %v212
      %v248 = vunpack.c.h.b16 %v212
      %v249 = vpack.c.b16 %v247, %v245
      %v250 = vpack.c.b16 %v248, %v246
      %v270 = vunpack.c.l.b16 %v213
      %v271 = vunpack.c.h.b16 %v213
      %v272 = vunpack.c.l.b16 %v214
      %v273 = vunpack.c.h.b16 %v214
      %v274 = vunpack.c.l.b16 %v215
      %v275 = vunpack.c.h.b16 %v215
      %v276 = vunpack.c.l.b16 %v216
      %v277 = vunpack.c.h.b16 %v216
      %v278 = vunpack.c.l.b16 %v217
      %v279 = vunpack.c.h.b16 %v217
      %v280 = vunpack.c.l.b16 %v218
      %v281 = vunpack.c.h.b16 %v218
      %v282 = vunpack.c.l.b16 %v219
      %v283 = vunpack.c.h.b16 %v219
      %v284 = vunpack.c.l.b16 %v220
      %v285 = vunpack.c.h.b16 %v220
      %v286 = vunpack.c.l.b16 %v221
      %v287 = vunpack.c.h.b16 %v221
      %v288 = vunpack.c.l.b16 %v222
      %v289 = vunpack.c.h.b16 %v222
      %v290 = vunpack.c.l.b16 %v223
      %v291 = vunpack.c.h.b16 %v223
      %v292 = vunpack.c.l.b16 %v224
      %v293 = vunpack.c.h.b16 %v224
      %v294 = vunpack.c.l.b16 %v225
      %v295 = vunpack.c.h.b16 %v225
      %v296 = vunpack.c.l.b16 %v226
      %v297 = vunpack.c.h.b16 %v226
      %v298 = vunpack.c.l.b16 %v227
      %v299 = vunpack.c.h.b16 %v227
      %v300 = vunpack.c.l.b16 %v228
      %v301 = vunpack.c.h.b16 %v228
      %v302 = vunpack.c.l.b16 %v229
      %v303 = vunpack.c.h.b16 %v229
      %v304 = vunpack.c.l.b16 %v230
      %v305 = vunpack.c.h.b16 %v230
      %v306 = vpack.c.b16 %v272, %v270
      %v307 = vpack.c.b16 %v273, %v271
      %v308 = vpack.c.b16 %v276, %v274
      %v309 = vpack.c.b16 %v277, %v275
      %v310 = vpack.c.b16 %v280, %v278
      %v311 = vpack.c.b16 %v281, %v279
      %v312 = vpack.c.b16 %v284, %v282
      %v313 = vpack.c.b16 %v285, %v283
      %v314 = vpack.c.b16 %v288, %v286
      %v315 = vpack.c.b16 %v289, %v287
      %v316 = vpack.c.b16 %v292, %v290
      %v317 = vpack.c.b16 %v293, %v291
      %v318 = vpack.c.b16 %v296, %v294
      %v319 = vpack.c.b16 %v297, %v295
      %v320 = vpack.c.b16 %v300, %v298
      %v321 = vpack.c.b16 %v301, %v299
      %v322 = vpack.c.b16 %v304, %v302
      %v323 = vpack.c.b16 %v305, %v303
      %vm342 = vcmask 130048
      %v344 = vsel %vm342, %v250, 0
      %346 = vmatprep.subr.bf16.mxu0 %v307
      %347 = vmatpush1.bf16.msra.mxu0 %v306
      %348 = vmatprep.subr.bf16.mxu0 %v309
      %349 = vmatpush1.bf16.msra.mxu0 %v308
      %350 = vmatprep.subr.bf16.mxu0 %v311
      %351 = vmatpush1.bf16.msra.mxu0 %v310
      %352 = vmatprep.subr.bf16.mxu0 %v313
      %353 = vmatpush1.bf16.msra.mxu0 %v312
      %354 = vmatprep.subr.bf16.mxu0 %v315
      %355 = vmatpush1.bf16.msra.mxu0 %v314
      %356 = vmatprep.subr.bf16.mxu0 %v317
      %357 = vmatpush1.bf16.msra.mxu0 %v316
      %358 = vmatprep.subr.bf16.mxu0 %v319
      %359 = vmatpush1.bf16.msra.mxu0 %v318
      %360 = vmatprep.subr.bf16.mxu0 %v321
      %361 = vmatpush1.bf16.msra.mxu0 %v320
      %362 = vmatprep.subr.bf16.mxu0 %v323
      %363 = vmatpush1.bf16.msra.mxu0 %v322
      %364 = vmatprep.subr.bf16.mxu0 0
      %365 = vmatpush1.bf16.msra.mxu0 0
      %366 = vmatprep.subr.bf16.mxu0 0
      %367 = vmatpush1.bf16.msra.mxu0 0
      %368 = vmatprep.subr.bf16.mxu0 0
      %369 = vmatpush1.bf16.msra.mxu0 0
      %370 = vmatprep.subr.bf16.mxu0 0
      %371 = vmatpush1.bf16.msra.mxu0 0
      %372 = vmatprep.subr.bf16.mxu0 0
      %373 = vmatpush1.bf16.msra.mxu0 0
      %374 = vmatprep.subr.bf16.mxu0 0
      %375 = vmatpush1.bf16.msra.mxu0 0
      %376 = vmatprep.subr.bf16.mxu0 0
      %377 = vmatpush1.bf16.msra.mxu0 0
      %378 = vmatprep.mubr.bf16.mxu0 %v344
      %379 = vmatmul.mubr.bf16.gmra.mrb[0].mxu0 %v249
      %v380 = vpop.f32.mrb[0].mxu0
      %v381 = vadd.f32 %v236, %v380
      %v382 = vpop.f32.mrb[0].mxu0
      %v383 = vadd.f32 %v236, %v382
      %v384 = vpop.f32.mrb[0].mxu0
      %v385 = vadd.f32 %v241, %v384
      %v386 = vpop.f32.mrb[0].mxu0
      %v387 = vadd.f32 %v241, %v386
      %388 = vdwg.mxu0
      %v389 = vmax.f32 %v381, 0.0
      %v390 = vmax.f32 %v383, 0.0
      %v391 = vmax.f32 %v385, 0.0
      %v392 = vmax.f32 %v387, 0.0
      %v393 = vpack.c.bf16 %v391, %v389
      %v394 = vpack.c.bf16 %v392, %v390
      %v397 = vunpack.c.l.b16 %v393
      %v398 = vunpack.c.l.b16 %v394
      %v399 = vunpack.c.h.b16 %v393
      %v400 = vunpack.c.h.b16 %v394
      %v401 = vpack.c.b16 %v398, %v397
      %v402 = vpack.c.b16 %v400, %v399
      %405 = vst [vmem:[%s208] sm:$0xff] %v401
      %406 = vst [vmem:[%s208 + $0x8] sm:$0xff] %v402
      %s407 = smul.u32 2, %s19
      %p408 = scmp.lt.s32.totalorder %s18, 1
      %s409 = scalar_select %p408, %s18, 1
      %p410 = scmp.lt.s32.totalorder %s407, 1
      %s411 = scalar_select %p410, %s407, 1
      %s412 = smul.addr %s409, 4
      %s413 = sadd.s32 %s411, %s412
      %s414 = smul.addr %s413, 4
      %s415 = scalar_lea.vmem %s3, %s414
      // Predicated region
      $region33: #{_lambda_.20} parent=31 // pred_check
        %p416 = pneg %p116
      $region34: #{_lambda_.20} parent=31 // pred_check_branch
        %418 = sbr.rel (%p416) target = $region36
      $region35: #{_lambda_.20} parent=31 // pred_region
        %s419 = smul.u32 2, %s19
      $region36: #{_lambda_.20} parent=31 // pred_fallthru
        _
    $region32: #{_lambda_.20} parent=5 // pred_fallthru
      _
    %p420 = scmp.le.s32.totalorder 2, %s9
    // Predicated region
    $region37: #{_lambda_.20} parent=5 // pred_check
      %p421 = pneg %p420
    $region38: #{_lambda_.20} parent=5 // pred_check_branch
      %423 = sbr.rel (%p421) target = $region40
    $region39: #{_lambda_.20} parent=5 // pred_region
      %s424 = ssub.s32 %s9, 2
      // Predicated region
      $region41: #{_lambda_.20} parent=39 // pred_check
        %p425 = pneg %p122
      $region42: #{_lambda_.20} parent=39 // pred_check_branch
        %427 = sbr.rel (%p425) target = $region44
      $region43: #{_lambda_.20} parent=39 // pred_region
        %s428 = smul.u32 2, %s21
        %p429 = scmp.lt.s32.totalorder %s20, 1
        %s430 = scalar_select %p429, %s20, 1
        %p431 = scmp.lt.s32.totalorder %s428, 1
        %s432 = scalar_select %p431, %s428, 1
        %s433 = smul.addr %s430, 4
        %s434 = sadd.s32 %s432, %s433
        %s435 = smul.addr %s434, 4
        %s436 = scalar_lea.vmem %s3, %s435
      $region44: #{_lambda_.20} parent=39 // pred_fallthru
        _
    $region40: #{_lambda_.20} parent=5 // pred_fallthru
      _
  $region6: #{_lambda_.20} parent=0 // loop_footer
    %s13 = sadd.s32 1, %s9
  $region7: #{_lambda_.20} parent=0 // loop_footer_branch
    %8 = sbr.rel target = $region3
  $region8: #{_lambda_.20} parent=0 // loop_exit
    _

// kernel: _lambda_.21
$region0: #{_lambda_.21}
  #allocation0 [shape = 'u32[]', space=smem, size = 0x4, offset = 0x4, fixed_abs, tag = 'smem constant byte address 0x4 - core index']
  #allocation1 [shape = 'u32[144,128]{1,0:T(1,128)}', space=vmem, size = 0x12000, scoped, tag = 'internal scratch']
  %s0 = inlined_call_operand.vmem [shape: bf16[2,144,256], index: 0, kind: input, shape index: {}]
  %s1 = inlined_call_operand.vmem [shape: bf16[16,144], index: 1, kind: input, shape index: {}]
  %s2 = inlined_call_operand.vmem [shape: f32[16,1], index: 2, kind: input, shape index: {}]
  %s3 = inlined_call_operand.vmem [shape: bf16[2,16,256], index: 3, kind: input, shape index: {}]
  %s4 = inlined_call_operand.vmem [shape: bf16[2,16,256], index: 4, kind: output, shape index: {}]
  %s5 = sld [smem:[#allocation0]]
  $region49: #{_lambda_.21} parent=0
    _
  %s7 = ssub.s32 1, %s5
  %s8 = scalar_select 0, %s7, %s5
  loop: start=0, step=1, limit=4
  $region2: #{_lambda_.21} parent=0 // loop_pre_header
    _
  $region3: #{_lambda_.21} parent=0 // loop_header
    %s10 = sphi 0, %s14
    %p11 = scmp.ge.s32.totalorder %s10, 4
    %s17 = sphi 0, %s29
    %s18 = sphi 0, %s25
    %s19 = sphi 0, %s17
    %s20 = sphi 0, %s18
    %s21 = sphi 0, %s19
    %s22 = sphi 0, %s20
    %s34 = sphi 0, %s36
    %s37 = sphi 0, %s34
    %s38 = sphi 0, %s37
    %s54 = sphi 0, %s38
    %s58 = sphi 0, %s58
    %s60 = sphi 0, %s58
    %s61 = sphi 0, %s60
    %s75 = sphi 0, %s61
    %s79 = sphi 0, %s79
    %s81 = sphi 0, %s79
    %s82 = sphi 0, %s81
    %s96 = sphi 0, %s82
    %s104 = sphi 0, %s106
    %s107 = sphi 0, %s104
    %s108 = sphi 0, %s107
    %s124 = sphi 0, %s108
    %s132 = sphi 0, %s134
    %s135 = sphi 0, %s132
    %s136 = sphi 0, %s135
    %s152 = sphi 0, %s136
  $region4: #{_lambda_.21} parent=0 // loop_header_branch
    %13 = sbr.rel (%p11) target = $region8
  $region5: #{_lambda_.21} parent=0 // loop_body
    %s15 = ssub.s32 %s10, 1
    %s16 = ssub.s32 %s10, 2
    %s23 = sadd.s32 1, %s18
    %p24 = scmp.ge.s32.totalorder %s23, 1
    %s25 = scalar_select %p24, 0, %s23
    %s26 = sadd.s32 1, %s17
    %s27 = scalar_select %p24, %s26, %s17
    %p28 = scmp.ge.s32.totalorder %s27, 2
    %s29 = scalar_select %p28, 0, %s27
    %s30 = ssub.s32 %s17, %s29
    %s31 = ssub.s32 %s18, %s25
    %s32 = sor.u32 %s30, %s31
    %p33 = scmp.eq.s32.totalorder %s32, 0
    %s35 = sadd.s32 %s34, 1
    %s36 = scalar_select %p33, %s34, %s35
    %p39 = pneg %p33
    %p40 = scmp.eq.s32.totalorder %s10, 1
    %p41 = por %p39, %p40
    %p42 = scmp.ne.s32.totalorder %s34, %s37
    %p43 = scmp.eq.s32.totalorder %s10, 0
    %p44 = por %p42, %p43
    %p45 = scmp.ne.s32.totalorder %s34, %s37
    %p46 = scmp.eq.s32.totalorder %s15, 1
    %p47 = por %p45, %p46
    %p48 = scmp.ne.s32.totalorder %s37, %s38
    %p49 = scmp.eq.s32.totalorder %s15, 0
    %p50 = por %p48, %p49
    %p51 = scmp.ne.s32.totalorder %s37, %s38
    %p52 = scmp.eq.s32.totalorder %s16, 1
    %p53 = por %p51, %p52
    %p55 = scmp.ne.s32.totalorder %s38, %s54
    %p56 = scmp.eq.s32.totalorder %s16, 0
    %p57 = por %p55, %p56
    %s59 = sadd.s32 %s58, 1
    %p62 = scmp.eq.s32.totalorder %s10, 1
    %p63 = scmp.ne.s32.totalorder %s58, %s60
    %p64 = scmp.eq.s32.totalorder %s10, 0
    %p65 = por %p63, %p64
    %p66 = scmp.ne.s32.totalorder %s58, %s60
    %p67 = scmp.eq.s32.totalorder %s15, 1
    %p68 = por %p66, %p67
    %p69 = scmp.ne.s32.totalorder %s60, %s61
    %p70 = scmp.eq.s32.totalorder %s15, 0
    %p71 = por %p69, %p70
    %p72 = scmp.ne.s32.totalorder %s60, %s61
    %p73 = scmp.eq.s32.totalorder %s16, 1
    %p74 = por %p72, %p73
    %p76 = scmp.ne.s32.totalorder %s61, %s75
    %p77 = scmp.eq.s32.totalorder %s16, 0
    %p78 = por %p76, %p77
    %s80 = sadd.s32 %s79, 1
    %p83 = scmp.eq.s32.totalorder %s10, 1
    %p84 = scmp.ne.s32.totalorder %s79, %s81
    %p85 = scmp.eq.s32.totalorder %s10, 0
    %p86 = por %p84, %p85
    %p87 = scmp.ne.s32.totalorder %s79, %s81
    %p88 = scmp.eq.s32.totalorder %s15, 1
    %p89 = por %p87, %p88
    %p90 = scmp.ne.s32.totalorder %s81, %s82
    %p91 = scmp.eq.s32.totalorder %s15, 0
    %p92 = por %p90, %p91
    %p93 = scmp.ne.s32.totalorder %s81, %s82
    %p94 = scmp.eq.s32.totalorder %s16, 1
    %p95 = por %p93, %p94
    %p97 = scmp.ne.s32.totalorder %s82, %s96
    %p98 = scmp.eq.s32.totalorder %s16, 0
    %p99 = por %p97, %p98
    %s100 = ssub.s32 %s17, %s29
    %s101 = ssub.s32 %s18, %s25
    %s102 = sor.u32 %s100, %s101
    %p103 = scmp.eq.s32.totalorder %s102, 0
    %s105 = sadd.s32 %s104, 1
    %s106 = scalar_select %p103, %s104, %s105
    %p109 = pneg %p103
    %p110 = scmp.eq.s32.totalorder %s10, 1
    %p111 = por %p109, %p110
    %p112 = scmp.ne.s32.totalorder %s104, %s107
    %p113 = scmp.eq.s32.totalorder %s10, 0
    %p114 = por %p112, %p113
    %p115 = scmp.ne.s32.totalorder %s104, %s107
    %p116 = scmp.eq.s32.totalorder %s15, 1
    %p117 = por %p115, %p116
    %p118 = scmp.ne.s32.totalorder %s107, %s108
    %p119 = scmp.eq.s32.totalorder %s15, 0
    %p120 = por %p118, %p119
    %p121 = scmp.ne.s32.totalorder %s107, %s108
    %p122 = scmp.eq.s32.totalorder %s16, 1
    %p123 = por %p121, %p122
    %p125 = scmp.ne.s32.totalorder %s108, %s124
    %p126 = scmp.eq.s32.totalorder %s16, 0
    %p127 = por %p125, %p126
    %s128 = ssub.s32 %s17, %s29
    %s129 = ssub.s32 %s18, %s25
    %s130 = sor.u32 %s128, %s129
    %p131 = scmp.eq.s32.totalorder %s130, 0
    %s133 = sadd.s32 %s132, 1
    %s134 = scalar_select %p131, %s132, %s133
    %p137 = pneg %p131
    %p138 = scmp.eq.s32.totalorder %s10, 1
    %p139 = por %p137, %p138
    %p140 = scmp.ne.s32.totalorder %s132, %s135
    %p141 = scmp.eq.s32.totalorder %s10, 0
    %p142 = por %p140, %p141
    %p143 = scmp.ne.s32.totalorder %s132, %s135
    %p144 = scmp.eq.s32.totalorder %s15, 1
    %p145 = por %p143, %p144
    %p146 = scmp.ne.s32.totalorder %s135, %s136
    %p147 = scmp.eq.s32.totalorder %s15, 0
    %p148 = por %p146, %p147
    %p149 = scmp.ne.s32.totalorder %s135, %s136
    %p150 = scmp.eq.s32.totalorder %s16, 1
    %p151 = por %p149, %p150
    %p153 = scmp.ne.s32.totalorder %s136, %s152
    %p154 = scmp.eq.s32.totalorder %s16, 0
    %p155 = por %p153, %p154
    %p156 = scmp.le.s32.totalorder 1, %s10
    %p157 = scmp.lt.s32.totalorder %s10, 3
    %p158 = pnand %p156, %p157
    %p159 = pneg %p158
    // Predicated region
    $region9: #{_lambda_.21} parent=5 // pred_check
      _
    $region10: #{_lambda_.21} parent=5 // pred_check_branch
      %161 = sbr.rel (%p158) target = $region12
    $region11: #{_lambda_.21} parent=5 // pred_region
      %s162 = ssub.s32 %s10, 1
      // Predicated region
      $region13: #{_lambda_.21} parent=11 // pred_check
        %p163 = pneg %p71
      $region14: #{_lambda_.21} parent=11 // pred_check_branch
        %165 = sbr.rel (%p163) target = $region16
      $region15: #{_lambda_.21} parent=11 // pred_region
        _
      $region16: #{_lambda_.21} parent=11 // pred_fallthru
        _
      // Predicated region
      $region17: #{_lambda_.21} parent=11 // pred_check
        %p166 = pneg %p92
      $region18: #{_lambda_.21} parent=11 // pred_check_branch
        %168 = sbr.rel (%p166) target = $region20
      $region19: #{_lambda_.21} parent=11 // pred_region
        _
      $region20: #{_lambda_.21} parent=11 // pred_fallthru
        _
    $region12: #{_lambda_.21} parent=5 // pred_fallthru
      _
    %p169 = scmp.lt.s32.totalorder %s10, 2
    // Predicated region
    $region21: #{_lambda_.21} parent=5 // pred_check
      %p170 = pneg %p169
    $region22: #{_lambda_.21} parent=5 // pred_check_branch
      %172 = sbr.rel (%p170) target = $region24
    $region23: #{_lambda_.21} parent=5 // pred_region
      // Predicated region
      $region25: #{_lambda_.21} parent=23 // pred_check
        %p173 = pneg %p44
      $region26: #{_lambda_.21} parent=23 // pred_check_branch
        %175 = sbr.rel (%p173) target = $region28
      $region27: #{_lambda_.21} parent=23 // pred_region
        %s176 = smul.u32 2, %s18
        %p177 = scmp.lt.s32.totalorder %s17, 1
        %s178 = scalar_select %p177, %s17, 1
        %p179 = scmp.lt.s32.totalorder %s176, 1
        %s180 = scalar_select %p179, %s176, 1
        %s181 = smul.addr %s178, 36
        %s182 = sadd.s32 %s180, %s181
        %s183 = smul.addr %s182, 4
        %s184 = scalar_lea.vmem %s0, %s183
        %s185 = smul.u32 2, %s18
      $region28: #{_lambda_.21} parent=23 // pred_fallthru
        _
      // Predicated region
      $region29: #{_lambda_.21} parent=23 // pred_check
        %p186 = pneg %p114
      $region30: #{_lambda_.21} parent=23 // pred_check_branch
        %188 = sbr.rel (%p186) target = $region32
      $region31: #{_lambda_.21} parent=23 // pred_region
        %s189 = smul.u32 2, %s18
        %p190 = scmp.lt.s32.totalorder %s17, 1
        %s191 = scalar_select %p190, %s17, 1
        %p192 = scmp.lt.s32.totalorder %s189, 1
        %s193 = scalar_select %p192, %s189, 1
        %s194 = smul.addr %s191, 4
        %s195 = sadd.s32 %s193, %s194
        %s196 = smul.addr %s195, 4
        %s197 = scalar_lea.vmem %s3, %s196
        %s198 = smul.u32 2, %s18
      $region32: #{_lambda_.21} parent=23 // pred_fallthru
        _
    $region24: #{_lambda_.21} parent=5 // pred_fallthru
      _
    %p199 = scmp.le.s32.totalorder 1, %s10
    %p200 = scmp.lt.s32.totalorder %s10, 3
    %p201 = pnand %p199, %p200
    %p202 = pneg %p201
    // Predicated region
    $region33: #{_lambda_.21} parent=5 // pred_check
      _
    $region34: #{_lambda_.21} parent=5 // pred_check_branch
      %204 = sbr.rel (%p201) target = $region36
    $region35: #{_lambda_.21} parent=5 // pred_region
      %s205 = ssub.s32 %s10, 1
      %s206 = smul.u32 2, %s20
      %p207 = scmp.lt.s32.totalorder %s19, 1
      %s208 = scalar_select %p207, %s19, 1
      %p209 = scmp.lt.s32.totalorder %s206, 1
      %s210 = scalar_select %p209, %s206, 1
      %s211 = smul.addr %s208, 36
      %s212 = sadd.s32 %s210, %s211
      %s213 = smul.addr %s212, 4
      %s214 = scalar_lea.vmem %s0, %s213
      %p215 = pneg %p50
      %p216 = pneg %p47
      %p217 = pneg %p71
      %p218 = pneg %p68
      %p219 = pneg %p92
      %p220 = pneg %p89
      %s221 = smul.u32 2, %s20
      %p222 = scmp.lt.s32.totalorder %s19, 1
      %s223 = scalar_select %p222, %s19, 1
      %p224 = scmp.lt.s32.totalorder %s221, 1
      %s225 = scalar_select %p224, %s221, 1
      %s226 = smul.addr %s223, 4
      %s227 = sadd.s32 %s225, %s226
      %s228 = smul.addr %s227, 4
      %s229 = scalar_lea.vmem %s3, %s228
      %p230 = pneg %p120
      %p231 = pneg %p117
      %p232 = pneg %p148
      %p233 = pneg %p145
      %s234 = smul.u32 2, %s20
      %p235 = scmp.lt.s32.totalorder %s19, 1
      %s236 = scalar_select %p235, %s19, 1
      %p237 = scmp.lt.s32.totalorder %s234, 1
      %s238 = scalar_select %p237, %s234, 1
      %s239 = smul.addr %s236, 4
      %s240 = sadd.s32 %s238, %s239
      %s241 = smul.addr %s240, 4
      %s242 = scalar_lea.vmem %s4, %s241
      %s243 = smul.u32 2, %s20
      %p244 = scmp.lt.s32.totalorder %s19, 1
      %s245 = scalar_select %p244, %s19, 1
      %p246 = scmp.lt.s32.totalorder %s243, 1
      %s247 = scalar_select %p246, %s243, 1
      %s248 = smul.addr %s245, 36
      %s249 = sadd.s32 %s247, %s248
      %s250 = smul.addr %s249, 4
      %s251 = scalar_lea.vmem %s0, %s250
      %s252 = smul.u32 2, %s20
      %s253 = smul.u32 2, %s20
      %p254 = scmp.lt.s32.totalorder %s19, 1
      %s255 = scalar_select %p254, %s19, 1
      %p256 = scmp.lt.s32.totalorder %s253, 1
      %s257 = scalar_select %p256, %s253, 1
      %s258 = smul.addr %s255, 4
      %s259 = sadd.s32 %s257, %s258
      %s260 = smul.addr %s259, 4
      %s261 = scalar_lea.vmem %s3, %s260
      %s262 = smul.u32 2, %s20
      %s263 = smul.u32 2, %s20
      %p264 = scmp.lt.s32.totalorder %s19, 1
      %s265 = scalar_select %p264, %s19, 1
      %p266 = scmp.lt.s32.totalorder %s263, 1
      %s267 = scalar_select %p266, %s263, 1
      %s268 = smul.addr %s265, 4
      %s269 = sadd.s32 %s267, %s268
      %s270 = smul.addr %s269, 4
      %s271 = scalar_lea.vmem %s4, %s270
      %s272 = smul.u32 2, %s20
      %v274 = vld [vmem:[%s1] sm:$0xff]
      %v275 = vld [vmem:[%s1 + $0x8] sm:$0xff]
      %v276 = vld [vmem:[%s251] sm:$0xff]
      %v277 = vld [vmem:[%s251 + $0x8] sm:$0xff]
      %v278 = vld [vmem:[%s251 + $0x10] sm:$0xff]
      %v279 = vld [vmem:[%s251 + $0x18] sm:$0xff]
      %v280 = vld [vmem:[%s251 + $0x20] sm:$0xff]
      %v281 = vld [vmem:[%s251 + $0x28] sm:$0xff]
      %v282 = vld [vmem:[%s251 + $0x30] sm:$0xff]
      %v283 = vld [vmem:[%s251 + $0x38] sm:$0xff]
      %v284 = vld [vmem:[%s251 + $0x40] sm:$0xff]
      %v285 = vld [vmem:[%s251 + $0x48] sm:$0xff]
      %v286 = vld [vmem:[%s251 + $0x50] sm:$0xff]
      %v287 = vld [vmem:[%s251 + $0x58] sm:$0xff]
      %v288 = vld [vmem:[%s251 + $0x60] sm:$0xff]
      %v289 = vld [vmem:[%s251 + $0x68] sm:$0xff]
      %v290 = vld [vmem:[%s251 + $0x70] sm:$0xff]
      %v291 = vld [vmem:[%s251 + $0x78] sm:$0xff]
      %v292 = vld [vmem:[%s251 + $0x80] sm:$0xff]
      %v293 = vld [vmem:[%s251 + $0x88] sm:$0xff]
      %v294 = vld [vmem:[%s2] sm:$0xff]
      %v295 = vld [vmem:[%s2 + $0x8] sm:$0xff]
      %297 = vset.pattern.permute.xlu0 0
      %298 = vperm.xlu0 %297, %v294
      %v299 = vpop.permute.xlu0 %298
      %302 = vset.pattern.permute.xlu0 0
      %303 = vperm.xlu0 %302, %v295
      %v304 = vpop.permute.xlu0 %303
      %v308 = vunpack.c.l.b16 %v274
      %v309 = vunpack.c.h.b16 %v274
      %v310 = vunpack.c.l.b16 %v275
      %v311 = vunpack.c.h.b16 %v275
      %v312 = vpack.c.b16 %v310, %v308
      %v313 = vpack.c.b16 %v311, %v309
      %v333 = vunpack.c.l.b16 %v276
      %v334 = vunpack.c.h.b16 %v276
      %v335 = vunpack.c.l.b16 %v277
      %v336 = vunpack.c.h.b16 %v277
      %v337 = vunpack.c.l.b16 %v278
      %v338 = vunpack.c.h.b16 %v278
      %v339 = vunpack.c.l.b16 %v279
      %v340 = vunpack.c.h.b16 %v279
      %v341 = vunpack.c.l.b16 %v280
      %v342 = vunpack.c.h.b16 %v280
      %v343 = vunpack.c.l.b16 %v281
      %v344 = vunpack.c.h.b16 %v281
      %v345 = vunpack.c.l.b16 %v282
      %v346 = vunpack.c.h.b16 %v282
      %v347 = vunpack.c.l.b16 %v283
      %v348 = vunpack.c.h.b16 %v283
      %v349 = vunpack.c.l.b16 %v284
      %v350 = vunpack.c.h.b16 %v284
      %v351 = vunpack.c.l.b16 %v285
      %v352 = vunpack.c.h.b16 %v285
      %v353 = vunpack.c.l.b16 %v286
      %v354 = vunpack.c.h.b16 %v286
      %v355 = vunpack.c.l.b16 %v287
      %v356 = vunpack.c.h.b16 %v287
      %v357 = vunpack.c.l.b16 %v288
      %v358 = vunpack.c.h.b16 %v288
      %v359 = vunpack.c.l.b16 %v289
      %v360 = vunpack.c.h.b16 %v289
      %v361 = vunpack.c.l.b16 %v290
      %v362 = vunpack.c.h.b16 %v290
      %v363 = vunpack.c.l.b16 %v291
      %v364 = vunpack.c.h.b16 %v291
      %v365 = vunpack.c.l.b16 %v292
      %v366 = vunpack.c.h.b16 %v292
      %v367 = vunpack.c.l.b16 %v293
      %v368 = vunpack.c.h.b16 %v293
      %v369 = vpack.c.b16 %v335, %v333
      %v370 = vpack.c.b16 %v336, %v334
      %v371 = vpack.c.b16 %v339, %v337
      %v372 = vpack.c.b16 %v340, %v338
      %v373 = vpack.c.b16 %v343, %v341
      %v374 = vpack.c.b16 %v344, %v342
      %v375 = vpack.c.b16 %v347, %v345
      %v376 = vpack.c.b16 %v348, %v346
      %v377 = vpack.c.b16 %v351, %v349
      %v378 = vpack.c.b16 %v352, %v350
      %v379 = vpack.c.b16 %v355, %v353
      %v380 = vpack.c.b16 %v356, %v354
      %v381 = vpack.c.b16 %v359, %v357
      %v382 = vpack.c.b16 %v360, %v358
      %v383 = vpack.c.b16 %v363, %v361
      %v384 = vpack.c.b16 %v364, %v362
      %v385 = vpack.c.b16 %v367, %v365
      %v386 = vpack.c.b16 %v368, %v366
      %vm405 = vcmask 130048
      %v407 = vsel %vm405, %v313, 0
      %409 = vmatprep.subr.bf16.mxu0 %v370
      %410 = vmatpush1.bf16.msra.mxu0 %v369
      %411 = vmatprep.subr.bf16.mxu0 %v372
      %412 = vmatpush1.bf16.msra.mxu0 %v371
      %413 = vmatprep.subr.bf16.mxu0 %v374
      %414 = vmatpush1.bf16.msra.mxu0 %v373
      %415 = vmatprep.subr.bf16.mxu0 %v376
      %416 = vmatpush1.bf16.msra.mxu0 %v375
      %417 = vmatprep.subr.bf16.mxu0 %v378
      %418 = vmatpush1.bf16.msra.mxu0 %v377
      %419 = vmatprep.subr.bf16.mxu0 %v380
      %420 = vmatpush1.bf16.msra.mxu0 %v379
      %421 = vmatprep.subr.bf16.mxu0 %v382
      %422 = vmatpush1.bf16.msra.mxu0 %v381
      %423 = vmatprep.subr.bf16.mxu0 %v384
      %424 = vmatpush1.bf16.msra.mxu0 %v383
      %425 = vmatprep.subr.bf16.mxu0 %v386
      %426 = vmatpush1.bf16.msra.mxu0 %v385
      %427 = vmatprep.subr.bf16.mxu0 0
      %428 = vmatpush1.bf16.msra.mxu0 0
      %429 = vmatprep.subr.bf16.mxu0 0
      %430 = vmatpush1.bf16.msra.mxu0 0
      %431 = vmatprep.subr.bf16.mxu0 0
      %432 = vmatpush1.bf16.msra.mxu0 0
      %433 = vmatprep.subr.bf16.mxu0 0
      %434 = vmatpush1.bf16.msra.mxu0 0
      %435 = vmatprep.subr.bf16.mxu0 0
      %436 = vmatpush1.bf16.msra.mxu0 0
      %437 = vmatprep.subr.bf16.mxu0 0
      %438 = vmatpush1.bf16.msra.mxu0 0
      %439 = vmatprep.subr.bf16.mxu0 0
      %440 = vmatpush1.bf16.msra.mxu0 0
      %441 = vmatprep.mubr.bf16.mxu0 %v407
      %442 = vmatmul.mubr.bf16.gmra.mrb[0].mxu0 %v312
      %v443 = vpop.f32.mrb[0].mxu0
      %v444 = vadd.f32 %v299, %v443
      %v445 = vpop.f32.mrb[0].mxu0
      %v446 = vadd.f32 %v299, %v445
      %v447 = vpop.f32.mrb[0].mxu0
      %v448 = vadd.f32 %v304, %v447
      %v449 = vpop.f32.mrb[0].mxu0
      %v450 = vadd.f32 %v304, %v449
      %451 = vdwg.mxu0
      %v452 = vld [vmem:[%s261] sm:$0xff]
      %v453 = vld [vmem:[%s261 + $0x8] sm:$0xff]
      %v454 = vunpack.c.l.bf16 %v452
      %v455 = vunpack.c.h.bf16 %v452
      %v456 = vunpack.c.l.bf16 %v453
      %v457 = vunpack.c.h.bf16 %v453
      %v458 = vadd.f32 %v444, %v454
      %v459 = vadd.f32 %v446, %v455
      %v460 = vadd.f32 %v448, %v456
      %v461 = vadd.f32 %v450, %v457
      %v462 = vmax.f32 %v458, 0.0
      %v463 = vmax.f32 %v459, 0.0
      %v464 = vmax.f32 %v460, 0.0
      %v465 = vmax.f32 %v461, 0.0
      %v466 = vpack.c.bf16 %v464, %v462
      %v467 = vpack.c.bf16 %v465, %v463
      %v470 = vunpack.c.l.b16 %v466
      %v471 = vunpack.c.l.b16 %v467
      %v472 = vunpack.c.h.b16 %v466
      %v473 = vunpack.c.h.b16 %v467
      %v474 = vpack.c.b16 %v471, %v470
      %v475 = vpack.c.b16 %v473, %v472
      %478 = vst [vmem:[%s271] sm:$0xff] %v474
      %479 = vst [vmem:[%s271 + $0x8] sm:$0xff] %v475
      %s480 = smul.u32 2, %s20
      %p481 = scmp.lt.s32.totalorder %s19, 1
      %s482 = scalar_select %p481, %s19, 1
      %p483 = scmp.lt.s32.totalorder %s480, 1
      %s484 = scalar_select %p483, %s480, 1
      %s485 = smul.addr %s482, 4
      %s486 = sadd.s32 %s484, %s485
      %s487 = smul.addr %s486, 4
      %s488 = scalar_lea.vmem %s4, %s487
      // Predicated region
      $region37: #{_lambda_.21} parent=35 // pred_check
        %p489 = pneg %p145
      $region38: #{_lambda_.21} parent=35 // pred_check_branch
        %491 = sbr.rel (%p489) target = $region40
      $region39: #{_lambda_.21} parent=35 // pred_region
        %s492 = smul.u32 2, %s20
      $region40: #{_lambda_.21} parent=35 // pred_fallthru
        _
    $region36: #{_lambda_.21} parent=5 // pred_fallthru
      _
    %p493 = scmp.le.s32.totalorder 2, %s10
    // Predicated region
    $region41: #{_lambda_.21} parent=5 // pred_check
      %p494 = pneg %p493
    $region42: #{_lambda_.21} parent=5 // pred_check_branch
      %496 = sbr.rel (%p494) target = $region44
    $region43: #{_lambda_.21} parent=5 // pred_region
      %s497 = ssub.s32 %s10, 2
      // Predicated region
      $region45: #{_lambda_.21} parent=43 // pred_check
        %p498 = pneg %p151
      $region46: #{_lambda_.21} parent=43 // pred_check_branch
        %500 = sbr.rel (%p498) target = $region48
      $region47: #{_lambda_.21} parent=43 // pred_region
        %s501 = smul.u32 2, %s22
        %p502 = scmp.lt.s32.totalorder %s21, 1
        %s503 = scalar_select %p502, %s21, 1
        %p504 = scmp.lt.s32.totalorder %s501, 1
        %s505 = scalar_select %p504, %s501, 1
        %s506 = smul.addr %s503, 4
        %s507 = sadd.s32 %s505, %s506
        %s508 = smul.addr %s507, 4
        %s509 = scalar_lea.vmem %s4, %s508
      $region48: #{_lambda_.21} parent=43 // pred_fallthru
        _
    $region44: #{_lambda_.21} parent=5 // pred_fallthru
      _
  $region6: #{_lambda_.21} parent=0 // loop_footer
    %s14 = sadd.s32 1, %s10
  $region7: #{_lambda_.21} parent=0 // loop_footer_branch
    %9 = sbr.rel target = $region3
  $region8: #{_lambda_.21} parent=0 // loop_exit
    _

// kernel: _lambda_.22
$region0: #{_lambda_.22}
  #allocation0 [shape = 'u32[]', space=smem, size = 0x4, offset = 0x4, fixed_abs, tag = 'smem constant byte address 0x4 - core index']
  #allocation1 [shape = 'u32[144,128]{1,0:T(1,128)}', space=vmem, size = 0x12000, scoped, tag = 'internal scratch']
  %s0 = inlined_call_operand.vmem [shape: bf16[2,144,128], index: 0, kind: input, shape index: {}]
  %s1 = inlined_call_operand.vmem [shape: bf16[32,144], index: 1, kind: input, shape index: {}]
  %s2 = inlined_call_operand.vmem [shape: f32[32,1], index: 2, kind: input, shape index: {}]
  %s3 = inlined_call_operand.vmem [shape: bf16[2,32,128], index: 3, kind: output, shape index: {}]
  %s4 = sld [smem:[#allocation0]]
  $region45: #{_lambda_.22} parent=0
    _
  %s6 = ssub.s32 1, %s4
  %s7 = scalar_select 0, %s6, %s4
  loop: start=0, step=1, limit=4
  $region2: #{_lambda_.22} parent=0 // loop_pre_header
    _
  $region3: #{_lambda_.22} parent=0 // loop_header
    %s9 = sphi 0, %s13
    %p10 = scmp.ge.s32.totalorder %s9, 4
    %s16 = sphi 0, %s28
    %s17 = sphi 0, %s24
    %s18 = sphi 0, %s16
    %s19 = sphi 0, %s17
    %s20 = sphi 0, %s18
    %s21 = sphi 0, %s19
    %s33 = sphi 0, %s35
    %s36 = sphi 0, %s33
    %s37 = sphi 0, %s36
    %s53 = sphi 0, %s37
    %s57 = sphi 0, %s57
    %s59 = sphi 0, %s57
    %s60 = sphi 0, %s59
    %s74 = sphi 0, %s60
    %s78 = sphi 0, %s78
    %s80 = sphi 0, %s78
    %s81 = sphi 0, %s80
    %s95 = sphi 0, %s81
    %s103 = sphi 0, %s105
    %s106 = sphi 0, %s103
    %s107 = sphi 0, %s106
    %s123 = sphi 0, %s107
  $region4: #{_lambda_.22} parent=0 // loop_header_branch
    %12 = sbr.rel (%p10) target = $region8
  $region5: #{_lambda_.22} parent=0 // loop_body
    %s14 = ssub.s32 %s9, 1
    %s15 = ssub.s32 %s9, 2
    %s22 = sadd.s32 1, %s17
    %p23 = scmp.ge.s32.totalorder %s22, 1
    %s24 = scalar_select %p23, 0, %s22
    %s25 = sadd.s32 1, %s16
    %s26 = scalar_select %p23, %s25, %s16
    %p27 = scmp.ge.s32.totalorder %s26, 2
    %s28 = scalar_select %p27, 0, %s26
    %s29 = ssub.s32 %s16, %s28
    %s30 = ssub.s32 %s17, %s24
    %s31 = sor.u32 %s29, %s30
    %p32 = scmp.eq.s32.totalorder %s31, 0
    %s34 = sadd.s32 %s33, 1
    %s35 = scalar_select %p32, %s33, %s34
    %p38 = pneg %p32
    %p39 = scmp.eq.s32.totalorder %s9, 1
    %p40 = por %p38, %p39
    %p41 = scmp.ne.s32.totalorder %s33, %s36
    %p42 = scmp.eq.s32.totalorder %s9, 0
    %p43 = por %p41, %p42
    %p44 = scmp.ne.s32.totalorder %s33, %s36
    %p45 = scmp.eq.s32.totalorder %s14, 1
    %p46 = por %p44, %p45
    %p47 = scmp.ne.s32.totalorder %s36, %s37
    %p48 = scmp.eq.s32.totalorder %s14, 0
    %p49 = por %p47, %p48
    %p50 = scmp.ne.s32.totalorder %s36, %s37
    %p51 = scmp.eq.s32.totalorder %s15, 1
    %p52 = por %p50, %p51
    %p54 = scmp.ne.s32.totalorder %s37, %s53
    %p55 = scmp.eq.s32.totalorder %s15, 0
    %p56 = por %p54, %p55
    %s58 = sadd.s32 %s57, 1
    %p61 = scmp.eq.s32.totalorder %s9, 1
    %p62 = scmp.ne.s32.totalorder %s57, %s59
    %p63 = scmp.eq.s32.totalorder %s9, 0
    %p64 = por %p62, %p63
    %p65 = scmp.ne.s32.totalorder %s57, %s59
    %p66 = scmp.eq.s32.totalorder %s14, 1
    %p67 = por %p65, %p66
    %p68 = scmp.ne.s32.totalorder %s59, %s60
    %p69 = scmp.eq.s32.totalorder %s14, 0
    %p70 = por %p68, %p69
    %p71 = scmp.ne.s32.totalorder %s59, %s60
    %p72 = scmp.eq.s32.totalorder %s15, 1
    %p73 = por %p71, %p72
    %p75 = scmp.ne.s32.totalorder %s60, %s74
    %p76 = scmp.eq.s32.totalorder %s15, 0
    %p77 = por %p75, %p76
    %s79 = sadd.s32 %s78, 1
    %p82 = scmp.eq.s32.totalorder %s9, 1
    %p83 = scmp.ne.s32.totalorder %s78, %s80
    %p84 = scmp.eq.s32.totalorder %s9, 0
    %p85 = por %p83, %p84
    %p86 = scmp.ne.s32.totalorder %s78, %s80
    %p87 = scmp.eq.s32.totalorder %s14, 1
    %p88 = por %p86, %p87
    %p89 = scmp.ne.s32.totalorder %s80, %s81
    %p90 = scmp.eq.s32.totalorder %s14, 0
    %p91 = por %p89, %p90
    %p92 = scmp.ne.s32.totalorder %s80, %s81
    %p93 = scmp.eq.s32.totalorder %s15, 1
    %p94 = por %p92, %p93
    %p96 = scmp.ne.s32.totalorder %s81, %s95
    %p97 = scmp.eq.s32.totalorder %s15, 0
    %p98 = por %p96, %p97
    %s99 = ssub.s32 %s16, %s28
    %s100 = ssub.s32 %s17, %s24
    %s101 = sor.u32 %s99, %s100
    %p102 = scmp.eq.s32.totalorder %s101, 0
    %s104 = sadd.s32 %s103, 1
    %s105 = scalar_select %p102, %s103, %s104
    %p108 = pneg %p102
    %p109 = scmp.eq.s32.totalorder %s9, 1
    %p110 = por %p108, %p109
    %p111 = scmp.ne.s32.totalorder %s103, %s106
    %p112 = scmp.eq.s32.totalorder %s9, 0
    %p113 = por %p111, %p112
    %p114 = scmp.ne.s32.totalorder %s103, %s106
    %p115 = scmp.eq.s32.totalorder %s14, 1
    %p116 = por %p114, %p115
    %p117 = scmp.ne.s32.totalorder %s106, %s107
    %p118 = scmp.eq.s32.totalorder %s14, 0
    %p119 = por %p117, %p118
    %p120 = scmp.ne.s32.totalorder %s106, %s107
    %p121 = scmp.eq.s32.totalorder %s15, 1
    %p122 = por %p120, %p121
    %p124 = scmp.ne.s32.totalorder %s107, %s123
    %p125 = scmp.eq.s32.totalorder %s15, 0
    %p126 = por %p124, %p125
    %p127 = scmp.le.s32.totalorder 1, %s9
    %p128 = scmp.lt.s32.totalorder %s9, 3
    %p129 = pnand %p127, %p128
    %p130 = pneg %p129
    // Predicated region
    $region9: #{_lambda_.22} parent=5 // pred_check
      _
    $region10: #{_lambda_.22} parent=5 // pred_check_branch
      %132 = sbr.rel (%p129) target = $region12
    $region11: #{_lambda_.22} parent=5 // pred_region
      %s133 = ssub.s32 %s9, 1
      // Predicated region
      $region13: #{_lambda_.22} parent=11 // pred_check
        %p134 = pneg %p70
      $region14: #{_lambda_.22} parent=11 // pred_check_branch
        %136 = sbr.rel (%p134) target = $region16
      $region15: #{_lambda_.22} parent=11 // pred_region
        _
      $region16: #{_lambda_.22} parent=11 // pred_fallthru
        _
      // Predicated region
      $region17: #{_lambda_.22} parent=11 // pred_check
        %p137 = pneg %p91
      $region18: #{_lambda_.22} parent=11 // pred_check_branch
        %139 = sbr.rel (%p137) target = $region20
      $region19: #{_lambda_.22} parent=11 // pred_region
        _
      $region20: #{_lambda_.22} parent=11 // pred_fallthru
        _
    $region12: #{_lambda_.22} parent=5 // pred_fallthru
      _
    %p140 = scmp.lt.s32.totalorder %s9, 2
    // Predicated region
    $region21: #{_lambda_.22} parent=5 // pred_check
      %p141 = pneg %p140
    $region22: #{_lambda_.22} parent=5 // pred_check_branch
      %143 = sbr.rel (%p141) target = $region24
    $region23: #{_lambda_.22} parent=5 // pred_region
      // Predicated region
      $region25: #{_lambda_.22} parent=23 // pred_check
        %p144 = pneg %p43
      $region26: #{_lambda_.22} parent=23 // pred_check_branch
        %146 = sbr.rel (%p144) target = $region28
      $region27: #{_lambda_.22} parent=23 // pred_region
        %p147 = scmp.lt.s32.totalorder %s16, 1
        %s148 = scalar_select %p147, %s16, 1
        %p149 = scmp.lt.s32.totalorder %s17, 0
        %s150 = scalar_select %p149, %s17, 0
        %s151 = smul.addr %s148, 18
        %s152 = sadd.s32 %s150, %s151
        %s153 = smul.addr %s152, 4
        %s154 = scalar_lea.vmem %s0, %s153
      $region28: #{_lambda_.22} parent=23 // pred_fallthru
        _
    $region24: #{_lambda_.22} parent=5 // pred_fallthru
      _
    %p155 = scmp.le.s32.totalorder 1, %s9
    %p156 = scmp.lt.s32.totalorder %s9, 3
    %p157 = pnand %p155, %p156
    %p158 = pneg %p157
    // Predicated region
    $region29: #{_lambda_.22} parent=5 // pred_check
      _
    $region30: #{_lambda_.22} parent=5 // pred_check_branch
      %160 = sbr.rel (%p157) target = $region32
    $region31: #{_lambda_.22} parent=5 // pred_region
      %s161 = ssub.s32 %s9, 1
      %p162 = scmp.lt.s32.totalorder %s18, 1
      %s163 = scalar_select %p162, %s18, 1
      %p164 = scmp.lt.s32.totalorder %s19, 0
      %s165 = scalar_select %p164, %s19, 0
      %s166 = smul.addr %s163, 18
      %s167 = sadd.s32 %s165, %s166
      %s168 = smul.addr %s167, 4
      %s169 = scalar_lea.vmem %s0, %s168
      %p170 = pneg %p49
      %p171 = pneg %p46
      %p172 = pneg %p70
      %p173 = pneg %p67
      %p174 = pneg %p91
      %p175 = pneg %p88
      %p176 = pneg %p119
      %p177 = pneg %p116
      %p178 = scmp.lt.s32.totalorder %s18, 1
      %s179 = scalar_select %p178, %s18, 1
      %p180 = scmp.lt.s32.totalorder %s19, 0
      %s181 = scalar_select %p180, %s19, 0
      %s182 = smul.addr %s179, 4
      %s183 = sadd.s32 %s181, %s182
      %s184 = smul.addr %s183, 4
      %s185 = scalar_lea.vmem %s3, %s184
      %p186 = scmp.lt.s32.totalorder %s18, 1
      %s187 = scalar_select %p186, %s18, 1
      %p188 = scmp.lt.s32.totalorder %s19, 0
      %s189 = scalar_select %p188, %s19, 0
      %s190 = smul.addr %s187, 18
      %s191 = sadd.s32 %s189, %s190
      %s192 = smul.addr %s191, 4
      %s193 = scalar_lea.vmem %s0, %s192
      %p194 = scmp.lt.s32.totalorder %s18, 1
      %s195 = scalar_select %p194, %s18, 1
      %p196 = scmp.lt.s32.totalorder %s19, 0
      %s197 = scalar_select %p196, %s19, 0
      %s198 = smul.addr %s195, 4
      %s199 = sadd.s32 %s197, %s198
      %s200 = smul.addr %s199, 4
      %s201 = scalar_lea.vmem %s3, %s200
      %v203 = vld [vmem:[%s1] sm:$0xff]
      %v204 = vld [vmem:[%s1 + $0x8] sm:$0xff]
      %v205 = vld [vmem:[%s1 + $0x10] sm:$0xff]
      %v206 = vld [vmem:[%s1 + $0x18] sm:$0xff]
      %v207 = vld [vmem:[%s193] sm:$0xf]
      %v208 = vld [vmem:[%s193 + $0x4] sm:$0xf]
      %v209 = vld [vmem:[%s193 + $0x8] sm:$0xf]
      %v210 = vld [vmem:[%s193 + $0xc] sm:$0xf]
      %v211 = vld [vmem:[%s193 + $0x10] sm:$0xf]
      %v212 = vld [vmem:[%s193 + $0x14] sm:$0xf]
      %v213 = vld [vmem:[%s193 + $0x18] sm:$0xf]
      %v214 = vld [vmem:[%s193 + $0x1c] sm:$0xf]
      %v215 = vld [vmem:[%s193 + $0x20] sm:$0xf]
      %v216 = vld [vmem:[%s193 + $0x24] sm:$0xf]
      %v217 = vld [vmem:[%s193 + $0x28] sm:$0xf]
      %v218 = vld [vmem:[%s193 + $0x2c] sm:$0xf]
      %v219 = vld [vmem:[%s193 + $0x30] sm:$0xf]
      %v220 = vld [vmem:[%s193 + $0x34] sm:$0xf]
      %v221 = vld [vmem:[%s193 + $0x38] sm:$0xf]
      %v222 = vld [vmem:[%s193 + $0x3c] sm:$0xf]
      %v223 = vld [vmem:[%s193 + $0x40] sm:$0xf]
      %v224 = vld [vmem:[%s193 + $0x44] sm:$0xf]
      %v225 = vld [vmem:[%s2] sm:$0xff]
      %v226 = vld [vmem:[%s2 + $0x8] sm:$0xff]
      %v227 = vld [vmem:[%s2 + $0x10] sm:$0xff]
      %v228 = vld [vmem:[%s2 + $0x18] sm:$0xff]
      %230 = vset.pattern.permute.xlu0 0
      %231 = vperm.xlu0 %230, %v225
      %v232 = vpop.permute.xlu0 %231
      %235 = vset.pattern.permute.xlu0 0
      %236 = vperm.xlu0 %235, %v226
      %v237 = vpop.permute.xlu0 %236
      %240 = vset.pattern.permute.xlu0 0
      %241 = vperm.xlu0 %240, %v227
      %v242 = vpop.permute.xlu0 %241
      %245 = vset.pattern.permute.xlu0 0
      %246 = vperm.xlu0 %245, %v228
      %v247 = vpop.permute.xlu0 %246
      %v253 = vunpack.c.l.b16 %v203
      %v254 = vunpack.c.h.b16 %v203
      %v255 = vunpack.c.l.b16 %v204
      %v256 = vunpack.c.h.b16 %v204
      %v257 = vunpack.c.l.b16 %v205
      %v258 = vunpack.c.h.b16 %v205
      %v259 = vunpack.c.l.b16 %v206
      %v260 = vunpack.c.h.b16 %v206
      %v261 = vpack.c.b16 %v255, %v253
      %v262 = vpack.c.b16 %v256, %v254
      %v263 = vpack.c.b16 %v259, %v257
      %v264 = vpack.c.b16 %v260, %v258
      %v285 = vunpack.c.l.b16 %v207
      %v286 = vunpack.c.l.b16 %v208
      %v287 = vunpack.c.l.b16 %v209
      %v288 = vunpack.c.l.b16 %v210
      %v289 = vunpack.c.l.b16 %v211
      %v290 = vunpack.c.l.b16 %v212
      %v291 = vunpack.c.l.b16 %v213
      %v292 = vunpack.c.l.b16 %v214
      %v293 = vunpack.c.l.b16 %v215
      %v294 = vunpack.c.l.b16 %v216
      %v295 = vunpack.c.l.b16 %v217
      %v296 = vunpack.c.l.b16 %v218
      %v297 = vunpack.c.l.b16 %v219
      %v298 = vunpack.c.l.b16 %v220
      %v299 = vunpack.c.l.b16 %v221
      %v300 = vunpack.c.l.b16 %v222
      %v301 = vunpack.c.l.b16 %v223
      %v302 = vunpack.c.l.b16 %v224
      %v303 = vpack.c.b16 %v286, %v285
      %v304 = vpack.c.b16 %v288, %v287
      %v305 = vpack.c.b16 %v290, %v289
      %v306 = vpack.c.b16 %v292, %v291
      %v307 = vpack.c.b16 %v294, %v293
      %v308 = vpack.c.b16 %v296, %v295
      %v309 = vpack.c.b16 %v298, %v297
      %v310 = vpack.c.b16 %v300, %v299
      %v311 = vpack.c.b16 %v302, %v301
      %vm321 = vcmask 130048
      %v323 = vsel %vm321, %v262, 0
      %v326 = vsel %vm321, %v264, 0
      %328 = vmatprep.subr.bf16.mxu0 0
      %329 = vmatpush1.bf16.msra.mxu0 %v303
      %330 = vmatprep.subr.bf16.mxu0 0
      %331 = vmatpush1.bf16.msra.mxu0 %v304
      %332 = vmatprep.subr.bf16.mxu0 0
      %333 = vmatpush1.bf16.msra.mxu0 %v305
      %334 = vmatprep.subr.bf16.mxu0 0
      %335 = vmatpush1.bf16.msra.mxu0 %v306
      %336 = vmatprep.subr.bf16.mxu0 0
      %337 = vmatpush1.bf16.msra.mxu0 %v307
      %338 = vmatprep.subr.bf16.mxu0 0
      %339 = vmatpush1.bf16.msra.mxu0 %v308
      %340 = vmatprep.subr.bf16.mxu0 0
      %341 = vmatpush1.bf16.msra.mxu0 %v309
      %342 = vmatprep.subr.bf16.mxu0 0
      %343 = vmatpush1.bf16.msra.mxu0 %v310
      %344 = vmatprep.subr.bf16.mxu0 0
      %345 = vmatpush1.bf16.msra.mxu0 %v311
      %346 = vmatprep.subr.bf16.mxu0 0
      %347 = vmatpush1.bf16.msra.mxu0 0
      %348 = vmatprep.subr.bf16.mxu0 0
      %349 = vmatpush1.bf16.msra.mxu0 0
      %350 = vmatprep.subr.bf16.mxu0 0
      %351 = vmatpush1.bf16.msra.mxu0 0
      %352 = vmatprep.subr.bf16.mxu0 0
      %353 = vmatpush1.bf16.msra.mxu0 0
      %354 = vmatprep.subr.bf16.mxu0 0
      %355 = vmatpush1.bf16.msra.mxu0 0
      %356 = vmatprep.subr.bf16.mxu0 0
      %357 = vmatpush1.bf16.msra.mxu0 0
      %358 = vmatprep.subr.bf16.mxu0 0
      %359 = vmatpush1.bf16.msra.mxu0 0
      %360 = vmatprep.mubr.bf16.mxu0 %v323
      %361 = vmatmul.mubr.bf16.gmra.mrb[0].mxu0 %v261
      %v362 = vpop.f32.mrb[0].mxu0
      %v363 = vadd.f32 %v232, %v362
      %v364 = vpop.f32.mrb[0].mxu0
      %v365 = vpop.f32.mrb[0].mxu0
      %v366 = vadd.f32 %v237, %v365
      %v367 = vpop.f32.mrb[0].mxu0
      %368 = vmatprep.mubr.bf16.mxu0 %v326
      %369 = vmatmul.mubr.bf16.gmra.mrb[0].mxu0 %v263
      %v370 = vpop.f32.mrb[0].mxu0
      %v371 = vadd.f32 %v242, %v370
      %v372 = vpop.f32.mrb[0].mxu0
      %v373 = vpop.f32.mrb[0].mxu0
      %v374 = vadd.f32 %v247, %v373
      %v375 = vpop.f32.mrb[0].mxu0
      %376 = vdwg.mxu0
      %v377 = vmax.f32 %v363, 0.0
      %v378 = vmax.f32 %v366, 0.0
      %v379 = vmax.f32 %v371, 0.0
      %v380 = vmax.f32 %v374, 0.0
      %v381 = vpack.c.bf16 %v378, %v377
      %v382 = vpack.c.bf16 %v380, %v379
      %v385 = vunpack.c.l.b16 %v381
      %v386 = vunpack.c.h.b16 %v381
      %v387 = vunpack.c.l.b16 %v382
      %v388 = vunpack.c.h.b16 %v382
      %v389 = vpack.c.b16 %v385, %v385
      %v390 = vpack.c.b16 %v386, %v386
      %v391 = vpack.c.b16 %v387, %v387
      %v392 = vpack.c.b16 %v388, %v388
      %397 = vst [vmem:[%s201] sm:$0xf] %v389
      %398 = vst [vmem:[%s201 + $0x4] sm:$0xf] %v390
      %399 = vst [vmem:[%s201 + $0x8] sm:$0xf] %v391
      %400 = vst [vmem:[%s201 + $0xc] sm:$0xf] %v392
      %p401 = scmp.lt.s32.totalorder %s18, 1
      %s402 = scalar_select %p401, %s18, 1
      %p403 = scmp.lt.s32.totalorder %s19, 0
      %s404 = scalar_select %p403, %s19, 0
      %s405 = smul.addr %s402, 4
      %s406 = sadd.s32 %s404, %s405
      %s407 = smul.addr %s406, 4
      %s408 = scalar_lea.vmem %s3, %s407
      // Predicated region
      $region33: #{_lambda_.22} parent=31 // pred_check
        %p409 = pneg %p116
      $region34: #{_lambda_.22} parent=31 // pred_check_branch
        %411 = sbr.rel (%p409) target = $region36
      $region35: #{_lambda_.22} parent=31 // pred_region
        _
      $region36: #{_lambda_.22} parent=31 // pred_fallthru
        _
    $region32: #{_lambda_.22} parent=5 // pred_fallthru
      _
    %p412 = scmp.le.s32.totalorder 2, %s9
    // Predicated region
    $region37: #{_lambda_.22} parent=5 // pred_check
      %p413 = pneg %p412
    $region38: #{_lambda_.22} parent=5 // pred_check_branch
      %415 = sbr.rel (%p413) target = $region40
    $region39: #{_lambda_.22} parent=5 // pred_region
      %s416 = ssub.s32 %s9, 2
      // Predicated region
      $region41: #{_lambda_.22} parent=39 // pred_check
        %p417 = pneg %p122
      $region42: #{_lambda_.22} parent=39 // pred_check_branch
        %419 = sbr.rel (%p417) target = $region44
      $region43: #{_lambda_.22} parent=39 // pred_region
        %p420 = scmp.lt.s32.totalorder %s20, 1
        %s421 = scalar_select %p420, %s20, 1
        %p422 = scmp.lt.s32.totalorder %s21, 0
        %s423 = scalar_select %p422, %s21, 0
        %s424 = smul.addr %s421, 4
        %s425 = sadd.s32 %s423, %s424
        %s426 = smul.addr %s425, 4
        %s427 = scalar_lea.vmem %s3, %s426
      $region44: #{_lambda_.22} parent=39 // pred_fallthru
        _
    $region40: #{_lambda_.22} parent=5 // pred_fallthru
      _
  $region6: #{_lambda_.22} parent=0 // loop_footer
    %s13 = sadd.s32 1, %s9
  $region7: #{_lambda_.22} parent=0 // loop_footer_branch
    %8 = sbr.rel target = $region3
  $region8: #{_lambda_.22} parent=0 // loop_exit
    _

// kernel: _lambda_.23
$region0: #{_lambda_.23}
  #allocation0 [shape = 'u32[]', space=smem, size = 0x4, offset = 0x4, fixed_abs, tag = 'smem constant byte address 0x4 - core index']
  #allocation1 [shape = 'u32[144,128]{1,0:T(1,128)}', space=vmem, size = 0x12000, scoped, tag = 'internal scratch']
  %s0 = inlined_call_operand.vmem [shape: bf16[2,288,128], index: 0, kind: input, shape index: {}]
  %s1 = inlined_call_operand.vmem [shape: bf16[32,288], index: 1, kind: input, shape index: {}]
  %s2 = inlined_call_operand.vmem [shape: f32[32,1], index: 2, kind: input, shape index: {}]
  %s3 = inlined_call_operand.vmem [shape: bf16[2,32,128], index: 3, kind: output, shape index: {}]
  %s4 = sld [smem:[#allocation0]]
  $region45: #{_lambda_.23} parent=0
    _
  %s6 = ssub.s32 1, %s4
  %s7 = scalar_select 0, %s6, %s4
  loop: start=0, step=1, limit=4
  $region2: #{_lambda_.23} parent=0 // loop_pre_header
    _
  $region3: #{_lambda_.23} parent=0 // loop_header
    %s9 = sphi 0, %s13
    %p10 = scmp.ge.s32.totalorder %s9, 4
    %s16 = sphi 0, %s28
    %s17 = sphi 0, %s24
    %s18 = sphi 0, %s16
    %s19 = sphi 0, %s17
    %s20 = sphi 0, %s18
    %s21 = sphi 0, %s19
    %s33 = sphi 0, %s35
    %s36 = sphi 0, %s33
    %s37 = sphi 0, %s36
    %s53 = sphi 0, %s37
    %s57 = sphi 0, %s57
    %s59 = sphi 0, %s57
    %s60 = sphi 0, %s59
    %s74 = sphi 0, %s60
    %s78 = sphi 0, %s78
    %s80 = sphi 0, %s78
    %s81 = sphi 0, %s80
    %s95 = sphi 0, %s81
    %s103 = sphi 0, %s105
    %s106 = sphi 0, %s103
    %s107 = sphi 0, %s106
    %s123 = sphi 0, %s107
  $region4: #{_lambda_.23} parent=0 // loop_header_branch
    %12 = sbr.rel (%p10) target = $region8
  $region5: #{_lambda_.23} parent=0 // loop_body
    %s14 = ssub.s32 %s9, 1
    %s15 = ssub.s32 %s9, 2
    %s22 = sadd.s32 1, %s17
    %p23 = scmp.ge.s32.totalorder %s22, 1
    %s24 = scalar_select %p23, 0, %s22
    %s25 = sadd.s32 1, %s16
    %s26 = scalar_select %p23, %s25, %s16
    %p27 = scmp.ge.s32.totalorder %s26, 2
    %s28 = scalar_select %p27, 0, %s26
    %s29 = ssub.s32 %s16, %s28
    %s30 = ssub.s32 %s17, %s24
    %s31 = sor.u32 %s29, %s30
    %p32 = scmp.eq.s32.totalorder %s31, 0
    %s34 = sadd.s32 %s33, 1
    %s35 = scalar_select %p32, %s33, %s34
    %p38 = pneg %p32
    %p39 = scmp.eq.s32.totalorder %s9, 1
    %p40 = por %p38, %p39
    %p41 = scmp.ne.s32.totalorder %s33, %s36
    %p42 = scmp.eq.s32.totalorder %s9, 0
    %p43 = por %p41, %p42
    %p44 = scmp.ne.s32.totalorder %s33, %s36
    %p45 = scmp.eq.s32.totalorder %s14, 1
    %p46 = por %p44, %p45
    %p47 = scmp.ne.s32.totalorder %s36, %s37
    %p48 = scmp.eq.s32.totalorder %s14, 0
    %p49 = por %p47, %p48
    %p50 = scmp.ne.s32.totalorder %s36, %s37
    %p51 = scmp.eq.s32.totalorder %s15, 1
    %p52 = por %p50, %p51
    %p54 = scmp.ne.s32.totalorder %s37, %s53
    %p55 = scmp.eq.s32.totalorder %s15, 0
    %p56 = por %p54, %p55
    %s58 = sadd.s32 %s57, 1
    %p61 = scmp.eq.s32.totalorder %s9, 1
    %p62 = scmp.ne.s32.totalorder %s57, %s59
    %p63 = scmp.eq.s32.totalorder %s9, 0
    %p64 = por %p62, %p63
    %p65 = scmp.ne.s32.totalorder %s57, %s59
    %p66 = scmp.eq.s32.totalorder %s14, 1
    %p67 = por %p65, %p66
    %p68 = scmp.ne.s32.totalorder %s59, %s60
    %p69 = scmp.eq.s32.totalorder %s14, 0
    %p70 = por %p68, %p69
    %p71 = scmp.ne.s32.totalorder %s59, %s60
    %p72 = scmp.eq.s32.totalorder %s15, 1
    %p73 = por %p71, %p72
    %p75 = scmp.ne.s32.totalorder %s60, %s74
    %p76 = scmp.eq.s32.totalorder %s15, 0
    %p77 = por %p75, %p76
    %s79 = sadd.s32 %s78, 1
    %p82 = scmp.eq.s32.totalorder %s9, 1
    %p83 = scmp.ne.s32.totalorder %s78, %s80
    %p84 = scmp.eq.s32.totalorder %s9, 0
    %p85 = por %p83, %p84
    %p86 = scmp.ne.s32.totalorder %s78, %s80
    %p87 = scmp.eq.s32.totalorder %s14, 1
    %p88 = por %p86, %p87
    %p89 = scmp.ne.s32.totalorder %s80, %s81
    %p90 = scmp.eq.s32.totalorder %s14, 0
    %p91 = por %p89, %p90
    %p92 = scmp.ne.s32.totalorder %s80, %s81
    %p93 = scmp.eq.s32.totalorder %s15, 1
    %p94 = por %p92, %p93
    %p96 = scmp.ne.s32.totalorder %s81, %s95
    %p97 = scmp.eq.s32.totalorder %s15, 0
    %p98 = por %p96, %p97
    %s99 = ssub.s32 %s16, %s28
    %s100 = ssub.s32 %s17, %s24
    %s101 = sor.u32 %s99, %s100
    %p102 = scmp.eq.s32.totalorder %s101, 0
    %s104 = sadd.s32 %s103, 1
    %s105 = scalar_select %p102, %s103, %s104
    %p108 = pneg %p102
    %p109 = scmp.eq.s32.totalorder %s9, 1
    %p110 = por %p108, %p109
    %p111 = scmp.ne.s32.totalorder %s103, %s106
    %p112 = scmp.eq.s32.totalorder %s9, 0
    %p113 = por %p111, %p112
    %p114 = scmp.ne.s32.totalorder %s103, %s106
    %p115 = scmp.eq.s32.totalorder %s14, 1
    %p116 = por %p114, %p115
    %p117 = scmp.ne.s32.totalorder %s106, %s107
    %p118 = scmp.eq.s32.totalorder %s14, 0
    %p119 = por %p117, %p118
    %p120 = scmp.ne.s32.totalorder %s106, %s107
    %p121 = scmp.eq.s32.totalorder %s15, 1
    %p122 = por %p120, %p121
    %p124 = scmp.ne.s32.totalorder %s107, %s123
    %p125 = scmp.eq.s32.totalorder %s15, 0
    %p126 = por %p124, %p125
    %p127 = scmp.le.s32.totalorder 1, %s9
    %p128 = scmp.lt.s32.totalorder %s9, 3
    %p129 = pnand %p127, %p128
    %p130 = pneg %p129
    // Predicated region
    $region9: #{_lambda_.23} parent=5 // pred_check
      _
    $region10: #{_lambda_.23} parent=5 // pred_check_branch
      %132 = sbr.rel (%p129) target = $region12
    $region11: #{_lambda_.23} parent=5 // pred_region
      %s133 = ssub.s32 %s9, 1
      // Predicated region
      $region13: #{_lambda_.23} parent=11 // pred_check
        %p134 = pneg %p70
      $region14: #{_lambda_.23} parent=11 // pred_check_branch
        %136 = sbr.rel (%p134) target = $region16
      $region15: #{_lambda_.23} parent=11 // pred_region
        _
      $region16: #{_lambda_.23} parent=11 // pred_fallthru
        _
      // Predicated region
      $region17: #{_lambda_.23} parent=11 // pred_check
        %p137 = pneg %p91
      $region18: #{_lambda_.23} parent=11 // pred_check_branch
        %139 = sbr.rel (%p137) target = $region20
      $region19: #{_lambda_.23} parent=11 // pred_region
        _
      $region20: #{_lambda_.23} parent=11 // pred_fallthru
        _
    $region12: #{_lambda_.23} parent=5 // pred_fallthru
      _
    %p140 = scmp.lt.s32.totalorder %s9, 2
    // Predicated region
    $region21: #{_lambda_.23} parent=5 // pred_check
      %p141 = pneg %p140
    $region22: #{_lambda_.23} parent=5 // pred_check_branch
      %143 = sbr.rel (%p141) target = $region24
    $region23: #{_lambda_.23} parent=5 // pred_region
      // Predicated region
      $region25: #{_lambda_.23} parent=23 // pred_check
        %p144 = pneg %p43
      $region26: #{_lambda_.23} parent=23 // pred_check_branch
        %146 = sbr.rel (%p144) target = $region28
      $region27: #{_lambda_.23} parent=23 // pred_region
        %p147 = scmp.lt.s32.totalorder %s16, 1
        %s148 = scalar_select %p147, %s16, 1
        %p149 = scmp.lt.s32.totalorder %s17, 0
        %s150 = scalar_select %p149, %s17, 0
        %s151 = smul.addr %s148, 36
        %s152 = sadd.s32 %s150, %s151
        %s153 = smul.addr %s152, 4
        %s154 = scalar_lea.vmem %s0, %s153
      $region28: #{_lambda_.23} parent=23 // pred_fallthru
        _
    $region24: #{_lambda_.23} parent=5 // pred_fallthru
      _
    %p155 = scmp.le.s32.totalorder 1, %s9
    %p156 = scmp.lt.s32.totalorder %s9, 3
    %p157 = pnand %p155, %p156
    %p158 = pneg %p157
    // Predicated region
    $region29: #{_lambda_.23} parent=5 // pred_check
      _
    $region30: #{_lambda_.23} parent=5 // pred_check_branch
      %160 = sbr.rel (%p157) target = $region32
    $region31: #{_lambda_.23} parent=5 // pred_region
      %s161 = ssub.s32 %s9, 1
      %p162 = scmp.lt.s32.totalorder %s18, 1
      %s163 = scalar_select %p162, %s18, 1
      %p164 = scmp.lt.s32.totalorder %s19, 0
      %s165 = scalar_select %p164, %s19, 0
      %s166 = smul.addr %s163, 36
      %s167 = sadd.s32 %s165, %s166
      %s168 = smul.addr %s167, 4
      %s169 = scalar_lea.vmem %s0, %s168
      %p170 = pneg %p49
      %p171 = pneg %p46
      %p172 = pneg %p70
      %p173 = pneg %p67
      %p174 = pneg %p91
      %p175 = pneg %p88
      %p176 = pneg %p119
      %p177 = pneg %p116
      %p178 = scmp.lt.s32.totalorder %s18, 1
      %s179 = scalar_select %p178, %s18, 1
      %p180 = scmp.lt.s32.totalorder %s19, 0
      %s181 = scalar_select %p180, %s19, 0
      %s182 = smul.addr %s179, 4
      %s183 = sadd.s32 %s181, %s182
      %s184 = smul.addr %s183, 4
      %s185 = scalar_lea.vmem %s3, %s184
      %p186 = scmp.lt.s32.totalorder %s18, 1
      %s187 = scalar_select %p186, %s18, 1
      %p188 = scmp.lt.s32.totalorder %s19, 0
      %s189 = scalar_select %p188, %s19, 0
      %s190 = smul.addr %s187, 36
      %s191 = sadd.s32 %s189, %s190
      %s192 = smul.addr %s191, 4
      %s193 = scalar_lea.vmem %s0, %s192
      %p194 = scmp.lt.s32.totalorder %s18, 1
      %s195 = scalar_select %p194, %s18, 1
      %p196 = scmp.lt.s32.totalorder %s19, 0
      %s197 = scalar_select %p196, %s19, 0
      %s198 = smul.addr %s195, 4
      %s199 = sadd.s32 %s197, %s198
      %s200 = smul.addr %s199, 4
      %s201 = scalar_lea.vmem %s3, %s200
      %v203 = vld [vmem:[%s1] sm:$0xff]
      %v204 = vld [vmem:[%s1 + $0x8] sm:$0xf]
      %v205 = vld [vmem:[%s1 + $0xc] sm:$0xff]
      %v206 = vld [vmem:[%s1 + $0x14] sm:$0xf]
      %v207 = vld [vmem:[%s1 + $0x18] sm:$0xff]
      %v208 = vld [vmem:[%s1 + $0x20] sm:$0xf]
      %v209 = vld [vmem:[%s1 + $0x24] sm:$0xff]
      %v210 = vld [vmem:[%s1 + $0x2c] sm:$0xf]
      %v211 = vld [vmem:[%s193] sm:$0xf]
      %v212 = vld [vmem:[%s193 + $0x4] sm:$0xf]
      %v213 = vld [vmem:[%s193 + $0x8] sm:$0xf]
      %v214 = vld [vmem:[%s193 + $0xc] sm:$0xf]
      %v215 = vld [vmem:[%s193 + $0x10] sm:$0xf]
      %v216 = vld [vmem:[%s193 + $0x14] sm:$0xf]
      %v217 = vld [vmem:[%s193 + $0x18] sm:$0xf]
      %v218 = vld [vmem:[%s193 + $0x1c] sm:$0xf]
      %v219 = vld [vmem:[%s193 + $0x20] sm:$0xf]
      %v220 = vld [vmem:[%s193 + $0x24] sm:$0xf]
      %v221 = vld [vmem:[%s193 + $0x28] sm:$0xf]
      %v222 = vld [vmem:[%s193 + $0x2c] sm:$0xf]
      %v223 = vld [vmem:[%s193 + $0x30] sm:$0xf]
      %v224 = vld [vmem:[%s193 + $0x34] sm:$0xf]
      %v225 = vld [vmem:[%s193 + $0x38] sm:$0xf]
      %v226 = vld [vmem:[%s193 + $0x3c] sm:$0xf]
      %v227 = vld [vmem:[%s193 + $0x40] sm:$0xf]
      %v228 = vld [vmem:[%s193 + $0x44] sm:$0xf]
      %v229 = vld [vmem:[%s193 + $0x48] sm:$0xf]
      %v230 = vld [vmem:[%s193 + $0x4c] sm:$0xf]
      %v231 = vld [vmem:[%s193 + $0x50] sm:$0xf]
      %v232 = vld [vmem:[%s193 + $0x54] sm:$0xf]
      %v233 = vld [vmem:[%s193 + $0x58] sm:$0xf]
      %v234 = vld [vmem:[%s193 + $0x5c] sm:$0xf]
      %v235 = vld [vmem:[%s193 + $0x60] sm:$0xf]
      %v236 = vld [vmem:[%s193 + $0x64] sm:$0xf]
      %v237 = vld [vmem:[%s193 + $0x68] sm:$0xf]
      %v238 = vld [vmem:[%s193 + $0x6c] sm:$0xf]
      %v239 = vld [vmem:[%s193 + $0x70] sm:$0xf]
      %v240 = vld [vmem:[%s193 + $0x74] sm:$0xf]
      %v241 = vld [vmem:[%s193 + $0x78] sm:$0xf]
      %v242 = vld [vmem:[%s193 + $0x7c] sm:$0xf]
      %v243 = vld [vmem:[%s193 + $0x80] sm:$0xf]
      %v244 = vld [vmem:[%s193 + $0x84] sm:$0xf]
      %v245 = vld [vmem:[%s193 + $0x88] sm:$0xf]
      %v246 = vld [vmem:[%s193 + $0x8c] sm:$0xf]
      %v247 = vld [vmem:[%s2] sm:$0xff]
      %v248 = vld [vmem:[%s2 + $0x8] sm:$0xff]
      %v249 = vld [vmem:[%s2 + $0x10] sm:$0xff]
      %v250 = vld [vmem:[%s2 + $0x18] sm:$0xff]
      %252 = vset.pattern.permute.xlu0 0
      %253 = vperm.xlu0 %252, %v247
      %v254 = vpop.permute.xlu0 %253
      %257 = vset.pattern.permute.xlu0 0
      %258 = vperm.xlu0 %257, %v248
      %v259 = vpop.permute.xlu0 %258
      %262 = vset.pattern.permute.xlu0 0
      %263 = vperm.xlu0 %262, %v249
      %v264 = vpop.permute.xlu0 %263
      %267 = vset.pattern.permute.xlu0 0
      %268 = vperm.xlu0 %267, %v250
      %v269 = vpop.permute.xlu0 %268
      %v279 = vunpack.c.l.b16 %v203
      %v280 = vunpack.c.h.b16 %v203
      %v281 = vunpack.c.l.b16 %v204
      %v282 = vunpack.c.l.b16 %v205
      %v283 = vunpack.c.h.b16 %v205
      %v284 = vunpack.c.l.b16 %v206
      %v285 = vunpack.c.l.b16 %v207
      %v286 = vunpack.c.h.b16 %v207
      %v287 = vunpack.c.l.b16 %v208
      %v288 = vunpack.c.l.b16 %v209
      %v289 = vunpack.c.h.b16 %v209
      %v290 = vunpack.c.l.b16 %v210
      %v291 = vpack.c.b16 %v282, %v279
      %v292 = vpack.c.b16 %v283, %v280
      %v293 = vpack.c.b16 %v284, %v281
      %v294 = vpack.c.b16 %v288, %v285
      %v295 = vpack.c.b16 %v289, %v286
      %v296 = vpack.c.b16 %v290, %v287
      %v337 = vunpack.c.l.b16 %v211
      %v338 = vunpack.c.l.b16 %v212
      %v339 = vunpack.c.l.b16 %v213
      %v340 = vunpack.c.l.b16 %v214
      %v341 = vunpack.c.l.b16 %v215
      %v342 = vunpack.c.l.b16 %v216
      %v343 = vunpack.c.l.b16 %v217
      %v344 = vunpack.c.l.b16 %v218
      %v345 = vunpack.c.l.b16 %v219
      %v346 = vunpack.c.l.b16 %v220
      %v347 = vunpack.c.l.b16 %v221
      %v348 = vunpack.c.l.b16 %v222
      %v349 = vunpack.c.l.b16 %v223
      %v350 = vunpack.c.l.b16 %v224
      %v351 = vunpack.c.l.b16 %v225
      %v352 = vunpack.c.l.b16 %v226
      %v353 = vunpack.c.l.b16 %v227
      %v354 = vunpack.c.l.b16 %v228
      %v355 = vunpack.c.l.b16 %v229
      %v356 = vunpack.c.l.b16 %v230
      %v357 = vunpack.c.l.b16 %v231
      %v358 = vunpack.c.l.b16 %v232
      %v359 = vunpack.c.l.b16 %v233
      %v360 = vunpack.c.l.b16 %v234
      %v361 = vunpack.c.l.b16 %v235
      %v362 = vunpack.c.l.b16 %v236
      %v363 = vunpack.c.l.b16 %v237
      %v364 = vunpack.c.l.b16 %v238
      %v365 = vunpack.c.l.b16 %v239
      %v366 = vunpack.c.l.b16 %v240
      %v367 = vunpack.c.l.b16 %v241
      %v368 = vunpack.c.l.b16 %v242
      %v369 = vunpack.c.l.b16 %v243
      %v370 = vunpack.c.l.b16 %v244
      %v371 = vunpack.c.l.b16 %v245
      %v372 = vunpack.c.l.b16 %v246
      %v373 = vpack.c.b16 %v338, %v337
      %v374 = vpack.c.b16 %v340, %v339
      %v375 = vpack.c.b16 %v342, %v341
      %v376 = vpack.c.b16 %v344, %v343
      %v377 = vpack.c.b16 %v346, %v345
      %v378 = vpack.c.b16 %v348, %v347
      %v379 = vpack.c.b16 %v350, %v349
      %v380 = vpack.c.b16 %v352, %v351
      %v381 = vpack.c.b16 %v354, %v353
      %v382 = vpack.c.b16 %v356, %v355
      %v383 = vpack.c.b16 %v358, %v357
      %v384 = vpack.c.b16 %v360, %v359
      %v385 = vpack.c.b16 %v362, %v361
      %v386 = vpack.c.b16 %v364, %v363
      %v387 = vpack.c.b16 %v366, %v365
      %v388 = vpack.c.b16 %v368, %v367
      %v389 = vpack.c.b16 %v370, %v369
      %v390 = vpack.c.b16 %v372, %v371
      %vm409 = vcmask 261120
      %v411 = vsel %vm409, %v293, 0
      %v414 = vsel %vm409, %v296, 0
      %416 = vmatprep.subr.bf16.mxu0 0
      %417 = vmatpush1.bf16.msra.mxu0 %v373
      %418 = vmatprep.subr.bf16.mxu0 0
      %419 = vmatpush1.bf16.msra.mxu0 %v374
      %420 = vmatprep.subr.bf16.mxu0 0
      %421 = vmatpush1.bf16.msra.mxu0 %v375
      %422 = vmatprep.subr.bf16.mxu0 0
      %423 = vmatpush1.bf16.msra.mxu0 %v376
      %424 = vmatprep.subr.bf16.mxu0 0
      %425 = vmatpush1.bf16.msra.mxu0 %v377
      %426 = vmatprep.subr.bf16.mxu0 0
      %427 = vmatpush1.bf16.msra.mxu0 %v378
      %428 = vmatprep.subr.bf16.mxu0 0
      %429 = vmatpush1.bf16.msra.mxu0 %v379
      %430 = vmatprep.subr.bf16.mxu0 0
      %431 = vmatpush1.bf16.msra.mxu0 %v380
      %432 = vmatprep.subr.bf16.mxu0 0
      %433 = vmatpush1.bf16.msra.mxu0 %v381
      %434 = vmatprep.subr.bf16.mxu0 0
      %435 = vmatpush1.bf16.msra.mxu0 %v382
      %436 = vmatprep.subr.bf16.mxu0 0
      %437 = vmatpush1.bf16.msra.mxu0 %v383
      %438 = vmatprep.subr.bf16.mxu0 0
      %439 = vmatpush1.bf16.msra.mxu0 %v384
      %440 = vmatprep.subr.bf16.mxu0 0
      %441 = vmatpush1.bf16.msra.mxu0 %v385
      %442 = vmatprep.subr.bf16.mxu0 0
      %443 = vmatpush1.bf16.msra.mxu0 %v386
      %444 = vmatprep.subr.bf16.mxu0 0
      %445 = vmatpush1.bf16.msra.mxu0 %v387
      %446 = vmatprep.subr.bf16.mxu0 0
      %447 = vmatpush1.bf16.msra.mxu0 %v388
      %448 = vmatprep.mubr.bf16.mxu0 %v292
      %449 = vmatmul.mubr.bf16.gmra.mrb[0].mxu0 %v291
      %v450 = vpop.f32.mrb[0].mxu0
      %v451 = vadd.f32 %v254, %v450
      %v452 = vpop.f32.mrb[0].mxu0
      %v453 = vpop.f32.mrb[0].mxu0
      %v454 = vadd.f32 %v259, %v453
      %v455 = vpop.f32.mrb[0].mxu0
      %456 = vmatprep.mubr.bf16.mxu0 %v295
      %457 = vmatmul.mubr.bf16.gmra.mrb[0].mxu0 %v294
      %v458 = vpop.f32.mrb[0].mxu0
      %v459 = vadd.f32 %v264, %v458
      %v460 = vpop.f32.mrb[0].mxu0
      %v461 = vpop.f32.mrb[0].mxu0
      %v462 = vadd.f32 %v269, %v461
      %v463 = vpop.f32.mrb[0].mxu0
      %464 = vdwg.mxu0
      %465 = vmatprep.subr.bf16.mxu0 0
      %466 = vmatpush1.bf16.msra.mxu0 %v389
      %467 = vmatprep.subr.bf16.mxu0 0
      %468 = vmatpush1.bf16.msra.mxu0 %v390
      %469 = vmatprep.subr.bf16.mxu0 0
      %470 = vmatpush1.bf16.msra.mxu0 0
      %471 = vmatprep.subr.bf16.mxu0 0
      %472 = vmatpush1.bf16.msra.mxu0 0
      %473 = vmatprep.subr.bf16.mxu0 0
      %474 = vmatpush1.bf16.msra.mxu0 0
      %475 = vmatprep.subr.bf16.mxu0 0
      %476 = vmatpush1.bf16.msra.mxu0 0
      %477 = vmatprep.subr.bf16.mxu0 0
      %478 = vmatpush1.bf16.msra.mxu0 0
      %479 = vmatprep.subr.bf16.mxu0 0
      %480 = vmatpush1.bf16.msra.mxu0 0
      %481 = vmatprep.subr.bf16.mxu0 0
      %482 = vmatpush1.bf16.msra.mxu0 0
      %483 = vmatprep.subr.bf16.mxu0 0
      %484 = vmatpush1.bf16.msra.mxu0 0
      %485 = vmatprep.subr.bf16.mxu0 0
      %486 = vmatpush1.bf16.msra.mxu0 0
      %487 = vmatprep.subr.bf16.mxu0 0
      %488 = vmatpush1.bf16.msra.mxu0 0
      %489 = vmatprep.subr.bf16.mxu0 0
      %490 = vmatpush1.bf16.msra.mxu0 0
      %491 = vmatprep.subr.bf16.mxu0 0
      %492 = vmatpush1.bf16.msra.mxu0 0
      %493 = vmatprep.subr.bf16.mxu0 0
      %494 = vmatpush1.bf16.msra.mxu0 0
      %495 = vmatprep.subr.bf16.mxu0 0
      %496 = vmatpush1.bf16.msra.mxu0 0
      %497 = vmatprep.mubr.bf16.mxu0 0
      %498 = vmatmul.mubr.bf16.gmra.mrb[0].mxu0 %v411
      %v499 = vpop.f32.mrb[0].mxu0
      %v500 = vadd.f32 %v451, %v499
      %v501 = vpop.f32.mrb[0].mxu0
      %v502 = vpop.f32.mrb[0].mxu0
      %v503 = vadd.f32 %v454, %v502
      %v504 = vpop.f32.mrb[0].mxu0
      %505 = vmatprep.mubr.bf16.mxu0 0
      %506 = vmatmul.mubr.bf16.gmra.mrb[0].mxu0 %v414
      %v507 = vpop.f32.mrb[0].mxu0
      %v508 = vadd.f32 %v459, %v507
      %v509 = vpop.f32.mrb[0].mxu0
      %v510 = vpop.f32.mrb[0].mxu0
      %v511 = vadd.f32 %v462, %v510
      %v512 = vpop.f32.mrb[0].mxu0
      %513 = vdwg.mxu0
      %v514 = vmax.f32 %v500, 0.0
      %v515 = vmax.f32 %v503, 0.0
      %v516 = vmax.f32 %v508, 0.0
      %v517 = vmax.f32 %v511, 0.0
      %v518 = vpack.c.bf16 %v515, %v514
      %v519 = vpack.c.bf16 %v517, %v516
      %v522 = vunpack.c.l.b16 %v518
      %v523 = vunpack.c.h.b16 %v518
      %v524 = vunpack.c.l.b16 %v519
      %v525 = vunpack.c.h.b16 %v519
      %v526 = vpack.c.b16 %v522, %v522
      %v527 = vpack.c.b16 %v523, %v523
      %v528 = vpack.c.b16 %v524, %v524
      %v529 = vpack.c.b16 %v525, %v525
      %534 = vst [vmem:[%s201] sm:$0xf] %v526
      %535 = vst [vmem:[%s201 + $0x4] sm:$0xf] %v527
      %536 = vst [vmem:[%s201 + $0x8] sm:$0xf] %v528
      %537 = vst [vmem:[%s201 + $0xc] sm:$0xf] %v529
      %p538 = scmp.lt.s32.totalorder %s18, 1
      %s539 = scalar_select %p538, %s18, 1
      %p540 = scmp.lt.s32.totalorder %s19, 0
      %s541 = scalar_select %p540, %s19, 0
      %s542 = smul.addr %s539, 4
      %s543 = sadd.s32 %s541, %s542
      %s544 = smul.addr %s543, 4
      %s545 = scalar_lea.vmem %s3, %s544
      // Predicated region
      $region33: #{_lambda_.23} parent=31 // pred_check
        %p546 = pneg %p116
      $region34: #{_lambda_.23} parent=31 // pred_check_branch
        %548 = sbr.rel (%p546) target = $region36
      $region35: #{_lambda_.23} parent=31 // pred_region
        _
      $region36: #{_lambda_.23} parent=31 // pred_fallthru
        _
    $region32: #{_lambda_.23} parent=5 // pred_fallthru
      _
    %p549 = scmp.le.s32.totalorder 2, %s9
    // Predicated region
    $region37: #{_lambda_.23} parent=5 // pred_check
      %p550 = pneg %p549
    $region38: #{_lambda_.23} parent=5 // pred_check_branch
      %552 = sbr.rel (%p550) target = $region40
    $region39: #{_lambda_.23} parent=5 // pred_region
      %s553 = ssub.s32 %s9, 2
      // Predicated region
      $region41: #{_lambda_.23} parent=39 // pred_check
        %p554 = pneg %p122
      $region42: #{_lambda_.23} parent=39 // pred_check_branch
        %556 = sbr.rel (%p554) target = $region44
      $region43: #{_lambda_.23} parent=39 // pred_region
        %p557 = scmp.lt.s32.totalorder %s20, 1
        %s558 = scalar_select %p557, %s20, 1
        %p559 = scmp.lt.s32.totalorder %s21, 0
        %s560 = scalar_select %p559, %s21, 0
        %s561 = smul.addr %s558, 4
        %s562 = sadd.s32 %s560, %s561
        %s563 = smul.addr %s562, 4
        %s564 = scalar_lea.vmem %s3, %s563
      $region44: #{_lambda_.23} parent=39 // pred_fallthru
        _
    $region40: #{_lambda_.23} parent=5 // pred_fallthru
      _
  $region6: #{_lambda_.23} parent=0 // loop_footer
    %s13 = sadd.s32 1, %s9
  $region7: #{_lambda_.23} parent=0 // loop_footer_branch
    %8 = sbr.rel target = $region3
  $region8: #{_lambda_.23} parent=0 // loop_exit
    _

// kernel: _lambda_.24
$region0: #{_lambda_.24}
  #allocation0 [shape = 'u32[]', space=smem, size = 0x4, offset = 0x4, fixed_abs, tag = 'smem constant byte address 0x4 - core index']
  #allocation1 [shape = 'u32[144,128]{1,0:T(1,128)}', space=vmem, size = 0x12000, scoped, tag = 'internal scratch']
  %s0 = inlined_call_operand.vmem [shape: bf16[2,288,128], index: 0, kind: input, shape index: {}]
  %s1 = inlined_call_operand.vmem [shape: bf16[32,288], index: 1, kind: input, shape index: {}]
  %s2 = inlined_call_operand.vmem [shape: f32[32,1], index: 2, kind: input, shape index: {}]
  %s3 = inlined_call_operand.vmem [shape: bf16[2,32,128], index: 3, kind: input, shape index: {}]
  %s4 = inlined_call_operand.vmem [shape: bf16[2,32,128], index: 4, kind: output, shape index: {}]
  %s5 = sld [smem:[#allocation0]]
  $region49: #{_lambda_.24} parent=0
    _
  %s7 = ssub.s32 1, %s5
  %s8 = scalar_select 0, %s7, %s5
  loop: start=0, step=1, limit=4
  $region2: #{_lambda_.24} parent=0 // loop_pre_header
    _
  $region3: #{_lambda_.24} parent=0 // loop_header
    %s10 = sphi 0, %s14
    %p11 = scmp.ge.s32.totalorder %s10, 4
    %s17 = sphi 0, %s29
    %s18 = sphi 0, %s25
    %s19 = sphi 0, %s17
    %s20 = sphi 0, %s18
    %s21 = sphi 0, %s19
    %s22 = sphi 0, %s20
    %s34 = sphi 0, %s36
    %s37 = sphi 0, %s34
    %s38 = sphi 0, %s37
    %s54 = sphi 0, %s38
    %s58 = sphi 0, %s58
    %s60 = sphi 0, %s58
    %s61 = sphi 0, %s60
    %s75 = sphi 0, %s61
    %s79 = sphi 0, %s79
    %s81 = sphi 0, %s79
    %s82 = sphi 0, %s81
    %s96 = sphi 0, %s82
    %s104 = sphi 0, %s106
    %s107 = sphi 0, %s104
    %s108 = sphi 0, %s107
    %s124 = sphi 0, %s108
    %s132 = sphi 0, %s134
    %s135 = sphi 0, %s132
    %s136 = sphi 0, %s135
    %s152 = sphi 0, %s136
  $region4: #{_lambda_.24} parent=0 // loop_header_branch
    %13 = sbr.rel (%p11) target = $region8
  $region5: #{_lambda_.24} parent=0 // loop_body
    %s15 = ssub.s32 %s10, 1
    %s16 = ssub.s32 %s10, 2
    %s23 = sadd.s32 1, %s18
    %p24 = scmp.ge.s32.totalorder %s23, 1
    %s25 = scalar_select %p24, 0, %s23
    %s26 = sadd.s32 1, %s17
    %s27 = scalar_select %p24, %s26, %s17
    %p28 = scmp.ge.s32.totalorder %s27, 2
    %s29 = scalar_select %p28, 0, %s27
    %s30 = ssub.s32 %s17, %s29
    %s31 = ssub.s32 %s18, %s25
    %s32 = sor.u32 %s30, %s31
    %p33 = scmp.eq.s32.totalorder %s32, 0
    %s35 = sadd.s32 %s34, 1
    %s36 = scalar_select %p33, %s34, %s35
    %p39 = pneg %p33
    %p40 = scmp.eq.s32.totalorder %s10, 1
    %p41 = por %p39, %p40
    %p42 = scmp.ne.s32.totalorder %s34, %s37
    %p43 = scmp.eq.s32.totalorder %s10, 0
    %p44 = por %p42, %p43
    %p45 = scmp.ne.s32.totalorder %s34, %s37
    %p46 = scmp.eq.s32.totalorder %s15, 1
    %p47 = por %p45, %p46
    %p48 = scmp.ne.s32.totalorder %s37, %s38
    %p49 = scmp.eq.s32.totalorder %s15, 0
    %p50 = por %p48, %p49
    %p51 = scmp.ne.s32.totalorder %s37, %s38
    %p52 = scmp.eq.s32.totalorder %s16, 1
    %p53 = por %p51, %p52
    %p55 = scmp.ne.s32.totalorder %s38, %s54
    %p56 = scmp.eq.s32.totalorder %s16, 0
    %p57 = por %p55, %p56
    %s59 = sadd.s32 %s58, 1
    %p62 = scmp.eq.s32.totalorder %s10, 1
    %p63 = scmp.ne.s32.totalorder %s58, %s60
    %p64 = scmp.eq.s32.totalorder %s10, 0
    %p65 = por %p63, %p64
    %p66 = scmp.ne.s32.totalorder %s58, %s60
    %p67 = scmp.eq.s32.totalorder %s15, 1
    %p68 = por %p66, %p67
    %p69 = scmp.ne.s32.totalorder %s60, %s61
    %p70 = scmp.eq.s32.totalorder %s15, 0
    %p71 = por %p69, %p70
    %p72 = scmp.ne.s32.totalorder %s60, %s61
    %p73 = scmp.eq.s32.totalorder %s16, 1
    %p74 = por %p72, %p73
    %p76 = scmp.ne.s32.totalorder %s61, %s75
    %p77 = scmp.eq.s32.totalorder %s16, 0
    %p78 = por %p76, %p77
    %s80 = sadd.s32 %s79, 1
    %p83 = scmp.eq.s32.totalorder %s10, 1
    %p84 = scmp.ne.s32.totalorder %s79, %s81
    %p85 = scmp.eq.s32.totalorder %s10, 0
    %p86 = por %p84, %p85
    %p87 = scmp.ne.s32.totalorder %s79, %s81
    %p88 = scmp.eq.s32.totalorder %s15, 1
    %p89 = por %p87, %p88
    %p90 = scmp.ne.s32.totalorder %s81, %s82
    %p91 = scmp.eq.s32.totalorder %s15, 0
    %p92 = por %p90, %p91
    %p93 = scmp.ne.s32.totalorder %s81, %s82
    %p94 = scmp.eq.s32.totalorder %s16, 1
    %p95 = por %p93, %p94
    %p97 = scmp.ne.s32.totalorder %s82, %s96
    %p98 = scmp.eq.s32.totalorder %s16, 0
    %p99 = por %p97, %p98
    %s100 = ssub.s32 %s17, %s29
    %s101 = ssub.s32 %s18, %s25
    %s102 = sor.u32 %s100, %s101
    %p103 = scmp.eq.s32.totalorder %s102, 0
    %s105 = sadd.s32 %s104, 1
    %s106 = scalar_select %p103, %s104, %s105
    %p109 = pneg %p103
    %p110 = scmp.eq.s32.totalorder %s10, 1
    %p111 = por %p109, %p110
    %p112 = scmp.ne.s32.totalorder %s104, %s107
    %p113 = scmp.eq.s32.totalorder %s10, 0
    %p114 = por %p112, %p113
    %p115 = scmp.ne.s32.totalorder %s104, %s107
    %p116 = scmp.eq.s32.totalorder %s15, 1
    %p117 = por %p115, %p116
    %p118 = scmp.ne.s32.totalorder %s107, %s108
    %p119 = scmp.eq.s32.totalorder %s15, 0
    %p120 = por %p118, %p119
    %p121 = scmp.ne.s32.totalorder %s107, %s108
    %p122 = scmp.eq.s32.totalorder %s16, 1
    %p123 = por %p121, %p122
    %p125 = scmp.ne.s32.totalorder %s108, %s124
    %p126 = scmp.eq.s32.totalorder %s16, 0
    %p127 = por %p125, %p126
    %s128 = ssub.s32 %s17, %s29
    %s129 = ssub.s32 %s18, %s25
    %s130 = sor.u32 %s128, %s129
    %p131 = scmp.eq.s32.totalorder %s130, 0
    %s133 = sadd.s32 %s132, 1
    %s134 = scalar_select %p131, %s132, %s133
    %p137 = pneg %p131
    %p138 = scmp.eq.s32.totalorder %s10, 1
    %p139 = por %p137, %p138
    %p140 = scmp.ne.s32.totalorder %s132, %s135
    %p141 = scmp.eq.s32.totalorder %s10, 0
    %p142 = por %p140, %p141
    %p143 = scmp.ne.s32.totalorder %s132, %s135
    %p144 = scmp.eq.s32.totalorder %s15, 1
    %p145 = por %p143, %p144
    %p146 = scmp.ne.s32.totalorder %s135, %s136
    %p147 = scmp.eq.s32.totalorder %s15, 0
    %p148 = por %p146, %p147
    %p149 = scmp.ne.s32.totalorder %s135, %s136
    %p150 = scmp.eq.s32.totalorder %s16, 1
    %p151 = por %p149, %p150
    %p153 = scmp.ne.s32.totalorder %s136, %s152
    %p154 = scmp.eq.s32.totalorder %s16, 0
    %p155 = por %p153, %p154
    %p156 = scmp.le.s32.totalorder 1, %s10
    %p157 = scmp.lt.s32.totalorder %s10, 3
    %p158 = pnand %p156, %p157
    %p159 = pneg %p158
    // Predicated region
    $region9: #{_lambda_.24} parent=5 // pred_check
      _
    $region10: #{_lambda_.24} parent=5 // pred_check_branch
      %161 = sbr.rel (%p158) target = $region12
    $region11: #{_lambda_.24} parent=5 // pred_region
      %s162 = ssub.s32 %s10, 1
      // Predicated region
      $region13: #{_lambda_.24} parent=11 // pred_check
        %p163 = pneg %p71
      $region14: #{_lambda_.24} parent=11 // pred_check_branch
        %165 = sbr.rel (%p163) target = $region16
      $region15: #{_lambda_.24} parent=11 // pred_region
        _
      $region16: #{_lambda_.24} parent=11 // pred_fallthru
        _
      // Predicated region
      $region17: #{_lambda_.24} parent=11 // pred_check
        %p166 = pneg %p92
      $region18: #{_lambda_.24} parent=11 // pred_check_branch
        %168 = sbr.rel (%p166) target = $region20
      $region19: #{_lambda_.24} parent=11 // pred_region
        _
      $region20: #{_lambda_.24} parent=11 // pred_fallthru
        _
    $region12: #{_lambda_.24} parent=5 // pred_fallthru
      _
    %p169 = scmp.lt.s32.totalorder %s10, 2
    // Predicated region
    $region21: #{_lambda_.24} parent=5 // pred_check
      %p170 = pneg %p169
    $region22: #{_lambda_.24} parent=5 // pred_check_branch
      %172 = sbr.rel (%p170) target = $region24
    $region23: #{_lambda_.24} parent=5 // pred_region
      // Predicated region
      $region25: #{_lambda_.24} parent=23 // pred_check
        %p173 = pneg %p44
      $region26: #{_lambda_.24} parent=23 // pred_check_branch
        %175 = sbr.rel (%p173) target = $region28
      $region27: #{_lambda_.24} parent=23 // pred_region
        %p176 = scmp.lt.s32.totalorder %s17, 1
        %s177 = scalar_select %p176, %s17, 1
        %p178 = scmp.lt.s32.totalorder %s18, 0
        %s179 = scalar_select %p178, %s18, 0
        %s180 = smul.addr %s177, 36
        %s181 = sadd.s32 %s179, %s180
        %s182 = smul.addr %s181, 4
        %s183 = scalar_lea.vmem %s0, %s182
      $region28: #{_lambda_.24} parent=23 // pred_fallthru
        _
      // Predicated region
      $region29: #{_lambda_.24} parent=23 // pred_check
        %p184 = pneg %p114
      $region30: #{_lambda_.24} parent=23 // pred_check_branch
        %186 = sbr.rel (%p184) target = $region32
      $region31: #{_lambda_.24} parent=23 // pred_region
        %p187 = scmp.lt.s32.totalorder %s17, 1
        %s188 = scalar_select %p187, %s17, 1
        %p189 = scmp.lt.s32.totalorder %s18, 0
        %s190 = scalar_select %p189, %s18, 0
        %s191 = smul.addr %s188, 4
        %s192 = sadd.s32 %s190, %s191
        %s193 = smul.addr %s192, 4
        %s194 = scalar_lea.vmem %s3, %s193
      $region32: #{_lambda_.24} parent=23 // pred_fallthru
        _
    $region24: #{_lambda_.24} parent=5 // pred_fallthru
      _
    %p195 = scmp.le.s32.totalorder 1, %s10
    %p196 = scmp.lt.s32.totalorder %s10, 3
    %p197 = pnand %p195, %p196
    %p198 = pneg %p197
    // Predicated region
    $region33: #{_lambda_.24} parent=5 // pred_check
      _
    $region34: #{_lambda_.24} parent=5 // pred_check_branch
      %200 = sbr.rel (%p197) target = $region36
    $region35: #{_lambda_.24} parent=5 // pred_region
      %s201 = ssub.s32 %s10, 1
      %p202 = scmp.lt.s32.totalorder %s19, 1
      %s203 = scalar_select %p202, %s19, 1
      %p204 = scmp.lt.s32.totalorder %s20, 0
      %s205 = scalar_select %p204, %s20, 0
      %s206 = smul.addr %s203, 36
      %s207 = sadd.s32 %s205, %s206
      %s208 = smul.addr %s207, 4
      %s209 = scalar_lea.vmem %s0, %s208
      %p210 = pneg %p50
      %p211 = pneg %p47
      %p212 = pneg %p71
      %p213 = pneg %p68
      %p214 = pneg %p92
      %p215 = pneg %p89
      %p216 = scmp.lt.s32.totalorder %s19, 1
      %s217 = scalar_select %p216, %s19, 1
      %p218 = scmp.lt.s32.totalorder %s20, 0
      %s219 = scalar_select %p218, %s20, 0
      %s220 = smul.addr %s217, 4
      %s221 = sadd.s32 %s219, %s220
      %s222 = smul.addr %s221, 4
      %s223 = scalar_lea.vmem %s3, %s222
      %p224 = pneg %p120
      %p225 = pneg %p117
      %p226 = pneg %p148
      %p227 = pneg %p145
      %p228 = scmp.lt.s32.totalorder %s19, 1
      %s229 = scalar_select %p228, %s19, 1
      %p230 = scmp.lt.s32.totalorder %s20, 0
      %s231 = scalar_select %p230, %s20, 0
      %s232 = smul.addr %s229, 4
      %s233 = sadd.s32 %s231, %s232
      %s234 = smul.addr %s233, 4
      %s235 = scalar_lea.vmem %s4, %s234
      %p236 = scmp.lt.s32.totalorder %s19, 1
      %s237 = scalar_select %p236, %s19, 1
      %p238 = scmp.lt.s32.totalorder %s20, 0
      %s239 = scalar_select %p238, %s20, 0
      %s240 = smul.addr %s237, 36
      %s241 = sadd.s32 %s239, %s240
      %s242 = smul.addr %s241, 4
      %s243 = scalar_lea.vmem %s0, %s242
      %p244 = scmp.lt.s32.totalorder %s19, 1
      %s245 = scalar_select %p244, %s19, 1
      %p246 = scmp.lt.s32.totalorder %s20, 0
      %s247 = scalar_select %p246, %s20, 0
      %s248 = smul.addr %s245, 4
      %s249 = sadd.s32 %s247, %s248
      %s250 = smul.addr %s249, 4
      %s251 = scalar_lea.vmem %s3, %s250
      %p252 = scmp.lt.s32.totalorder %s19, 1
      %s253 = scalar_select %p252, %s19, 1
      %p254 = scmp.lt.s32.totalorder %s20, 0
      %s255 = scalar_select %p254, %s20, 0
      %s256 = smul.addr %s253, 4
      %s257 = sadd.s32 %s255, %s256
      %s258 = smul.addr %s257, 4
      %s259 = scalar_lea.vmem %s4, %s258
      %v261 = vld [vmem:[%s1] sm:$0xff]
      %v262 = vld [vmem:[%s1 + $0x8] sm:$0xf]
      %v263 = vld [vmem:[%s1 + $0xc] sm:$0xff]
      %v264 = vld [vmem:[%s1 + $0x14] sm:$0xf]
      %v265 = vld [vmem:[%s1 + $0x18] sm:$0xff]
      %v266 = vld [vmem:[%s1 + $0x20] sm:$0xf]
      %v267 = vld [vmem:[%s1 + $0x24] sm:$0xff]
      %v268 = vld [vmem:[%s1 + $0x2c] sm:$0xf]
      %v269 = vld [vmem:[%s243] sm:$0xf]
      %v270 = vld [vmem:[%s243 + $0x4] sm:$0xf]
      %v271 = vld [vmem:[%s243 + $0x8] sm:$0xf]
      %v272 = vld [vmem:[%s243 + $0xc] sm:$0xf]
      %v273 = vld [vmem:[%s243 + $0x10] sm:$0xf]
      %v274 = vld [vmem:[%s243 + $0x14] sm:$0xf]
      %v275 = vld [vmem:[%s243 + $0x18] sm:$0xf]
      %v276 = vld [vmem:[%s243 + $0x1c] sm:$0xf]
      %v277 = vld [vmem:[%s243 + $0x20] sm:$0xf]
      %v278 = vld [vmem:[%s243 + $0x24] sm:$0xf]
      %v279 = vld [vmem:[%s243 + $0x28] sm:$0xf]
      %v280 = vld [vmem:[%s243 + $0x2c] sm:$0xf]
      %v281 = vld [vmem:[%s243 + $0x30] sm:$0xf]
      %v282 = vld [vmem:[%s243 + $0x34] sm:$0xf]
      %v283 = vld [vmem:[%s243 + $0x38] sm:$0xf]
      %v284 = vld [vmem:[%s243 + $0x3c] sm:$0xf]
      %v285 = vld [vmem:[%s243 + $0x40] sm:$0xf]
      %v286 = vld [vmem:[%s243 + $0x44] sm:$0xf]
      %v287 = vld [vmem:[%s243 + $0x48] sm:$0xf]
      %v288 = vld [vmem:[%s243 + $0x4c] sm:$0xf]
      %v289 = vld [vmem:[%s243 + $0x50] sm:$0xf]
      %v290 = vld [vmem:[%s243 + $0x54] sm:$0xf]
      %v291 = vld [vmem:[%s243 + $0x58] sm:$0xf]
      %v292 = vld [vmem:[%s243 + $0x5c] sm:$0xf]
      %v293 = vld [vmem:[%s243 + $0x60] sm:$0xf]
      %v294 = vld [vmem:[%s243 + $0x64] sm:$0xf]
      %v295 = vld [vmem:[%s243 + $0x68] sm:$0xf]
      %v296 = vld [vmem:[%s243 + $0x6c] sm:$0xf]
      %v297 = vld [vmem:[%s243 + $0x70] sm:$0xf]
      %v298 = vld [vmem:[%s243 + $0x74] sm:$0xf]
      %v299 = vld [vmem:[%s243 + $0x78] sm:$0xf]
      %v300 = vld [vmem:[%s243 + $0x7c] sm:$0xf]
      %v301 = vld [vmem:[%s243 + $0x80] sm:$0xf]
      %v302 = vld [vmem:[%s243 + $0x84] sm:$0xf]
      %v303 = vld [vmem:[%s243 + $0x88] sm:$0xf]
      %v304 = vld [vmem:[%s243 + $0x8c] sm:$0xf]
      %v305 = vld [vmem:[%s2] sm:$0xff]
      %v306 = vld [vmem:[%s2 + $0x8] sm:$0xff]
      %v307 = vld [vmem:[%s2 + $0x10] sm:$0xff]
      %v308 = vld [vmem:[%s2 + $0x18] sm:$0xff]
      %310 = vset.pattern.permute.xlu0 0
      %311 = vperm.xlu0 %310, %v305
      %v312 = vpop.permute.xlu0 %311
      %315 = vset.pattern.permute.xlu0 0
      %316 = vperm.xlu0 %315, %v306
      %v317 = vpop.permute.xlu0 %316
      %320 = vset.pattern.permute.xlu0 0
      %321 = vperm.xlu0 %320, %v307
      %v322 = vpop.permute.xlu0 %321
      %325 = vset.pattern.permute.xlu0 0
      %326 = vperm.xlu0 %325, %v308
      %v327 = vpop.permute.xlu0 %326
      %v337 = vunpack.c.l.b16 %v261
      %v338 = vunpack.c.h.b16 %v261
      %v339 = vunpack.c.l.b16 %v262
      %v340 = vunpack.c.l.b16 %v263
      %v341 = vunpack.c.h.b16 %v263
      %v342 = vunpack.c.l.b16 %v264
      %v343 = vunpack.c.l.b16 %v265
      %v344 = vunpack.c.h.b16 %v265
      %v345 = vunpack.c.l.b16 %v266
      %v346 = vunpack.c.l.b16 %v267
      %v347 = vunpack.c.h.b16 %v267
      %v348 = vunpack.c.l.b16 %v268
      %v349 = vpack.c.b16 %v340, %v337
      %v350 = vpack.c.b16 %v341, %v338
      %v351 = vpack.c.b16 %v342, %v339
      %v352 = vpack.c.b16 %v346, %v343
      %v353 = vpack.c.b16 %v347, %v344
      %v354 = vpack.c.b16 %v348, %v345
      %v395 = vunpack.c.l.b16 %v269
      %v396 = vunpack.c.l.b16 %v270
      %v397 = vunpack.c.l.b16 %v271
      %v398 = vunpack.c.l.b16 %v272
      %v399 = vunpack.c.l.b16 %v273
      %v400 = vunpack.c.l.b16 %v274
      %v401 = vunpack.c.l.b16 %v275
      %v402 = vunpack.c.l.b16 %v276
      %v403 = vunpack.c.l.b16 %v277
      %v404 = vunpack.c.l.b16 %v278
      %v405 = vunpack.c.l.b16 %v279
      %v406 = vunpack.c.l.b16 %v280
      %v407 = vunpack.c.l.b16 %v281
      %v408 = vunpack.c.l.b16 %v282
      %v409 = vunpack.c.l.b16 %v283
      %v410 = vunpack.c.l.b16 %v284
      %v411 = vunpack.c.l.b16 %v285
      %v412 = vunpack.c.l.b16 %v286
      %v413 = vunpack.c.l.b16 %v287
      %v414 = vunpack.c.l.b16 %v288
      %v415 = vunpack.c.l.b16 %v289
      %v416 = vunpack.c.l.b16 %v290
      %v417 = vunpack.c.l.b16 %v291
      %v418 = vunpack.c.l.b16 %v292
      %v419 = vunpack.c.l.b16 %v293
      %v420 = vunpack.c.l.b16 %v294
      %v421 = vunpack.c.l.b16 %v295
      %v422 = vunpack.c.l.b16 %v296
      %v423 = vunpack.c.l.b16 %v297
      %v424 = vunpack.c.l.b16 %v298
      %v425 = vunpack.c.l.b16 %v299
      %v426 = vunpack.c.l.b16 %v300
      %v427 = vunpack.c.l.b16 %v301
      %v428 = vunpack.c.l.b16 %v302
      %v429 = vunpack.c.l.b16 %v303
      %v430 = vunpack.c.l.b16 %v304
      %v431 = vpack.c.b16 %v396, %v395
      %v432 = vpack.c.b16 %v398, %v397
      %v433 = vpack.c.b16 %v400, %v399
      %v434 = vpack.c.b16 %v402, %v401
      %v435 = vpack.c.b16 %v404, %v403
      %v436 = vpack.c.b16 %v406, %v405
      %v437 = vpack.c.b16 %v408, %v407
      %v438 = vpack.c.b16 %v410, %v409
      %v439 = vpack.c.b16 %v412, %v411
      %v440 = vpack.c.b16 %v414, %v413
      %v441 = vpack.c.b16 %v416, %v415
      %v442 = vpack.c.b16 %v418, %v417
      %v443 = vpack.c.b16 %v420, %v419
      %v444 = vpack.c.b16 %v422, %v421
      %v445 = vpack.c.b16 %v424, %v423
      %v446 = vpack.c.b16 %v426, %v425
      %v447 = vpack.c.b16 %v428, %v427
      %v448 = vpack.c.b16 %v430, %v429
      %vm467 = vcmask 261120
      %v469 = vsel %vm467, %v351, 0
      %v472 = vsel %vm467, %v354, 0
      %474 = vmatprep.subr.bf16.mxu0 0
      %475 = vmatpush1.bf16.msra.mxu0 %v431
      %476 = vmatprep.subr.bf16.mxu0 0
      %477 = vmatpush1.bf16.msra.mxu0 %v432
      %478 = vmatprep.subr.bf16.mxu0 0
      %479 = vmatpush1.bf16.msra.mxu0 %v433
      %480 = vmatprep.subr.bf16.mxu0 0
      %481 = vmatpush1.bf16.msra.mxu0 %v434
      %482 = vmatprep.subr.bf16.mxu0 0
      %483 = vmatpush1.bf16.msra.mxu0 %v435
      %484 = vmatprep.subr.bf16.mxu0 0
      %485 = vmatpush1.bf16.msra.mxu0 %v436
      %486 = vmatprep.subr.bf16.mxu0 0
      %487 = vmatpush1.bf16.msra.mxu0 %v437
      %488 = vmatprep.subr.bf16.mxu0 0
      %489 = vmatpush1.bf16.msra.mxu0 %v438
      %490 = vmatprep.subr.bf16.mxu0 0
      %491 = vmatpush1.bf16.msra.mxu0 %v439
      %492 = vmatprep.subr.bf16.mxu0 0
      %493 = vmatpush1.bf16.msra.mxu0 %v440
      %494 = vmatprep.subr.bf16.mxu0 0
      %495 = vmatpush1.bf16.msra.mxu0 %v441
      %496 = vmatprep.subr.bf16.mxu0 0
      %497 = vmatpush1.bf16.msra.mxu0 %v442
      %498 = vmatprep.subr.bf16.mxu0 0
      %499 = vmatpush1.bf16.msra.mxu0 %v443
      %500 = vmatprep.subr.bf16.mxu0 0
      %501 = vmatpush1.bf16.msra.mxu0 %v444
      %502 = vmatprep.subr.bf16.mxu0 0
      %503 = vmatpush1.bf16.msra.mxu0 %v445
      %504 = vmatprep.subr.bf16.mxu0 0
      %505 = vmatpush1.bf16.msra.mxu0 %v446
      %506 = vmatprep.mubr.bf16.mxu0 %v350
      %507 = vmatmul.mubr.bf16.gmra.mrb[0].mxu0 %v349
      %v508 = vpop.f32.mrb[0].mxu0
      %v509 = vadd.f32 %v312, %v508
      %v510 = vpop.f32.mrb[0].mxu0
      %v511 = vpop.f32.mrb[0].mxu0
      %v512 = vadd.f32 %v317, %v511
      %v513 = vpop.f32.mrb[0].mxu0
      %514 = vmatprep.mubr.bf16.mxu0 %v353
      %515 = vmatmul.mubr.bf16.gmra.mrb[0].mxu0 %v352
      %v516 = vpop.f32.mrb[0].mxu0
      %v517 = vadd.f32 %v322, %v516
      %v518 = vpop.f32.mrb[0].mxu0
      %v519 = vpop.f32.mrb[0].mxu0
      %v520 = vadd.f32 %v327, %v519
      %v521 = vpop.f32.mrb[0].mxu0
      %522 = vdwg.mxu0
      %523 = vmatprep.subr.bf16.mxu0 0
      %524 = vmatpush1.bf16.msra.mxu0 %v447
      %525 = vmatprep.subr.bf16.mxu0 0
      %526 = vmatpush1.bf16.msra.mxu0 %v448
      %527 = vmatprep.subr.bf16.mxu0 0
      %528 = vmatpush1.bf16.msra.mxu0 0
      %529 = vmatprep.subr.bf16.mxu0 0
      %530 = vmatpush1.bf16.msra.mxu0 0
      %531 = vmatprep.subr.bf16.mxu0 0
      %532 = vmatpush1.bf16.msra.mxu0 0
      %533 = vmatprep.subr.bf16.mxu0 0
      %534 = vmatpush1.bf16.msra.mxu0 0
      %535 = vmatprep.subr.bf16.mxu0 0
      %536 = vmatpush1.bf16.msra.mxu0 0
      %537 = vmatprep.subr.bf16.mxu0 0
      %538 = vmatpush1.bf16.msra.mxu0 0
      %539 = vmatprep.subr.bf16.mxu0 0
      %540 = vmatpush1.bf16.msra.mxu0 0
      %541 = vmatprep.subr.bf16.mxu0 0
      %542 = vmatpush1.bf16.msra.mxu0 0
      %543 = vmatprep.subr.bf16.mxu0 0
      %544 = vmatpush1.bf16.msra.mxu0 0
      %545 = vmatprep.subr.bf16.mxu0 0
      %546 = vmatpush1.bf16.msra.mxu0 0
      %547 = vmatprep.subr.bf16.mxu0 0
      %548 = vmatpush1.bf16.msra.mxu0 0
      %549 = vmatprep.subr.bf16.mxu0 0
      %550 = vmatpush1.bf16.msra.mxu0 0
      %551 = vmatprep.subr.bf16.mxu0 0
      %552 = vmatpush1.bf16.msra.mxu0 0
      %553 = vmatprep.subr.bf16.mxu0 0
      %554 = vmatpush1.bf16.msra.mxu0 0
      %555 = vmatprep.mubr.bf16.mxu0 0
      %556 = vmatmul.mubr.bf16.gmra.mrb[0].mxu0 %v469
      %v557 = vpop.f32.mrb[0].mxu0
      %v558 = vadd.f32 %v509, %v557
      %v559 = vpop.f32.mrb[0].mxu0
      %v560 = vpop.f32.mrb[0].mxu0
      %v561 = vadd.f32 %v512, %v560
      %v562 = vpop.f32.mrb[0].mxu0
      %563 = vmatprep.mubr.bf16.mxu0 0
      %564 = vmatmul.mubr.bf16.gmra.mrb[0].mxu0 %v472
      %v565 = vpop.f32.mrb[0].mxu0
      %v566 = vadd.f32 %v517, %v565
      %v567 = vpop.f32.mrb[0].mxu0
      %v568 = vpop.f32.mrb[0].mxu0
      %v569 = vadd.f32 %v520, %v568
      %v570 = vpop.f32.mrb[0].mxu0
      %571 = vdwg.mxu0
      %v572 = vld [vmem:[%s251] sm:$0xf]
      %v573 = vld [vmem:[%s251 + $0x4] sm:$0xf]
      %v574 = vld [vmem:[%s251 + $0x8] sm:$0xf]
      %v575 = vld [vmem:[%s251 + $0xc] sm:$0xf]
      %v576 = vunpack.c.l.bf16 %v572
      %v577 = vunpack.c.l.bf16 %v573
      %v578 = vunpack.c.l.bf16 %v574
      %v579 = vunpack.c.l.bf16 %v575
      %v580 = vadd.f32 %v558, %v576
      %v581 = vadd.f32 %v561, %v577
      %v582 = vadd.f32 %v566, %v578
      %v583 = vadd.f32 %v569, %v579
      %v584 = vmax.f32 %v580, 0.0
      %v585 = vmax.f32 %v581, 0.0
      %v586 = vmax.f32 %v582, 0.0
      %v587 = vmax.f32 %v583, 0.0
      %v588 = vpack.c.bf16 %v585, %v584
      %v589 = vpack.c.bf16 %v587, %v586
      %v592 = vunpack.c.l.b16 %v588
      %v593 = vunpack.c.h.b16 %v588
      %v594 = vunpack.c.l.b16 %v589
      %v595 = vunpack.c.h.b16 %v589
      %v596 = vpack.c.b16 %v592, %v592
      %v597 = vpack.c.b16 %v593, %v593
      %v598 = vpack.c.b16 %v594, %v594
      %v599 = vpack.c.b16 %v595, %v595
      %604 = vst [vmem:[%s259] sm:$0xf] %v596
      %605 = vst [vmem:[%s259 + $0x4] sm:$0xf] %v597
      %606 = vst [vmem:[%s259 + $0x8] sm:$0xf] %v598
      %607 = vst [vmem:[%s259 + $0xc] sm:$0xf] %v599
      %p608 = scmp.lt.s32.totalorder %s19, 1
      %s609 = scalar_select %p608, %s19, 1
      %p610 = scmp.lt.s32.totalorder %s20, 0
      %s611 = scalar_select %p610, %s20, 0
      %s612 = smul.addr %s609, 4
      %s613 = sadd.s32 %s611, %s612
      %s614 = smul.addr %s613, 4
      %s615 = scalar_lea.vmem %s4, %s614
      // Predicated region
      $region37: #{_lambda_.24} parent=35 // pred_check
        %p616 = pneg %p145
      $region38: #{_lambda_.24} parent=35 // pred_check_branch
        %618 = sbr.rel (%p616) target = $region40
      $region39: #{_lambda_.24} parent=35 // pred_region
        _
      $region40: #{_lambda_.24} parent=35 // pred_fallthru
        _
    $region36: #{_lambda_.24} parent=5 // pred_fallthru
      _
    %p619 = scmp.le.s32.totalorder 2, %s10
    // Predicated region
    $region41: #{_lambda_.24} parent=5 // pred_check
      %p620 = pneg %p619
    $region42: #{_lambda_.24} parent=5 // pred_check_branch
      %622 = sbr.rel (%p620) target = $region44
    $region43: #{_lambda_.24} parent=5 // pred_region
      %s623 = ssub.s32 %s10, 2
      // Predicated region
      $region45: #{_lambda_.24} parent=43 // pred_check
        %p624 = pneg %p151
      $region46: #{_lambda_.24} parent=43 // pred_check_branch
        %626 = sbr.rel (%p624) target = $region48
      $region47: #{_lambda_.24} parent=43 // pred_region
        %p627 = scmp.lt.s32.totalorder %s21, 1
        %s628 = scalar_select %p627, %s21, 1
        %p629 = scmp.lt.s32.totalorder %s22, 0
        %s630 = scalar_select %p629, %s22, 0
        %s631 = smul.addr %s628, 4
        %s632 = sadd.s32 %s630, %s631
        %s633 = smul.addr %s632, 4
        %s634 = scalar_lea.vmem %s4, %s633
      $region48: #{_lambda_.24} parent=43 // pred_fallthru
        _
    $region44: #{_lambda_.24} parent=5 // pred_fallthru
      _
  $region6: #{_lambda_.24} parent=0 // loop_footer
    %s14 = sadd.s32 1, %s10
  $region7: #{_lambda_.24} parent=0 // loop_footer_branch
    %9 = sbr.rel target = $region3
  $region8: #{_lambda_.24} parent=0 // loop_exit
    _

// kernel: _lambda_.31
$region0: #{_lambda_.31}
  #allocation0 [shape = 'u32[]', space=smem, size = 0x4, offset = 0x4, fixed_abs, tag = 'smem constant byte address 0x4 - core index']
  #allocation1 [shape = 'u32[144,128]{1,0:T(1,128)}', space=vmem, size = 0x12000, scoped, tag = 'internal scratch']
  %s0 = inlined_call_operand.vmem [shape: bf16[2,288,128], index: 0, kind: input, shape index: {}]
  %s1 = inlined_call_operand.vmem [shape: bf16[128,288], index: 1, kind: input, shape index: {}]
  %s2 = inlined_call_operand.vmem [shape: f32[128,1], index: 2, kind: input, shape index: {}]
  %s3 = inlined_call_operand.vmem [shape: bf16[2,128,128], index: 3, kind: output, shape index: {}]
  %s4 = sld [smem:[#allocation0]]
  $region45: #{_lambda_.31} parent=0
    _
  %s6 = ssub.s32 1, %s4
  %s7 = scalar_select 0, %s6, %s4
  loop: start=0, step=1, limit=4
  $region2: #{_lambda_.31} parent=0 // loop_pre_header
    _
  $region3: #{_lambda_.31} parent=0 // loop_header
    %s9 = sphi 0, %s13
    %p10 = scmp.ge.s32.totalorder %s9, 4
    %s16 = sphi 0, %s28
    %s17 = sphi 0, %s24
    %s18 = sphi 0, %s16
    %s19 = sphi 0, %s17
    %s20 = sphi 0, %s18
    %s21 = sphi 0, %s19
    %s33 = sphi 0, %s35
    %s36 = sphi 0, %s33
    %s37 = sphi 0, %s36
    %s53 = sphi 0, %s37
    %s57 = sphi 0, %s57
    %s59 = sphi 0, %s57
    %s60 = sphi 0, %s59
    %s74 = sphi 0, %s60
    %s78 = sphi 0, %s78
    %s80 = sphi 0, %s78
    %s81 = sphi 0, %s80
    %s95 = sphi 0, %s81
    %s103 = sphi 0, %s105
    %s106 = sphi 0, %s103
    %s107 = sphi 0, %s106
    %s123 = sphi 0, %s107
  $region4: #{_lambda_.31} parent=0 // loop_header_branch
    %12 = sbr.rel (%p10) target = $region8
  $region5: #{_lambda_.31} parent=0 // loop_body
    %s14 = ssub.s32 %s9, 1
    %s15 = ssub.s32 %s9, 2
    %s22 = sadd.s32 1, %s17
    %p23 = scmp.ge.s32.totalorder %s22, 1
    %s24 = scalar_select %p23, 0, %s22
    %s25 = sadd.s32 1, %s16
    %s26 = scalar_select %p23, %s25, %s16
    %p27 = scmp.ge.s32.totalorder %s26, 2
    %s28 = scalar_select %p27, 0, %s26
    %s29 = ssub.s32 %s16, %s28
    %s30 = ssub.s32 %s17, %s24
    %s31 = sor.u32 %s29, %s30
    %p32 = scmp.eq.s32.totalorder %s31, 0
    %s34 = sadd.s32 %s33, 1
    %s35 = scalar_select %p32, %s33, %s34
    %p38 = pneg %p32
    %p39 = scmp.eq.s32.totalorder %s9, 1
    %p40 = por %p38, %p39
    %p41 = scmp.ne.s32.totalorder %s33, %s36
    %p42 = scmp.eq.s32.totalorder %s9, 0
    %p43 = por %p41, %p42
    %p44 = scmp.ne.s32.totalorder %s33, %s36
    %p45 = scmp.eq.s32.totalorder %s14, 1
    %p46 = por %p44, %p45
    %p47 = scmp.ne.s32.totalorder %s36, %s37
    %p48 = scmp.eq.s32.totalorder %s14, 0
    %p49 = por %p47, %p48
    %p50 = scmp.ne.s32.totalorder %s36, %s37
    %p51 = scmp.eq.s32.totalorder %s15, 1
    %p52 = por %p50, %p51
    %p54 = scmp.ne.s32.totalorder %s37, %s53
    %p55 = scmp.eq.s32.totalorder %s15, 0
    %p56 = por %p54, %p55
    %s58 = sadd.s32 %s57, 1
    %p61 = scmp.eq.s32.totalorder %s9, 1
    %p62 = scmp.ne.s32.totalorder %s57, %s59
    %p63 = scmp.eq.s32.totalorder %s9, 0
    %p64 = por %p62, %p63
    %p65 = scmp.ne.s32.totalorder %s57, %s59
    %p66 = scmp.eq.s32.totalorder %s14, 1
    %p67 = por %p65, %p66
    %p68 = scmp.ne.s32.totalorder %s59, %s60
    %p69 = scmp.eq.s32.totalorder %s14, 0
    %p70 = por %p68, %p69
    %p71 = scmp.ne.s32.totalorder %s59, %s60
    %p72 = scmp.eq.s32.totalorder %s15, 1
    %p73 = por %p71, %p72
    %p75 = scmp.ne.s32.totalorder %s60, %s74
    %p76 = scmp.eq.s32.totalorder %s15, 0
    %p77 = por %p75, %p76
    %s79 = sadd.s32 %s78, 1
    %p82 = scmp.eq.s32.totalorder %s9, 1
    %p83 = scmp.ne.s32.totalorder %s78, %s80
    %p84 = scmp.eq.s32.totalorder %s9, 0
    %p85 = por %p83, %p84
    %p86 = scmp.ne.s32.totalorder %s78, %s80
    %p87 = scmp.eq.s32.totalorder %s14, 1
    %p88 = por %p86, %p87
    %p89 = scmp.ne.s32.totalorder %s80, %s81
    %p90 = scmp.eq.s32.totalorder %s14, 0
    %p91 = por %p89, %p90
    %p92 = scmp.ne.s32.totalorder %s80, %s81
    %p93 = scmp.eq.s32.totalorder %s15, 1
    %p94 = por %p92, %p93
    %p96 = scmp.ne.s32.totalorder %s81, %s95
    %p97 = scmp.eq.s32.totalorder %s15, 0
    %p98 = por %p96, %p97
    %s99 = ssub.s32 %s16, %s28
    %s100 = ssub.s32 %s17, %s24
    %s101 = sor.u32 %s99, %s100
    %p102 = scmp.eq.s32.totalorder %s101, 0
    %s104 = sadd.s32 %s103, 1
    %s105 = scalar_select %p102, %s103, %s104
    %p108 = pneg %p102
    %p109 = scmp.eq.s32.totalorder %s9, 1
    %p110 = por %p108, %p109
    %p111 = scmp.ne.s32.totalorder %s103, %s106
    %p112 = scmp.eq.s32.totalorder %s9, 0
    %p113 = por %p111, %p112
    %p114 = scmp.ne.s32.totalorder %s103, %s106
    %p115 = scmp.eq.s32.totalorder %s14, 1
    %p116 = por %p114, %p115
    %p117 = scmp.ne.s32.totalorder %s106, %s107
    %p118 = scmp.eq.s32.totalorder %s14, 0
    %p119 = por %p117, %p118
    %p120 = scmp.ne.s32.totalorder %s106, %s107
    %p121 = scmp.eq.s32.totalorder %s15, 1
    %p122 = por %p120, %p121
    %p124 = scmp.ne.s32.totalorder %s107, %s123
    %p125 = scmp.eq.s32.totalorder %s15, 0
    %p126 = por %p124, %p125
    %p127 = scmp.le.s32.totalorder 1, %s9
    %p128 = scmp.lt.s32.totalorder %s9, 3
    %p129 = pnand %p127, %p128
    %p130 = pneg %p129
    // Predicated region
    $region9: #{_lambda_.31} parent=5 // pred_check
      _
    $region10: #{_lambda_.31} parent=5 // pred_check_branch
      %132 = sbr.rel (%p129) target = $region12
    $region11: #{_lambda_.31} parent=5 // pred_region
      %s133 = ssub.s32 %s9, 1
      // Predicated region
      $region13: #{_lambda_.31} parent=11 // pred_check
        %p134 = pneg %p70
      $region14: #{_lambda_.31} parent=11 // pred_check_branch
        %136 = sbr.rel (%p134) target = $region16
      $region15: #{_lambda_.31} parent=11 // pred_region
        _
      $region16: #{_lambda_.31} parent=11 // pred_fallthru
        _
      // Predicated region
      $region17: #{_lambda_.31} parent=11 // pred_check
        %p137 = pneg %p91
      $region18: #{_lambda_.31} parent=11 // pred_check_branch
        %139 = sbr.rel (%p137) target = $region20
      $region19: #{_lambda_.31} parent=11 // pred_region
        _
      $region20: #{_lambda_.31} parent=11 // pred_fallthru
        _
    $region12: #{_lambda_.31} parent=5 // pred_fallthru
      _
    %p140 = scmp.lt.s32.totalorder %s9, 2
    // Predicated region
    $region21: #{_lambda_.31} parent=5 // pred_check
      %p141 = pneg %p140
    $region22: #{_lambda_.31} parent=5 // pred_check_branch
      %143 = sbr.rel (%p141) target = $region24
    $region23: #{_lambda_.31} parent=5 // pred_region
      // Predicated region
      $region25: #{_lambda_.31} parent=23 // pred_check
        %p144 = pneg %p43
      $region26: #{_lambda_.31} parent=23 // pred_check_branch
        %146 = sbr.rel (%p144) target = $region28
      $region27: #{_lambda_.31} parent=23 // pred_region
        %p147 = scmp.lt.s32.totalorder %s16, 1
        %s148 = scalar_select %p147, %s16, 1
        %p149 = scmp.lt.s32.totalorder %s17, 0
        %s150 = scalar_select %p149, %s17, 0
        %s151 = smul.addr %s148, 36
        %s152 = sadd.s32 %s150, %s151
        %s153 = smul.addr %s152, 4
        %s154 = scalar_lea.vmem %s0, %s153
      $region28: #{_lambda_.31} parent=23 // pred_fallthru
        _
    $region24: #{_lambda_.31} parent=5 // pred_fallthru
      _
    %p155 = scmp.le.s32.totalorder 1, %s9
    %p156 = scmp.lt.s32.totalorder %s9, 3
    %p157 = pnand %p155, %p156
    %p158 = pneg %p157
    // Predicated region
    $region29: #{_lambda_.31} parent=5 // pred_check
      _
    $region30: #{_lambda_.31} parent=5 // pred_check_branch
      %160 = sbr.rel (%p157) target = $region32
    $region31: #{_lambda_.31} parent=5 // pred_region
      %s161 = ssub.s32 %s9, 1
      %p162 = scmp.lt.s32.totalorder %s18, 1
      %s163 = scalar_select %p162, %s18, 1
      %p164 = scmp.lt.s32.totalorder %s19, 0
      %s165 = scalar_select %p164, %s19, 0
      %s166 = smul.addr %s163, 36
      %s167 = sadd.s32 %s165, %s166
      %s168 = smul.addr %s167, 4
      %s169 = scalar_lea.vmem %s0, %s168
      %p170 = pneg %p49
      %p171 = pneg %p46
      %p172 = pneg %p70
      %p173 = pneg %p67
      %p174 = pneg %p91
      %p175 = pneg %p88
      %p176 = pneg %p119
      %p177 = pneg %p116
      %p178 = scmp.lt.s32.totalorder %s18, 1
      %s179 = scalar_select %p178, %s18, 1
      %p180 = scmp.lt.s32.totalorder %s19, 0
      %s181 = scalar_select %p180, %s19, 0
      %s182 = smul.addr %s179, 16
      %s183 = sadd.s32 %s181, %s182
      %s184 = smul.addr %s183, 4
      %s185 = scalar_lea.vmem %s3, %s184
      %p186 = scmp.lt.s32.totalorder %s18, 1
      %s187 = scalar_select %p186, %s18, 1
      %p188 = scmp.lt.s32.totalorder %s19, 0
      %s189 = scalar_select %p188, %s19, 0
      %s190 = smul.addr %s187, 36
      %s191 = sadd.s32 %s189, %s190
      %s192 = smul.addr %s191, 4
      %s193 = scalar_lea.vmem %s0, %s192
      %p194 = scmp.lt.s32.totalorder %s18, 1
      %s195 = scalar_select %p194, %s18, 1
      %p196 = scmp.lt.s32.totalorder %s19, 0
      %s197 = scalar_select %p196, %s19, 0
      %s198 = smul.addr %s195, 16
      %s199 = sadd.s32 %s197, %s198
      %s200 = smul.addr %s199, 4
      %s201 = scalar_lea.vmem %s3, %s200
      %v203 = vld [vmem:[%s1] sm:$0xff]
      %v204 = vld [vmem:[%s1 + $0x8] sm:$0xf]
      %v205 = vld [vmem:[%s1 + $0xc] sm:$0xff]
      %v206 = vld [vmem:[%s1 + $0x14] sm:$0xf]
      %v207 = vld [vmem:[%s1 + $0x18] sm:$0xff]
      %v208 = vld [vmem:[%s1 + $0x20] sm:$0xf]
      %v209 = vld [vmem:[%s1 + $0x24] sm:$0xff]
      %v210 = vld [vmem:[%s1 + $0x2c] sm:$0xf]
      %v211 = vld [vmem:[%s1 + $0x30] sm:$0xff]
      %v212 = vld [vmem:[%s1 + $0x38] sm:$0xf]
      %v213 = vld [vmem:[%s1 + $0x3c] sm:$0xff]
      %v214 = vld [vmem:[%s1 + $0x44] sm:$0xf]
      %v215 = vld [vmem:[%s1 + $0x48] sm:$0xff]
      %v216 = vld [vmem:[%s1 + $0x50] sm:$0xf]
      %v217 = vld [vmem:[%s1 + $0x54] sm:$0xff]
      %v218 = vld [vmem:[%s1 + $0x5c] sm:$0xf]
      %v219 = vld [vmem:[%s1 + $0x60] sm:$0xff]
      %v220 = vld [vmem:[%s1 + $0x68] sm:$0xf]
      %v221 = vld [vmem:[%s1 + $0x6c] sm:$0xff]
      %v222 = vld [vmem:[%s1 + $0x74] sm:$0xf]
      %v223 = vld [vmem:[%s1 + $0x78] sm:$0xff]
      %v224 = vld [vmem:[%s1 + $0x80] sm:$0xf]
      %v225 = vld [vmem:[%s1 + $0x84] sm:$0xff]
      %v226 = vld [vmem:[%s1 + $0x8c] sm:$0xf]
      %v227 = vld [vmem:[%s1 + $0x90] sm:$0xff]
      %v228 = vld [vmem:[%s1 + $0x98] sm:$0xf]
      %v229 = vld [vmem:[%s1 + $0x9c] sm:$0xff]
      %v230 = vld [vmem:[%s1 + $0xa4] sm:$0xf]
      %v231 = vld [vmem:[%s1 + $0xa8] sm:$0xff]
      %v232 = vld [vmem:[%s1 + $0xb0] sm:$0xf]
      %v233 = vld [vmem:[%s1 + $0xb4] sm:$0xff]
      %v234 = vld [vmem:[%s1 + $0xbc] sm:$0xf]
      %v235 = vld [vmem:[%s193] sm:$0xf]
      %v236 = vld [vmem:[%s193 + $0x4] sm:$0xf]
      %v237 = vld [vmem:[%s193 + $0x8] sm:$0xf]
      %v238 = vld [vmem:[%s193 + $0xc] sm:$0xf]
      %v239 = vld [vmem:[%s193 + $0x10] sm:$0xf]
      %v240 = vld [vmem:[%s193 + $0x14] sm:$0xf]
      %v241 = vld [vmem:[%s193 + $0x18] sm:$0xf]
      %v242 = vld [vmem:[%s193 + $0x1c] sm:$0xf]
      %v243 = vld [vmem:[%s193 + $0x20] sm:$0xf]
      %v244 = vld [vmem:[%s193 + $0x24] sm:$0xf]
      %v245 = vld [vmem:[%s193 + $0x28] sm:$0xf]
      %v246 = vld [vmem:[%s193 + $0x2c] sm:$0xf]
      %v247 = vld [vmem:[%s193 + $0x30] sm:$0xf]
      %v248 = vld [vmem:[%s193 + $0x34] sm:$0xf]
      %v249 = vld [vmem:[%s193 + $0x38] sm:$0xf]
      %v250 = vld [vmem:[%s193 + $0x3c] sm:$0xf]
      %v251 = vld [vmem:[%s193 + $0x40] sm:$0xf]
      %v252 = vld [vmem:[%s193 + $0x44] sm:$0xf]
      %v253 = vld [vmem:[%s193 + $0x48] sm:$0xf]
      %v254 = vld [vmem:[%s193 + $0x4c] sm:$0xf]
      %v255 = vld [vmem:[%s193 + $0x50] sm:$0xf]
      %v256 = vld [vmem:[%s193 + $0x54] sm:$0xf]
      %v257 = vld [vmem:[%s193 + $0x58] sm:$0xf]
      %v258 = vld [vmem:[%s193 + $0x5c] sm:$0xf]
      %v259 = vld [vmem:[%s193 + $0x60] sm:$0xf]
      %v260 = vld [vmem:[%s193 + $0x64] sm:$0xf]
      %v261 = vld [vmem:[%s193 + $0x68] sm:$0xf]
      %v262 = vld [vmem:[%s193 + $0x6c] sm:$0xf]
      %v263 = vld [vmem:[%s193 + $0x70] sm:$0xf]
      %v264 = vld [vmem:[%s193 + $0x74] sm:$0xf]
      %v265 = vld [vmem:[%s193 + $0x78] sm:$0xf]
      %v266 = vld [vmem:[%s193 + $0x7c] sm:$0xf]
      %v267 = vld [vmem:[%s193 + $0x80] sm:$0xf]
      %v268 = vld [vmem:[%s193 + $0x84] sm:$0xf]
      %v269 = vld [vmem:[%s193 + $0x88] sm:$0xf]
      %v270 = vld [vmem:[%s193 + $0x8c] sm:$0xf]
      %v271 = vld [vmem:[%s2] sm:$0xff]
      %v272 = vld [vmem:[%s2 + $0x8] sm:$0xff]
      %v273 = vld [vmem:[%s2 + $0x10] sm:$0xff]
      %v274 = vld [vmem:[%s2 + $0x18] sm:$0xff]
      %v275 = vld [vmem:[%s2 + $0x20] sm:$0xff]
      %v276 = vld [vmem:[%s2 + $0x28] sm:$0xff]
      %v277 = vld [vmem:[%s2 + $0x30] sm:$0xff]
      %v278 = vld [vmem:[%s2 + $0x38] sm:$0xff]
      %v279 = vld [vmem:[%s2 + $0x40] sm:$0xff]
      %v280 = vld [vmem:[%s2 + $0x48] sm:$0xff]
      %v281 = vld [vmem:[%s2 + $0x50] sm:$0xff]
      %v282 = vld [vmem:[%s2 + $0x58] sm:$0xff]
      %v283 = vld [vmem:[%s2 + $0x60] sm:$0xff]
      %v284 = vld [vmem:[%s2 + $0x68] sm:$0xff]
      %v285 = vld [vmem:[%s2 + $0x70] sm:$0xff]
      %v286 = vld [vmem:[%s2 + $0x78] sm:$0xff]
      %288 = vset.pattern.permute.xlu0 0
      %289 = vperm.xlu0 %288, %v271
      %v290 = vpop.permute.xlu0 %289
      %293 = vset.pattern.permute.xlu0 0
      %294 = vperm.xlu0 %293, %v272
      %v295 = vpop.permute.xlu0 %294
      %298 = vset.pattern.permute.xlu0 0
      %299 = vperm.xlu0 %298, %v273
      %v300 = vpop.permute.xlu0 %299
      %303 = vset.pattern.permute.xlu0 0
      %304 = vperm.xlu0 %303, %v274
      %v305 = vpop.permute.xlu0 %304
      %308 = vset.pattern.permute.xlu0 0
      %309 = vperm.xlu0 %308, %v275
      %v310 = vpop.permute.xlu0 %309
      %313 = vset.pattern.permute.xlu0 0
      %314 = vperm.xlu0 %313, %v276
      %v315 = vpop.permute.xlu0 %314
      %318 = vset.pattern.permute.xlu0 0
      %319 = vperm.xlu0 %318, %v277
      %v320 = vpop.permute.xlu0 %319
      %323 = vset.pattern.permute.xlu0 0
      %324 = vperm.xlu0 %323, %v278
      %v325 = vpop.permute.xlu0 %324
      %328 = vset.pattern.permute.xlu0 0
      %329 = vperm.xlu0 %328, %v279
      %v330 = vpop.permute.xlu0 %329
      %333 = vset.pattern.permute.xlu0 0
      %334 = vperm.xlu0 %333, %v280
      %v335 = vpop.permute.xlu0 %334
      %338 = vset.pattern.permute.xlu0 0
      %339 = vperm.xlu0 %338, %v281
      %v340 = vpop.permute.xlu0 %339
      %343 = vset.pattern.permute.xlu0 0
      %344 = vperm.xlu0 %343, %v282
      %v345 = vpop.permute.xlu0 %344
      %348 = vset.pattern.permute.xlu0 0
      %349 = vperm.xlu0 %348, %v283
      %v350 = vpop.permute.xlu0 %349
      %353 = vset.pattern.permute.xlu0 0
      %354 = vperm.xlu0 %353, %v284
      %v355 = vpop.permute.xlu0 %354
      %358 = vset.pattern.permute.xlu0 0
      %359 = vperm.xlu0 %358, %v285
      %v360 = vpop.permute.xlu0 %359
      %363 = vset.pattern.permute.xlu0 0
      %364 = vperm.xlu0 %363, %v286
      %v365 = vpop.permute.xlu0 %364
      %v399 = vunpack.c.l.b16 %v203
      %v400 = vunpack.c.h.b16 %v203
      %v401 = vunpack.c.l.b16 %v204
      %v402 = vunpack.c.l.b16 %v205
      %v403 = vunpack.c.h.b16 %v205
      %v404 = vunpack.c.l.b16 %v206
      %v405 = vunpack.c.l.b16 %v207
      %v406 = vunpack.c.h.b16 %v207
      %v407 = vunpack.c.l.b16 %v208
      %v408 = vunpack.c.l.b16 %v209
      %v409 = vunpack.c.h.b16 %v209
      %v410 = vunpack.c.l.b16 %v210
      %v411 = vunpack.c.l.b16 %v211
      %v412 = vunpack.c.h.b16 %v211
      %v413 = vunpack.c.l.b16 %v212
      %v414 = vunpack.c.l.b16 %v213
      %v415 = vunpack.c.h.b16 %v213
      %v416 = vunpack.c.l.b16 %v214
      %v417 = vunpack.c.l.b16 %v215
      %v418 = vunpack.c.h.b16 %v215
      %v419 = vunpack.c.l.b16 %v216
      %v420 = vunpack.c.l.b16 %v217
      %v421 = vunpack.c.h.b16 %v217
      %v422 = vunpack.c.l.b16 %v218
      %v423 = vunpack.c.l.b16 %v219
      %v424 = vunpack.c.h.b16 %v219
      %v425 = vunpack.c.l.b16 %v220
      %v426 = vunpack.c.l.b16 %v221
      %v427 = vunpack.c.h.b16 %v221
      %v428 = vunpack.c.l.b16 %v222
      %v429 = vunpack.c.l.b16 %v223
      %v430 = vunpack.c.h.b16 %v223
      %v431 = vunpack.c.l.b16 %v224
      %v432 = vunpack.c.l.b16 %v225
      %v433 = vunpack.c.h.b16 %v225
      %v434 = vunpack.c.l.b16 %v226
      %v435 = vunpack.c.l.b16 %v227
      %v436 = vunpack.c.h.b16 %v227
      %v437 = vunpack.c.l.b16 %v228
      %v438 = vunpack.c.l.b16 %v229
      %v439 = vunpack.c.h.b16 %v229
      %v440 = vunpack.c.l.b16 %v230
      %v441 = vunpack.c.l.b16 %v231
      %v442 = vunpack.c.h.b16 %v231
      %v443 = vunpack.c.l.b16 %v232
      %v444 = vunpack.c.l.b16 %v233
      %v445 = vunpack.c.h.b16 %v233
      %v446 = vunpack.c.l.b16 %v234
      %v447 = vpack.c.b16 %v402, %v399
      %v448 = vpack.c.b16 %v403, %v400
      %v449 = vpack.c.b16 %v404, %v401
      %v450 = vpack.c.b16 %v408, %v405
      %v451 = vpack.c.b16 %v409, %v406
      %v452 = vpack.c.b16 %v410, %v407
      %v453 = vpack.c.b16 %v414, %v411
      %v454 = vpack.c.b16 %v415, %v412
      %v455 = vpack.c.b16 %v416, %v413
      %v456 = vpack.c.b16 %v420, %v417
      %v457 = vpack.c.b16 %v421, %v418
      %v458 = vpack.c.b16 %v422, %v419
      %v459 = vpack.c.b16 %v426, %v423
      %v460 = vpack.c.b16 %v427, %v424
      %v461 = vpack.c.b16 %v428, %v425
      %v462 = vpack.c.b16 %v432, %v429
      %v463 = vpack.c.b16 %v433, %v430
      %v464 = vpack.c.b16 %v434, %v431
      %v465 = vpack.c.b16 %v438, %v435
      %v466 = vpack.c.b16 %v439, %v436
      %v467 = vpack.c.b16 %v440, %v437
      %v468 = vpack.c.b16 %v444, %v441
      %v469 = vpack.c.b16 %v445, %v442
      %v470 = vpack.c.b16 %v446, %v443
      %v523 = vunpack.c.l.b16 %v235
      %v524 = vunpack.c.l.b16 %v236
      %v525 = vunpack.c.l.b16 %v237
      %v526 = vunpack.c.l.b16 %v238
      %v527 = vunpack.c.l.b16 %v239
      %v528 = vunpack.c.l.b16 %v240
      %v529 = vunpack.c.l.b16 %v241
      %v530 = vunpack.c.l.b16 %v242
      %v531 = vunpack.c.l.b16 %v243
      %v532 = vunpack.c.l.b16 %v244
      %v533 = vunpack.c.l.b16 %v245
      %v534 = vunpack.c.l.b16 %v246
      %v535 = vunpack.c.l.b16 %v247
      %v536 = vunpack.c.l.b16 %v248
      %v537 = vunpack.c.l.b16 %v249
      %v538 = vunpack.c.l.b16 %v250
      %v539 = vunpack.c.l.b16 %v251
      %v540 = vunpack.c.l.b16 %v252
      %v541 = vunpack.c.l.b16 %v253
      %v542 = vunpack.c.l.b16 %v254
      %v543 = vunpack.c.l.b16 %v255
      %v544 = vunpack.c.l.b16 %v256
      %v545 = vunpack.c.l.b16 %v257
      %v546 = vunpack.c.l.b16 %v258
      %v547 = vunpack.c.l.b16 %v259
      %v548 = vunpack.c.l.b16 %v260
      %v549 = vunpack.c.l.b16 %v261
      %v550 = vunpack.c.l.b16 %v262
      %v551 = vunpack.c.l.b16 %v263
      %v552 = vunpack.c.l.b16 %v264
      %v553 = vunpack.c.l.b16 %v265
      %v554 = vunpack.c.l.b16 %v266
      %v555 = vunpack.c.l.b16 %v267
      %v556 = vunpack.c.l.b16 %v268
      %v557 = vunpack.c.l.b16 %v269
      %v558 = vunpack.c.l.b16 %v270
      %v559 = vpack.c.b16 %v524, %v523
      %v560 = vpack.c.b16 %v526, %v525
      %v561 = vpack.c.b16 %v528, %v527
      %v562 = vpack.c.b16 %v530, %v529
      %v563 = vpack.c.b16 %v532, %v531
      %v564 = vpack.c.b16 %v534, %v533
      %v565 = vpack.c.b16 %v536, %v535
      %v566 = vpack.c.b16 %v538, %v537
      %v567 = vpack.c.b16 %v540, %v539
      %v568 = vpack.c.b16 %v542, %v541
      %v569 = vpack.c.b16 %v544, %v543
      %v570 = vpack.c.b16 %v546, %v545
      %v571 = vpack.c.b16 %v548, %v547
      %v572 = vpack.c.b16 %v550, %v549
      %v573 = vpack.c.b16 %v552, %v551
      %v574 = vpack.c.b16 %v554, %v553
      %v575 = vpack.c.b16 %v556, %v555
      %v576 = vpack.c.b16 %v558, %v557
      %vm595 = vcmask 261120
      %v597 = vsel %vm595, %v449, 0
      %v600 = vsel %vm595, %v452, 0
      %v603 = vsel %vm595, %v455, 0
      %v606 = vsel %vm595, %v458, 0
      %v609 = vsel %vm595, %v461, 0
      %v612 = vsel %vm595, %v464, 0
      %v615 = vsel %vm595, %v467, 0
      %v618 = vsel %vm595, %v470, 0
      %620 = vmatprep.subr.bf16.mxu0 0
      %621 = vmatpush1.bf16.msra.mxu0 %v559
      %622 = vmatprep.subr.bf16.mxu0 0
      %623 = vmatpush1.bf16.msra.mxu0 %v560
      %624 = vmatprep.subr.bf16.mxu0 0
      %625 = vmatpush1.bf16.msra.mxu0 %v561
      %626 = vmatprep.subr.bf16.mxu0 0
      %627 = vmatpush1.bf16.msra.mxu0 %v562
      %628 = vmatprep.subr.bf16.mxu0 0
      %629 = vmatpush1.bf16.msra.mxu0 %v563
      %630 = vmatprep.subr.bf16.mxu0 0
      %631 = vmatpush1.bf16.msra.mxu0 %v564
      %632 = vmatprep.subr.bf16.mxu0 0
      %633 = vmatpush1.bf16.msra.mxu0 %v565
      %634 = vmatprep.subr.bf16.mxu0 0
      %635 = vmatpush1.bf16.msra.mxu0 %v566
      %636 = vmatprep.subr.bf16.mxu0 0
      %637 = vmatpush1.bf16.msra.mxu0 %v567
      %638 = vmatprep.subr.bf16.mxu0 0
      %639 = vmatpush1.bf16.msra.mxu0 %v568
      %640 = vmatprep.subr.bf16.mxu0 0
      %641 = vmatpush1.bf16.msra.mxu0 %v569
      %642 = vmatprep.subr.bf16.mxu0 0
      %643 = vmatpush1.bf16.msra.mxu0 %v570
      %644 = vmatprep.subr.bf16.mxu0 0
      %645 = vmatpush1.bf16.msra.mxu0 %v571
      %646 = vmatprep.subr.bf16.mxu0 0
      %647 = vmatpush1.bf16.msra.mxu0 %v572
      %648 = vmatprep.subr.bf16.mxu0 0
      %649 = vmatpush1.bf16.msra.mxu0 %v573
      %650 = vmatprep.subr.bf16.mxu0 0
      %651 = vmatpush1.bf16.msra.mxu0 %v574
      %652 = vmatprep.mubr.bf16.mxu0 %v448
      %653 = vmatmul.mubr.bf16.gmra.mrb[0].mxu0 %v447
      %v654 = vpop.f32.mrb[0].mxu0
      %v655 = vadd.f32 %v290, %v654
      %v656 = vpop.f32.mrb[0].mxu0
      %v657 = vpop.f32.mrb[0].mxu0
      %v658 = vadd.f32 %v295, %v657
      %v659 = vpop.f32.mrb[0].mxu0
      %660 = vmatprep.mubr.bf16.mxu0 %v451
      %661 = vmatmul.mubr.bf16.gmra.mrb[0].mxu0 %v450
      %v662 = vpop.f32.mrb[0].mxu0
      %v663 = vadd.f32 %v300, %v662
      %v664 = vpop.f32.mrb[0].mxu0
      %v665 = vpop.f32.mrb[0].mxu0
      %v666 = vadd.f32 %v305, %v665
      %v667 = vpop.f32.mrb[0].mxu0
      %668 = vmatprep.mubr.bf16.mxu0 %v454
      %669 = vmatmul.mubr.bf16.gmra.mrb[0].mxu0 %v453
      %v670 = vpop.f32.mrb[0].mxu0
      %v671 = vadd.f32 %v310, %v670
      %v672 = vpop.f32.mrb[0].mxu0
      %v673 = vpop.f32.mrb[0].mxu0
      %v674 = vadd.f32 %v315, %v673
      %v675 = vpop.f32.mrb[0].mxu0
      %676 = vmatprep.mubr.bf16.mxu0 %v457
      %677 = vmatmul.mubr.bf16.gmra.mrb[0].mxu0 %v456
      %v678 = vpop.f32.mrb[0].mxu0
      %v679 = vadd.f32 %v320, %v678
      %v680 = vpop.f32.mrb[0].mxu0
      %v681 = vpop.f32.mrb[0].mxu0
      %v682 = vadd.f32 %v325, %v681
      %v683 = vpop.f32.mrb[0].mxu0
      %684 = vmatprep.mubr.bf16.mxu0 %v460
      %685 = vmatmul.mubr.bf16.gmra.mrb[0].mxu0 %v459
      %v686 = vpop.f32.mrb[0].mxu0
      %v687 = vadd.f32 %v330, %v686
      %v688 = vpop.f32.mrb[0].mxu0
      %v689 = vpop.f32.mrb[0].mxu0
      %v690 = vadd.f32 %v335, %v689
      %v691 = vpop.f32.mrb[0].mxu0
      %692 = vmatprep.mubr.bf16.mxu0 %v463
      %693 = vmatmul.mubr.bf16.gmra.mrb[0].mxu0 %v462
      %v694 = vpop.f32.mrb[0].mxu0
      %v695 = vadd.f32 %v340, %v694
      %v696 = vpop.f32.mrb[0].mxu0
      %v697 = vpop.f32.mrb[0].mxu0
      %v698 = vadd.f32 %v345, %v697
      %v699 = vpop.f32.mrb[0].mxu0
      %700 = vmatprep.mubr.bf16.mxu0 %v466
      %701 = vmatmul.mubr.bf16.gmra.mrb[0].mxu0 %v465
      %v702 = vpop.f32.mrb[0].mxu0
      %v703 = vadd.f32 %v350, %v702
      %v704 = vpop.f32.mrb[0].mxu0
      %v705 = vpop.f32.mrb[0].mxu0
      %v706 = vadd.f32 %v355, %v705
      %v707 = vpop.f32.mrb[0].mxu0
      %708 = vmatprep.mubr.bf16.mxu0 %v469
      %709 = vmatmul.mubr.bf16.gmra.mrb[0].mxu0 %v468
      %v710 = vpop.f32.mrb[0].mxu0
      %v711 = vadd.f32 %v360, %v710
      %v712 = vpop.f32.mrb[0].mxu0
      %v713 = vpop.f32.mrb[0].mxu0
      %v714 = vadd.f32 %v365, %v713
      %v715 = vpop.f32.mrb[0].mxu0
      %716 = vdwg.mxu0
      %717 = vmatprep.subr.bf16.mxu0 0
      %718 = vmatpush1.bf16.msra.mxu0 %v575
      %719 = vmatprep.subr.bf16.mxu0 0
      %720 = vmatpush1.bf16.msra.mxu0 %v576
      %721 = vmatprep.subr.bf16.mxu0 0
      %722 = vmatpush1.bf16.msra.mxu0 0
      %723 = vmatprep.subr.bf16.mxu0 0
      %724 = vmatpush1.bf16.msra.mxu0 0
      %725 = vmatprep.subr.bf16.mxu0 0
      %726 = vmatpush1.bf16.msra.mxu0 0
      %727 = vmatprep.subr.bf16.mxu0 0
      %728 = vmatpush1.bf16.msra.mxu0 0
      %729 = vmatprep.subr.bf16.mxu0 0
      %730 = vmatpush1.bf16.msra.mxu0 0
      %731 = vmatprep.subr.bf16.mxu0 0
      %732 = vmatpush1.bf16.msra.mxu0 0
      %733 = vmatprep.subr.bf16.mxu0 0
      %734 = vmatpush1.bf16.msra.mxu0 0
      %735 = vmatprep.subr.bf16.mxu0 0
      %736 = vmatpush1.bf16.msra.mxu0 0
      %737 = vmatprep.subr.bf16.mxu0 0
      %738 = vmatpush1.bf16.msra.mxu0 0
      %739 = vmatprep.subr.bf16.mxu0 0
      %740 = vmatpush1.bf16.msra.mxu0 0
      %741 = vmatprep.subr.bf16.mxu0 0
      %742 = vmatpush1.bf16.msra.mxu0 0
      %743 = vmatprep.subr.bf16.mxu0 0
      %744 = vmatpush1.bf16.msra.mxu0 0
      %745 = vmatprep.subr.bf16.mxu0 0
      %746 = vmatpush1.bf16.msra.mxu0 0
      %747 = vmatprep.subr.bf16.mxu0 0
      %748 = vmatpush1.bf16.msra.mxu0 0
      %749 = vmatprep.mubr.bf16.mxu0 0
      %750 = vmatmul.mubr.bf16.gmra.mrb[0].mxu0 %v597
      %v751 = vpop.f32.mrb[0].mxu0
      %v752 = vadd.f32 %v655, %v751
      %v753 = vpop.f32.mrb[0].mxu0
      %v754 = vpop.f32.mrb[0].mxu0
      %v755 = vadd.f32 %v658, %v754
      %v756 = vpop.f32.mrb[0].mxu0
      %757 = vmatprep.mubr.bf16.mxu0 0
      %758 = vmatmul.mubr.bf16.gmra.mrb[0].mxu0 %v600
      %v759 = vpop.f32.mrb[0].mxu0
      %v760 = vadd.f32 %v663, %v759
      %v761 = vpop.f32.mrb[0].mxu0
      %v762 = vpop.f32.mrb[0].mxu0
      %v763 = vadd.f32 %v666, %v762
      %v764 = vpop.f32.mrb[0].mxu0
      %765 = vmatprep.mubr.bf16.mxu0 0
      %766 = vmatmul.mubr.bf16.gmra.mrb[0].mxu0 %v603
      %v767 = vpop.f32.mrb[0].mxu0
      %v768 = vadd.f32 %v671, %v767
      %v769 = vpop.f32.mrb[0].mxu0
      %v770 = vpop.f32.mrb[0].mxu0
      %v771 = vadd.f32 %v674, %v770
      %v772 = vpop.f32.mrb[0].mxu0
      %773 = vmatprep.mubr.bf16.mxu0 0
      %774 = vmatmul.mubr.bf16.gmra.mrb[0].mxu0 %v606
      %v775 = vpop.f32.mrb[0].mxu0
      %v776 = vadd.f32 %v679, %v775
      %v777 = vpop.f32.mrb[0].mxu0
      %v778 = vpop.f32.mrb[0].mxu0
      %v779 = vadd.f32 %v682, %v778
      %v780 = vpop.f32.mrb[0].mxu0
      %781 = vmatprep.mubr.bf16.mxu0 0
      %782 = vmatmul.mubr.bf16.gmra.mrb[0].mxu0 %v609
      %v783 = vpop.f32.mrb[0].mxu0
      %v784 = vadd.f32 %v687, %v783
      %v785 = vpop.f32.mrb[0].mxu0
      %v786 = vpop.f32.mrb[0].mxu0
      %v787 = vadd.f32 %v690, %v786
      %v788 = vpop.f32.mrb[0].mxu0
      %789 = vmatprep.mubr.bf16.mxu0 0
      %790 = vmatmul.mubr.bf16.gmra.mrb[0].mxu0 %v612
      %v791 = vpop.f32.mrb[0].mxu0
      %v792 = vadd.f32 %v695, %v791
      %v793 = vpop.f32.mrb[0].mxu0
      %v794 = vpop.f32.mrb[0].mxu0
      %v795 = vadd.f32 %v698, %v794
      %v796 = vpop.f32.mrb[0].mxu0
      %797 = vmatprep.mubr.bf16.mxu0 0
      %798 = vmatmul.mubr.bf16.gmra.mrb[0].mxu0 %v615
      %v799 = vpop.f32.mrb[0].mxu0
      %v800 = vadd.f32 %v703, %v799
      %v801 = vpop.f32.mrb[0].mxu0
      %v802 = vpop.f32.mrb[0].mxu0
      %v803 = vadd.f32 %v706, %v802
      %v804 = vpop.f32.mrb[0].mxu0
      %805 = vmatprep.mubr.bf16.mxu0 0
      %806 = vmatmul.mubr.bf16.gmra.mrb[0].mxu0 %v618
      %v807 = vpop.f32.mrb[0].mxu0
      %v808 = vadd.f32 %v711, %v807
      %v809 = vpop.f32.mrb[0].mxu0
      %v810 = vpop.f32.mrb[0].mxu0
      %v811 = vadd.f32 %v714, %v810
      %v812 = vpop.f32.mrb[0].mxu0
      %813 = vdwg.mxu0
      %v814 = vmax.f32 %v752, 0.0
      %v815 = vmax.f32 %v755, 0.0
      %v816 = vmax.f32 %v760, 0.0
      %v817 = vmax.f32 %v763, 0.0
      %v818 = vmax.f32 %v768, 0.0
      %v819 = vmax.f32 %v771, 0.0
      %v820 = vmax.f32 %v776, 0.0
      %v821 = vmax.f32 %v779, 0.0
      %v822 = vmax.f32 %v784, 0.0
      %v823 = vmax.f32 %v787, 0.0
      %v824 = vmax.f32 %v792, 0.0
      %v825 = vmax.f32 %v795, 0.0
      %v826 = vmax.f32 %v800, 0.0
      %v827 = vmax.f32 %v803, 0.0
      %v828 = vmax.f32 %v808, 0.0
      %v829 = vmax.f32 %v811, 0.0
      %v830 = vpack.c.bf16 %v815, %v814
      %v831 = vpack.c.bf16 %v817, %v816
      %v832 = vpack.c.bf16 %v819, %v818
      %v833 = vpack.c.bf16 %v821, %v820
      %v834 = vpack.c.bf16 %v823, %v822
      %v835 = vpack.c.bf16 %v825, %v824
      %v836 = vpack.c.bf16 %v827, %v826
      %v837 = vpack.c.bf16 %v829, %v828
      %v846 = vunpack.c.l.b16 %v830
      %v847 = vunpack.c.h.b16 %v830
      %v848 = vunpack.c.l.b16 %v831
      %v849 = vunpack.c.h.b16 %v831
      %v850 = vunpack.c.l.b16 %v832
      %v851 = vunpack.c.h.b16 %v832
      %v852 = vunpack.c.l.b16 %v833
      %v853 = vunpack.c.h.b16 %v833
      %v854 = vunpack.c.l.b16 %v834
      %v855 = vunpack.c.h.b16 %v834
      %v856 = vunpack.c.l.b16 %v835
      %v857 = vunpack.c.h.b16 %v835
      %v858 = vunpack.c.l.b16 %v836
      %v859 = vunpack.c.h.b16 %v836
      %v860 = vunpack.c.l.b16 %v837
      %v861 = vunpack.c.h.b16 %v837
      %v862 = vpack.c.b16 %v846, %v846
      %v863 = vpack.c.b16 %v847, %v847
      %v864 = vpack.c.b16 %v848, %v848
      %v865 = vpack.c.b16 %v849, %v849
      %v866 = vpack.c.b16 %v850, %v850
      %v867 = vpack.c.b16 %v851, %v851
      %v868 = vpack.c.b16 %v852, %v852
      %v869 = vpack.c.b16 %v853, %v853
      %v870 = vpack.c.b16 %v854, %v854
      %v871 = vpack.c.b16 %v855, %v855
      %v872 = vpack.c.b16 %v856, %v856
      %v873 = vpack.c.b16 %v857, %v857
      %v874 = vpack.c.b16 %v858, %v858
      %v875 = vpack.c.b16 %v859, %v859
      %v876 = vpack.c.b16 %v860, %v860
      %v877 = vpack.c.b16 %v861, %v861
      %894 = vst [vmem:[%s201] sm:$0xf] %v862
      %895 = vst [vmem:[%s201 + $0x4] sm:$0xf] %v863
      %896 = vst [vmem:[%s201 + $0x8] sm:$0xf] %v864
      %897 = vst [vmem:[%s201 + $0xc] sm:$0xf] %v865
      %898 = vst [vmem:[%s201 + $0x10] sm:$0xf] %v866
      %899 = vst [vmem:[%s201 + $0x14] sm:$0xf] %v867
      %900 = vst [vmem:[%s201 + $0x18] sm:$0xf] %v868
      %901 = vst [vmem:[%s201 + $0x1c] sm:$0xf] %v869
      %902 = vst [vmem:[%s201 + $0x20] sm:$0xf] %v870
      %903 = vst [vmem:[%s201 + $0x24] sm:$0xf] %v871
      %904 = vst [vmem:[%s201 + $0x28] sm:$0xf] %v872
      %905 = vst [vmem:[%s201 + $0x2c] sm:$0xf] %v873
      %906 = vst [vmem:[%s201 + $0x30] sm:$0xf] %v874
      %907 = vst [vmem:[%s201 + $0x34] sm:$0xf] %v875
      %908 = vst [vmem:[%s201 + $0x38] sm:$0xf] %v876
      %909 = vst [vmem:[%s201 + $0x3c] sm:$0xf] %v877
      %p910 = scmp.lt.s32.totalorder %s18, 1
      %s911 = scalar_select %p910, %s18, 1
      %p912 = scmp.lt.s32.totalorder %s19, 0
      %s913 = scalar_select %p912, %s19, 0
      %s914 = smul.addr %s911, 16
      %s915 = sadd.s32 %s913, %s914
      %s916 = smul.addr %s915, 4
      %s917 = scalar_lea.vmem %s3, %s916
      // Predicated region
      $region33: #{_lambda_.31} parent=31 // pred_check
        %p918 = pneg %p116
      $region34: #{_lambda_.31} parent=31 // pred_check_branch
        %920 = sbr.rel (%p918) target = $region36
      $region35: #{_lambda_.31} parent=31 // pred_region
        _
      $region36: #{_lambda_.31} parent=31 // pred_fallthru
        _
    $region32: #{_lambda_.31} parent=5 // pred_fallthru
      _
    %p921 = scmp.le.s32.totalorder 2, %s9
    // Predicated region
    $region37: #{_lambda_.31} parent=5 // pred_check
      %p922 = pneg %p921
    $region38: #{_lambda_.31} parent=5 // pred_check_branch
      %924 = sbr.rel (%p922) target = $region40
    $region39: #{_lambda_.31} parent=5 // pred_region
      %s925 = ssub.s32 %s9, 2
      // Predicated region
      $region41: #{_lambda_.31} parent=39 // pred_check
        %p926 = pneg %p122
      $region42: #{_lambda_.31} parent=39 // pred_check_branch
        %928 = sbr.rel (%p926) target = $region44
      $region43: #{_lambda_.31} parent=39 // pred_region
        %p929 = scmp.lt.s32.totalorder %s20, 1
        %s930 = scalar_select %p929, %s20, 1
        %p931 = scmp.lt.s32.totalorder %s21, 0
        %s932 = scalar_select %p931, %s21, 0
        %s933 = smul.addr %s930, 16
        %s934 = sadd.s32 %s932, %s933
        %s935 = smul.addr %s934, 4
        %s936 = scalar_lea.vmem %s3, %s935
      $region44: #{_lambda_.31} parent=39 // pred_fallthru
        _
    $region40: #{_lambda_.31} parent=5 // pred_fallthru
      _
  $region6: #{_lambda_.31} parent=0 // loop_footer
    %s13 = sadd.s32 1, %s9
  $region7: #{_lambda_.31} parent=0 // loop_footer_branch
    %8 = sbr.rel target = $region3
  $region8: #{_lambda_.31} parent=0 // loop_exit
    _

// kernel: _lambda_.33
$region0: #{_lambda_.33}
  #allocation0 [shape = 'u32[]', space=smem, size = 0x4, offset = 0x4, fixed_abs, tag = 'smem constant byte address 0x4 - core index']
  #allocation1 [shape = 'u32[144,128]{1,0:T(1,128)}', space=vmem, size = 0x12000, scoped, tag = 'internal scratch']
  %s0 = inlined_call_operand.vmem [shape: bf16[2,288,128], index: 0, kind: input, shape index: {}]
  %s1 = inlined_call_operand.vmem [shape: bf16[64,288], index: 1, kind: input, shape index: {}]
  %s2 = inlined_call_operand.vmem [shape: f32[64,1], index: 2, kind: input, shape index: {}]
  %s3 = inlined_call_operand.vmem [shape: bf16[2,64,128], index: 3, kind: output, shape index: {}]
  %s4 = sld [smem:[#allocation0]]
  $region45: #{_lambda_.33} parent=0
    _
  %s6 = ssub.s32 1, %s4
  %s7 = scalar_select 0, %s6, %s4
  loop: start=0, step=1, limit=4
  $region2: #{_lambda_.33} parent=0 // loop_pre_header
    _
  $region3: #{_lambda_.33} parent=0 // loop_header
    %s9 = sphi 0, %s13
    %p10 = scmp.ge.s32.totalorder %s9, 4
    %s16 = sphi 0, %s28
    %s17 = sphi 0, %s24
    %s18 = sphi 0, %s16
    %s19 = sphi 0, %s17
    %s20 = sphi 0, %s18
    %s21 = sphi 0, %s19
    %s33 = sphi 0, %s35
    %s36 = sphi 0, %s33
    %s37 = sphi 0, %s36
    %s53 = sphi 0, %s37
    %s57 = sphi 0, %s57
    %s59 = sphi 0, %s57
    %s60 = sphi 0, %s59
    %s74 = sphi 0, %s60
    %s78 = sphi 0, %s78
    %s80 = sphi 0, %s78
    %s81 = sphi 0, %s80
    %s95 = sphi 0, %s81
    %s103 = sphi 0, %s105
    %s106 = sphi 0, %s103
    %s107 = sphi 0, %s106
    %s123 = sphi 0, %s107
  $region4: #{_lambda_.33} parent=0 // loop_header_branch
    %12 = sbr.rel (%p10) target = $region8
  $region5: #{_lambda_.33} parent=0 // loop_body
    %s14 = ssub.s32 %s9, 1
    %s15 = ssub.s32 %s9, 2
    %s22 = sadd.s32 1, %s17
    %p23 = scmp.ge.s32.totalorder %s22, 1
    %s24 = scalar_select %p23, 0, %s22
    %s25 = sadd.s32 1, %s16
    %s26 = scalar_select %p23, %s25, %s16
    %p27 = scmp.ge.s32.totalorder %s26, 2
    %s28 = scalar_select %p27, 0, %s26
    %s29 = ssub.s32 %s16, %s28
    %s30 = ssub.s32 %s17, %s24
    %s31 = sor.u32 %s29, %s30
    %p32 = scmp.eq.s32.totalorder %s31, 0
    %s34 = sadd.s32 %s33, 1
    %s35 = scalar_select %p32, %s33, %s34
    %p38 = pneg %p32
    %p39 = scmp.eq.s32.totalorder %s9, 1
    %p40 = por %p38, %p39
    %p41 = scmp.ne.s32.totalorder %s33, %s36
    %p42 = scmp.eq.s32.totalorder %s9, 0
    %p43 = por %p41, %p42
    %p44 = scmp.ne.s32.totalorder %s33, %s36
    %p45 = scmp.eq.s32.totalorder %s14, 1
    %p46 = por %p44, %p45
    %p47 = scmp.ne.s32.totalorder %s36, %s37
    %p48 = scmp.eq.s32.totalorder %s14, 0
    %p49 = por %p47, %p48
    %p50 = scmp.ne.s32.totalorder %s36, %s37
    %p51 = scmp.eq.s32.totalorder %s15, 1
    %p52 = por %p50, %p51
    %p54 = scmp.ne.s32.totalorder %s37, %s53
    %p55 = scmp.eq.s32.totalorder %s15, 0
    %p56 = por %p54, %p55
    %s58 = sadd.s32 %s57, 1
    %p61 = scmp.eq.s32.totalorder %s9, 1
    %p62 = scmp.ne.s32.totalorder %s57, %s59
    %p63 = scmp.eq.s32.totalorder %s9, 0
    %p64 = por %p62, %p63
    %p65 = scmp.ne.s32.totalorder %s57, %s59
    %p66 = scmp.eq.s32.totalorder %s14, 1
    %p67 = por %p65, %p66
    %p68 = scmp.ne.s32.totalorder %s59, %s60
    %p69 = scmp.eq.s32.totalorder %s14, 0
    %p70 = por %p68, %p69
    %p71 = scmp.ne.s32.totalorder %s59, %s60
    %p72 = scmp.eq.s32.totalorder %s15, 1
    %p73 = por %p71, %p72
    %p75 = scmp.ne.s32.totalorder %s60, %s74
    %p76 = scmp.eq.s32.totalorder %s15, 0
    %p77 = por %p75, %p76
    %s79 = sadd.s32 %s78, 1
    %p82 = scmp.eq.s32.totalorder %s9, 1
    %p83 = scmp.ne.s32.totalorder %s78, %s80
    %p84 = scmp.eq.s32.totalorder %s9, 0
    %p85 = por %p83, %p84
    %p86 = scmp.ne.s32.totalorder %s78, %s80
    %p87 = scmp.eq.s32.totalorder %s14, 1
    %p88 = por %p86, %p87
    %p89 = scmp.ne.s32.totalorder %s80, %s81
    %p90 = scmp.eq.s32.totalorder %s14, 0
    %p91 = por %p89, %p90
    %p92 = scmp.ne.s32.totalorder %s80, %s81
    %p93 = scmp.eq.s32.totalorder %s15, 1
    %p94 = por %p92, %p93
    %p96 = scmp.ne.s32.totalorder %s81, %s95
    %p97 = scmp.eq.s32.totalorder %s15, 0
    %p98 = por %p96, %p97
    %s99 = ssub.s32 %s16, %s28
    %s100 = ssub.s32 %s17, %s24
    %s101 = sor.u32 %s99, %s100
    %p102 = scmp.eq.s32.totalorder %s101, 0
    %s104 = sadd.s32 %s103, 1
    %s105 = scalar_select %p102, %s103, %s104
    %p108 = pneg %p102
    %p109 = scmp.eq.s32.totalorder %s9, 1
    %p110 = por %p108, %p109
    %p111 = scmp.ne.s32.totalorder %s103, %s106
    %p112 = scmp.eq.s32.totalorder %s9, 0
    %p113 = por %p111, %p112
    %p114 = scmp.ne.s32.totalorder %s103, %s106
    %p115 = scmp.eq.s32.totalorder %s14, 1
    %p116 = por %p114, %p115
    %p117 = scmp.ne.s32.totalorder %s106, %s107
    %p118 = scmp.eq.s32.totalorder %s14, 0
    %p119 = por %p117, %p118
    %p120 = scmp.ne.s32.totalorder %s106, %s107
    %p121 = scmp.eq.s32.totalorder %s15, 1
    %p122 = por %p120, %p121
    %p124 = scmp.ne.s32.totalorder %s107, %s123
    %p125 = scmp.eq.s32.totalorder %s15, 0
    %p126 = por %p124, %p125
    %p127 = scmp.le.s32.totalorder 1, %s9
    %p128 = scmp.lt.s32.totalorder %s9, 3
    %p129 = pnand %p127, %p128
    %p130 = pneg %p129
    // Predicated region
    $region9: #{_lambda_.33} parent=5 // pred_check
      _
    $region10: #{_lambda_.33} parent=5 // pred_check_branch
      %132 = sbr.rel (%p129) target = $region12
    $region11: #{_lambda_.33} parent=5 // pred_region
      %s133 = ssub.s32 %s9, 1
      // Predicated region
      $region13: #{_lambda_.33} parent=11 // pred_check
        %p134 = pneg %p70
      $region14: #{_lambda_.33} parent=11 // pred_check_branch
        %136 = sbr.rel (%p134) target = $region16
      $region15: #{_lambda_.33} parent=11 // pred_region
        _
      $region16: #{_lambda_.33} parent=11 // pred_fallthru
        _
      // Predicated region
      $region17: #{_lambda_.33} parent=11 // pred_check
        %p137 = pneg %p91
      $region18: #{_lambda_.33} parent=11 // pred_check_branch
        %139 = sbr.rel (%p137) target = $region20
      $region19: #{_lambda_.33} parent=11 // pred_region
        _
      $region20: #{_lambda_.33} parent=11 // pred_fallthru
        _
    $region12: #{_lambda_.33} parent=5 // pred_fallthru
      _
    %p140 = scmp.lt.s32.totalorder %s9, 2
    // Predicated region
    $region21: #{_lambda_.33} parent=5 // pred_check
      %p141 = pneg %p140
    $region22: #{_lambda_.33} parent=5 // pred_check_branch
      %143 = sbr.rel (%p141) target = $region24
    $region23: #{_lambda_.33} parent=5 // pred_region
      // Predicated region
      $region25: #{_lambda_.33} parent=23 // pred_check
        %p144 = pneg %p43
      $region26: #{_lambda_.33} parent=23 // pred_check_branch
        %146 = sbr.rel (%p144) target = $region28
      $region27: #{_lambda_.33} parent=23 // pred_region
        %p147 = scmp.lt.s32.totalorder %s16, 1
        %s148 = scalar_select %p147, %s16, 1
        %p149 = scmp.lt.s32.totalorder %s17, 0
        %s150 = scalar_select %p149, %s17, 0
        %s151 = smul.addr %s148, 36
        %s152 = sadd.s32 %s150, %s151
        %s153 = smul.addr %s152, 4
        %s154 = scalar_lea.vmem %s0, %s153
      $region28: #{_lambda_.33} parent=23 // pred_fallthru
        _
    $region24: #{_lambda_.33} parent=5 // pred_fallthru
      _
    %p155 = scmp.le.s32.totalorder 1, %s9
    %p156 = scmp.lt.s32.totalorder %s9, 3
    %p157 = pnand %p155, %p156
    %p158 = pneg %p157
    // Predicated region
    $region29: #{_lambda_.33} parent=5 // pred_check
      _
    $region30: #{_lambda_.33} parent=5 // pred_check_branch
      %160 = sbr.rel (%p157) target = $region32
    $region31: #{_lambda_.33} parent=5 // pred_region
      %s161 = ssub.s32 %s9, 1
      %p162 = scmp.lt.s32.totalorder %s18, 1
      %s163 = scalar_select %p162, %s18, 1
      %p164 = scmp.lt.s32.totalorder %s19, 0
      %s165 = scalar_select %p164, %s19, 0
      %s166 = smul.addr %s163, 36
      %s167 = sadd.s32 %s165, %s166
      %s168 = smul.addr %s167, 4
      %s169 = scalar_lea.vmem %s0, %s168
      %p170 = pneg %p49
      %p171 = pneg %p46
      %p172 = pneg %p70
      %p173 = pneg %p67
      %p174 = pneg %p91
      %p175 = pneg %p88
      %p176 = pneg %p119
      %p177 = pneg %p116
      %p178 = scmp.lt.s32.totalorder %s18, 1
      %s179 = scalar_select %p178, %s18, 1
      %p180 = scmp.lt.s32.totalorder %s19, 0
      %s181 = scalar_select %p180, %s19, 0
      %s182 = smul.addr %s179, 8
      %s183 = sadd.s32 %s181, %s182
      %s184 = smul.addr %s183, 4
      %s185 = scalar_lea.vmem %s3, %s184
      %p186 = scmp.lt.s32.totalorder %s18, 1
      %s187 = scalar_select %p186, %s18, 1
      %p188 = scmp.lt.s32.totalorder %s19, 0
      %s189 = scalar_select %p188, %s19, 0
      %s190 = smul.addr %s187, 36
      %s191 = sadd.s32 %s189, %s190
      %s192 = smul.addr %s191, 4
      %s193 = scalar_lea.vmem %s0, %s192
      %p194 = scmp.lt.s32.totalorder %s18, 1
      %s195 = scalar_select %p194, %s18, 1
      %p196 = scmp.lt.s32.totalorder %s19, 0
      %s197 = scalar_select %p196, %s19, 0
      %s198 = smul.addr %s195, 8
      %s199 = sadd.s32 %s197, %s198
      %s200 = smul.addr %s199, 4
      %s201 = scalar_lea.vmem %s3, %s200
      %v203 = vld [vmem:[%s1] sm:$0xff]
      %v204 = vld [vmem:[%s1 + $0x8] sm:$0xf]
      %v205 = vld [vmem:[%s1 + $0xc] sm:$0xff]
      %v206 = vld [vmem:[%s1 + $0x14] sm:$0xf]
      %v207 = vld [vmem:[%s1 + $0x18] sm:$0xff]
      %v208 = vld [vmem:[%s1 + $0x20] sm:$0xf]
      %v209 = vld [vmem:[%s1 + $0x24] sm:$0xff]
      %v210 = vld [vmem:[%s1 + $0x2c] sm:$0xf]
      %v211 = vld [vmem:[%s1 + $0x30] sm:$0xff]
      %v212 = vld [vmem:[%s1 + $0x38] sm:$0xf]
      %v213 = vld [vmem:[%s1 + $0x3c] sm:$0xff]
      %v214 = vld [vmem:[%s1 + $0x44] sm:$0xf]
      %v215 = vld [vmem:[%s1 + $0x48] sm:$0xff]
      %v216 = vld [vmem:[%s1 + $0x50] sm:$0xf]
      %v217 = vld [vmem:[%s1 + $0x54] sm:$0xff]
      %v218 = vld [vmem:[%s1 + $0x5c] sm:$0xf]
      %v219 = vld [vmem:[%s193] sm:$0xf]
      %v220 = vld [vmem:[%s193 + $0x4] sm:$0xf]
      %v221 = vld [vmem:[%s193 + $0x8] sm:$0xf]
      %v222 = vld [vmem:[%s193 + $0xc] sm:$0xf]
      %v223 = vld [vmem:[%s193 + $0x10] sm:$0xf]
      %v224 = vld [vmem:[%s193 + $0x14] sm:$0xf]
      %v225 = vld [vmem:[%s193 + $0x18] sm:$0xf]
      %v226 = vld [vmem:[%s193 + $0x1c] sm:$0xf]
      %v227 = vld [vmem:[%s193 + $0x20] sm:$0xf]
      %v228 = vld [vmem:[%s193 + $0x24] sm:$0xf]
      %v229 = vld [vmem:[%s193 + $0x28] sm:$0xf]
      %v230 = vld [vmem:[%s193 + $0x2c] sm:$0xf]
      %v231 = vld [vmem:[%s193 + $0x30] sm:$0xf]
      %v232 = vld [vmem:[%s193 + $0x34] sm:$0xf]
      %v233 = vld [vmem:[%s193 + $0x38] sm:$0xf]
      %v234 = vld [vmem:[%s193 + $0x3c] sm:$0xf]
      %v235 = vld [vmem:[%s193 + $0x40] sm:$0xf]
      %v236 = vld [vmem:[%s193 + $0x44] sm:$0xf]
      %v237 = vld [vmem:[%s193 + $0x48] sm:$0xf]
      %v238 = vld [vmem:[%s193 + $0x4c] sm:$0xf]
      %v239 = vld [vmem:[%s193 + $0x50] sm:$0xf]
      %v240 = vld [vmem:[%s193 + $0x54] sm:$0xf]
      %v241 = vld [vmem:[%s193 + $0x58] sm:$0xf]
      %v242 = vld [vmem:[%s193 + $0x5c] sm:$0xf]
      %v243 = vld [vmem:[%s193 + $0x60] sm:$0xf]
      %v244 = vld [vmem:[%s193 + $0x64] sm:$0xf]
      %v245 = vld [vmem:[%s193 + $0x68] sm:$0xf]
      %v246 = vld [vmem:[%s193 + $0x6c] sm:$0xf]
      %v247 = vld [vmem:[%s193 + $0x70] sm:$0xf]
      %v248 = vld [vmem:[%s193 + $0x74] sm:$0xf]
      %v249 = vld [vmem:[%s193 + $0x78] sm:$0xf]
      %v250 = vld [vmem:[%s193 + $0x7c] sm:$0xf]
      %v251 = vld [vmem:[%s193 + $0x80] sm:$0xf]
      %v252 = vld [vmem:[%s193 + $0x84] sm:$0xf]
      %v253 = vld [vmem:[%s193 + $0x88] sm:$0xf]
      %v254 = vld [vmem:[%s193 + $0x8c] sm:$0xf]
      %v255 = vld [vmem:[%s2] sm:$0xff]
      %v256 = vld [vmem:[%s2 + $0x8] sm:$0xff]
      %v257 = vld [vmem:[%s2 + $0x10] sm:$0xff]
      %v258 = vld [vmem:[%s2 + $0x18] sm:$0xff]
      %v259 = vld [vmem:[%s2 + $0x20] sm:$0xff]
      %v260 = vld [vmem:[%s2 + $0x28] sm:$0xff]
      %v261 = vld [vmem:[%s2 + $0x30] sm:$0xff]
      %v262 = vld [vmem:[%s2 + $0x38] sm:$0xff]
      %264 = vset.pattern.permute.xlu0 0
      %265 = vperm.xlu0 %264, %v255
      %v266 = vpop.permute.xlu0 %265
      %269 = vset.pattern.permute.xlu0 0
      %270 = vperm.xlu0 %269, %v256
      %v271 = vpop.permute.xlu0 %270
      %274 = vset.pattern.permute.xlu0 0
      %275 = vperm.xlu0 %274, %v257
      %v276 = vpop.permute.xlu0 %275
      %279 = vset.pattern.permute.xlu0 0
      %280 = vperm.xlu0 %279, %v258
      %v281 = vpop.permute.xlu0 %280
      %284 = vset.pattern.permute.xlu0 0
      %285 = vperm.xlu0 %284, %v259
      %v286 = vpop.permute.xlu0 %285
      %289 = vset.pattern.permute.xlu0 0
      %290 = vperm.xlu0 %289, %v260
      %v291 = vpop.permute.xlu0 %290
      %294 = vset.pattern.permute.xlu0 0
      %295 = vperm.xlu0 %294, %v261
      %v296 = vpop.permute.xlu0 %295
      %299 = vset.pattern.permute.xlu0 0
      %300 = vperm.xlu0 %299, %v262
      %v301 = vpop.permute.xlu0 %300
      %v319 = vunpack.c.l.b16 %v203
      %v320 = vunpack.c.h.b16 %v203
      %v321 = vunpack.c.l.b16 %v204
      %v322 = vunpack.c.l.b16 %v205
      %v323 = vunpack.c.h.b16 %v205
      %v324 = vunpack.c.l.b16 %v206
      %v325 = vunpack.c.l.b16 %v207
      %v326 = vunpack.c.h.b16 %v207
      %v327 = vunpack.c.l.b16 %v208
      %v328 = vunpack.c.l.b16 %v209
      %v329 = vunpack.c.h.b16 %v209
      %v330 = vunpack.c.l.b16 %v210
      %v331 = vunpack.c.l.b16 %v211
      %v332 = vunpack.c.h.b16 %v211
      %v333 = vunpack.c.l.b16 %v212
      %v334 = vunpack.c.l.b16 %v213
      %v335 = vunpack.c.h.b16 %v213
      %v336 = vunpack.c.l.b16 %v214
      %v337 = vunpack.c.l.b16 %v215
      %v338 = vunpack.c.h.b16 %v215
      %v339 = vunpack.c.l.b16 %v216
      %v340 = vunpack.c.l.b16 %v217
      %v341 = vunpack.c.h.b16 %v217
      %v342 = vunpack.c.l.b16 %v218
      %v343 = vpack.c.b16 %v322, %v319
      %v344 = vpack.c.b16 %v323, %v320
      %v345 = vpack.c.b16 %v324, %v321
      %v346 = vpack.c.b16 %v328, %v325
      %v347 = vpack.c.b16 %v329, %v326
      %v348 = vpack.c.b16 %v330, %v327
      %v349 = vpack.c.b16 %v334, %v331
      %v350 = vpack.c.b16 %v335, %v332
      %v351 = vpack.c.b16 %v336, %v333
      %v352 = vpack.c.b16 %v340, %v337
      %v353 = vpack.c.b16 %v341, %v338
      %v354 = vpack.c.b16 %v342, %v339
      %v399 = vunpack.c.l.b16 %v219
      %v400 = vunpack.c.l.b16 %v220
      %v401 = vunpack.c.l.b16 %v221
      %v402 = vunpack.c.l.b16 %v222
      %v403 = vunpack.c.l.b16 %v223
      %v404 = vunpack.c.l.b16 %v224
      %v405 = vunpack.c.l.b16 %v225
      %v406 = vunpack.c.l.b16 %v226
      %v407 = vunpack.c.l.b16 %v227
      %v408 = vunpack.c.l.b16 %v228
      %v409 = vunpack.c.l.b16 %v229
      %v410 = vunpack.c.l.b16 %v230
      %v411 = vunpack.c.l.b16 %v231
      %v412 = vunpack.c.l.b16 %v232
      %v413 = vunpack.c.l.b16 %v233
      %v414 = vunpack.c.l.b16 %v234
      %v415 = vunpack.c.l.b16 %v235
      %v416 = vunpack.c.l.b16 %v236
      %v417 = vunpack.c.l.b16 %v237
      %v418 = vunpack.c.l.b16 %v238
      %v419 = vunpack.c.l.b16 %v239
      %v420 = vunpack.c.l.b16 %v240
      %v421 = vunpack.c.l.b16 %v241
      %v422 = vunpack.c.l.b16 %v242
      %v423 = vunpack.c.l.b16 %v243
      %v424 = vunpack.c.l.b16 %v244
      %v425 = vunpack.c.l.b16 %v245
      %v426 = vunpack.c.l.b16 %v246
      %v427 = vunpack.c.l.b16 %v247
      %v428 = vunpack.c.l.b16 %v248
      %v429 = vunpack.c.l.b16 %v249
      %v430 = vunpack.c.l.b16 %v250
      %v431 = vunpack.c.l.b16 %v251
      %v432 = vunpack.c.l.b16 %v252
      %v433 = vunpack.c.l.b16 %v253
      %v434 = vunpack.c.l.b16 %v254
      %v435 = vpack.c.b16 %v400, %v399
      %v436 = vpack.c.b16 %v402, %v401
      %v437 = vpack.c.b16 %v404, %v403
      %v438 = vpack.c.b16 %v406, %v405
      %v439 = vpack.c.b16 %v408, %v407
      %v440 = vpack.c.b16 %v410, %v409
      %v441 = vpack.c.b16 %v412, %v411
      %v442 = vpack.c.b16 %v414, %v413
      %v443 = vpack.c.b16 %v416, %v415
      %v444 = vpack.c.b16 %v418, %v417
      %v445 = vpack.c.b16 %v420, %v419
      %v446 = vpack.c.b16 %v422, %v421
      %v447 = vpack.c.b16 %v424, %v423
      %v448 = vpack.c.b16 %v426, %v425
      %v449 = vpack.c.b16 %v428, %v427
      %v450 = vpack.c.b16 %v430, %v429
      %v451 = vpack.c.b16 %v432, %v431
      %v452 = vpack.c.b16 %v434, %v433
      %vm471 = vcmask 261120
      %v473 = vsel %vm471, %v345, 0
      %v476 = vsel %vm471, %v348, 0
      %v479 = vsel %vm471, %v351, 0
      %v482 = vsel %vm471, %v354, 0
      %484 = vmatprep.subr.bf16.mxu0 0
      %485 = vmatpush1.bf16.msra.mxu0 %v435
      %486 = vmatprep.subr.bf16.mxu0 0
      %487 = vmatpush1.bf16.msra.mxu0 %v436
      %488 = vmatprep.subr.bf16.mxu0 0
      %489 = vmatpush1.bf16.msra.mxu0 %v437
      %490 = vmatprep.subr.bf16.mxu0 0
      %491 = vmatpush1.bf16.msra.mxu0 %v438
      %492 = vmatprep.subr.bf16.mxu0 0
      %493 = vmatpush1.bf16.msra.mxu0 %v439
      %494 = vmatprep.subr.bf16.mxu0 0
      %495 = vmatpush1.bf16.msra.mxu0 %v440
      %496 = vmatprep.subr.bf16.mxu0 0
      %497 = vmatpush1.bf16.msra.mxu0 %v441
      %498 = vmatprep.subr.bf16.mxu0 0
      %499 = vmatpush1.bf16.msra.mxu0 %v442
      %500 = vmatprep.subr.bf16.mxu0 0
      %501 = vmatpush1.bf16.msra.mxu0 %v443
      %502 = vmatprep.subr.bf16.mxu0 0
      %503 = vmatpush1.bf16.msra.mxu0 %v444
      %504 = vmatprep.subr.bf16.mxu0 0
      %505 = vmatpush1.bf16.msra.mxu0 %v445
      %506 = vmatprep.subr.bf16.mxu0 0
      %507 = vmatpush1.bf16.msra.mxu0 %v446
      %508 = vmatprep.subr.bf16.mxu0 0
      %509 = vmatpush1.bf16.msra.mxu0 %v447
      %510 = vmatprep.subr.bf16.mxu0 0
      %511 = vmatpush1.bf16.msra.mxu0 %v448
      %512 = vmatprep.subr.bf16.mxu0 0
      %513 = vmatpush1.bf16.msra.mxu0 %v449
      %514 = vmatprep.subr.bf16.mxu0 0
      %515 = vmatpush1.bf16.msra.mxu0 %v450
      %516 = vmatprep.mubr.bf16.mxu0 %v344
      %517 = vmatmul.mubr.bf16.gmra.mrb[0].mxu0 %v343
      %v518 = vpop.f32.mrb[0].mxu0
      %v519 = vadd.f32 %v266, %v518
      %v520 = vpop.f32.mrb[0].mxu0
      %v521 = vpop.f32.mrb[0].mxu0
      %v522 = vadd.f32 %v271, %v521
      %v523 = vpop.f32.mrb[0].mxu0
      %524 = vmatprep.mubr.bf16.mxu0 %v347
      %525 = vmatmul.mubr.bf16.gmra.mrb[0].mxu0 %v346
      %v526 = vpop.f32.mrb[0].mxu0
      %v527 = vadd.f32 %v276, %v526
      %v528 = vpop.f32.mrb[0].mxu0
      %v529 = vpop.f32.mrb[0].mxu0
      %v530 = vadd.f32 %v281, %v529
      %v531 = vpop.f32.mrb[0].mxu0
      %532 = vmatprep.mubr.bf16.mxu0 %v350
      %533 = vmatmul.mubr.bf16.gmra.mrb[0].mxu0 %v349
      %v534 = vpop.f32.mrb[0].mxu0
      %v535 = vadd.f32 %v286, %v534
      %v536 = vpop.f32.mrb[0].mxu0
      %v537 = vpop.f32.mrb[0].mxu0
      %v538 = vadd.f32 %v291, %v537
      %v539 = vpop.f32.mrb[0].mxu0
      %540 = vmatprep.mubr.bf16.mxu0 %v353
      %541 = vmatmul.mubr.bf16.gmra.mrb[0].mxu0 %v352
      %v542 = vpop.f32.mrb[0].mxu0
      %v543 = vadd.f32 %v296, %v542
      %v544 = vpop.f32.mrb[0].mxu0
      %v545 = vpop.f32.mrb[0].mxu0
      %v546 = vadd.f32 %v301, %v545
      %v547 = vpop.f32.mrb[0].mxu0
      %548 = vdwg.mxu0
      %549 = vmatprep.subr.bf16.mxu0 0
      %550 = vmatpush1.bf16.msra.mxu0 %v451
      %551 = vmatprep.subr.bf16.mxu0 0
      %552 = vmatpush1.bf16.msra.mxu0 %v452
      %553 = vmatprep.subr.bf16.mxu0 0
      %554 = vmatpush1.bf16.msra.mxu0 0
      %555 = vmatprep.subr.bf16.mxu0 0
      %556 = vmatpush1.bf16.msra.mxu0 0
      %557 = vmatprep.subr.bf16.mxu0 0
      %558 = vmatpush1.bf16.msra.mxu0 0
      %559 = vmatprep.subr.bf16.mxu0 0
      %560 = vmatpush1.bf16.msra.mxu0 0
      %561 = vmatprep.subr.bf16.mxu0 0
      %562 = vmatpush1.bf16.msra.mxu0 0
      %563 = vmatprep.subr.bf16.mxu0 0
      %564 = vmatpush1.bf16.msra.mxu0 0
      %565 = vmatprep.subr.bf16.mxu0 0
      %566 = vmatpush1.bf16.msra.mxu0 0
      %567 = vmatprep.subr.bf16.mxu0 0
      %568 = vmatpush1.bf16.msra.mxu0 0
      %569 = vmatprep.subr.bf16.mxu0 0
      %570 = vmatpush1.bf16.msra.mxu0 0
      %571 = vmatprep.subr.bf16.mxu0 0
      %572 = vmatpush1.bf16.msra.mxu0 0
      %573 = vmatprep.subr.bf16.mxu0 0
      %574 = vmatpush1.bf16.msra.mxu0 0
      %575 = vmatprep.subr.bf16.mxu0 0
      %576 = vmatpush1.bf16.msra.mxu0 0
      %577 = vmatprep.subr.bf16.mxu0 0
      %578 = vmatpush1.bf16.msra.mxu0 0
      %579 = vmatprep.subr.bf16.mxu0 0
      %580 = vmatpush1.bf16.msra.mxu0 0
      %581 = vmatprep.mubr.bf16.mxu0 0
      %582 = vmatmul.mubr.bf16.gmra.mrb[0].mxu0 %v473
      %v583 = vpop.f32.mrb[0].mxu0
      %v584 = vadd.f32 %v519, %v583
      %v585 = vpop.f32.mrb[0].mxu0
      %v586 = vpop.f32.mrb[0].mxu0
      %v587 = vadd.f32 %v522, %v586
      %v588 = vpop.f32.mrb[0].mxu0
      %589 = vmatprep.mubr.bf16.mxu0 0
      %590 = vmatmul.mubr.bf16.gmra.mrb[0].mxu0 %v476
      %v591 = vpop.f32.mrb[0].mxu0
      %v592 = vadd.f32 %v527, %v591
      %v593 = vpop.f32.mrb[0].mxu0
      %v594 = vpop.f32.mrb[0].mxu0
      %v595 = vadd.f32 %v530, %v594
      %v596 = vpop.f32.mrb[0].mxu0
      %597 = vmatprep.mubr.bf16.mxu0 0
      %598 = vmatmul.mubr.bf16.gmra.mrb[0].mxu0 %v479
      %v599 = vpop.f32.mrb[0].mxu0
      %v600 = vadd.f32 %v535, %v599
      %v601 = vpop.f32.mrb[0].mxu0
      %v602 = vpop.f32.mrb[0].mxu0
      %v603 = vadd.f32 %v538, %v602
      %v604 = vpop.f32.mrb[0].mxu0
      %605 = vmatprep.mubr.bf16.mxu0 0
      %606 = vmatmul.mubr.bf16.gmra.mrb[0].mxu0 %v482
      %v607 = vpop.f32.mrb[0].mxu0
      %v608 = vadd.f32 %v543, %v607
      %v609 = vpop.f32.mrb[0].mxu0
      %v610 = vpop.f32.mrb[0].mxu0
      %v611 = vadd.f32 %v546, %v610
      %v612 = vpop.f32.mrb[0].mxu0
      %613 = vdwg.mxu0
      %v614 = vmax.f32 %v584, 0.0
      %v615 = vmax.f32 %v587, 0.0
      %v616 = vmax.f32 %v592, 0.0
      %v617 = vmax.f32 %v595, 0.0
      %v618 = vmax.f32 %v600, 0.0
      %v619 = vmax.f32 %v603, 0.0
      %v620 = vmax.f32 %v608, 0.0
      %v621 = vmax.f32 %v611, 0.0
      %v622 = vpack.c.bf16 %v615, %v614
      %v623 = vpack.c.bf16 %v617, %v616
      %v624 = vpack.c.bf16 %v619, %v618
      %v625 = vpack.c.bf16 %v621, %v620
      %v630 = vunpack.c.l.b16 %v622
      %v631 = vunpack.c.h.b16 %v622
      %v632 = vunpack.c.l.b16 %v623
      %v633 = vunpack.c.h.b16 %v623
      %v634 = vunpack.c.l.b16 %v624
      %v635 = vunpack.c.h.b16 %v624
      %v636 = vunpack.c.l.b16 %v625
      %v637 = vunpack.c.h.b16 %v625
      %v638 = vpack.c.b16 %v630, %v630
      %v639 = vpack.c.b16 %v631, %v631
      %v640 = vpack.c.b16 %v632, %v632
      %v641 = vpack.c.b16 %v633, %v633
      %v642 = vpack.c.b16 %v634, %v634
      %v643 = vpack.c.b16 %v635, %v635
      %v644 = vpack.c.b16 %v636, %v636
      %v645 = vpack.c.b16 %v637, %v637
      %654 = vst [vmem:[%s201] sm:$0xf] %v638
      %655 = vst [vmem:[%s201 + $0x4] sm:$0xf] %v639
      %656 = vst [vmem:[%s201 + $0x8] sm:$0xf] %v640
      %657 = vst [vmem:[%s201 + $0xc] sm:$0xf] %v641
      %658 = vst [vmem:[%s201 + $0x10] sm:$0xf] %v642
      %659 = vst [vmem:[%s201 + $0x14] sm:$0xf] %v643
      %660 = vst [vmem:[%s201 + $0x18] sm:$0xf] %v644
      %661 = vst [vmem:[%s201 + $0x1c] sm:$0xf] %v645
      %p662 = scmp.lt.s32.totalorder %s18, 1
      %s663 = scalar_select %p662, %s18, 1
      %p664 = scmp.lt.s32.totalorder %s19, 0
      %s665 = scalar_select %p664, %s19, 0
      %s666 = smul.addr %s663, 8
      %s667 = sadd.s32 %s665, %s666
      %s668 = smul.addr %s667, 4
      %s669 = scalar_lea.vmem %s3, %s668
      // Predicated region
      $region33: #{_lambda_.33} parent=31 // pred_check
        %p670 = pneg %p116
      $region34: #{_lambda_.33} parent=31 // pred_check_branch
        %672 = sbr.rel (%p670) target = $region36
      $region35: #{_lambda_.33} parent=31 // pred_region
        _
      $region36: #{_lambda_.33} parent=31 // pred_fallthru
        _
    $region32: #{_lambda_.33} parent=5 // pred_fallthru
      _
    %p673 = scmp.le.s32.totalorder 2, %s9
    // Predicated region
    $region37: #{_lambda_.33} parent=5 // pred_check
      %p674 = pneg %p673
    $region38: #{_lambda_.33} parent=5 // pred_check_branch
      %676 = sbr.rel (%p674) target = $region40
    $region39: #{_lambda_.33} parent=5 // pred_region
      %s677 = ssub.s32 %s9, 2
      // Predicated region
      $region41: #{_lambda_.33} parent=39 // pred_check
        %p678 = pneg %p122
      $region42: #{_lambda_.33} parent=39 // pred_check_branch
        %680 = sbr.rel (%p678) target = $region44
      $region43: #{_lambda_.33} parent=39 // pred_region
        %p681 = scmp.lt.s32.totalorder %s20, 1
        %s682 = scalar_select %p681, %s20, 1
        %p683 = scmp.lt.s32.totalorder %s21, 0
        %s684 = scalar_select %p683, %s21, 0
        %s685 = smul.addr %s682, 8
        %s686 = sadd.s32 %s684, %s685
        %s687 = smul.addr %s686, 4
        %s688 = scalar_lea.vmem %s3, %s687
      $region44: #{_lambda_.33} parent=39 // pred_fallthru
        _
    $region40: #{_lambda_.33} parent=5 // pred_fallthru
      _
  $region6: #{_lambda_.33} parent=0 // loop_footer
    %s13 = sadd.s32 1, %s9
  $region7: #{_lambda_.33} parent=0 // loop_footer_branch
    %8 = sbr.rel target = $region3
  $region8: #{_lambda_.33} parent=0 // loop_exit
    _

// kernel: _lambda_.34
$region0: #{_lambda_.34}
  #allocation0 [shape = 'u32[]', space=smem, size = 0x4, offset = 0x4, fixed_abs, tag = 'smem constant byte address 0x4 - core index']
  #allocation1 [shape = 'u32[144,128]{1,0:T(1,128)}', space=vmem, size = 0x12000, scoped, tag = 'internal scratch']
  %s0 = inlined_call_operand.vmem [shape: bf16[2,144,256], index: 0, kind: input, shape index: {}]
  %s1 = inlined_call_operand.vmem [shape: bf16[32,144], index: 1, kind: input, shape index: {}]
  %s2 = inlined_call_operand.vmem [shape: f32[32,1], index: 2, kind: input, shape index: {}]
  %s3 = inlined_call_operand.vmem [shape: bf16[2,32,256], index: 3, kind: output, shape index: {}]
  %s4 = sld [smem:[#allocation0]]
  $region45: #{_lambda_.34} parent=0
    _
  %s6 = ssub.s32 1, %s4
  %s7 = scalar_select 0, %s6, %s4
  loop: start=0, step=1, limit=4
  $region2: #{_lambda_.34} parent=0 // loop_pre_header
    _
  $region3: #{_lambda_.34} parent=0 // loop_header
    %s9 = sphi 0, %s13
    %p10 = scmp.ge.s32.totalorder %s9, 4
    %s16 = sphi 0, %s28
    %s17 = sphi 0, %s24
    %s18 = sphi 0, %s16
    %s19 = sphi 0, %s17
    %s20 = sphi 0, %s18
    %s21 = sphi 0, %s19
    %s33 = sphi 0, %s35
    %s36 = sphi 0, %s33
    %s37 = sphi 0, %s36
    %s53 = sphi 0, %s37
    %s57 = sphi 0, %s57
    %s59 = sphi 0, %s57
    %s60 = sphi 0, %s59
    %s74 = sphi 0, %s60
    %s78 = sphi 0, %s78
    %s80 = sphi 0, %s78
    %s81 = sphi 0, %s80
    %s95 = sphi 0, %s81
    %s103 = sphi 0, %s105
    %s106 = sphi 0, %s103
    %s107 = sphi 0, %s106
    %s123 = sphi 0, %s107
  $region4: #{_lambda_.34} parent=0 // loop_header_branch
    %12 = sbr.rel (%p10) target = $region8
  $region5: #{_lambda_.34} parent=0 // loop_body
    %s14 = ssub.s32 %s9, 1
    %s15 = ssub.s32 %s9, 2
    %s22 = sadd.s32 1, %s17
    %p23 = scmp.ge.s32.totalorder %s22, 1
    %s24 = scalar_select %p23, 0, %s22
    %s25 = sadd.s32 1, %s16
    %s26 = scalar_select %p23, %s25, %s16
    %p27 = scmp.ge.s32.totalorder %s26, 2
    %s28 = scalar_select %p27, 0, %s26
    %s29 = ssub.s32 %s16, %s28
    %s30 = ssub.s32 %s17, %s24
    %s31 = sor.u32 %s29, %s30
    %p32 = scmp.eq.s32.totalorder %s31, 0
    %s34 = sadd.s32 %s33, 1
    %s35 = scalar_select %p32, %s33, %s34
    %p38 = pneg %p32
    %p39 = scmp.eq.s32.totalorder %s9, 1
    %p40 = por %p38, %p39
    %p41 = scmp.ne.s32.totalorder %s33, %s36
    %p42 = scmp.eq.s32.totalorder %s9, 0
    %p43 = por %p41, %p42
    %p44 = scmp.ne.s32.totalorder %s33, %s36
    %p45 = scmp.eq.s32.totalorder %s14, 1
    %p46 = por %p44, %p45
    %p47 = scmp.ne.s32.totalorder %s36, %s37
    %p48 = scmp.eq.s32.totalorder %s14, 0
    %p49 = por %p47, %p48
    %p50 = scmp.ne.s32.totalorder %s36, %s37
    %p51 = scmp.eq.s32.totalorder %s15, 1
    %p52 = por %p50, %p51
    %p54 = scmp.ne.s32.totalorder %s37, %s53
    %p55 = scmp.eq.s32.totalorder %s15, 0
    %p56 = por %p54, %p55
    %s58 = sadd.s32 %s57, 1
    %p61 = scmp.eq.s32.totalorder %s9, 1
    %p62 = scmp.ne.s32.totalorder %s57, %s59
    %p63 = scmp.eq.s32.totalorder %s9, 0
    %p64 = por %p62, %p63
    %p65 = scmp.ne.s32.totalorder %s57, %s59
    %p66 = scmp.eq.s32.totalorder %s14, 1
    %p67 = por %p65, %p66
    %p68 = scmp.ne.s32.totalorder %s59, %s60
    %p69 = scmp.eq.s32.totalorder %s14, 0
    %p70 = por %p68, %p69
    %p71 = scmp.ne.s32.totalorder %s59, %s60
    %p72 = scmp.eq.s32.totalorder %s15, 1
    %p73 = por %p71, %p72
    %p75 = scmp.ne.s32.totalorder %s60, %s74
    %p76 = scmp.eq.s32.totalorder %s15, 0
    %p77 = por %p75, %p76
    %s79 = sadd.s32 %s78, 1
    %p82 = scmp.eq.s32.totalorder %s9, 1
    %p83 = scmp.ne.s32.totalorder %s78, %s80
    %p84 = scmp.eq.s32.totalorder %s9, 0
    %p85 = por %p83, %p84
    %p86 = scmp.ne.s32.totalorder %s78, %s80
    %p87 = scmp.eq.s32.totalorder %s14, 1
    %p88 = por %p86, %p87
    %p89 = scmp.ne.s32.totalorder %s80, %s81
    %p90 = scmp.eq.s32.totalorder %s14, 0
    %p91 = por %p89, %p90
    %p92 = scmp.ne.s32.totalorder %s80, %s81
    %p93 = scmp.eq.s32.totalorder %s15, 1
    %p94 = por %p92, %p93
    %p96 = scmp.ne.s32.totalorder %s81, %s95
    %p97 = scmp.eq.s32.totalorder %s15, 0
    %p98 = por %p96, %p97
    %s99 = ssub.s32 %s16, %s28
    %s100 = ssub.s32 %s17, %s24
    %s101 = sor.u32 %s99, %s100
    %p102 = scmp.eq.s32.totalorder %s101, 0
    %s104 = sadd.s32 %s103, 1
    %s105 = scalar_select %p102, %s103, %s104
    %p108 = pneg %p102
    %p109 = scmp.eq.s32.totalorder %s9, 1
    %p110 = por %p108, %p109
    %p111 = scmp.ne.s32.totalorder %s103, %s106
    %p112 = scmp.eq.s32.totalorder %s9, 0
    %p113 = por %p111, %p112
    %p114 = scmp.ne.s32.totalorder %s103, %s106
    %p115 = scmp.eq.s32.totalorder %s14, 1
    %p116 = por %p114, %p115
    %p117 = scmp.ne.s32.totalorder %s106, %s107
    %p118 = scmp.eq.s32.totalorder %s14, 0
    %p119 = por %p117, %p118
    %p120 = scmp.ne.s32.totalorder %s106, %s107
    %p121 = scmp.eq.s32.totalorder %s15, 1
    %p122 = por %p120, %p121
    %p124 = scmp.ne.s32.totalorder %s107, %s123
    %p125 = scmp.eq.s32.totalorder %s15, 0
    %p126 = por %p124, %p125
    %p127 = scmp.le.s32.totalorder 1, %s9
    %p128 = scmp.lt.s32.totalorder %s9, 3
    %p129 = pnand %p127, %p128
    %p130 = pneg %p129
    // Predicated region
    $region9: #{_lambda_.34} parent=5 // pred_check
      _
    $region10: #{_lambda_.34} parent=5 // pred_check_branch
      %132 = sbr.rel (%p129) target = $region12
    $region11: #{_lambda_.34} parent=5 // pred_region
      %s133 = ssub.s32 %s9, 1
      // Predicated region
      $region13: #{_lambda_.34} parent=11 // pred_check
        %p134 = pneg %p70
      $region14: #{_lambda_.34} parent=11 // pred_check_branch
        %136 = sbr.rel (%p134) target = $region16
      $region15: #{_lambda_.34} parent=11 // pred_region
        _
      $region16: #{_lambda_.34} parent=11 // pred_fallthru
        _
      // Predicated region
      $region17: #{_lambda_.34} parent=11 // pred_check
        %p137 = pneg %p91
      $region18: #{_lambda_.34} parent=11 // pred_check_branch
        %139 = sbr.rel (%p137) target = $region20
      $region19: #{_lambda_.34} parent=11 // pred_region
        _
      $region20: #{_lambda_.34} parent=11 // pred_fallthru
        _
    $region12: #{_lambda_.34} parent=5 // pred_fallthru
      _
    %p140 = scmp.lt.s32.totalorder %s9, 2
    // Predicated region
    $region21: #{_lambda_.34} parent=5 // pred_check
      %p141 = pneg %p140
    $region22: #{_lambda_.34} parent=5 // pred_check_branch
      %143 = sbr.rel (%p141) target = $region24
    $region23: #{_lambda_.34} parent=5 // pred_region
      // Predicated region
      $region25: #{_lambda_.34} parent=23 // pred_check
        %p144 = pneg %p43
      $region26: #{_lambda_.34} parent=23 // pred_check_branch
        %146 = sbr.rel (%p144) target = $region28
      $region27: #{_lambda_.34} parent=23 // pred_region
        %s147 = smul.u32 2, %s17
        %p148 = scmp.lt.s32.totalorder %s16, 1
        %s149 = scalar_select %p148, %s16, 1
        %p150 = scmp.lt.s32.totalorder %s147, 1
        %s151 = scalar_select %p150, %s147, 1
        %s152 = smul.addr %s149, 36
        %s153 = sadd.s32 %s151, %s152
        %s154 = smul.addr %s153, 4
        %s155 = scalar_lea.vmem %s0, %s154
        %s156 = smul.u32 2, %s17
      $region28: #{_lambda_.34} parent=23 // pred_fallthru
        _
    $region24: #{_lambda_.34} parent=5 // pred_fallthru
      _
    %p157 = scmp.le.s32.totalorder 1, %s9
    %p158 = scmp.lt.s32.totalorder %s9, 3
    %p159 = pnand %p157, %p158
    %p160 = pneg %p159
    // Predicated region
    $region29: #{_lambda_.34} parent=5 // pred_check
      _
    $region30: #{_lambda_.34} parent=5 // pred_check_branch
      %162 = sbr.rel (%p159) target = $region32
    $region31: #{_lambda_.34} parent=5 // pred_region
      %s163 = ssub.s32 %s9, 1
      %s164 = smul.u32 2, %s19
      %p165 = scmp.lt.s32.totalorder %s18, 1
      %s166 = scalar_select %p165, %s18, 1
      %p167 = scmp.lt.s32.totalorder %s164, 1
      %s168 = scalar_select %p167, %s164, 1
      %s169 = smul.addr %s166, 36
      %s170 = sadd.s32 %s168, %s169
      %s171 = smul.addr %s170, 4
      %s172 = scalar_lea.vmem %s0, %s171
      %p173 = pneg %p49
      %p174 = pneg %p46
      %p175 = pneg %p70
      %p176 = pneg %p67
      %p177 = pneg %p91
      %p178 = pneg %p88
      %p179 = pneg %p119
      %p180 = pneg %p116
      %s181 = smul.u32 2, %s19
      %p182 = scmp.lt.s32.totalorder %s18, 1
      %s183 = scalar_select %p182, %s18, 1
      %p184 = scmp.lt.s32.totalorder %s181, 1
      %s185 = scalar_select %p184, %s181, 1
      %s186 = smul.addr %s183, 8
      %s187 = sadd.s32 %s185, %s186
      %s188 = smul.addr %s187, 4
      %s189 = scalar_lea.vmem %s3, %s188
      %s190 = smul.u32 2, %s19
      %p191 = scmp.lt.s32.totalorder %s18, 1
      %s192 = scalar_select %p191, %s18, 1
      %p193 = scmp.lt.s32.totalorder %s190, 1
      %s194 = scalar_select %p193, %s190, 1
      %s195 = smul.addr %s192, 36
      %s196 = sadd.s32 %s194, %s195
      %s197 = smul.addr %s196, 4
      %s198 = scalar_lea.vmem %s0, %s197
      %s199 = smul.u32 2, %s19
      %s200 = smul.u32 2, %s19
      %p201 = scmp.lt.s32.totalorder %s18, 1
      %s202 = scalar_select %p201, %s18, 1
      %p203 = scmp.lt.s32.totalorder %s200, 1
      %s204 = scalar_select %p203, %s200, 1
      %s205 = smul.addr %s202, 8
      %s206 = sadd.s32 %s204, %s205
      %s207 = smul.addr %s206, 4
      %s208 = scalar_lea.vmem %s3, %s207
      %s209 = smul.u32 2, %s19
      %v211 = vld [vmem:[%s1] sm:$0xff]
      %v212 = vld [vmem:[%s1 + $0x8] sm:$0xff]
      %v213 = vld [vmem:[%s1 + $0x10] sm:$0xff]
      %v214 = vld [vmem:[%s1 + $0x18] sm:$0xff]
      %v215 = vld [vmem:[%s198] sm:$0xff]
      %v216 = vld [vmem:[%s198 + $0x8] sm:$0xff]
      %v217 = vld [vmem:[%s198 + $0x10] sm:$0xff]
      %v218 = vld [vmem:[%s198 + $0x18] sm:$0xff]
      %v219 = vld [vmem:[%s198 + $0x20] sm:$0xff]
      %v220 = vld [vmem:[%s198 + $0x28] sm:$0xff]
      %v221 = vld [vmem:[%s198 + $0x30] sm:$0xff]
      %v222 = vld [vmem:[%s198 + $0x38] sm:$0xff]
      %v223 = vld [vmem:[%s198 + $0x40] sm:$0xff]
      %v224 = vld [vmem:[%s198 + $0x48] sm:$0xff]
      %v225 = vld [vmem:[%s198 + $0x50] sm:$0xff]
      %v226 = vld [vmem:[%s198 + $0x58] sm:$0xff]
      %v227 = vld [vmem:[%s198 + $0x60] sm:$0xff]
      %v228 = vld [vmem:[%s198 + $0x68] sm:$0xff]
      %v229 = vld [vmem:[%s198 + $0x70] sm:$0xff]
      %v230 = vld [vmem:[%s198 + $0x78] sm:$0xff]
      %v231 = vld [vmem:[%s198 + $0x80] sm:$0xff]
      %v232 = vld [vmem:[%s198 + $0x88] sm:$0xff]
      %v233 = vld [vmem:[%s2] sm:$0xff]
      %v234 = vld [vmem:[%s2 + $0x8] sm:$0xff]
      %v235 = vld [vmem:[%s2 + $0x10] sm:$0xff]
      %v236 = vld [vmem:[%s2 + $0x18] sm:$0xff]
      %238 = vset.pattern.permute.xlu0 0
      %239 = vperm.xlu0 %238, %v233
      %v240 = vpop.permute.xlu0 %239
      %243 = vset.pattern.permute.xlu0 0
      %244 = vperm.xlu0 %243, %v234
      %v245 = vpop.permute.xlu0 %244
      %248 = vset.pattern.permute.xlu0 0
      %249 = vperm.xlu0 %248, %v235
      %v250 = vpop.permute.xlu0 %249
      %253 = vset.pattern.permute.xlu0 0
      %254 = vperm.xlu0 %253, %v236
      %v255 = vpop.permute.xlu0 %254
      %v261 = vunpack.c.l.b16 %v211
      %v262 = vunpack.c.h.b16 %v211
      %v263 = vunpack.c.l.b16 %v212
      %v264 = vunpack.c.h.b16 %v212
      %v265 = vunpack.c.l.b16 %v213
      %v266 = vunpack.c.h.b16 %v213
      %v267 = vunpack.c.l.b16 %v214
      %v268 = vunpack.c.h.b16 %v214
      %v269 = vpack.c.b16 %v263, %v261
      %v270 = vpack.c.b16 %v264, %v262
      %v271 = vpack.c.b16 %v267, %v265
      %v272 = vpack.c.b16 %v268, %v266
      %v293 = vunpack.c.l.b16 %v215
      %v294 = vunpack.c.h.b16 %v215
      %v295 = vunpack.c.l.b16 %v216
      %v296 = vunpack.c.h.b16 %v216
      %v297 = vunpack.c.l.b16 %v217
      %v298 = vunpack.c.h.b16 %v217
      %v299 = vunpack.c.l.b16 %v218
      %v300 = vunpack.c.h.b16 %v218
      %v301 = vunpack.c.l.b16 %v219
      %v302 = vunpack.c.h.b16 %v219
      %v303 = vunpack.c.l.b16 %v220
      %v304 = vunpack.c.h.b16 %v220
      %v305 = vunpack.c.l.b16 %v221
      %v306 = vunpack.c.h.b16 %v221
      %v307 = vunpack.c.l.b16 %v222
      %v308 = vunpack.c.h.b16 %v222
      %v309 = vunpack.c.l.b16 %v223
      %v310 = vunpack.c.h.b16 %v223
      %v311 = vunpack.c.l.b16 %v224
      %v312 = vunpack.c.h.b16 %v224
      %v313 = vunpack.c.l.b16 %v225
      %v314 = vunpack.c.h.b16 %v225
      %v315 = vunpack.c.l.b16 %v226
      %v316 = vunpack.c.h.b16 %v226
      %v317 = vunpack.c.l.b16 %v227
      %v318 = vunpack.c.h.b16 %v227
      %v319 = vunpack.c.l.b16 %v228
      %v320 = vunpack.c.h.b16 %v228
      %v321 = vunpack.c.l.b16 %v229
      %v322 = vunpack.c.h.b16 %v229
      %v323 = vunpack.c.l.b16 %v230
      %v324 = vunpack.c.h.b16 %v230
      %v325 = vunpack.c.l.b16 %v231
      %v326 = vunpack.c.h.b16 %v231
      %v327 = vunpack.c.l.b16 %v232
      %v328 = vunpack.c.h.b16 %v232
      %v329 = vpack.c.b16 %v295, %v293
      %v330 = vpack.c.b16 %v296, %v294
      %v331 = vpack.c.b16 %v299, %v297
      %v332 = vpack.c.b16 %v300, %v298
      %v333 = vpack.c.b16 %v303, %v301
      %v334 = vpack.c.b16 %v304, %v302
      %v335 = vpack.c.b16 %v307, %v305
      %v336 = vpack.c.b16 %v308, %v306
      %v337 = vpack.c.b16 %v311, %v309
      %v338 = vpack.c.b16 %v312, %v310
      %v339 = vpack.c.b16 %v315, %v313
      %v340 = vpack.c.b16 %v316, %v314
      %v341 = vpack.c.b16 %v319, %v317
      %v342 = vpack.c.b16 %v320, %v318
      %v343 = vpack.c.b16 %v323, %v321
      %v344 = vpack.c.b16 %v324, %v322
      %v345 = vpack.c.b16 %v327, %v325
      %v346 = vpack.c.b16 %v328, %v326
      %vm365 = vcmask 130048
      %v367 = vsel %vm365, %v270, 0
      %v370 = vsel %vm365, %v272, 0
      %372 = vmatprep.subr.bf16.mxu0 %v330
      %373 = vmatpush1.bf16.msra.mxu0 %v329
      %374 = vmatprep.subr.bf16.mxu0 %v332
      %375 = vmatpush1.bf16.msra.mxu0 %v331
      %376 = vmatprep.subr.bf16.mxu0 %v334
      %377 = vmatpush1.bf16.msra.mxu0 %v333
      %378 = vmatprep.subr.bf16.mxu0 %v336
      %379 = vmatpush1.bf16.msra.mxu0 %v335
      %380 = vmatprep.subr.bf16.mxu0 %v338
      %381 = vmatpush1.bf16.msra.mxu0 %v337
      %382 = vmatprep.subr.bf16.mxu0 %v340
      %383 = vmatpush1.bf16.msra.mxu0 %v339
      %384 = vmatprep.subr.bf16.mxu0 %v342
      %385 = vmatpush1.bf16.msra.mxu0 %v341
      %386 = vmatprep.subr.bf16.mxu0 %v344
      %387 = vmatpush1.bf16.msra.mxu0 %v343
      %388 = vmatprep.subr.bf16.mxu0 %v346
      %389 = vmatpush1.bf16.msra.mxu0 %v345
      %390 = vmatprep.subr.bf16.mxu0 0
      %391 = vmatpush1.bf16.msra.mxu0 0
      %392 = vmatprep.subr.bf16.mxu0 0
      %393 = vmatpush1.bf16.msra.mxu0 0
      %394 = vmatprep.subr.bf16.mxu0 0
      %395 = vmatpush1.bf16.msra.mxu0 0
      %396 = vmatprep.subr.bf16.mxu0 0
      %397 = vmatpush1.bf16.msra.mxu0 0
      %398 = vmatprep.subr.bf16.mxu0 0
      %399 = vmatpush1.bf16.msra.mxu0 0
      %400 = vmatprep.subr.bf16.mxu0 0
      %401 = vmatpush1.bf16.msra.mxu0 0
      %402 = vmatprep.subr.bf16.mxu0 0
      %403 = vmatpush1.bf16.msra.mxu0 0
      %404 = vmatprep.mubr.bf16.mxu0 %v367
      %405 = vmatmul.mubr.bf16.gmra.mrb[0].mxu0 %v269
      %v406 = vpop.f32.mrb[0].mxu0
      %v407 = vadd.f32 %v240, %v406
      %v408 = vpop.f32.mrb[0].mxu0
      %v409 = vadd.f32 %v240, %v408
      %v410 = vpop.f32.mrb[0].mxu0
      %v411 = vadd.f32 %v245, %v410
      %v412 = vpop.f32.mrb[0].mxu0
      %v413 = vadd.f32 %v245, %v412
      %414 = vmatprep.mubr.bf16.mxu0 %v370
      %415 = vmatmul.mubr.bf16.gmra.mrb[0].mxu0 %v271
      %v416 = vpop.f32.mrb[0].mxu0
      %v417 = vadd.f32 %v250, %v416
      %v418 = vpop.f32.mrb[0].mxu0
      %v419 = vadd.f32 %v250, %v418
      %v420 = vpop.f32.mrb[0].mxu0
      %v421 = vadd.f32 %v255, %v420
      %v422 = vpop.f32.mrb[0].mxu0
      %v423 = vadd.f32 %v255, %v422
      %424 = vdwg.mxu0
      %v425 = vmax.f32 %v407, 0.0
      %v426 = vmax.f32 %v409, 0.0
      %v427 = vmax.f32 %v411, 0.0
      %v428 = vmax.f32 %v413, 0.0
      %v429 = vmax.f32 %v417, 0.0
      %v430 = vmax.f32 %v419, 0.0
      %v431 = vmax.f32 %v421, 0.0
      %v432 = vmax.f32 %v423, 0.0
      %v433 = vpack.c.bf16 %v427, %v425
      %v434 = vpack.c.bf16 %v428, %v426
      %v435 = vpack.c.bf16 %v431, %v429
      %v436 = vpack.c.bf16 %v432, %v430
      %v441 = vunpack.c.l.b16 %v433
      %v442 = vunpack.c.l.b16 %v434
      %v443 = vunpack.c.h.b16 %v433
      %v444 = vunpack.c.h.b16 %v434
      %v445 = vunpack.c.l.b16 %v435
      %v446 = vunpack.c.l.b16 %v436
      %v447 = vunpack.c.h.b16 %v435
      %v448 = vunpack.c.h.b16 %v436
      %v449 = vpack.c.b16 %v442, %v441
      %v450 = vpack.c.b16 %v444, %v443
      %v451 = vpack.c.b16 %v446, %v445
      %v452 = vpack.c.b16 %v448, %v447
      %457 = vst [vmem:[%s208] sm:$0xff] %v449
      %458 = vst [vmem:[%s208 + $0x8] sm:$0xff] %v450
      %459 = vst [vmem:[%s208 + $0x10] sm:$0xff] %v451
      %460 = vst [vmem:[%s208 + $0x18] sm:$0xff] %v452
      %s461 = smul.u32 2, %s19
      %p462 = scmp.lt.s32.totalorder %s18, 1
      %s463 = scalar_select %p462, %s18, 1
      %p464 = scmp.lt.s32.totalorder %s461, 1
      %s465 = scalar_select %p464, %s461, 1
      %s466 = smul.addr %s463, 8
      %s467 = sadd.s32 %s465, %s466
      %s468 = smul.addr %s467, 4
      %s469 = scalar_lea.vmem %s3, %s468
      // Predicated region
      $region33: #{_lambda_.34} parent=31 // pred_check
        %p470 = pneg %p116
      $region34: #{_lambda_.34} parent=31 // pred_check_branch
        %472 = sbr.rel (%p470) target = $region36
      $region35: #{_lambda_.34} parent=31 // pred_region
        %s473 = smul.u32 2, %s19
      $region36: #{_lambda_.34} parent=31 // pred_fallthru
        _
    $region32: #{_lambda_.34} parent=5 // pred_fallthru
      _
    %p474 = scmp.le.s32.totalorder 2, %s9
    // Predicated region
    $region37: #{_lambda_.34} parent=5 // pred_check
      %p475 = pneg %p474
    $region38: #{_lambda_.34} parent=5 // pred_check_branch
      %477 = sbr.rel (%p475) target = $region40
    $region39: #{_lambda_.34} parent=5 // pred_region
      %s478 = ssub.s32 %s9, 2
      // Predicated region
      $region41: #{_lambda_.34} parent=39 // pred_check
        %p479 = pneg %p122
      $region42: #{_lambda_.34} parent=39 // pred_check_branch
        %481 = sbr.rel (%p479) target = $region44
      $region43: #{_lambda_.34} parent=39 // pred_region
        %s482 = smul.u32 2, %s21
        %p483 = scmp.lt.s32.totalorder %s20, 1
        %s484 = scalar_select %p483, %s20, 1
        %p485 = scmp.lt.s32.totalorder %s482, 1
        %s486 = scalar_select %p485, %s482, 1
        %s487 = smul.addr %s484, 8
        %s488 = sadd.s32 %s486, %s487
        %s489 = smul.addr %s488, 4
        %s490 = scalar_lea.vmem %s3, %s489
      $region44: #{_lambda_.34} parent=39 // pred_fallthru
        _
    $region40: #{_lambda_.34} parent=5 // pred_fallthru
      _
  $region6: #{_lambda_.34} parent=0 // loop_footer
    %s13 = sadd.s32 1, %s9
  $region7: #{_lambda_.34} parent=0 // loop_footer_branch
    %8 = sbr.rel target = $region3
  $region8: #{_lambda_.34} parent=0 // loop_exit
    _

// kernel: _lambda_.35
$region0: #{_lambda_.35}
  #allocation0 [shape = 'u32[]', space=smem, size = 0x4, offset = 0x4, fixed_abs, tag = 'smem constant byte address 0x4 - core index']
  #allocation1 [shape = 'u32[144,128]{1,0:T(1,128)}', space=vmem, size = 0x12000, scoped, tag = 'internal scratch']
  #allocation2 [shape = 'f32[1,1]{1,0:T(1,128)S(1)}', space=vmem, size = 0x200, scoped, tag = 'scoped memory for _lambda_.35']
  %s0 = inlined_call_operand.vmem [shape: bf16[2,72,1024], index: 0, kind: input, shape index: {}]
  %s1 = inlined_call_operand.vmem [shape: bf16[1,72], index: 1, kind: input, shape index: {}]
  %s2 = inlined_call_operand.<no memory space> [shape: f32[1,1], index: 2, kind: input, shape index: {}]
  %s3 = inlined_call_operand.vmem [shape: f32[2,1,1024], index: 3, kind: output, shape index: {}]
  %s4 = sld [smem:[#allocation0]]
  $region68: #{_lambda_.35} parent=0
    _
  %s6 = ssub.s32 1, %s4
  %s7 = scalar_select 0, %s6, %s4
  %v8 = vstv %s2
  %9 = vst [vmem:[#allocation2] sm:$0x1] %v8
  $region1: #{_lambda_.35} parent=0
    #allocation3 [shape = 'u8[147456]{0}', space=vmem, size = 0x24000, scoped, tag = 'input window, operand 0']
    loop: start=0, step=1, limit=6
    $region2: #{_lambda_.35} parent=1 // loop_pre_header
      _
    $region3: #{_lambda_.35} parent=1 // loop_header
      %s11 = sphi 0, %s15
      %p12 = scmp.ge.s32.totalorder %s11, 6
      %s18 = sphi 0, %s30
      %s19 = sphi 0, %s26
      %s20 = sphi 0, %s18
      %s21 = sphi 0, %s19
      %s22 = sphi 0, %s20
      %s23 = sphi 0, %s21
      %s35 = sphi 0, %s37
      %s38 = sphi 0, %s35
      %s39 = sphi 0, %s38
      %s55 = sphi 0, %s39
      %s59 = sphi 0, %s59
      %s61 = sphi 0, %s59
      %s62 = sphi 0, %s61
      %s76 = sphi 0, %s62
      %s80 = sphi 0, %s80
      %s82 = sphi 0, %s80
      %s83 = sphi 0, %s82
      %s97 = sphi 0, %s83
      %s105 = sphi 0, %s107
      %s108 = sphi 0, %s105
      %s109 = sphi 0, %s108
      %s125 = sphi 0, %s109
    $region4: #{_lambda_.35} parent=1 // loop_header_branch
      %14 = sbr.rel (%p12) target = $region8
    $region5: #{_lambda_.35} parent=1 // loop_body
      %s16 = ssub.s32 %s11, 1
      %s17 = ssub.s32 %s11, 2
      %s24 = sadd.s32 1, %s19
      %p25 = scmp.ge.s32.totalorder %s24, 2
      %s26 = scalar_select %p25, 0, %s24
      %s27 = sadd.s32 1, %s18
      %s28 = scalar_select %p25, %s27, %s18
      %p29 = scmp.ge.s32.totalorder %s28, 2
      %s30 = scalar_select %p29, 0, %s28
      %s31 = ssub.s32 %s18, %s30
      %s32 = ssub.s32 %s19, %s26
      %s33 = sor.u32 %s31, %s32
      %p34 = scmp.eq.s32.totalorder %s33, 0
      %s36 = sadd.s32 %s35, 1
      %s37 = scalar_select %p34, %s35, %s36
      %p40 = pneg %p34
      %p41 = scmp.eq.s32.totalorder %s11, 3
      %p42 = por %p40, %p41
      %p43 = scmp.ne.s32.totalorder %s35, %s38
      %p44 = scmp.eq.s32.totalorder %s11, 0
      %p45 = por %p43, %p44
      %p46 = scmp.ne.s32.totalorder %s35, %s38
      %p47 = scmp.eq.s32.totalorder %s16, 3
      %p48 = por %p46, %p47
      %p49 = scmp.ne.s32.totalorder %s38, %s39
      %p50 = scmp.eq.s32.totalorder %s16, 0
      %p51 = por %p49, %p50
      %p52 = scmp.ne.s32.totalorder %s38, %s39
      %p53 = scmp.eq.s32.totalorder %s17, 3
      %p54 = por %p52, %p53
      %p56 = scmp.ne.s32.totalorder %s39, %s55
      %p57 = scmp.eq.s32.totalorder %s17, 0
      %p58 = por %p56, %p57
      %s60 = sadd.s32 %s59, 1
      %p63 = scmp.eq.s32.totalorder %s11, 3
      %p64 = scmp.ne.s32.totalorder %s59, %s61
      %p65 = scmp.eq.s32.totalorder %s11, 0
      %p66 = por %p64, %p65
      %p67 = scmp.ne.s32.totalorder %s59, %s61
      %p68 = scmp.eq.s32.totalorder %s16, 3
      %p69 = por %p67, %p68
      %p70 = scmp.ne.s32.totalorder %s61, %s62
      %p71 = scmp.eq.s32.totalorder %s16, 0
      %p72 = por %p70, %p71
      %p73 = scmp.ne.s32.totalorder %s61, %s62
      %p74 = scmp.eq.s32.totalorder %s17, 3
      %p75 = por %p73, %p74
      %p77 = scmp.ne.s32.totalorder %s62, %s76
      %p78 = scmp.eq.s32.totalorder %s17, 0
      %p79 = por %p77, %p78
      %s81 = sadd.s32 %s80, 1
      %p84 = scmp.eq.s32.totalorder %s11, 3
      %p85 = scmp.ne.s32.totalorder %s80, %s82
      %p86 = scmp.eq.s32.totalorder %s11, 0
      %p87 = por %p85, %p86
      %p88 = scmp.ne.s32.totalorder %s80, %s82
      %p89 = scmp.eq.s32.totalorder %s16, 3
      %p90 = por %p88, %p89
      %p91 = scmp.ne.s32.totalorder %s82, %s83
      %p92 = scmp.eq.s32.totalorder %s16, 0
      %p93 = por %p91, %p92
      %p94 = scmp.ne.s32.totalorder %s82, %s83
      %p95 = scmp.eq.s32.totalorder %s17, 3
      %p96 = por %p94, %p95
      %p98 = scmp.ne.s32.totalorder %s83, %s97
      %p99 = scmp.eq.s32.totalorder %s17, 0
      %p100 = por %p98, %p99
      %s101 = ssub.s32 %s18, %s30
      %s102 = ssub.s32 %s19, %s26
      %s103 = sor.u32 %s101, %s102
      %p104 = scmp.eq.s32.totalorder %s103, 0
      %s106 = sadd.s32 %s105, 1
      %s107 = scalar_select %p104, %s105, %s106
      %p110 = pneg %p104
      %p111 = scmp.eq.s32.totalorder %s11, 3
      %p112 = por %p110, %p111
      %p113 = scmp.ne.s32.totalorder %s105, %s108
      %p114 = scmp.eq.s32.totalorder %s11, 0
      %p115 = por %p113, %p114
      %p116 = scmp.ne.s32.totalorder %s105, %s108
      %p117 = scmp.eq.s32.totalorder %s16, 3
      %p118 = por %p116, %p117
      %p119 = scmp.ne.s32.totalorder %s108, %s109
      %p120 = scmp.eq.s32.totalorder %s16, 0
      %p121 = por %p119, %p120
      %p122 = scmp.ne.s32.totalorder %s108, %s109
      %p123 = scmp.eq.s32.totalorder %s17, 3
      %p124 = por %p122, %p123
      %p126 = scmp.ne.s32.totalorder %s109, %s125
      %p127 = scmp.eq.s32.totalorder %s17, 0
      %p128 = por %p126, %p127
      %p129 = scmp.le.s32.totalorder 1, %s11
      %p130 = scmp.lt.s32.totalorder %s11, 5
      %p131 = pnand %p129, %p130
      %p132 = pneg %p131
      // Predicated region
      $region9: #{_lambda_.35} parent=5 // pred_check
        _
      $region10: #{_lambda_.35} parent=5 // pred_check_branch
        %134 = sbr.rel (%p131) target = $region12
      $region11: #{_lambda_.35} parent=5 // pred_region
        %s135 = ssub.s32 %s11, 1
        // Predicated region
        $region13: #{_lambda_.35} parent=11 // pred_check
          %p136 = pneg %p72
        $region14: #{_lambda_.35} parent=11 // pred_check_branch
          %138 = sbr.rel (%p136) target = $region16
        $region15: #{_lambda_.35} parent=11 // pred_region
          _
        $region16: #{_lambda_.35} parent=11 // pred_fallthru
          _
        // Predicated region
        $region17: #{_lambda_.35} parent=11 // pred_check
          %p139 = pneg %p93
        $region18: #{_lambda_.35} parent=11 // pred_check_branch
          %141 = sbr.rel (%p139) target = $region20
        $region19: #{_lambda_.35} parent=11 // pred_region
          _
        $region20: #{_lambda_.35} parent=11 // pred_fallthru
          _
      $region12: #{_lambda_.35} parent=5 // pred_fallthru
        _
      %p142 = scmp.lt.s32.totalorder %s11, 4
      // Predicated region
      $region21: #{_lambda_.35} parent=5 // pred_check
        %p143 = pneg %p142
      $region22: #{_lambda_.35} parent=5 // pred_check_branch
        %145 = sbr.rel (%p143) target = $region24
      $region23: #{_lambda_.35} parent=5 // pred_region
        // Predicated region
        $region25: #{_lambda_.35} parent=23 // pred_check
          %p146 = pneg %p45
        $region26: #{_lambda_.35} parent=23 // pred_check_branch
          %148 = sbr.rel (%p146) target = $region28
        $region27: #{_lambda_.35} parent=23 // pred_region
          %s149 = sand.u32 %s35, 1
          %s150 = sand.u32 %s35, 1
          %s151 = smul.addr %s150, 144
          %s152 = scalar_lea.vmem [#allocation3], %s151
          %s153 = smul.u32 4, %s19
          %s154 = smul.addr %s18, 72
          %s155 = sadd.s32 %s153, %s154
          %s156 = smul.addr %s155, 4
          %s157 = scalar_lea.vmem %s0, %s156
          // Predicated region
          $region29: #{_lambda_.35} parent=27 // pred_check
            _
          $region30: #{_lambda_.35} parent=27 // pred_check_branch
            %159 = sbr.rel (0) target = $region32
          $region31: #{_lambda_.35} parent=27 // pred_region
            // Predicated region
            $region33: #{_lambda_.35} parent=31 // pred_check
              _
            $region34: #{_lambda_.35} parent=31 // pred_check_branch
              %161 = sbr.rel (0) target = $region36
            $region35: #{_lambda_.35} parent=31 // pred_region
              loop: start=0, step=1, limit=1
              $region37: #{_lambda_.35} parent=35 // loop_pre_header
                _
              $region38: #{_lambda_.35} parent=35 // loop_header
                %s163 = sphi 0, %s167
                %p164 = scmp.ge.s32.totalorder %s163, 1
                %s168 = sphi %s157, %s157
                %s169 = sphi %s152, %s152
              $region39: #{_lambda_.35} parent=35 // loop_header_branch
                %166 = sbr.rel (%p164) target = $region43
              $region40: #{_lambda_.35} parent=35 // loop_body
                %v170 = vld [vmem:[%s168] sm:$0xff]
                %171 = vst [vmem:[%s169] sm:$0xff] %v170
                %v172 = vld [vmem:[%s168 + $0x8] sm:$0xff]
                %173 = vst [vmem:[%s169 + $0x8] sm:$0xff] %v172
                %v174 = vld [vmem:[%s168 + $0x20] sm:$0xff]
                %175 = vst [vmem:[%s169 + $0x10] sm:$0xff] %v174
                %v176 = vld [vmem:[%s168 + $0x28] sm:$0xff]
                %177 = vst [vmem:[%s169 + $0x18] sm:$0xff] %v176
                %v178 = vld [vmem:[%s168 + $0x40] sm:$0xff]
                %179 = vst [vmem:[%s169 + $0x20] sm:$0xff] %v178
                %v180 = vld [vmem:[%s168 + $0x48] sm:$0xff]
                %181 = vst [vmem:[%s169 + $0x28] sm:$0xff] %v180
                %v182 = vld [vmem:[%s168 + $0x60] sm:$0xff]
                %183 = vst [vmem:[%s169 + $0x30] sm:$0xff] %v182
                %v184 = vld [vmem:[%s168 + $0x68] sm:$0xff]
                %185 = vst [vmem:[%s169 + $0x38] sm:$0xff] %v184
                %v186 = vld [vmem:[%s168 + $0x80] sm:$0xff]
                %187 = vst [vmem:[%s169 + $0x40] sm:$0xff] %v186
                %v188 = vld [vmem:[%s168 + $0x88] sm:$0xff]
                %189 = vst [vmem:[%s169 + $0x48] sm:$0xff] %v188
                %v190 = vld [vmem:[%s168 + $0xa0] sm:$0xff]
                %191 = vst [vmem:[%s169 + $0x50] sm:$0xff] %v190
                %v192 = vld [vmem:[%s168 + $0xa8] sm:$0xff]
                %193 = vst [vmem:[%s169 + $0x58] sm:$0xff] %v192
                %v194 = vld [vmem:[%s168 + $0xc0] sm:$0xff]
                %195 = vst [vmem:[%s169 + $0x60] sm:$0xff] %v194
                %v196 = vld [vmem:[%s168 + $0xc8] sm:$0xff]
                %197 = vst [vmem:[%s169 + $0x68] sm:$0xff] %v196
                %v198 = vld [vmem:[%s168 + $0xe0] sm:$0xff]
                %199 = vst [vmem:[%s169 + $0x70] sm:$0xff] %v198
                %v200 = vld [vmem:[%s168 + $0xe8] sm:$0xff]
                %201 = vst [vmem:[%s169 + $0x78] sm:$0xff] %v200
                %v202 = vld [vmem:[%s168 + $0x100] sm:$0xff]
                %203 = vst [vmem:[%s169 + $0x80] sm:$0xff] %v202
                %v204 = vld [vmem:[%s168 + $0x108] sm:$0xff]
                %205 = vst [vmem:[%s169 + $0x88] sm:$0xff] %v204
              $region41: #{_lambda_.35} parent=35 // loop_footer
                %s167 = sadd.s32 1, %s163
              $region42: #{_lambda_.35} parent=35 // loop_footer_branch
                %162 = sbr.rel target = $region38
              $region43: #{_lambda_.35} parent=35 // loop_exit
                _
            $region36: #{_lambda_.35} parent=31 // pred_fallthru
              _
            // Predicated region
            $region44: #{_lambda_.35} parent=31 // pred_check
              _
            $region45: #{_lambda_.35} parent=31 // pred_check_branch
              %207 = sbr.rel target = $region47
            $region46: #{_lambda_.35} parent=31 // pred_region
              _
            $region47: #{_lambda_.35} parent=31 // pred_fallthru
              _
          $region32: #{_lambda_.35} parent=27 // pred_fallthru
            _
          %208 = vnop
        $region28: #{_lambda_.35} parent=23 // pred_fallthru
          _
      $region24: #{_lambda_.35} parent=5 // pred_fallthru
        _
      %p209 = scmp.le.s32.totalorder 1, %s11
      %p210 = scmp.lt.s32.totalorder %s11, 5
      %p211 = pnand %p209, %p210
      %p212 = pneg %p211
      // Predicated region
      $region48: #{_lambda_.35} parent=5 // pred_check
        _
      $region49: #{_lambda_.35} parent=5 // pred_check_branch
        %214 = sbr.rel (%p211) target = $region51
      $region50: #{_lambda_.35} parent=5 // pred_region
        %s215 = ssub.s32 %s11, 1
        %s216 = sand.u32 %s38, 1
        %s217 = sand.u32 %s38, 1
        %s218 = smul.addr %s217, 144
        %s219 = scalar_lea.vmem [#allocation3], %s218
        // Predicated region
        $region52: #{_lambda_.35} parent=50 // pred_check
          %p220 = pneg %p51
        $region53: #{_lambda_.35} parent=50 // pred_check_branch
          %222 = sbr.rel (%p220) target = $region55
        $region54: #{_lambda_.35} parent=50 // pred_region
          _
        $region55: #{_lambda_.35} parent=50 // pred_fallthru
          _
        %s223 = sand.u32 %s38, 1
        %s224 = sand.u32 %s38, 1
        %s225 = smul.addr %s224, 144
        %s226 = scalar_lea.vmem [#allocation3], %s225
        %p227 = pneg %p51
        %p228 = pneg %p48
        %p229 = pneg %p72
        %p230 = pneg %p69
        %p231 = pneg %p93
        %p232 = pneg %p90
        %p233 = pneg %p121
        %p234 = pneg %p118
        %s235 = smul.u32 4, %s21
        %p236 = scmp.lt.s32.totalorder %s20, 1
        %s237 = scalar_select %p236, %s20, 1
        %p238 = scmp.lt.s32.totalorder %s235, 7
        %s239 = scalar_select %p238, %s235, 7
        %s240 = smul.addr %s237, 8
        %s241 = sadd.s32 %s239, %s240
        %s242 = scalar_lea.vmem %s3, %s241
        %s243 = smul.u32 4, %s21
        %s244 = smul.u32 4, %s21
        %p245 = scmp.lt.s32.totalorder %s20, 1
        %s246 = scalar_select %p245, %s20, 1
        %p247 = scmp.lt.s32.totalorder %s244, 7
        %s248 = scalar_select %p247, %s244, 7
        %s249 = smul.addr %s246, 8
        %s250 = sadd.s32 %s248, %s249
        %s251 = scalar_lea.vmem %s3, %s250
        %s252 = smul.u32 4, %s21
        %v254 = vld [vmem:[%s1] sm:$0x1]
        %v255 = vld [vmem:[%s219] sm:$0xff]
        %v256 = vld [vmem:[%s219 + $0x8] sm:$0xff]
        %v257 = vld [vmem:[%s219 + $0x10] sm:$0xff]
        %v258 = vld [vmem:[%s219 + $0x18] sm:$0xff]
        %v259 = vld [vmem:[%s219 + $0x20] sm:$0xff]
        %v260 = vld [vmem:[%s219 + $0x28] sm:$0xff]
        %v261 = vld [vmem:[%s219 + $0x30] sm:$0xff]
        %v262 = vld [vmem:[%s219 + $0x38] sm:$0xff]
        %v263 = vld [vmem:[%s219 + $0x40] sm:$0xff]
        %v264 = vld [vmem:[%s219 + $0x48] sm:$0xff]
        %v265 = vld [vmem:[%s219 + $0x50] sm:$0xff]
        %v266 = vld [vmem:[%s219 + $0x58] sm:$0xff]
        %v267 = vld [vmem:[%s219 + $0x60] sm:$0xff]
        %v268 = vld [vmem:[%s219 + $0x68] sm:$0xff]
        %v269 = vld [vmem:[%s219 + $0x70] sm:$0xff]
        %v270 = vld [vmem:[%s219 + $0x78] sm:$0xff]
        %v271 = vld [vmem:[%s219 + $0x80] sm:$0xff]
        %v272 = vld [vmem:[%s219 + $0x88] sm:$0xff]
        %v273 = vld [vmem:[#allocation2] sm:$0x1]
        %275 = vset.pattern.permute.xlu0 0
        %276 = vperm.xlu0 %275, %v273
        %v277 = vpop.permute.xlu0 %276
        %v279 = vlaneseq
        %v280 = vshrl.u32 %v279, 7
        %v281 = vsub.s32 0, %v280
        %v282 = vrot.slane %v277, %v281
        %v301 = vunpack.c.l.b16 %v255
        %v302 = vunpack.c.h.b16 %v255
        %v303 = vunpack.c.l.b16 %v256
        %v304 = vunpack.c.h.b16 %v256
        %v305 = vunpack.c.l.b16 %v257
        %v306 = vunpack.c.h.b16 %v257
        %v307 = vunpack.c.l.b16 %v258
        %v308 = vunpack.c.h.b16 %v258
        %v309 = vunpack.c.l.b16 %v259
        %v310 = vunpack.c.h.b16 %v259
        %v311 = vunpack.c.l.b16 %v260
        %v312 = vunpack.c.h.b16 %v260
        %v313 = vunpack.c.l.b16 %v261
        %v314 = vunpack.c.h.b16 %v261
        %v315 = vunpack.c.l.b16 %v262
        %v316 = vunpack.c.h.b16 %v262
        %v317 = vunpack.c.l.b16 %v263
        %v318 = vunpack.c.h.b16 %v263
        %v319 = vunpack.c.l.b16 %v264
        %v320 = vunpack.c.h.b16 %v264
        %v321 = vunpack.c.l.b16 %v265
        %v322 = vunpack.c.h.b16 %v265
        %v323 = vunpack.c.l.b16 %v266
        %v324 = vunpack.c.h.b16 %v266
        %v325 = vunpack.c.l.b16 %v267
        %v326 = vunpack.c.h.b16 %v267
        %v327 = vunpack.c.l.b16 %v268
        %v328 = vunpack.c.h.b16 %v268
        %v329 = vunpack.c.l.b16 %v269
        %v330 = vunpack.c.h.b16 %v269
        %v331 = vunpack.c.l.b16 %v270
        %v332 = vunpack.c.h.b16 %v270
        %v333 = vunpack.c.l.b16 %v271
        %v334 = vunpack.c.h.b16 %v271
        %v335 = vunpack.c.l.b16 %v272
        %v336 = vunpack.c.h.b16 %v272
        %v337 = vpack.c.b16 %v305, %v301
        %v338 = vpack.c.b16 %v306, %v302
        %v339 = vpack.c.b16 %v307, %v303
        %v340 = vpack.c.b16 %v308, %v304
        %v341 = vpack.c.b16 %v313, %v309
        %v342 = vpack.c.b16 %v314, %v310
        %v343 = vpack.c.b16 %v315, %v311
        %v344 = vpack.c.b16 %v316, %v312
        %v345 = vpack.c.b16 %v321, %v317
        %v346 = vpack.c.b16 %v322, %v318
        %v347 = vpack.c.b16 %v323, %v319
        %v348 = vpack.c.b16 %v324, %v320
        %v349 = vpack.c.b16 %v329, %v325
        %v350 = vpack.c.b16 %v330, %v326
        %v351 = vpack.c.b16 %v331, %v327
        %v352 = vpack.c.b16 %v332, %v328
        %v353 = vpack.c.b16 %v333, %v333
        %v354 = vpack.c.b16 %v334, %v334
        %v355 = vpack.c.b16 %v335, %v335
        %v356 = vpack.c.b16 %v336, %v336
        %vm373 = vcmask 588800
        %v375 = vsel %vm373, %v254, 0
        %vm377 = vcmask 1043456
        %v379 = vsel %vm377, %v353, 0
        %v382 = vsel %vm377, %v354, 0
        %v385 = vsel %vm377, %v355, 0
        %v388 = vsel %vm377, %v356, 0
        %390 = vmatprep.subr.bf16.mxu0 %v338
        %391 = vmatpush1.bf16.msra.mxu0 %v337
        %392 = vmatprep.subr.bf16.mxu0 %v342
        %393 = vmatpush1.bf16.msra.mxu0 %v341
        %394 = vmatprep.subr.bf16.mxu0 %v346
        %395 = vmatpush1.bf16.msra.mxu0 %v345
        %396 = vmatprep.subr.bf16.mxu0 %v350
        %397 = vmatpush1.bf16.msra.mxu0 %v349
        %398 = vmatprep.subr.bf16.mxu0 %v382
        %399 = vmatpush1.bf16.msra.mxu0 %v379
        %400 = vmatprep.subr.bf16.mxu0 0
        %401 = vmatpush1.bf16.msra.mxu0 0
        %402 = vmatprep.subr.bf16.mxu0 0
        %403 = vmatpush1.bf16.msra.mxu0 0
        %404 = vmatprep.subr.bf16.mxu0 0
        %405 = vmatpush1.bf16.msra.mxu0 0
        %406 = vmatprep.subr.bf16.mxu0 0
        %407 = vmatpush1.bf16.msra.mxu0 0
        %408 = vmatprep.subr.bf16.mxu0 0
        %409 = vmatpush1.bf16.msra.mxu0 0
        %410 = vmatprep.subr.bf16.mxu0 0
        %411 = vmatpush1.bf16.msra.mxu0 0
        %412 = vmatprep.subr.bf16.mxu0 0
        %413 = vmatpush1.bf16.msra.mxu0 0
        %414 = vmatprep.subr.bf16.mxu0 0
        %415 = vmatpush1.bf16.msra.mxu0 0
        %416 = vmatprep.subr.bf16.mxu0 0
        %417 = vmatpush1.bf16.msra.mxu0 0
        %418 = vmatprep.subr.bf16.mxu0 0
        %419 = vmatpush1.bf16.msra.mxu0 0
        %420 = vmatprep.subr.bf16.mxu0 0
        %421 = vmatpush1.bf16.msra.mxu0 0
        %422 = vmatprep.mubr.bf16.mxu0 0
        %423 = vmatmul.mubr.bf16.gmra.mrb[0].mxu0 %v375
        %v424 = vpop.f32.mrb[0].mxu0
        %v425 = vadd.f32 %v282, %v424
        %v426 = vpop.f32.mrb[0].mxu0
        %v427 = vadd.f32 %v282, %v426
        %v428 = vpop.f32.mrb[0].mxu0
        %v429 = vpop.f32.mrb[0].mxu0
        %430 = vdwg.mxu0
        %431 = vmatprep.subr.bf16.mxu0 %v340
        %432 = vmatpush1.bf16.msra.mxu0 %v339
        %433 = vmatprep.subr.bf16.mxu0 %v344
        %434 = vmatpush1.bf16.msra.mxu0 %v343
        %435 = vmatprep.subr.bf16.mxu0 %v348
        %436 = vmatpush1.bf16.msra.mxu0 %v347
        %437 = vmatprep.subr.bf16.mxu0 %v352
        %438 = vmatpush1.bf16.msra.mxu0 %v351
        %439 = vmatprep.subr.bf16.mxu0 %v388
        %440 = vmatpush1.bf16.msra.mxu0 %v385
        %441 = vmatprep.subr.bf16.mxu0 0
        %442 = vmatpush1.bf16.msra.mxu0 0
        %443 = vmatprep.subr.bf16.mxu0 0
        %444 = vmatpush1.bf16.msra.mxu0 0
        %445 = vmatprep.subr.bf16.mxu0 0
        %446 = vmatpush1.bf16.msra.mxu0 0
        %447 = vmatprep.subr.bf16.mxu0 0
        %448 = vmatpush1.bf16.msra.mxu0 0
        %449 = vmatprep.subr.bf16.mxu0 0
        %450 = vmatpush1.bf16.msra.mxu0 0
        %451 = vmatprep.subr.bf16.mxu0 0
        %452 = vmatpush1.bf16.msra.mxu0 0
        %453 = vmatprep.subr.bf16.mxu0 0
        %454 = vmatpush1.bf16.msra.mxu0 0
        %455 = vmatprep.subr.bf16.mxu0 0
        %456 = vmatpush1.bf16.msra.mxu0 0
        %457 = vmatprep.subr.bf16.mxu0 0
        %458 = vmatpush1.bf16.msra.mxu0 0
        %459 = vmatprep.subr.bf16.mxu0 0
        %460 = vmatpush1.bf16.msra.mxu0 0
        %461 = vmatprep.subr.bf16.mxu0 0
        %462 = vmatpush1.bf16.msra.mxu0 0
        %463 = vmatprep.mubr.bf16.mxu0 0
        %464 = vmatmul.mubr.bf16.gmra.mrb[0].mxu0 %v375
        %v465 = vpop.f32.mrb[0].mxu0
        %v466 = vadd.f32 %v282, %v465
        %v467 = vpop.f32.mrb[0].mxu0
        %v468 = vadd.f32 %v282, %v467
        %v469 = vpop.f32.mrb[0].mxu0
        %v470 = vpop.f32.mrb[0].mxu0
        %471 = vdwg.mxu0
        %v476 = vcombine.low %v425, %v427
        %v477 = vcombine.low %v466, %v468
        %v479 = vunpack.c.l.s4 1966171168
        %v480 = vunpack.c.0.s8 %v479
        %v481 = vlaneseq
        %v482 = vshrl.u32 %v481, 7
        %v483 = vsub.s32 %v480, %v482
        %v484 = vrot.slane %v476, %v483
        %v486 = vunpack.c.l.s4 1966171168
        %v487 = vunpack.c.0.s8 %v486
        %v488 = vlaneseq
        %v489 = vshrl.u32 %v488, 7
        %v490 = vsub.s32 %v487, %v489
        %v491 = vrot.slane %v477, %v490
        %v492 = vcombine.low %v484, %v491
        %v494 = vunpack.c.l.s4 1966171168
        %v495 = vunpack.c.0.s8 %v494
        %v496 = vlaneseq
        %v497 = vshrl.u32 %v496, 7
        %v498 = vsub.s32 %v495, %v497
        %v499 = vrot.slane %v492, %v498
        %v501 = vlaneseq
        %vm502 = vcmp.ge.s32.totalorder %v501, 0
        %vm503 = vcmp.lt.s32.totalorder %v501, 512
        %vm504 = vmand %vm502, %vm503
        %505 = vst.msk [vmem:[%s251] sm:$0xf] %vm504, %v499
        %s506 = smul.u32 4, %s21
        %p507 = scmp.lt.s32.totalorder %s20, 1
        %s508 = scalar_select %p507, %s20, 1
        %p509 = scmp.lt.s32.totalorder %s506, 7
        %s510 = scalar_select %p509, %s506, 7
        %s511 = smul.addr %s508, 8
        %s512 = sadd.s32 %s510, %s511
        %s513 = scalar_lea.vmem %s3, %s512
        // Predicated region
        $region56: #{_lambda_.35} parent=50 // pred_check
          %p514 = pneg %p118
        $region57: #{_lambda_.35} parent=50 // pred_check_branch
          %516 = sbr.rel (%p514) target = $region59
        $region58: #{_lambda_.35} parent=50 // pred_region
          %s517 = smul.u32 4, %s21
        $region59: #{_lambda_.35} parent=50 // pred_fallthru
          _
      $region51: #{_lambda_.35} parent=5 // pred_fallthru
        _
      %p518 = scmp.le.s32.totalorder 2, %s11
      // Predicated region
      $region60: #{_lambda_.35} parent=5 // pred_check
        %p519 = pneg %p518
      $region61: #{_lambda_.35} parent=5 // pred_check_branch
        %521 = sbr.rel (%p519) target = $region63
      $region62: #{_lambda_.35} parent=5 // pred_region
        %s522 = ssub.s32 %s11, 2
        // Predicated region
        $region64: #{_lambda_.35} parent=62 // pred_check
          %p523 = pneg %p124
        $region65: #{_lambda_.35} parent=62 // pred_check_branch
          %525 = sbr.rel (%p523) target = $region67
        $region66: #{_lambda_.35} parent=62 // pred_region
          %s526 = smul.u32 4, %s23
          %p527 = scmp.lt.s32.totalorder %s22, 1
          %s528 = scalar_select %p527, %s22, 1
          %p529 = scmp.lt.s32.totalorder %s526, 7
          %s530 = scalar_select %p529, %s526, 7
          %s531 = smul.addr %s528, 8
          %s532 = sadd.s32 %s530, %s531
          %s533 = scalar_lea.vmem %s3, %s532
        $region67: #{_lambda_.35} parent=62 // pred_fallthru
          _
      $region63: #{_lambda_.35} parent=5 // pred_fallthru
        _
    $region6: #{_lambda_.35} parent=1 // loop_footer
      %s15 = sadd.s32 1, %s11
    $region7: #{_lambda_.35} parent=1 // loop_footer_branch
      %10 = sbr.rel target = $region3
    $region8: #{_lambda_.35} parent=1 // loop_exit
      _

</llo_original>
